<compile_context>
chip_gen: v7x
topology: tpu7x:2x2x1
jax: 0.10.0
libtpu: 0.0.40
codegen_flags: <defaults>
</compile_context>

<pallas_src>
import math
import jax
import jax.numpy as jnp
from jax import lax
from jax.experimental import pallas as pl
from jax.experimental.pallas import tpu as pltpu

# ----------------------------- config (small, MBart-like) -----------------------------
D_MODEL = 32
N_HEADS = 4
HEAD_DIM = D_MODEL // N_HEADS
FFN_DIM = 64
VOCAB = 64            # text vocab (shared embedding / lm_head)
GLOSS_VOCAB = 48      # gloss vocab
N_ENC_LAYERS = 2
N_DEC_LAYERS = 2
PAD_INDEX = 1
LABEL_SMOOTHING = 0.1
EMBED_SCALE = math.sqrt(D_MODEL)   # input_embed_scale = sqrt(d_model); MBart scale_embedding
LN_EPS = 1e-5
NEG_INF = -1e9
MAX_POS = 66          # learned positional embedding table (offset 2, MBart-style)
LANE = 128            # lane width; also the padded lm_head / logits width


# ----------------------- static packing layouts (shared by packer & kernel) -----------------------
def _w32_layout():
    """Contraction-dim-32 weights; each weight gets one 128-lane column tile."""
    items = []
    for l in range(N_ENC_LAYERS):
        items += [(f"enc{l}_wqkv", 3 * D_MODEL), (f"enc{l}_wo", D_MODEL),
                  (f"enc{l}_fc1", FFN_DIM)]
    for l in range(N_DEC_LAYERS):
        items += [(f"dec{l}_sa_wqkv", 3 * D_MODEL), (f"dec{l}_sa_wo", D_MODEL),
                  (f"dec{l}_ca_wq", D_MODEL), (f"dec{l}_ca_wkv", 2 * D_MODEL),
                  (f"dec{l}_ca_wo", D_MODEL), (f"dec{l}_fc1", FFN_DIM)]
    items += [("lm_head", LANE)]
    layout = {name: (i * LANE, w) for i, (name, w) in enumerate(items)}
    return layout, len(items) * LANE


def _w64_layout():
    """Contraction-dim-64 weights (fc2); one 128-lane column tile each."""
    items = [(f"enc{l}_fc2", D_MODEL) for l in range(N_ENC_LAYERS)]
    items += [(f"dec{l}_fc2", D_MODEL) for l in range(N_DEC_LAYERS)]
    layout = {name: (i * LANE, w) for i, (name, w) in enumerate(items)}
    return layout, len(items) * LANE


def _vec_layout():
    """All (1, width) vectors (LN g/b, biases, final_logits_bias): one sublane row each."""
    items = [
        ("enc_ln_emb_g", D_MODEL), ("enc_ln_emb_b", D_MODEL),
        ("enc_final_g", D_MODEL), ("enc_final_b", D_MODEL),
        ("dec_ln_emb_g", D_MODEL), ("dec_ln_emb_b", D_MODEL),
        ("dec_final_g", D_MODEL), ("dec_final_b", D_MODEL),
        ("final_logits_bias", LANE),
    ]
    for l in range(N_ENC_LAYERS):
        items += [(f"enc{l}_ln1_g", D_MODEL), (f"enc{l}_ln1_b", D_MODEL),
                  (f"enc{l}_bqkv", 3 * D_MODEL), (f"enc{l}_bo", D_MODEL),
                  (f"enc{l}_ln2_g", D_MODEL), (f"enc{l}_ln2_b", D_MODEL),
                  (f"enc{l}_fc1_b", FFN_DIM), (f"enc{l}_fc2_b", D_MODEL)]
    for l in range(N_DEC_LAYERS):
        items += [(f"dec{l}_ln1_g", D_MODEL), (f"dec{l}_ln1_b", D_MODEL),
                  (f"dec{l}_sa_bqkv", 3 * D_MODEL), (f"dec{l}_sa_bo", D_MODEL),
                  (f"dec{l}_ln2_g", D_MODEL), (f"dec{l}_ln2_b", D_MODEL),
                  (f"dec{l}_ca_bq", D_MODEL), (f"dec{l}_ca_bkv", 2 * D_MODEL),
                  (f"dec{l}_ca_bo", D_MODEL),
                  (f"dec{l}_ln3_g", D_MODEL), (f"dec{l}_ln3_b", D_MODEL),
                  (f"dec{l}_fc1_b", FFN_DIM), (f"dec{l}_fc2_b", D_MODEL)]
    layout = {name: (i, w) for i, (name, w) in enumerate(items)}
    rows = ((len(items) + 7) // 8) * 8
    return layout, rows


W32_LAYOUT, W32_COLS = _w32_layout()
W64_LAYOUT, W64_COLS = _w64_layout()
VEC_LAYOUT, VEC_ROWS = _vec_layout()


# ----------------------------------- fused kernel --------------------------------------
def _build_fused_kernel(S, T):
    """Per-batch-element (grid step) encoder + decoder + lm_head + log_softmax + Xent."""
    fill = LABEL_SMOOTHING / (VOCAB - 2)
    conf = 1.0 - LABEL_SMOOTHING
    log_fill = math.log(fill)
    log_conf = math.log(conf)

    def kernel(enc_h0_ref, dec_h0_ref, am_ref, tgt_ref, w32_ref, w64_ref, vec_ref,
               logits_ref, loss_ref):
        # ------------------ packed-parameter accessors (static slices) ------------------
        def W32(name):
            off, width = W32_LAYOUT[name]
            return w32_ref[:, off:off + width]          # bf16 (32, width)

        def W64(name):
            off, width = W64_LAYOUT[name]
            return w64_ref[:, off:off + width]          # bf16 (64, width)

        def V(name):
            row, width = VEC_LAYOUT[name]
            return vec_ref[row:row + 1, :width]         # f32 (1, width)

        # ------------------------------ building blocks ------------------------------
        def layernorm(x, g, b):
            mu = jnp.mean(x, axis=-1, keepdims=True)
            var = jnp.mean((x - mu) ** 2, axis=-1, keepdims=True)
            return (x - mu) * lax.rsqrt(var + LN_EPS) * g + b

        def linear(x, w, b):
            # bf16 MXU inputs (weights are pre-cast in the slab), f32 accumulation.
            y = lax.dot_general(x.astype(jnp.bfloat16), w,
                                (((1,), (0,)), ((), ())),
                                preferred_element_type=jnp.float32)
            return y + b

        def gelu(x):
            # TODO(synk): HF MBart uses exact (erf) GELU; tanh approximation used here.
            return jax.nn.gelu(x, approximate=True)

        def split_heads(x):
            # (Sx, D) -> (H, Sx, HEAD_DIM) bf16; static lane slices + stack (no transposes).
            return jnp.stack(
                [x[:, h * HEAD_DIM:(h + 1) * HEAD_DIM] for h in range(N_HEADS)],
                axis=0).astype(jnp.bfloat16)

        def attention(q, k, v, mask_add):
            # One batched score dot, one fused softmax, one batched context dot.
            # 1/sqrt(HEAD_DIM) is folded into the q projection weights at pack time.
            qh, kh, vh = split_heads(q), split_heads(k), split_heads(v)
            s = lax.dot_general(qh, kh, (((2,), (2,)), ((0,), (0,))),
                                preferred_element_type=jnp.float32)       # (H, Sq, Sk)
            s = s + mask_add
            m = jnp.max(s, axis=-1, keepdims=True)
            e = jnp.exp(s - m)
            p = e * pl.reciprocal(jnp.sum(e, axis=-1, keepdims=True), approx=True)
            ctx = lax.dot_general(p.astype(jnp.bfloat16), vh,
                                  (((2,), (1,)), ((0,), (0,))),
                                  preferred_element_type=jnp.float32)     # (H, Sq, Hd)
            return jnp.concatenate([ctx[h] for h in range(N_HEADS)], axis=-1)  # (Sq, D)

        # ---------------- masks: built ONCE per grid step (hoisted broadcasts) ----------------
        pad_add = (1.0 - am_ref[...]) * NEG_INF                 # (1, 1, S) additive key-pad
        row_i = lax.broadcasted_iota(jnp.int32, (1, T, T), 1)
        col_i = lax.broadcasted_iota(jnp.int32, (1, T, T), 2)
        causal_add = jnp.where(row_i >= col_i, 0.0, NEG_INF)    # (1, T, T)

        # ----------------------------------- encoder -----------------------------------
        h = layernorm(enc_h0_ref[0], V("enc_ln_emb_g"), V("enc_ln_emb_b"))   # (S, D)
        for l in range(N_ENC_LAYERS):
            res = h
            x = layernorm(h, V(f"enc{l}_ln1_g"), V(f"enc{l}_ln1_b"))
            qkv = linear(x, W32(f"enc{l}_wqkv"), V(f"enc{l}_bqkv"))          # (S, 3D)
            ctx = attention(qkv[:, :D_MODEL], qkv[:, D_MODEL:2 * D_MODEL],
                            qkv[:, 2 * D_MODEL:], pad_add)
            h = res + linear(ctx, W32(f"enc{l}_wo"), V(f"enc{l}_bo"))

            res = h
            x = layernorm(h, V(f"enc{l}_ln2_g"), V(f"enc{l}_ln2_b"))
            x = gelu(linear(x, W32(f"enc{l}_fc1"), V(f"enc{l}_fc1_b")))
            h = res + linear(x, W64(f"enc{l}_fc2"), V(f"enc{l}_fc2_b"))
        enc_out = layernorm(h, V("enc_final_g"), V("enc_final_b"))            # (S, D)

        # ----------------------------------- decoder -----------------------------------
        h = layernorm(dec_h0_ref[0], V("dec_ln_emb_g"), V("dec_ln_emb_b"))    # (T, D)
        for l in range(N_DEC_LAYERS):
            # masked self-attention
            res = h
            x = layernorm(h, V(f"dec{l}_ln1_g"), V(f"dec{l}_ln1_b"))
            qkv = linear(x, W32(f"dec{l}_sa_wqkv"), V(f"dec{l}_sa_bqkv"))
            ctx = attention(qkv[:, :D_MODEL], qkv[:, D_MODEL:2 * D_MODEL],
                            qkv[:, 2 * D_MODEL:], causal_add)
            h = res + linear(ctx, W32(f"dec{l}_sa_wo"), V(f"dec{l}_sa_bo"))

            # cross-attention over encoder output
            res = h
            x = layernorm(h, V(f"dec{l}_ln2_g"), V(f"dec{l}_ln2_b"))
            q = linear(x, W32(f"dec{l}_ca_wq"), V(f"dec{l}_ca_bq"))
            kv = linear(enc_out, W32(f"dec{l}_ca_wkv"), V(f"dec{l}_ca_bkv"))  # (S, 2D)
            ctx = attention(q, kv[:, :D_MODEL], kv[:, D_MODEL:], pad_add)
            h = res + linear(ctx, W32(f"dec{l}_ca_wo"), V(f"dec{l}_ca_bo"))

            # feed-forward
            res = h
            x = layernorm(h, V(f"dec{l}_ln3_g"), V(f"dec{l}_ln3_b"))
            x = gelu(linear(x, W32(f"dec{l}_fc1"), V(f"dec{l}_fc1_b")))
            h = res + linear(x, W64(f"dec{l}_fc2"), V(f"dec{l}_fc2_b"))
        dec_out = layernorm(h, V("dec_final_g"), V("dec_final_b"))            # (T, D)

        # ---- lm_head (lane-dense, 128-wide) + log_softmax + label-smoothed Xent (sum) ----
        # Padded vocab columns have weight 0 and bias NEG_INF -> vanish from the softmax.
        logits = lax.dot_general(dec_out.astype(jnp.bfloat16), W32("lm_head"),
                                 (((1,), (0,)), ((), ())),
                                 preferred_element_type=jnp.float32) + V("final_logits_bias")
        logits_ref[0] = logits                                               # dense (T,128) store

        mx = jnp.max(logits, axis=-1, keepdims=True)
        sh = logits - mx
        logp = sh - jnp.log(jnp.sum(jnp.exp(sh), axis=-1, keepdims=True))

        # KLDiv(reduction='sum') against signjoey-style smoothed targets.
        tgt = tgt_ref[0]                                                     # (T, 1) int32
        iota = lax.broadcasted_iota(jnp.int32, (T, LANE), 1)
        is_t = iota == tgt
        dist = jnp.where(is_t, conf, fill)
        logdist = jnp.where(is_t, log_conf, log_fill)
        contrib = dist * (logdist - logp)
        valid_col = jnp.logical_and(iota != PAD_INDEX, iota < VOCAB)         # drop pad col + vocab pad
        contrib = jnp.where(valid_col, contrib, 0.0)
        contrib = jnp.where(tgt == PAD_INDEX, 0.0, contrib)                  # zero padded target rows
        loss_ref[...] = jnp.sum(contrib).reshape(1, 1, 1)

    return kernel


# --------------------------------------- glue -------------------------------------------
def shift_tokens_right(input_ids, pad_token_id):
    # MBart-style shift: last non-pad token becomes decoder start token.
    # TODO(synk): does not handle -100 ignore-index labels (HF replaces with pad first).
    idx_eos = jnp.sum(input_ids != pad_token_id, axis=1) - 1
    decoder_start = jnp.take_along_axis(input_ids, idx_eos[:, None], axis=1)[:, 0]
    prev = jnp.zeros_like(input_ids)
    prev = prev.at[:, 1:].set(input_ids[:, :-1])
    prev = prev.at[:, 0].set(decoder_start)
    return prev


def translation_network_forward(packed, input_ids, attention_mask, labels):
    """input_type='gloss' path of TranslationNetwork.forward (fused single pallas_call)."""
    B, S = input_ids.shape
    T = labels.shape[1]

    # prepare_gloss_inputs: embedding gather (padding row is zero) * embed_scale,
    # plus MBart offset-2 learned positions.
    enc_embeds = jnp.take(packed["gloss_emb"], input_ids, axis=0) * EMBED_SCALE
    enc_h0 = enc_embeds + packed["enc_pos"][2:2 + S][None]                   # (B, S, D)

    dec_ids = shift_tokens_right(labels, PAD_INDEX)
    dec_embeds = jnp.take(packed["shared_emb"], dec_ids, axis=0) * EMBED_SCALE
    dec_h0 = dec_embeds + packed["dec_pos"][2:2 + T][None]                   # (B, T, D)

    am = attention_mask.astype(jnp.float32).reshape(B, 1, S)
    tgt = labels.astype(jnp.int32).reshape(B, T, 1)

    kernel = _build_fused_kernel(S, T)
    logits_pad, loss_parts = pl.pallas_call(
        kernel,
        out_shape=(jax.ShapeDtypeStruct((B, T, LANE), jnp.float32),
                   jax.ShapeDtypeStruct((B, 1, 1), jnp.float32)),
        grid=(B,),
        in_specs=[
            pl.BlockSpec((1, S, D_MODEL), lambda b: (b, 0, 0)),
            pl.BlockSpec((1, T, D_MODEL), lambda b: (b, 0, 0)),
            pl.BlockSpec((1, 1, S), lambda b: (b, 0, 0)),
            pl.BlockSpec((1, T, 1), lambda b: (b, 0, 0)),
            pl.BlockSpec((D_MODEL, W32_COLS), lambda b: (0, 0)),   # weights stay resident
            pl.BlockSpec((FFN_DIM, W64_COLS), lambda b: (0, 0)),
            pl.BlockSpec((VEC_ROWS, LANE), lambda b: (0, 0)),
        ],
        out_specs=(
            pl.BlockSpec((1, T, LANE), lambda b: (b, 0, 0)),
            pl.BlockSpec((1, 1, 1), lambda b: (b, 0, 0)),
        ),
        compiler_params=pltpu.CompilerParams(dimension_semantics=("parallel",)),
    )(enc_h0, dec_h0, am, tgt, packed["w32"], packed["w64"], packed["vecs"])

    return {
        "logits": logits_pad[:, :, :VOCAB],
        "translation_loss": jnp.sum(loss_parts) / B,
    }


# ------------------------------------ param init & packing ---------------------------------------
def init_params(key):
    keys = iter(jax.random.split(key, 64))

    def w(shape, scale=0.02):
        return scale * jax.random.normal(next(keys), shape, dtype=jnp.float32)

    def zeros(shape):
        return jnp.zeros(shape, jnp.float32)

    def ones(shape):
        return jnp.ones(shape, jnp.float32)

    LE, LD = N_ENC_LAYERS, N_DEC_LAYERS
    gloss_emb = w((GLOSS_VOCAB, D_MODEL)).at[PAD_INDEX].set(0.0)   # padding_idx
    shared_emb = w((VOCAB, D_MODEL))

    enc_layers = {
        "ln1_g": ones((LE, 1, D_MODEL)), "ln1_b": zeros((LE, 1, D_MODEL)),
        "wqkv": w((LE, D_MODEL, 3 * D_MODEL)), "bqkv": zeros((LE, 1, 3 * D_MODEL)),
        "wo": w((LE, D_MODEL, D_MODEL)), "bo": zeros((LE, 1, D_MODEL)),
        "ln2_g": ones((LE, 1, D_MODEL)), "ln2_b": zeros((LE, 1, D_MODEL)),
        "fc1_w": w((LE, D_MODEL, FFN_DIM)), "fc1_b": zeros((LE, 1, FFN_DIM)),
        "fc2_w": w((LE, FFN_DIM, D_MODEL)), "fc2_b": zeros((LE, 1, D_MODEL)),
    }
    dec_layers = {
        "ln1_g": ones((LD, 1, D_MODEL)), "ln1_b": zeros((LD, 1, D_MODEL)),
        "sa_wqkv": w((LD, D_MODEL, 3 * D_MODEL)), "sa_bqkv": zeros((LD, 1, 3 * D_MODEL)),
        "sa_wo": w((LD, D_MODEL, D_MODEL)), "sa_bo": zeros((LD, 1, D_MODEL)),
        "ln2_g": ones((LD, 1, D_MODEL)), "ln2_b": zeros((LD, 1, D_MODEL)),
        "ca_wq": w((LD, D_MODEL, D_MODEL)), "ca_bq": zeros((LD, 1, D_MODEL)),
        "ca_wkv": w((LD, D_MODEL, 2 * D_MODEL)), "ca_bkv": zeros((LD, 1, 2 * D_MODEL)),
        "ca_wo": w((LD, D_MODEL, D_MODEL)), "ca_bo": zeros((LD, 1, D_MODEL)),
        "ln3_g": ones((LD, 1, D_MODEL)), "ln3_b": zeros((LD, 1, D_MODEL)),
        "fc1_w": w((LD, D_MODEL, FFN_DIM)), "fc1_b": zeros((LD, 1, FFN_DIM)),
        "fc2_w": w((LD, FFN_DIM, D_MODEL)), "fc2_b": zeros((LD, 1, D_MODEL)),
    }

    return {
        "gloss_emb": gloss_emb,
        "shared_emb": shared_emb,
        "enc_pos": w((MAX_POS, D_MODEL)),
        "dec_pos": w((MAX_POS, D_MODEL)),
        "final_logits_bias": zeros((1, VOCAB)),
        "enc_ln_emb_g": ones((1, D_MODEL)), "enc_ln_emb_b": zeros((1, D_MODEL)),
        "enc_final_g": ones((1, D_MODEL)), "enc_final_b": zeros((1, D_MODEL)),
        "dec_ln_emb_g": ones((1, D_MODEL)), "dec_ln_emb_b": zeros((1, D_MODEL)),
        "dec_final_g": ones((1, D_MODEL)), "dec_final_b": zeros((1, D_MODEL)),
        "enc_layers": enc_layers,
        "dec_layers": dec_layers,
    }


def pack_params(params):
    """One-time (outside jit) packing of per-layer weights into 3 kernel slabs.

    * W32 / W64 slabs are pre-cast to bf16 (halved DMA bytes, no in-kernel weight casts).
    * 1/sqrt(HEAD_DIM) is folded into q projection weights & biases.
    * lm_head (tied shared_emb^T) is padded to 128 lanes; final_logits_bias rows beyond
      VOCAB are set to NEG_INF so the padded columns vanish from log_softmax.
    """
    scale = 1.0 / math.sqrt(HEAD_DIM)
    ep, dp = params["enc_layers"], params["dec_layers"]

    def fold_q(a):  # scale the q block of a fused qkv weight/bias
        return a.at[..., :D_MODEL].multiply(scale)

    # ---- W32 ----
    w32_entries = {}
    for l in range(N_ENC_LAYERS):
        w32_entries[f"enc{l}_wqkv"] = fold_q(ep["wqkv"][l])
        w32_entries[f"enc{l}_wo"] = ep["wo"][l]
        w32_entries[f"enc{l}_fc1"] = ep["fc1_w"][l]
    for l in range(N_DEC_LAYERS):
        w32_entries[f"dec{l}_sa_wqkv"] = fold_q(dp["sa_wqkv"][l])
        w32_entries[f"dec{l}_sa_wo"] = dp["sa_wo"][l]
        w32_entries[f"dec{l}_ca_wq"] = dp["ca_wq"][l] * scale
        w32_entries[f"dec{l}_ca_wkv"] = dp["ca_wkv"][l]
        w32_entries[f"dec{l}_ca_wo"] = dp["ca_wo"][l]
        w32_entries[f"dec{l}_fc1"] = dp["fc1_w"][l]
    w32_entries["lm_head"] = jnp.transpose(params["shared_emb"])   # tied lm_head (D, VOCAB)

    w32 = jnp.zeros((D_MODEL, W32_COLS), jnp.float32)
    for name, (off, _) in W32_LAYOUT.items():
        ent = w32_entries[name]
        w32 = w32.at[:, off:off + ent.shape[1]].set(ent)
    w32 = w32.astype(jnp.bfloat16)

    # ---- W64 ----
    w64_entries = {}
    for l in range(N_ENC_LAYERS):
        w64_entries[f"enc{l}_fc2"] = ep["fc2_w"][l]
    for l in range(N_DEC_LAYERS):
        w64_entries[f"dec{l}_fc2"] = dp["fc2_w"][l]
    w64 = jnp.zeros((FFN_DIM, W64_COLS), jnp.float32)
    for name, (off, _) in W64_LAYOUT.items():
        ent = w64_entries[name]
        w64 = w64.at[:, off:off + ent.shape[1]].set(ent)
    w64 = w64.astype(jnp.bfloat16)

    # ---- VECS ----
    vec_entries = {
        "enc_ln_emb_g": params["enc_ln_emb_g"], "enc_ln_emb_b": params["enc_ln_emb_b"],
        "enc_final_g": params["enc_final_g"], "enc_final_b": params["enc_final_b"],
        "dec_ln_emb_g": params["dec_ln_emb_g"], "dec_ln_emb_b": params["dec_ln_emb_b"],
        "dec_final_g": params["dec_final_g"], "dec_final_b": params["dec_final_b"],
        "final_logits_bias": jnp.full((1, LANE), NEG_INF, jnp.float32)
                               .at[:, :VOCAB].set(params["final_logits_bias"]),
    }
    for l in range(N_ENC_LAYERS):
        vec_entries[f"enc{l}_ln1_g"] = ep["ln1_g"][l]
        vec_entries[f"enc{l}_ln1_b"] = ep["ln1_b"][l]
        vec_entries[f"enc{l}_bqkv"] = fold_q(ep["bqkv"][l])
        vec_entries[f"enc{l}_bo"] = ep["bo"][l]
        vec_entries[f"enc{l}_ln2_g"] = ep["ln2_g"][l]
        vec_entries[f"enc{l}_ln2_b"] = ep["ln2_b"][l]
        vec_entries[f"enc{l}_fc1_b"] = ep["fc1_b"][l]
        vec_entries[f"enc{l}_fc2_b"] = ep["fc2_b"][l]
    for l in range(N_DEC_LAYERS):
        vec_entries[f"dec{l}_ln1_g"] = dp["ln1_g"][l]
        vec_entries[f"dec{l}_ln1_b"] = dp["ln1_b"][l]
        vec_entries[f"dec{l}_sa_bqkv"] = fold_q(dp["sa_bqkv"][l])
        vec_entries[f"dec{l}_sa_bo"] = dp["sa_bo"][l]
        vec_entries[f"dec{l}_ln2_g"] = dp["ln2_g"][l]
        vec_entries[f"dec{l}_ln2_b"] = dp["ln2_b"][l]
        vec_entries[f"dec{l}_ca_bq"] = dp["ca_bq"][l] * scale
        vec_entries[f"dec{l}_ca_bkv"] = dp["ca_bkv"][l]
        vec_entries[f"dec{l}_ca_bo"] = dp["ca_bo"][l]
        vec_entries[f"dec{l}_ln3_g"] = dp["ln3_g"][l]
        vec_entries[f"dec{l}_ln3_b"] = dp["ln3_b"][l]
        vec_entries[f"dec{l}_fc1_b"] = dp["fc1_b"][l]
        vec_entries[f"dec{l}_fc2_b"] = dp["fc2_b"][l]

    vecs = jnp.zeros((VEC_ROWS, LANE), jnp.float32)
    for name, (row, _) in VEC_LAYOUT.items():
        ent = vec_entries[name]
        vecs = vecs.at[row:row + 1, :ent.shape[1]].set(ent)

    return {
        "gloss_emb": params["gloss_emb"],
        "shared_emb": params["shared_emb"],
        "enc_pos": params["enc_pos"],
        "dec_pos": params["dec_pos"],
        "w32": w32, "w64": w64, "vecs": vecs,
    }


# ---------------------------------------- main ------------------------------------------
if __name__ == "__main__":
    key = jax.random.PRNGKey(0)
    k_param, k_gloss, k_label = jax.random.split(key, 3)

    B, S, T = 2, 8, 8
    params = init_params(k_param)
    packed = pack_params(params)          # one-time packing, outside jit

    input_ids = jax.random.randint(k_gloss, (B, S), 4, GLOSS_VOCAB, dtype=jnp.int32)
    attention_mask = jnp.ones((B, S), jnp.int32).at[1, 5:].set(0)
    labels = jax.random.randint(k_label, (B, T), 4, VOCAB, dtype=jnp.int32)
    labels = labels.at[1, 6:].set(PAD_INDEX)

    fwd = jax.jit(translation_network_forward)
    out = fwd(packed, input_ids, attention_mask, labels)
    jax.block_until_ready(out)

    loss = float(out["translation_loss"])
    logits = out["logits"]
    assert logits.shape == (B, T, VOCAB)
    assert bool(jnp.all(jnp.isfinite(logits)))
    assert jnp.isfinite(loss)
    print("KERNEL_OK")
</pallas_src>

<mosaic_0001>
module attributes {stable_mosaic.version = 11 : i64} {
  func.func @kernel(%arg0: i32, %arg1: memref<1x8x32xf32, #tpu.memory_space<vmem>>, %arg2: memref<1x8x32xf32, #tpu.memory_space<vmem>>, %arg3: memref<1x1x8xf32, #tpu.memory_space<vmem>>, %arg4: memref<1x8x1xi32, #tpu.memory_space<vmem>>, %arg5: memref<32x2432xbf16, #tpu.memory_space<vmem>>, %arg6: memref<64x512xbf16, #tpu.memory_space<vmem>>, %arg7: memref<56x128xf32, #tpu.memory_space<vmem>>, %arg8: memref<1x8x128xf32, #tpu.memory_space<vmem>>, %arg9: memref<1x1x1xf32, #tpu.memory_space<vmem>>) attributes {dimension_semantics = [#tpu.dimension_semantics<parallel>], iteration_bounds = array<i64: 2>, scalar_prefetch = 0 : i64, scratch_operands = 0 : i64, tpu.core_type = #tpu.core_type<tc>, window_params = [{transform_indices = @transform_0, window_bounds = array<i64: 1, 8, 32>}, {transform_indices = @transform_1, window_bounds = array<i64: 1, 8, 32>}, {transform_indices = @transform_2, window_bounds = array<i64: 1, 1, 8>}, {transform_indices = @transform_3, window_bounds = array<i64: 1, 8, 1>}, {pipeline_mode = #tpu.pipeline_mode<synchronous>, transform_indices = @transform_4, window_bounds = array<i64: 32, 2432>}, {pipeline_mode = #tpu.pipeline_mode<synchronous>, transform_indices = @transform_5, window_bounds = array<i64: 64, 512>}, {pipeline_mode = #tpu.pipeline_mode<synchronous>, transform_indices = @transform_6, window_bounds = array<i64: 56, 128>}, {transform_indices = @transform_7, window_bounds = array<i64: 1, 8, 128>}, {transform_indices = @transform_8, window_bounds = array<i64: 1, 1, 1>}]} {
    %c0 = arith.constant 0 : index
    %c0_0 = arith.constant 0 : index
    %c0_1 = arith.constant 0 : index
    %0 = vector.load %arg3[%c0, %c0_0, %c0_1] : memref<1x1x8xf32, #tpu.memory_space<vmem>>, vector<1x1x8xf32>
    %cst = arith.constant 1.000000e+00 : f32
    %1 = vector.broadcast %cst : f32 to vector<1x1x8xf32>
    %2 = arith.subf %1, %0 : vector<1x1x8xf32>
    %cst_2 = arith.constant -1.000000e+09 : f32
    %3 = vector.broadcast %cst_2 : f32 to vector<1x1x8xf32>
    %4 = arith.mulf %2, %3 : vector<1x1x8xf32>
    %5 = tpu.iota {dimensions = array<i32: 1>} : vector<1x8x8xi32>
    %6 = tpu.iota {dimensions = array<i32: 2>} : vector<1x8x8xi32>
    %7 = arith.cmpi sge, %5, %6 : vector<1x8x8xi32>
    %cst_3 = arith.constant 0.000000e+00 : f32
    %cst_4 = arith.constant -1.000000e+09 : f32
    %8 = vector.broadcast %cst_3 : f32 to vector<1x8x8xf32>
    %9 = vector.broadcast %cst_4 : f32 to vector<1x8x8xf32>
    %10 = arith.select %7, %8, %9 : vector<1x8x8xi1>, vector<1x8x8xf32>
    %c0_5 = arith.constant 0 : index
    %c0_6 = arith.constant 0 : index
    %c0_7 = arith.constant 0 : index
    %11 = vector.load %arg1[%c0_5, %c0_6, %c0_7] : memref<1x8x32xf32, #tpu.memory_space<vmem>>, vector<1x8x32xf32>
    %12 = vector.shape_cast %11 : vector<1x8x32xf32> to vector<8x32xf32>
    %c0_8 = arith.constant 0 : index
    %c0_9 = arith.constant 0 : index
    %13 = vector.load %arg7[%c0_8, %c0_9] : memref<56x128xf32, #tpu.memory_space<vmem>>, vector<1x32xf32>
    %c1 = arith.constant 1 : index
    %c0_10 = arith.constant 0 : index
    %14 = vector.load %arg7[%c1, %c0_10] : memref<56x128xf32, #tpu.memory_space<vmem>>, vector<1x32xf32>
    %cst_11 = arith.constant dense<0.000000e+00> : vector<8xf32>
    %15 = vector.multi_reduction <add>, %12, %cst_11 [1] : vector<8x32xf32> to vector<8xf32>
    %16 = vector.shape_cast %15 : vector<8xf32> to vector<8x1xf32>
    %cst_12 = arith.constant 3.200000e+01 : f32
    %17 = vector.broadcast %cst_12 : f32 to vector<8x1xf32>
    %18 = arith.divf %16, %17 : vector<8x1xf32>
    %19 = vector.broadcast %18 : vector<8x1xf32> to vector<8x32xf32>
    %20 = arith.subf %12, %19 : vector<8x32xf32>
    %21 = arith.mulf %20, %20 : vector<8x32xf32>
    %cst_13 = arith.constant dense<0.000000e+00> : vector<8xf32>
    %22 = vector.multi_reduction <add>, %21, %cst_13 [1] : vector<8x32xf32> to vector<8xf32>
    %23 = vector.shape_cast %22 : vector<8xf32> to vector<8x1xf32>
    %cst_14 = arith.constant 3.200000e+01 : f32
    %24 = vector.broadcast %cst_14 : f32 to vector<8x1xf32>
    %25 = arith.divf %23, %24 : vector<8x1xf32>
    %26 = vector.broadcast %18 : vector<8x1xf32> to vector<8x32xf32>
    %27 = arith.subf %12, %26 : vector<8x32xf32>
    %cst_15 = arith.constant 9.99999974E-6 : f32
    %28 = vector.broadcast %cst_15 : f32 to vector<8x1xf32>
    %29 = arith.addf %25, %28 : vector<8x1xf32>
    %30 = math.rsqrt %29 : vector<8x1xf32>
    %31 = vector.broadcast %30 : vector<8x1xf32> to vector<8x32xf32>
    %32 = arith.mulf %27, %31 : vector<8x32xf32>
    %33 = vector.broadcast %13 : vector<1x32xf32> to vector<8x32xf32>
    %34 = arith.mulf %32, %33 : vector<8x32xf32>
    %35 = vector.broadcast %14 : vector<1x32xf32> to vector<8x32xf32>
    %36 = arith.addf %34, %35 : vector<8x32xf32>
    %c9 = arith.constant 9 : index
    %c0_16 = arith.constant 0 : index
    %37 = vector.load %arg7[%c9, %c0_16] : memref<56x128xf32, #tpu.memory_space<vmem>>, vector<1x32xf32>
    %c10 = arith.constant 10 : index
    %c0_17 = arith.constant 0 : index
    %38 = vector.load %arg7[%c10, %c0_17] : memref<56x128xf32, #tpu.memory_space<vmem>>, vector<1x32xf32>
    %cst_18 = arith.constant dense<0.000000e+00> : vector<8xf32>
    %39 = vector.multi_reduction <add>, %36, %cst_18 [1] : vector<8x32xf32> to vector<8xf32>
    %40 = vector.shape_cast %39 : vector<8xf32> to vector<8x1xf32>
    %cst_19 = arith.constant 3.200000e+01 : f32
    %41 = vector.broadcast %cst_19 : f32 to vector<8x1xf32>
    %42 = arith.divf %40, %41 : vector<8x1xf32>
    %43 = vector.broadcast %42 : vector<8x1xf32> to vector<8x32xf32>
    %44 = arith.subf %36, %43 : vector<8x32xf32>
    %45 = arith.mulf %44, %44 : vector<8x32xf32>
    %cst_20 = arith.constant dense<0.000000e+00> : vector<8xf32>
    %46 = vector.multi_reduction <add>, %45, %cst_20 [1] : vector<8x32xf32> to vector<8xf32>
    %47 = vector.shape_cast %46 : vector<8xf32> to vector<8x1xf32>
    %cst_21 = arith.constant 3.200000e+01 : f32
    %48 = vector.broadcast %cst_21 : f32 to vector<8x1xf32>
    %49 = arith.divf %47, %48 : vector<8x1xf32>
    %50 = vector.broadcast %42 : vector<8x1xf32> to vector<8x32xf32>
    %51 = arith.subf %36, %50 : vector<8x32xf32>
    %cst_22 = arith.constant 9.99999974E-6 : f32
    %52 = vector.broadcast %cst_22 : f32 to vector<8x1xf32>
    %53 = arith.addf %49, %52 : vector<8x1xf32>
    %54 = math.rsqrt %53 : vector<8x1xf32>
    %55 = vector.broadcast %54 : vector<8x1xf32> to vector<8x32xf32>
    %56 = arith.mulf %51, %55 : vector<8x32xf32>
    %57 = vector.broadcast %37 : vector<1x32xf32> to vector<8x32xf32>
    %58 = arith.mulf %56, %57 : vector<8x32xf32>
    %59 = vector.broadcast %38 : vector<1x32xf32> to vector<8x32xf32>
    %60 = arith.addf %58, %59 : vector<8x32xf32>
    %c0_23 = arith.constant 0 : index
    %c0_24 = arith.constant 0 : index
    %61 = vector.load %arg5[%c0_23, %c0_24] : memref<32x2432xbf16, #tpu.memory_space<vmem>>, vector<32x96xbf16>
    %c11 = arith.constant 11 : index
    %c0_25 = arith.constant 0 : index
    %62 = vector.load %arg7[%c11, %c0_25] : memref<56x128xf32, #tpu.memory_space<vmem>>, vector<1x96xf32>
    %63 = arith.truncf %60 : vector<8x32xf32> to vector<8x32xbf16>
    %cst_26 = arith.constant dense<0.000000e+00> : vector<8x96xf32>
    %64 = tpu.matmul %63, %61, %cst_26 {dimension_numbers = #tpu.dot_dimension_numbers<[1], [0], [0], [1], [0, 0, 1, 1], [], []>} : vector<8x32xbf16>, vector<32x96xbf16>, vector<8x96xf32> -> vector<8x96xf32>
    %65 = vector.broadcast %62 : vector<1x96xf32> to vector<8x96xf32>
    %66 = arith.addf %64, %65 : vector<8x96xf32>
    %67 = vector.extract_strided_slice %66 {offsets = [0, 0], sizes = [8, 32], strides = [1, 1]} : vector<8x96xf32> to vector<8x32xf32>
    %68 = vector.extract_strided_slice %66 {offsets = [0, 32], sizes = [8, 32], strides = [1, 1]} : vector<8x96xf32> to vector<8x32xf32>
    %69 = vector.extract_strided_slice %66 {offsets = [0, 64], sizes = [8, 32], strides = [1, 1]} : vector<8x96xf32> to vector<8x32xf32>
    %70 = vector.extract_strided_slice %67 {offsets = [0, 0], sizes = [8, 8], strides = [1, 1]} : vector<8x32xf32> to vector<8x8xf32>
    %71 = vector.extract_strided_slice %67 {offsets = [0, 8], sizes = [8, 8], strides = [1, 1]} : vector<8x32xf32> to vector<8x8xf32>
    %72 = vector.extract_strided_slice %67 {offsets = [0, 16], sizes = [8, 8], strides = [1, 1]} : vector<8x32xf32> to vector<8x8xf32>
    %73 = vector.extract_strided_slice %67 {offsets = [0, 24], sizes = [8, 8], strides = [1, 1]} : vector<8x32xf32> to vector<8x8xf32>
    %74 = vector.shape_cast %70 : vector<8x8xf32> to vector<1x8x8xf32>
    %75 = vector.shape_cast %71 : vector<8x8xf32> to vector<1x8x8xf32>
    %76 = vector.shape_cast %72 : vector<8x8xf32> to vector<1x8x8xf32>
    %77 = vector.shape_cast %73 : vector<8x8xf32> to vector<1x8x8xf32>
    %78 = tpu.concatenate %74, %75, %76, %77 in 0 : vector<1x8x8xf32>, vector<1x8x8xf32>, vector<1x8x8xf32>, vector<1x8x8xf32> -> vector<4x8x8xf32>
    %79 = arith.truncf %78 : vector<4x8x8xf32> to vector<4x8x8xbf16>
    %80 = vector.extract_strided_slice %68 {offsets = [0, 0], sizes = [8, 8], strides = [1, 1]} : vector<8x32xf32> to vector<8x8xf32>
    %81 = vector.extract_strided_slice %68 {offsets = [0, 8], sizes = [8, 8], strides = [1, 1]} : vector<8x32xf32> to vector<8x8xf32>
    %82 = vector.extract_strided_slice %68 {offsets = [0, 16], sizes = [8, 8], strides = [1, 1]} : vector<8x32xf32> to vector<8x8xf32>
    %83 = vector.extract_strided_slice %68 {offsets = [0, 24], sizes = [8, 8], strides = [1, 1]} : vector<8x32xf32> to vector<8x8xf32>
    %84 = vector.shape_cast %80 : vector<8x8xf32> to vector<1x8x8xf32>
    %85 = vector.shape_cast %81 : vector<8x8xf32> to vector<1x8x8xf32>
    %86 = vector.shape_cast %82 : vector<8x8xf32> to vector<1x8x8xf32>
    %87 = vector.shape_cast %83 : vector<8x8xf32> to vector<1x8x8xf32>
    %88 = tpu.concatenate %84, %85, %86, %87 in 0 : vector<1x8x8xf32>, vector<1x8x8xf32>, vector<1x8x8xf32>, vector<1x8x8xf32> -> vector<4x8x8xf32>
    %89 = arith.truncf %88 : vector<4x8x8xf32> to vector<4x8x8xbf16>
    %90 = vector.extract_strided_slice %69 {offsets = [0, 0], sizes = [8, 8], strides = [1, 1]} : vector<8x32xf32> to vector<8x8xf32>
    %91 = vector.extract_strided_slice %69 {offsets = [0, 8], sizes = [8, 8], strides = [1, 1]} : vector<8x32xf32> to vector<8x8xf32>
    %92 = vector.extract_strided_slice %69 {offsets = [0, 16], sizes = [8, 8], strides = [1, 1]} : vector<8x32xf32> to vector<8x8xf32>
    %93 = vector.extract_strided_slice %69 {offsets = [0, 24], sizes = [8, 8], strides = [1, 1]} : vector<8x32xf32> to vector<8x8xf32>
    %94 = vector.shape_cast %90 : vector<8x8xf32> to vector<1x8x8xf32>
    %95 = vector.shape_cast %91 : vector<8x8xf32> to vector<1x8x8xf32>
    %96 = vector.shape_cast %92 : vector<8x8xf32> to vector<1x8x8xf32>
    %97 = vector.shape_cast %93 : vector<8x8xf32> to vector<1x8x8xf32>
    %98 = tpu.concatenate %94, %95, %96, %97 in 0 : vector<1x8x8xf32>, vector<1x8x8xf32>, vector<1x8x8xf32>, vector<1x8x8xf32> -> vector<4x8x8xf32>
    %99 = arith.truncf %98 : vector<4x8x8xf32> to vector<4x8x8xbf16>
    %cst_27 = arith.constant dense<0.000000e+00> : vector<4x8x8xf32>
    %100 = tpu.matmul %79, %89, %cst_27 {dimension_numbers = #tpu.dot_dimension_numbers<[2], [2], [1], [1], [0, 0, 0, 1, 1, 1], [0], [0]>} : vector<4x8x8xbf16>, vector<4x8x8xbf16>, vector<4x8x8xf32> -> vector<4x8x8xf32>
    %101 = vector.broadcast %4 : vector<1x1x8xf32> to vector<4x8x8xf32>
    %102 = arith.addf %100, %101 : vector<4x8x8xf32>
    %cst_28 = arith.constant dense<0xFF800000> : vector<4x8xf32>
    %103 = vector.multi_reduction <maximumf>, %102, %cst_28 [2] : vector<4x8x8xf32> to vector<4x8xf32>
    %104 = vector.shape_cast %103 : vector<4x8xf32> to vector<4x8x1xf32>
    %105 = vector.broadcast %104 : vector<4x8x1xf32> to vector<4x8x8xf32>
    %106 = arith.subf %102, %105 : vector<4x8x8xf32>
    %107 = math.exp %106 : vector<4x8x8xf32>
    %cst_29 = arith.constant dense<0.000000e+00> : vector<4x8xf32>
    %108 = vector.multi_reduction <add>, %107, %cst_29 [2] : vector<4x8x8xf32> to vector<4x8xf32>
    %109 = vector.shape_cast %108 : vector<4x8xf32> to vector<4x8x1xf32>
    %110 = tpu.reciprocal %109 {approx = true} : vector<4x8x1xf32> -> vector<4x8x1xf32>
    %111 = vector.broadcast %110 : vector<4x8x1xf32> to vector<4x8x8xf32>
    %112 = arith.mulf %107, %111 : vector<4x8x8xf32>
    %113 = arith.truncf %112 : vector<4x8x8xf32> to vector<4x8x8xbf16>
    %cst_30 = arith.constant dense<0.000000e+00> : vector<4x8x8xf32>
    %114 = tpu.matmul %113, %99, %cst_30 {dimension_numbers = #tpu.dot_dimension_numbers<[2], [1], [1], [2], [0, 0, 0, 1, 1, 2], [0], [0]>} : vector<4x8x8xbf16>, vector<4x8x8xbf16>, vector<4x8x8xf32> -> vector<4x8x8xf32>
    %115 = vector.extract_strided_slice %114 {offsets = [0, 0, 0], sizes = [1, 8, 8], strides = [1, 1, 1]} : vector<4x8x8xf32> to vector<1x8x8xf32>
    %116 = vector.shape_cast %115 : vector<1x8x8xf32> to vector<8x8xf32>
    %117 = vector.extract_strided_slice %114 {offsets = [1, 0, 0], sizes = [1, 8, 8], strides = [1, 1, 1]} : vector<4x8x8xf32> to vector<1x8x8xf32>
    %118 = vector.shape_cast %117 : vector<1x8x8xf32> to vector<8x8xf32>
    %119 = vector.extract_strided_slice %114 {offsets = [2, 0, 0], sizes = [1, 8, 8], strides = [1, 1, 1]} : vector<4x8x8xf32> to vector<1x8x8xf32>
    %120 = vector.shape_cast %119 : vector<1x8x8xf32> to vector<8x8xf32>
    %121 = vector.extract_strided_slice %114 {offsets = [3, 0, 0], sizes = [1, 8, 8], strides = [1, 1, 1]} : vector<4x8x8xf32> to vector<1x8x8xf32>
    %122 = vector.shape_cast %121 : vector<1x8x8xf32> to vector<8x8xf32>
    %123 = tpu.concatenate %116, %118, %120, %122 in 1 : vector<8x8xf32>, vector<8x8xf32>, vector<8x8xf32>, vector<8x8xf32> -> vector<8x32xf32>
    %c0_31 = arith.constant 0 : index
    %c128 = arith.constant 128 : index
    %124 = vector.load %arg5[%c0_31, %c128] : memref<32x2432xbf16, #tpu.memory_space<vmem>>, vector<32x32xbf16>
    %c12 = arith.constant 12 : index
    %c0_32 = arith.constant 0 : index
    %125 = vector.load %arg7[%c12, %c0_32] : memref<56x128xf32, #tpu.memory_space<vmem>>, vector<1x32xf32>
    %126 = arith.truncf %123 : vector<8x32xf32> to vector<8x32xbf16>
    %cst_33 = arith.constant dense<0.000000e+00> : vector<8x32xf32>
    %127 = tpu.matmul %126, %124, %cst_33 {dimension_numbers = #tpu.dot_dimension_numbers<[1], [0], [0], [1], [0, 0, 1, 1], [], []>} : vector<8x32xbf16>, vector<32x32xbf16>, vector<8x32xf32> -> vector<8x32xf32>
    %128 = vector.broadcast %125 : vector<1x32xf32> to vector<8x32xf32>
    %129 = arith.addf %127, %128 : vector<8x32xf32>
    %130 = arith.addf %36, %129 : vector<8x32xf32>
    %c13 = arith.constant 13 : index
    %c0_34 = arith.constant 0 : index
    %131 = vector.load %arg7[%c13, %c0_34] : memref<56x128xf32, #tpu.memory_space<vmem>>, vector<1x32xf32>
    %c14 = arith.constant 14 : index
    %c0_35 = arith.constant 0 : index
    %132 = vector.load %arg7[%c14, %c0_35] : memref<56x128xf32, #tpu.memory_space<vmem>>, vector<1x32xf32>
    %cst_36 = arith.constant dense<0.000000e+00> : vector<8xf32>
    %133 = vector.multi_reduction <add>, %130, %cst_36 [1] : vector<8x32xf32> to vector<8xf32>
    %134 = vector.shape_cast %133 : vector<8xf32> to vector<8x1xf32>
    %cst_37 = arith.constant 3.200000e+01 : f32
    %135 = vector.broadcast %cst_37 : f32 to vector<8x1xf32>
    %136 = arith.divf %134, %135 : vector<8x1xf32>
    %137 = vector.broadcast %136 : vector<8x1xf32> to vector<8x32xf32>
    %138 = arith.subf %130, %137 : vector<8x32xf32>
    %139 = arith.mulf %138, %138 : vector<8x32xf32>
    %cst_38 = arith.constant dense<0.000000e+00> : vector<8xf32>
    %140 = vector.multi_reduction <add>, %139, %cst_38 [1] : vector<8x32xf32> to vector<8xf32>
    %141 = vector.shape_cast %140 : vector<8xf32> to vector<8x1xf32>
    %cst_39 = arith.constant 3.200000e+01 : f32
    %142 = vector.broadcast %cst_39 : f32 to vector<8x1xf32>
    %143 = arith.divf %141, %142 : vector<8x1xf32>
    %144 = vector.broadcast %136 : vector<8x1xf32> to vector<8x32xf32>
    %145 = arith.subf %130, %144 : vector<8x32xf32>
    %cst_40 = arith.constant 9.99999974E-6 : f32
    %146 = vector.broadcast %cst_40 : f32 to vector<8x1xf32>
    %147 = arith.addf %143, %146 : vector<8x1xf32>
    %148 = math.rsqrt %147 : vector<8x1xf32>
    %149 = vector.broadcast %148 : vector<8x1xf32> to vector<8x32xf32>
    %150 = arith.mulf %145, %149 : vector<8x32xf32>
    %151 = vector.broadcast %131 : vector<1x32xf32> to vector<8x32xf32>
    %152 = arith.mulf %150, %151 : vector<8x32xf32>
    %153 = vector.broadcast %132 : vector<1x32xf32> to vector<8x32xf32>
    %154 = arith.addf %152, %153 : vector<8x32xf32>
    %c0_41 = arith.constant 0 : index
    %c256 = arith.constant 256 : index
    %155 = vector.load %arg5[%c0_41, %c256] : memref<32x2432xbf16, #tpu.memory_space<vmem>>, vector<32x64xbf16>
    %c15 = arith.constant 15 : index
    %c0_42 = arith.constant 0 : index
    %156 = vector.load %arg7[%c15, %c0_42] : memref<56x128xf32, #tpu.memory_space<vmem>>, vector<1x64xf32>
    %157 = arith.truncf %154 : vector<8x32xf32> to vector<8x32xbf16>
    %cst_43 = arith.constant dense<0.000000e+00> : vector<8x64xf32>
    %158 = tpu.matmul %157, %155, %cst_43 {dimension_numbers = #tpu.dot_dimension_numbers<[1], [0], [0], [1], [0, 0, 1, 1], [], []>} : vector<8x32xbf16>, vector<32x64xbf16>, vector<8x64xf32> -> vector<8x64xf32>
    %159 = vector.broadcast %156 : vector<1x64xf32> to vector<8x64xf32>
    %160 = arith.addf %158, %159 : vector<8x64xf32>
    %161 = arith.mulf %160, %160 : vector<8x64xf32>
    %162 = arith.mulf %160, %161 : vector<8x64xf32>
    %cst_44 = arith.constant 4.471500e-02 : f32
    %163 = vector.broadcast %cst_44 : f32 to vector<8x64xf32>
    %164 = arith.mulf %163, %162 : vector<8x64xf32>
    %165 = arith.addf %160, %164 : vector<8x64xf32>
    %cst_45 = arith.constant 0.797884583 : f32
    %166 = vector.broadcast %cst_45 : f32 to vector<8x64xf32>
    %167 = arith.mulf %166, %165 : vector<8x64xf32>
    %168 = math.tanh %167 : vector<8x64xf32>
    %cst_46 = arith.constant 1.000000e+00 : f32
    %169 = vector.broadcast %cst_46 : f32 to vector<8x64xf32>
    %170 = arith.addf %169, %168 : vector<8x64xf32>
    %cst_47 = arith.constant 5.000000e-01 : f32
    %171 = vector.broadcast %cst_47 : f32 to vector<8x64xf32>
    %172 = arith.mulf %171, %170 : vector<8x64xf32>
    %173 = arith.mulf %160, %172 : vector<8x64xf32>
    %c0_48 = arith.constant 0 : index
    %c0_49 = arith.constant 0 : index
    %174 = vector.load %arg6[%c0_48, %c0_49] : memref<64x512xbf16, #tpu.memory_space<vmem>>, vector<64x32xbf16>
    %c16 = arith.constant 16 : index
    %c0_50 = arith.constant 0 : index
    %175 = vector.load %arg7[%c16, %c0_50] : memref<56x128xf32, #tpu.memory_space<vmem>>, vector<1x32xf32>
    %176 = arith.truncf %173 : vector<8x64xf32> to vector<8x64xbf16>
    %cst_51 = arith.constant dense<0.000000e+00> : vector<8x32xf32>
    %177 = tpu.matmul %176, %174, %cst_51 {dimension_numbers = #tpu.dot_dimension_numbers<[1], [0], [0], [1], [0, 0, 1, 1], [], []>} : vector<8x64xbf16>, vector<64x32xbf16>, vector<8x32xf32> -> vector<8x32xf32>
    %178 = vector.broadcast %175 : vector<1x32xf32> to vector<8x32xf32>
    %179 = arith.addf %177, %178 : vector<8x32xf32>
    %180 = arith.addf %130, %179 : vector<8x32xf32>
    %c17 = arith.constant 17 : index
    %c0_52 = arith.constant 0 : index
    %181 = vector.load %arg7[%c17, %c0_52] : memref<56x128xf32, #tpu.memory_space<vmem>>, vector<1x32xf32>
    %c18 = arith.constant 18 : index
    %c0_53 = arith.constant 0 : index
    %182 = vector.load %arg7[%c18, %c0_53] : memref<56x128xf32, #tpu.memory_space<vmem>>, vector<1x32xf32>
    %cst_54 = arith.constant dense<0.000000e+00> : vector<8xf32>
    %183 = vector.multi_reduction <add>, %180, %cst_54 [1] : vector<8x32xf32> to vector<8xf32>
    %184 = vector.shape_cast %183 : vector<8xf32> to vector<8x1xf32>
    %cst_55 = arith.constant 3.200000e+01 : f32
    %185 = vector.broadcast %cst_55 : f32 to vector<8x1xf32>
    %186 = arith.divf %184, %185 : vector<8x1xf32>
    %187 = vector.broadcast %186 : vector<8x1xf32> to vector<8x32xf32>
    %188 = arith.subf %180, %187 : vector<8x32xf32>
    %189 = arith.mulf %188, %188 : vector<8x32xf32>
    %cst_56 = arith.constant dense<0.000000e+00> : vector<8xf32>
    %190 = vector.multi_reduction <add>, %189, %cst_56 [1] : vector<8x32xf32> to vector<8xf32>
    %191 = vector.shape_cast %190 : vector<8xf32> to vector<8x1xf32>
    %cst_57 = arith.constant 3.200000e+01 : f32
    %192 = vector.broadcast %cst_57 : f32 to vector<8x1xf32>
    %193 = arith.divf %191, %192 : vector<8x1xf32>
    %194 = vector.broadcast %186 : vector<8x1xf32> to vector<8x32xf32>
    %195 = arith.subf %180, %194 : vector<8x32xf32>
    %cst_58 = arith.constant 9.99999974E-6 : f32
    %196 = vector.broadcast %cst_58 : f32 to vector<8x1xf32>
    %197 = arith.addf %193, %196 : vector<8x1xf32>
    %198 = math.rsqrt %197 : vector<8x1xf32>
    %199 = vector.broadcast %198 : vector<8x1xf32> to vector<8x32xf32>
    %200 = arith.mulf %195, %199 : vector<8x32xf32>
    %201 = vector.broadcast %181 : vector<1x32xf32> to vector<8x32xf32>
    %202 = arith.mulf %200, %201 : vector<8x32xf32>
    %203 = vector.broadcast %182 : vector<1x32xf32> to vector<8x32xf32>
    %204 = arith.addf %202, %203 : vector<8x32xf32>
    %c0_59 = arith.constant 0 : index
    %c384 = arith.constant 384 : index
    %205 = vector.load %arg5[%c0_59, %c384] : memref<32x2432xbf16, #tpu.memory_space<vmem>>, vector<32x96xbf16>
    %c19 = arith.constant 19 : index
    %c0_60 = arith.constant 0 : index
    %206 = vector.load %arg7[%c19, %c0_60] : memref<56x128xf32, #tpu.memory_space<vmem>>, vector<1x96xf32>
    %207 = arith.truncf %204 : vector<8x32xf32> to vector<8x32xbf16>
    %cst_61 = arith.constant dense<0.000000e+00> : vector<8x96xf32>
    %208 = tpu.matmul %207, %205, %cst_61 {dimension_numbers = #tpu.dot_dimension_numbers<[1], [0], [0], [1], [0, 0, 1, 1], [], []>} : vector<8x32xbf16>, vector<32x96xbf16>, vector<8x96xf32> -> vector<8x96xf32>
    %209 = vector.broadcast %206 : vector<1x96xf32> to vector<8x96xf32>
    %210 = arith.addf %208, %209 : vector<8x96xf32>
    %211 = vector.extract_strided_slice %210 {offsets = [0, 0], sizes = [8, 32], strides = [1, 1]} : vector<8x96xf32> to vector<8x32xf32>
    %212 = vector.extract_strided_slice %210 {offsets = [0, 32], sizes = [8, 32], strides = [1, 1]} : vector<8x96xf32> to vector<8x32xf32>
    %213 = vector.extract_strided_slice %210 {offsets = [0, 64], sizes = [8, 32], strides = [1, 1]} : vector<8x96xf32> to vector<8x32xf32>
    %214 = vector.extract_strided_slice %211 {offsets = [0, 0], sizes = [8, 8], strides = [1, 1]} : vector<8x32xf32> to vector<8x8xf32>
    %215 = vector.extract_strided_slice %211 {offsets = [0, 8], sizes = [8, 8], strides = [1, 1]} : vector<8x32xf32> to vector<8x8xf32>
    %216 = vector.extract_strided_slice %211 {offsets = [0, 16], sizes = [8, 8], strides = [1, 1]} : vector<8x32xf32> to vector<8x8xf32>
    %217 = vector.extract_strided_slice %211 {offsets = [0, 24], sizes = [8, 8], strides = [1, 1]} : vector<8x32xf32> to vector<8x8xf32>
    %218 = vector.shape_cast %214 : vector<8x8xf32> to vector<1x8x8xf32>
    %219 = vector.shape_cast %215 : vector<8x8xf32> to vector<1x8x8xf32>
    %220 = vector.shape_cast %216 : vector<8x8xf32> to vector<1x8x8xf32>
    %221 = vector.shape_cast %217 : vector<8x8xf32> to vector<1x8x8xf32>
    %222 = tpu.concatenate %218, %219, %220, %221 in 0 : vector<1x8x8xf32>, vector<1x8x8xf32>, vector<1x8x8xf32>, vector<1x8x8xf32> -> vector<4x8x8xf32>
    %223 = arith.truncf %222 : vector<4x8x8xf32> to vector<4x8x8xbf16>
    %224 = vector.extract_strided_slice %212 {offsets = [0, 0], sizes = [8, 8], strides = [1, 1]} : vector<8x32xf32> to vector<8x8xf32>
    %225 = vector.extract_strided_slice %212 {offsets = [0, 8], sizes = [8, 8], strides = [1, 1]} : vector<8x32xf32> to vector<8x8xf32>
    %226 = vector.extract_strided_slice %212 {offsets = [0, 16], sizes = [8, 8], strides = [1, 1]} : vector<8x32xf32> to vector<8x8xf32>
    %227 = vector.extract_strided_slice %212 {offsets = [0, 24], sizes = [8, 8], strides = [1, 1]} : vector<8x32xf32> to vector<8x8xf32>
    %228 = vector.shape_cast %224 : vector<8x8xf32> to vector<1x8x8xf32>
    %229 = vector.shape_cast %225 : vector<8x8xf32> to vector<1x8x8xf32>
    %230 = vector.shape_cast %226 : vector<8x8xf32> to vector<1x8x8xf32>
    %231 = vector.shape_cast %227 : vector<8x8xf32> to vector<1x8x8xf32>
    %232 = tpu.concatenate %228, %229, %230, %231 in 0 : vector<1x8x8xf32>, vector<1x8x8xf32>, vector<1x8x8xf32>, vector<1x8x8xf32> -> vector<4x8x8xf32>
    %233 = arith.truncf %232 : vector<4x8x8xf32> to vector<4x8x8xbf16>
    %234 = vector.extract_strided_slice %213 {offsets = [0, 0], sizes = [8, 8], strides = [1, 1]} : vector<8x32xf32> to vector<8x8xf32>
    %235 = vector.extract_strided_slice %213 {offsets = [0, 8], sizes = [8, 8], strides = [1, 1]} : vector<8x32xf32> to vector<8x8xf32>
    %236 = vector.extract_strided_slice %213 {offsets = [0, 16], sizes = [8, 8], strides = [1, 1]} : vector<8x32xf32> to vector<8x8xf32>
    %237 = vector.extract_strided_slice %213 {offsets = [0, 24], sizes = [8, 8], strides = [1, 1]} : vector<8x32xf32> to vector<8x8xf32>
    %238 = vector.shape_cast %234 : vector<8x8xf32> to vector<1x8x8xf32>
    %239 = vector.shape_cast %235 : vector<8x8xf32> to vector<1x8x8xf32>
    %240 = vector.shape_cast %236 : vector<8x8xf32> to vector<1x8x8xf32>
    %241 = vector.shape_cast %237 : vector<8x8xf32> to vector<1x8x8xf32>
    %242 = tpu.concatenate %238, %239, %240, %241 in 0 : vector<1x8x8xf32>, vector<1x8x8xf32>, vector<1x8x8xf32>, vector<1x8x8xf32> -> vector<4x8x8xf32>
    %243 = arith.truncf %242 : vector<4x8x8xf32> to vector<4x8x8xbf16>
    %cst_62 = arith.constant dense<0.000000e+00> : vector<4x8x8xf32>
    %244 = tpu.matmul %223, %233, %cst_62 {dimension_numbers = #tpu.dot_dimension_numbers<[2], [2], [1], [1], [0, 0, 0, 1, 1, 1], [0], [0]>} : vector<4x8x8xbf16>, vector<4x8x8xbf16>, vector<4x8x8xf32> -> vector<4x8x8xf32>
    %245 = vector.broadcast %4 : vector<1x1x8xf32> to vector<4x8x8xf32>
    %246 = arith.addf %244, %245 : vector<4x8x8xf32>
    %cst_63 = arith.constant dense<0xFF800000> : vector<4x8xf32>
    %247 = vector.multi_reduction <maximumf>, %246, %cst_63 [2] : vector<4x8x8xf32> to vector<4x8xf32>
    %248 = vector.shape_cast %247 : vector<4x8xf32> to vector<4x8x1xf32>
    %249 = vector.broadcast %248 : vector<4x8x1xf32> to vector<4x8x8xf32>
    %250 = arith.subf %246, %249 : vector<4x8x8xf32>
    %251 = math.exp %250 : vector<4x8x8xf32>
    %cst_64 = arith.constant dense<0.000000e+00> : vector<4x8xf32>
    %252 = vector.multi_reduction <add>, %251, %cst_64 [2] : vector<4x8x8xf32> to vector<4x8xf32>
    %253 = vector.shape_cast %252 : vector<4x8xf32> to vector<4x8x1xf32>
    %254 = tpu.reciprocal %253 {approx = true} : vector<4x8x1xf32> -> vector<4x8x1xf32>
    %255 = vector.broadcast %254 : vector<4x8x1xf32> to vector<4x8x8xf32>
    %256 = arith.mulf %251, %255 : vector<4x8x8xf32>
    %257 = arith.truncf %256 : vector<4x8x8xf32> to vector<4x8x8xbf16>
    %cst_65 = arith.constant dense<0.000000e+00> : vector<4x8x8xf32>
    %258 = tpu.matmul %257, %243, %cst_65 {dimension_numbers = #tpu.dot_dimension_numbers<[2], [1], [1], [2], [0, 0, 0, 1, 1, 2], [0], [0]>} : vector<4x8x8xbf16>, vector<4x8x8xbf16>, vector<4x8x8xf32> -> vector<4x8x8xf32>
    %259 = vector.extract_strided_slice %258 {offsets = [0, 0, 0], sizes = [1, 8, 8], strides = [1, 1, 1]} : vector<4x8x8xf32> to vector<1x8x8xf32>
    %260 = vector.shape_cast %259 : vector<1x8x8xf32> to vector<8x8xf32>
    %261 = vector.extract_strided_slice %258 {offsets = [1, 0, 0], sizes = [1, 8, 8], strides = [1, 1, 1]} : vector<4x8x8xf32> to vector<1x8x8xf32>
    %262 = vector.shape_cast %261 : vector<1x8x8xf32> to vector<8x8xf32>
    %263 = vector.extract_strided_slice %258 {offsets = [2, 0, 0], sizes = [1, 8, 8], strides = [1, 1, 1]} : vector<4x8x8xf32> to vector<1x8x8xf32>
    %264 = vector.shape_cast %263 : vector<1x8x8xf32> to vector<8x8xf32>
    %265 = vector.extract_strided_slice %258 {offsets = [3, 0, 0], sizes = [1, 8, 8], strides = [1, 1, 1]} : vector<4x8x8xf32> to vector<1x8x8xf32>
    %266 = vector.shape_cast %265 : vector<1x8x8xf32> to vector<8x8xf32>
    %267 = tpu.concatenate %260, %262, %264, %266 in 1 : vector<8x8xf32>, vector<8x8xf32>, vector<8x8xf32>, vector<8x8xf32> -> vector<8x32xf32>
    %c0_66 = arith.constant 0 : index
    %c512 = arith.constant 512 : index
    %268 = vector.load %arg5[%c0_66, %c512] : memref<32x2432xbf16, #tpu.memory_space<vmem>>, vector<32x32xbf16>
    %c20 = arith.constant 20 : index
    %c0_67 = arith.constant 0 : index
    %269 = vector.load %arg7[%c20, %c0_67] : memref<56x128xf32, #tpu.memory_space<vmem>>, vector<1x32xf32>
    %270 = arith.truncf %267 : vector<8x32xf32> to vector<8x32xbf16>
    %cst_68 = arith.constant dense<0.000000e+00> : vector<8x32xf32>
    %271 = tpu.matmul %270, %268, %cst_68 {dimension_numbers = #tpu.dot_dimension_numbers<[1], [0], [0], [1], [0, 0, 1, 1], [], []>} : vector<8x32xbf16>, vector<32x32xbf16>, vector<8x32xf32> -> vector<8x32xf32>
    %272 = vector.broadcast %269 : vector<1x32xf32> to vector<8x32xf32>
    %273 = arith.addf %271, %272 : vector<8x32xf32>
    %274 = arith.addf %180, %273 : vector<8x32xf32>
    %c21 = arith.constant 21 : index
    %c0_69 = arith.constant 0 : index
    %275 = vector.load %arg7[%c21, %c0_69] : memref<56x128xf32, #tpu.memory_space<vmem>>, vector<1x32xf32>
    %c22 = arith.constant 22 : index
    %c0_70 = arith.constant 0 : index
    %276 = vector.load %arg7[%c22, %c0_70] : memref<56x128xf32, #tpu.memory_space<vmem>>, vector<1x32xf32>
    %cst_71 = arith.constant dense<0.000000e+00> : vector<8xf32>
    %277 = vector.multi_reduction <add>, %274, %cst_71 [1] : vector<8x32xf32> to vector<8xf32>
    %278 = vector.shape_cast %277 : vector<8xf32> to vector<8x1xf32>
    %cst_72 = arith.constant 3.200000e+01 : f32
    %279 = vector.broadcast %cst_72 : f32 to vector<8x1xf32>
    %280 = arith.divf %278, %279 : vector<8x1xf32>
    %281 = vector.broadcast %280 : vector<8x1xf32> to vector<8x32xf32>
    %282 = arith.subf %274, %281 : vector<8x32xf32>
    %283 = arith.mulf %282, %282 : vector<8x32xf32>
    %cst_73 = arith.constant dense<0.000000e+00> : vector<8xf32>
    %284 = vector.multi_reduction <add>, %283, %cst_73 [1] : vector<8x32xf32> to vector<8xf32>
    %285 = vector.shape_cast %284 : vector<8xf32> to vector<8x1xf32>
    %cst_74 = arith.constant 3.200000e+01 : f32
    %286 = vector.broadcast %cst_74 : f32 to vector<8x1xf32>
    %287 = arith.divf %285, %286 : vector<8x1xf32>
    %288 = vector.broadcast %280 : vector<8x1xf32> to vector<8x32xf32>
    %289 = arith.subf %274, %288 : vector<8x32xf32>
    %cst_75 = arith.constant 9.99999974E-6 : f32
    %290 = vector.broadcast %cst_75 : f32 to vector<8x1xf32>
    %291 = arith.addf %287, %290 : vector<8x1xf32>
    %292 = math.rsqrt %291 : vector<8x1xf32>
    %293 = vector.broadcast %292 : vector<8x1xf32> to vector<8x32xf32>
    %294 = arith.mulf %289, %293 : vector<8x32xf32>
    %295 = vector.broadcast %275 : vector<1x32xf32> to vector<8x32xf32>
    %296 = arith.mulf %294, %295 : vector<8x32xf32>
    %297 = vector.broadcast %276 : vector<1x32xf32> to vector<8x32xf32>
    %298 = arith.addf %296, %297 : vector<8x32xf32>
    %c0_76 = arith.constant 0 : index
    %c640 = arith.constant 640 : index
    %299 = vector.load %arg5[%c0_76, %c640] : memref<32x2432xbf16, #tpu.memory_space<vmem>>, vector<32x64xbf16>
    %c23 = arith.constant 23 : index
    %c0_77 = arith.constant 0 : index
    %300 = vector.load %arg7[%c23, %c0_77] : memref<56x128xf32, #tpu.memory_space<vmem>>, vector<1x64xf32>
    %301 = arith.truncf %298 : vector<8x32xf32> to vector<8x32xbf16>
    %cst_78 = arith.constant dense<0.000000e+00> : vector<8x64xf32>
    %302 = tpu.matmul %301, %299, %cst_78 {dimension_numbers = #tpu.dot_dimension_numbers<[1], [0], [0], [1], [0, 0, 1, 1], [], []>} : vector<8x32xbf16>, vector<32x64xbf16>, vector<8x64xf32> -> vector<8x64xf32>
    %303 = vector.broadcast %300 : vector<1x64xf32> to vector<8x64xf32>
    %304 = arith.addf %302, %303 : vector<8x64xf32>
    %305 = arith.mulf %304, %304 : vector<8x64xf32>
    %306 = arith.mulf %304, %305 : vector<8x64xf32>
    %cst_79 = arith.constant 4.471500e-02 : f32
    %307 = vector.broadcast %cst_79 : f32 to vector<8x64xf32>
    %308 = arith.mulf %307, %306 : vector<8x64xf32>
    %309 = arith.addf %304, %308 : vector<8x64xf32>
    %cst_80 = arith.constant 0.797884583 : f32
    %310 = vector.broadcast %cst_80 : f32 to vector<8x64xf32>
    %311 = arith.mulf %310, %309 : vector<8x64xf32>
    %312 = math.tanh %311 : vector<8x64xf32>
    %cst_81 = arith.constant 1.000000e+00 : f32
    %313 = vector.broadcast %cst_81 : f32 to vector<8x64xf32>
    %314 = arith.addf %313, %312 : vector<8x64xf32>
    %cst_82 = arith.constant 5.000000e-01 : f32
    %315 = vector.broadcast %cst_82 : f32 to vector<8x64xf32>
    %316 = arith.mulf %315, %314 : vector<8x64xf32>
    %317 = arith.mulf %304, %316 : vector<8x64xf32>
    %c0_83 = arith.constant 0 : index
    %c128_84 = arith.constant 128 : index
    %318 = vector.load %arg6[%c0_83, %c128_84] : memref<64x512xbf16, #tpu.memory_space<vmem>>, vector<64x32xbf16>
    %c24 = arith.constant 24 : index
    %c0_85 = arith.constant 0 : index
    %319 = vector.load %arg7[%c24, %c0_85] : memref<56x128xf32, #tpu.memory_space<vmem>>, vector<1x32xf32>
    %320 = arith.truncf %317 : vector<8x64xf32> to vector<8x64xbf16>
    %cst_86 = arith.constant dense<0.000000e+00> : vector<8x32xf32>
    %321 = tpu.matmul %320, %318, %cst_86 {dimension_numbers = #tpu.dot_dimension_numbers<[1], [0], [0], [1], [0, 0, 1, 1], [], []>} : vector<8x64xbf16>, vector<64x32xbf16>, vector<8x32xf32> -> vector<8x32xf32>
    %322 = vector.broadcast %319 : vector<1x32xf32> to vector<8x32xf32>
    %323 = arith.addf %321, %322 : vector<8x32xf32>
    %324 = arith.addf %274, %323 : vector<8x32xf32>
    %c2 = arith.constant 2 : index
    %c0_87 = arith.constant 0 : index
    %325 = vector.load %arg7[%c2, %c0_87] : memref<56x128xf32, #tpu.memory_space<vmem>>, vector<1x32xf32>
    %c3 = arith.constant 3 : index
    %c0_88 = arith.constant 0 : index
    %326 = vector.load %arg7[%c3, %c0_88] : memref<56x128xf32, #tpu.memory_space<vmem>>, vector<1x32xf32>
    %cst_89 = arith.constant dense<0.000000e+00> : vector<8xf32>
    %327 = vector.multi_reduction <add>, %324, %cst_89 [1] : vector<8x32xf32> to vector<8xf32>
    %328 = vector.shape_cast %327 : vector<8xf32> to vector<8x1xf32>
    %cst_90 = arith.constant 3.200000e+01 : f32
    %329 = vector.broadcast %cst_90 : f32 to vector<8x1xf32>
    %330 = arith.divf %328, %329 : vector<8x1xf32>
    %331 = vector.broadcast %330 : vector<8x1xf32> to vector<8x32xf32>
    %332 = arith.subf %324, %331 : vector<8x32xf32>
    %333 = arith.mulf %332, %332 : vector<8x32xf32>
    %cst_91 = arith.constant dense<0.000000e+00> : vector<8xf32>
    %334 = vector.multi_reduction <add>, %333, %cst_91 [1] : vector<8x32xf32> to vector<8xf32>
    %335 = vector.shape_cast %334 : vector<8xf32> to vector<8x1xf32>
    %cst_92 = arith.constant 3.200000e+01 : f32
    %336 = vector.broadcast %cst_92 : f32 to vector<8x1xf32>
    %337 = arith.divf %335, %336 : vector<8x1xf32>
    %338 = vector.broadcast %330 : vector<8x1xf32> to vector<8x32xf32>
    %339 = arith.subf %324, %338 : vector<8x32xf32>
    %cst_93 = arith.constant 9.99999974E-6 : f32
    %340 = vector.broadcast %cst_93 : f32 to vector<8x1xf32>
    %341 = arith.addf %337, %340 : vector<8x1xf32>
    %342 = math.rsqrt %341 : vector<8x1xf32>
    %343 = vector.broadcast %342 : vector<8x1xf32> to vector<8x32xf32>
    %344 = arith.mulf %339, %343 : vector<8x32xf32>
    %345 = vector.broadcast %325 : vector<1x32xf32> to vector<8x32xf32>
    %346 = arith.mulf %344, %345 : vector<8x32xf32>
    %347 = vector.broadcast %326 : vector<1x32xf32> to vector<8x32xf32>
    %348 = arith.addf %346, %347 : vector<8x32xf32>
    %c0_94 = arith.constant 0 : index
    %c0_95 = arith.constant 0 : index
    %c0_96 = arith.constant 0 : index
    %349 = vector.load %arg2[%c0_94, %c0_95, %c0_96] : memref<1x8x32xf32, #tpu.memory_space<vmem>>, vector<1x8x32xf32>
    %350 = vector.shape_cast %349 : vector<1x8x32xf32> to vector<8x32xf32>
    %c4 = arith.constant 4 : index
    %c0_97 = arith.constant 0 : index
    %351 = vector.load %arg7[%c4, %c0_97] : memref<56x128xf32, #tpu.memory_space<vmem>>, vector<1x32xf32>
    %c5 = arith.constant 5 : index
    %c0_98 = arith.constant 0 : index
    %352 = vector.load %arg7[%c5, %c0_98] : memref<56x128xf32, #tpu.memory_space<vmem>>, vector<1x32xf32>
    %cst_99 = arith.constant dense<0.000000e+00> : vector<8xf32>
    %353 = vector.multi_reduction <add>, %350, %cst_99 [1] : vector<8x32xf32> to vector<8xf32>
    %354 = vector.shape_cast %353 : vector<8xf32> to vector<8x1xf32>
    %cst_100 = arith.constant 3.200000e+01 : f32
    %355 = vector.broadcast %cst_100 : f32 to vector<8x1xf32>
    %356 = arith.divf %354, %355 : vector<8x1xf32>
    %357 = vector.broadcast %356 : vector<8x1xf32> to vector<8x32xf32>
    %358 = arith.subf %350, %357 : vector<8x32xf32>
    %359 = arith.mulf %358, %358 : vector<8x32xf32>
    %cst_101 = arith.constant dense<0.000000e+00> : vector<8xf32>
    %360 = vector.multi_reduction <add>, %359, %cst_101 [1] : vector<8x32xf32> to vector<8xf32>
    %361 = vector.shape_cast %360 : vector<8xf32> to vector<8x1xf32>
    %cst_102 = arith.constant 3.200000e+01 : f32
    %362 = vector.broadcast %cst_102 : f32 to vector<8x1xf32>
    %363 = arith.divf %361, %362 : vector<8x1xf32>
    %364 = vector.broadcast %356 : vector<8x1xf32> to vector<8x32xf32>
    %365 = arith.subf %350, %364 : vector<8x32xf32>
    %cst_103 = arith.constant 9.99999974E-6 : f32
    %366 = vector.broadcast %cst_103 : f32 to vector<8x1xf32>
    %367 = arith.addf %363, %366 : vector<8x1xf32>
    %368 = math.rsqrt %367 : vector<8x1xf32>
    %369 = vector.broadcast %368 : vector<8x1xf32> to vector<8x32xf32>
    %370 = arith.mulf %365, %369 : vector<8x32xf32>
    %371 = vector.broadcast %351 : vector<1x32xf32> to vector<8x32xf32>
    %372 = arith.mulf %370, %371 : vector<8x32xf32>
    %373 = vector.broadcast %352 : vector<1x32xf32> to vector<8x32xf32>
    %374 = arith.addf %372, %373 : vector<8x32xf32>
    %c25 = arith.constant 25 : index
    %c0_104 = arith.constant 0 : index
    %375 = vector.load %arg7[%c25, %c0_104] : memref<56x128xf32, #tpu.memory_space<vmem>>, vector<1x32xf32>
    %c26 = arith.constant 26 : index
    %c0_105 = arith.constant 0 : index
    %376 = vector.load %arg7[%c26, %c0_105] : memref<56x128xf32, #tpu.memory_space<vmem>>, vector<1x32xf32>
    %cst_106 = arith.constant dense<0.000000e+00> : vector<8xf32>
    %377 = vector.multi_reduction <add>, %374, %cst_106 [1] : vector<8x32xf32> to vector<8xf32>
    %378 = vector.shape_cast %377 : vector<8xf32> to vector<8x1xf32>
    %cst_107 = arith.constant 3.200000e+01 : f32
    %379 = vector.broadcast %cst_107 : f32 to vector<8x1xf32>
    %380 = arith.divf %378, %379 : vector<8x1xf32>
    %381 = vector.broadcast %380 : vector<8x1xf32> to vector<8x32xf32>
    %382 = arith.subf %374, %381 : vector<8x32xf32>
    %383 = arith.mulf %382, %382 : vector<8x32xf32>
    %cst_108 = arith.constant dense<0.000000e+00> : vector<8xf32>
    %384 = vector.multi_reduction <add>, %383, %cst_108 [1] : vector<8x32xf32> to vector<8xf32>
    %385 = vector.shape_cast %384 : vector<8xf32> to vector<8x1xf32>
    %cst_109 = arith.constant 3.200000e+01 : f32
    %386 = vector.broadcast %cst_109 : f32 to vector<8x1xf32>
    %387 = arith.divf %385, %386 : vector<8x1xf32>
    %388 = vector.broadcast %380 : vector<8x1xf32> to vector<8x32xf32>
    %389 = arith.subf %374, %388 : vector<8x32xf32>
    %cst_110 = arith.constant 9.99999974E-6 : f32
    %390 = vector.broadcast %cst_110 : f32 to vector<8x1xf32>
    %391 = arith.addf %387, %390 : vector<8x1xf32>
    %392 = math.rsqrt %391 : vector<8x1xf32>
    %393 = vector.broadcast %392 : vector<8x1xf32> to vector<8x32xf32>
    %394 = arith.mulf %389, %393 : vector<8x32xf32>
    %395 = vector.broadcast %375 : vector<1x32xf32> to vector<8x32xf32>
    %396 = arith.mulf %394, %395 : vector<8x32xf32>
    %397 = vector.broadcast %376 : vector<1x32xf32> to vector<8x32xf32>
    %398 = arith.addf %396, %397 : vector<8x32xf32>
    %c0_111 = arith.constant 0 : index
    %c768 = arith.constant 768 : index
    %399 = vector.load %arg5[%c0_111, %c768] : memref<32x2432xbf16, #tpu.memory_space<vmem>>, vector<32x96xbf16>
    %c27 = arith.constant 27 : index
    %c0_112 = arith.constant 0 : index
    %400 = vector.load %arg7[%c27, %c0_112] : memref<56x128xf32, #tpu.memory_space<vmem>>, vector<1x96xf32>
    %401 = arith.truncf %398 : vector<8x32xf32> to vector<8x32xbf16>
    %cst_113 = arith.constant dense<0.000000e+00> : vector<8x96xf32>
    %402 = tpu.matmul %401, %399, %cst_113 {dimension_numbers = #tpu.dot_dimension_numbers<[1], [0], [0], [1], [0, 0, 1, 1], [], []>} : vector<8x32xbf16>, vector<32x96xbf16>, vector<8x96xf32> -> vector<8x96xf32>
    %403 = vector.broadcast %400 : vector<1x96xf32> to vector<8x96xf32>
    %404 = arith.addf %402, %403 : vector<8x96xf32>
    %405 = vector.extract_strided_slice %404 {offsets = [0, 0], sizes = [8, 32], strides = [1, 1]} : vector<8x96xf32> to vector<8x32xf32>
    %406 = vector.extract_strided_slice %404 {offsets = [0, 32], sizes = [8, 32], strides = [1, 1]} : vector<8x96xf32> to vector<8x32xf32>
    %407 = vector.extract_strided_slice %404 {offsets = [0, 64], sizes = [8, 32], strides = [1, 1]} : vector<8x96xf32> to vector<8x32xf32>
    %408 = vector.extract_strided_slice %405 {offsets = [0, 0], sizes = [8, 8], strides = [1, 1]} : vector<8x32xf32> to vector<8x8xf32>
    %409 = vector.extract_strided_slice %405 {offsets = [0, 8], sizes = [8, 8], strides = [1, 1]} : vector<8x32xf32> to vector<8x8xf32>
    %410 = vector.extract_strided_slice %405 {offsets = [0, 16], sizes = [8, 8], strides = [1, 1]} : vector<8x32xf32> to vector<8x8xf32>
    %411 = vector.extract_strided_slice %405 {offsets = [0, 24], sizes = [8, 8], strides = [1, 1]} : vector<8x32xf32> to vector<8x8xf32>
    %412 = vector.shape_cast %408 : vector<8x8xf32> to vector<1x8x8xf32>
    %413 = vector.shape_cast %409 : vector<8x8xf32> to vector<1x8x8xf32>
    %414 = vector.shape_cast %410 : vector<8x8xf32> to vector<1x8x8xf32>
    %415 = vector.shape_cast %411 : vector<8x8xf32> to vector<1x8x8xf32>
    %416 = tpu.concatenate %412, %413, %414, %415 in 0 : vector<1x8x8xf32>, vector<1x8x8xf32>, vector<1x8x8xf32>, vector<1x8x8xf32> -> vector<4x8x8xf32>
    %417 = arith.truncf %416 : vector<4x8x8xf32> to vector<4x8x8xbf16>
    %418 = vector.extract_strided_slice %406 {offsets = [0, 0], sizes = [8, 8], strides = [1, 1]} : vector<8x32xf32> to vector<8x8xf32>
    %419 = vector.extract_strided_slice %406 {offsets = [0, 8], sizes = [8, 8], strides = [1, 1]} : vector<8x32xf32> to vector<8x8xf32>
    %420 = vector.extract_strided_slice %406 {offsets = [0, 16], sizes = [8, 8], strides = [1, 1]} : vector<8x32xf32> to vector<8x8xf32>
    %421 = vector.extract_strided_slice %406 {offsets = [0, 24], sizes = [8, 8], strides = [1, 1]} : vector<8x32xf32> to vector<8x8xf32>
    %422 = vector.shape_cast %418 : vector<8x8xf32> to vector<1x8x8xf32>
    %423 = vector.shape_cast %419 : vector<8x8xf32> to vector<1x8x8xf32>
    %424 = vector.shape_cast %420 : vector<8x8xf32> to vector<1x8x8xf32>
    %425 = vector.shape_cast %421 : vector<8x8xf32> to vector<1x8x8xf32>
    %426 = tpu.concatenate %422, %423, %424, %425 in 0 : vector<1x8x8xf32>, vector<1x8x8xf32>, vector<1x8x8xf32>, vector<1x8x8xf32> -> vector<4x8x8xf32>
    %427 = arith.truncf %426 : vector<4x8x8xf32> to vector<4x8x8xbf16>
    %428 = vector.extract_strided_slice %407 {offsets = [0, 0], sizes = [8, 8], strides = [1, 1]} : vector<8x32xf32> to vector<8x8xf32>
    %429 = vector.extract_strided_slice %407 {offsets = [0, 8], sizes = [8, 8], strides = [1, 1]} : vector<8x32xf32> to vector<8x8xf32>
    %430 = vector.extract_strided_slice %407 {offsets = [0, 16], sizes = [8, 8], strides = [1, 1]} : vector<8x32xf32> to vector<8x8xf32>
    %431 = vector.extract_strided_slice %407 {offsets = [0, 24], sizes = [8, 8], strides = [1, 1]} : vector<8x32xf32> to vector<8x8xf32>
    %432 = vector.shape_cast %428 : vector<8x8xf32> to vector<1x8x8xf32>
    %433 = vector.shape_cast %429 : vector<8x8xf32> to vector<1x8x8xf32>
    %434 = vector.shape_cast %430 : vector<8x8xf32> to vector<1x8x8xf32>
    %435 = vector.shape_cast %431 : vector<8x8xf32> to vector<1x8x8xf32>
    %436 = tpu.concatenate %432, %433, %434, %435 in 0 : vector<1x8x8xf32>, vector<1x8x8xf32>, vector<1x8x8xf32>, vector<1x8x8xf32> -> vector<4x8x8xf32>
    %437 = arith.truncf %436 : vector<4x8x8xf32> to vector<4x8x8xbf16>
    %cst_114 = arith.constant dense<0.000000e+00> : vector<4x8x8xf32>
    %438 = tpu.matmul %417, %427, %cst_114 {dimension_numbers = #tpu.dot_dimension_numbers<[2], [2], [1], [1], [0, 0, 0, 1, 1, 1], [0], [0]>} : vector<4x8x8xbf16>, vector<4x8x8xbf16>, vector<4x8x8xf32> -> vector<4x8x8xf32>
    %439 = vector.broadcast %10 : vector<1x8x8xf32> to vector<4x8x8xf32>
    %440 = arith.addf %438, %439 : vector<4x8x8xf32>
    %cst_115 = arith.constant dense<0xFF800000> : vector<4x8xf32>
    %441 = vector.multi_reduction <maximumf>, %440, %cst_115 [2] : vector<4x8x8xf32> to vector<4x8xf32>
    %442 = vector.shape_cast %441 : vector<4x8xf32> to vector<4x8x1xf32>
    %443 = vector.broadcast %442 : vector<4x8x1xf32> to vector<4x8x8xf32>
    %444 = arith.subf %440, %443 : vector<4x8x8xf32>
    %445 = math.exp %444 : vector<4x8x8xf32>
    %cst_116 = arith.constant dense<0.000000e+00> : vector<4x8xf32>
    %446 = vector.multi_reduction <add>, %445, %cst_116 [2] : vector<4x8x8xf32> to vector<4x8xf32>
    %447 = vector.shape_cast %446 : vector<4x8xf32> to vector<4x8x1xf32>
    %448 = tpu.reciprocal %447 {approx = true} : vector<4x8x1xf32> -> vector<4x8x1xf32>
    %449 = vector.broadcast %448 : vector<4x8x1xf32> to vector<4x8x8xf32>
    %450 = arith.mulf %445, %449 : vector<4x8x8xf32>
    %451 = arith.truncf %450 : vector<4x8x8xf32> to vector<4x8x8xbf16>
    %cst_117 = arith.constant dense<0.000000e+00> : vector<4x8x8xf32>
    %452 = tpu.matmul %451, %437, %cst_117 {dimension_numbers = #tpu.dot_dimension_numbers<[2], [1], [1], [2], [0, 0, 0, 1, 1, 2], [0], [0]>} : vector<4x8x8xbf16>, vector<4x8x8xbf16>, vector<4x8x8xf32> -> vector<4x8x8xf32>
    %453 = vector.extract_strided_slice %452 {offsets = [0, 0, 0], sizes = [1, 8, 8], strides = [1, 1, 1]} : vector<4x8x8xf32> to vector<1x8x8xf32>
    %454 = vector.shape_cast %453 : vector<1x8x8xf32> to vector<8x8xf32>
    %455 = vector.extract_strided_slice %452 {offsets = [1, 0, 0], sizes = [1, 8, 8], strides = [1, 1, 1]} : vector<4x8x8xf32> to vector<1x8x8xf32>
    %456 = vector.shape_cast %455 : vector<1x8x8xf32> to vector<8x8xf32>
    %457 = vector.extract_strided_slice %452 {offsets = [2, 0, 0], sizes = [1, 8, 8], strides = [1, 1, 1]} : vector<4x8x8xf32> to vector<1x8x8xf32>
    %458 = vector.shape_cast %457 : vector<1x8x8xf32> to vector<8x8xf32>
    %459 = vector.extract_strided_slice %452 {offsets = [3, 0, 0], sizes = [1, 8, 8], strides = [1, 1, 1]} : vector<4x8x8xf32> to vector<1x8x8xf32>
    %460 = vector.shape_cast %459 : vector<1x8x8xf32> to vector<8x8xf32>
    %461 = tpu.concatenate %454, %456, %458, %460 in 1 : vector<8x8xf32>, vector<8x8xf32>, vector<8x8xf32>, vector<8x8xf32> -> vector<8x32xf32>
    %c0_118 = arith.constant 0 : index
    %c896 = arith.constant 896 : index
    %462 = vector.load %arg5[%c0_118, %c896] : memref<32x2432xbf16, #tpu.memory_space<vmem>>, vector<32x32xbf16>
    %c28 = arith.constant 28 : index
    %c0_119 = arith.constant 0 : index
    %463 = vector.load %arg7[%c28, %c0_119] : memref<56x128xf32, #tpu.memory_space<vmem>>, vector<1x32xf32>
    %464 = arith.truncf %461 : vector<8x32xf32> to vector<8x32xbf16>
    %cst_120 = arith.constant dense<0.000000e+00> : vector<8x32xf32>
    %465 = tpu.matmul %464, %462, %cst_120 {dimension_numbers = #tpu.dot_dimension_numbers<[1], [0], [0], [1], [0, 0, 1, 1], [], []>} : vector<8x32xbf16>, vector<32x32xbf16>, vector<8x32xf32> -> vector<8x32xf32>
    %466 = vector.broadcast %463 : vector<1x32xf32> to vector<8x32xf32>
    %467 = arith.addf %465, %466 : vector<8x32xf32>
    %468 = arith.addf %374, %467 : vector<8x32xf32>
    %c29 = arith.constant 29 : index
    %c0_121 = arith.constant 0 : index
    %469 = vector.load %arg7[%c29, %c0_121] : memref<56x128xf32, #tpu.memory_space<vmem>>, vector<1x32xf32>
    %c30 = arith.constant 30 : index
    %c0_122 = arith.constant 0 : index
    %470 = vector.load %arg7[%c30, %c0_122] : memref<56x128xf32, #tpu.memory_space<vmem>>, vector<1x32xf32>
    %cst_123 = arith.constant dense<0.000000e+00> : vector<8xf32>
    %471 = vector.multi_reduction <add>, %468, %cst_123 [1] : vector<8x32xf32> to vector<8xf32>
    %472 = vector.shape_cast %471 : vector<8xf32> to vector<8x1xf32>
    %cst_124 = arith.constant 3.200000e+01 : f32
    %473 = vector.broadcast %cst_124 : f32 to vector<8x1xf32>
    %474 = arith.divf %472, %473 : vector<8x1xf32>
    %475 = vector.broadcast %474 : vector<8x1xf32> to vector<8x32xf32>
    %476 = arith.subf %468, %475 : vector<8x32xf32>
    %477 = arith.mulf %476, %476 : vector<8x32xf32>
    %cst_125 = arith.constant dense<0.000000e+00> : vector<8xf32>
    %478 = vector.multi_reduction <add>, %477, %cst_125 [1] : vector<8x32xf32> to vector<8xf32>
    %479 = vector.shape_cast %478 : vector<8xf32> to vector<8x1xf32>
    %cst_126 = arith.constant 3.200000e+01 : f32
    %480 = vector.broadcast %cst_126 : f32 to vector<8x1xf32>
    %481 = arith.divf %479, %480 : vector<8x1xf32>
    %482 = vector.broadcast %474 : vector<8x1xf32> to vector<8x32xf32>
    %483 = arith.subf %468, %482 : vector<8x32xf32>
    %cst_127 = arith.constant 9.99999974E-6 : f32
    %484 = vector.broadcast %cst_127 : f32 to vector<8x1xf32>
    %485 = arith.addf %481, %484 : vector<8x1xf32>
    %486 = math.rsqrt %485 : vector<8x1xf32>
    %487 = vector.broadcast %486 : vector<8x1xf32> to vector<8x32xf32>
    %488 = arith.mulf %483, %487 : vector<8x32xf32>
    %489 = vector.broadcast %469 : vector<1x32xf32> to vector<8x32xf32>
    %490 = arith.mulf %488, %489 : vector<8x32xf32>
    %491 = vector.broadcast %470 : vector<1x32xf32> to vector<8x32xf32>
    %492 = arith.addf %490, %491 : vector<8x32xf32>
    %c0_128 = arith.constant 0 : index
    %c1024 = arith.constant 1024 : index
    %493 = vector.load %arg5[%c0_128, %c1024] : memref<32x2432xbf16, #tpu.memory_space<vmem>>, vector<32x32xbf16>
    %c31 = arith.constant 31 : index
    %c0_129 = arith.constant 0 : index
    %494 = vector.load %arg7[%c31, %c0_129] : memref<56x128xf32, #tpu.memory_space<vmem>>, vector<1x32xf32>
    %495 = arith.truncf %492 : vector<8x32xf32> to vector<8x32xbf16>
    %cst_130 = arith.constant dense<0.000000e+00> : vector<8x32xf32>
    %496 = tpu.matmul %495, %493, %cst_130 {dimension_numbers = #tpu.dot_dimension_numbers<[1], [0], [0], [1], [0, 0, 1, 1], [], []>} : vector<8x32xbf16>, vector<32x32xbf16>, vector<8x32xf32> -> vector<8x32xf32>
    %497 = vector.broadcast %494 : vector<1x32xf32> to vector<8x32xf32>
    %498 = arith.addf %496, %497 : vector<8x32xf32>
    %c0_131 = arith.constant 0 : index
    %c1152 = arith.constant 1152 : index
    %499 = vector.load %arg5[%c0_131, %c1152] : memref<32x2432xbf16, #tpu.memory_space<vmem>>, vector<32x64xbf16>
    %c32 = arith.constant 32 : index
    %c0_132 = arith.constant 0 : index
    %500 = vector.load %arg7[%c32, %c0_132] : memref<56x128xf32, #tpu.memory_space<vmem>>, vector<1x64xf32>
    %501 = arith.truncf %348 : vector<8x32xf32> to vector<8x32xbf16>
    %cst_133 = arith.constant dense<0.000000e+00> : vector<8x64xf32>
    %502 = tpu.matmul %501, %499, %cst_133 {dimension_numbers = #tpu.dot_dimension_numbers<[1], [0], [0], [1], [0, 0, 1, 1], [], []>} : vector<8x32xbf16>, vector<32x64xbf16>, vector<8x64xf32> -> vector<8x64xf32>
    %503 = vector.broadcast %500 : vector<1x64xf32> to vector<8x64xf32>
    %504 = arith.addf %502, %503 : vector<8x64xf32>
    %505 = vector.extract_strided_slice %504 {offsets = [0, 0], sizes = [8, 32], strides = [1, 1]} : vector<8x64xf32> to vector<8x32xf32>
    %506 = vector.extract_strided_slice %504 {offsets = [0, 32], sizes = [8, 32], strides = [1, 1]} : vector<8x64xf32> to vector<8x32xf32>
    %507 = vector.extract_strided_slice %498 {offsets = [0, 0], sizes = [8, 8], strides = [1, 1]} : vector<8x32xf32> to vector<8x8xf32>
    %508 = vector.extract_strided_slice %498 {offsets = [0, 8], sizes = [8, 8], strides = [1, 1]} : vector<8x32xf32> to vector<8x8xf32>
    %509 = vector.extract_strided_slice %498 {offsets = [0, 16], sizes = [8, 8], strides = [1, 1]} : vector<8x32xf32> to vector<8x8xf32>
    %510 = vector.extract_strided_slice %498 {offsets = [0, 24], sizes = [8, 8], strides = [1, 1]} : vector<8x32xf32> to vector<8x8xf32>
    %511 = vector.shape_cast %507 : vector<8x8xf32> to vector<1x8x8xf32>
    %512 = vector.shape_cast %508 : vector<8x8xf32> to vector<1x8x8xf32>
    %513 = vector.shape_cast %509 : vector<8x8xf32> to vector<1x8x8xf32>
    %514 = vector.shape_cast %510 : vector<8x8xf32> to vector<1x8x8xf32>
    %515 = tpu.concatenate %511, %512, %513, %514 in 0 : vector<1x8x8xf32>, vector<1x8x8xf32>, vector<1x8x8xf32>, vector<1x8x8xf32> -> vector<4x8x8xf32>
    %516 = arith.truncf %515 : vector<4x8x8xf32> to vector<4x8x8xbf16>
    %517 = vector.extract_strided_slice %505 {offsets = [0, 0], sizes = [8, 8], strides = [1, 1]} : vector<8x32xf32> to vector<8x8xf32>
    %518 = vector.extract_strided_slice %505 {offsets = [0, 8], sizes = [8, 8], strides = [1, 1]} : vector<8x32xf32> to vector<8x8xf32>
    %519 = vector.extract_strided_slice %505 {offsets = [0, 16], sizes = [8, 8], strides = [1, 1]} : vector<8x32xf32> to vector<8x8xf32>
    %520 = vector.extract_strided_slice %505 {offsets = [0, 24], sizes = [8, 8], strides = [1, 1]} : vector<8x32xf32> to vector<8x8xf32>
    %521 = vector.shape_cast %517 : vector<8x8xf32> to vector<1x8x8xf32>
    %522 = vector.shape_cast %518 : vector<8x8xf32> to vector<1x8x8xf32>
    %523 = vector.shape_cast %519 : vector<8x8xf32> to vector<1x8x8xf32>
    %524 = vector.shape_cast %520 : vector<8x8xf32> to vector<1x8x8xf32>
    %525 = tpu.concatenate %521, %522, %523, %524 in 0 : vector<1x8x8xf32>, vector<1x8x8xf32>, vector<1x8x8xf32>, vector<1x8x8xf32> -> vector<4x8x8xf32>
    %526 = arith.truncf %525 : vector<4x8x8xf32> to vector<4x8x8xbf16>
    %527 = vector.extract_strided_slice %506 {offsets = [0, 0], sizes = [8, 8], strides = [1, 1]} : vector<8x32xf32> to vector<8x8xf32>
    %528 = vector.extract_strided_slice %506 {offsets = [0, 8], sizes = [8, 8], strides = [1, 1]} : vector<8x32xf32> to vector<8x8xf32>
    %529 = vector.extract_strided_slice %506 {offsets = [0, 16], sizes = [8, 8], strides = [1, 1]} : vector<8x32xf32> to vector<8x8xf32>
    %530 = vector.extract_strided_slice %506 {offsets = [0, 24], sizes = [8, 8], strides = [1, 1]} : vector<8x32xf32> to vector<8x8xf32>
    %531 = vector.shape_cast %527 : vector<8x8xf32> to vector<1x8x8xf32>
    %532 = vector.shape_cast %528 : vector<8x8xf32> to vector<1x8x8xf32>
    %533 = vector.shape_cast %529 : vector<8x8xf32> to vector<1x8x8xf32>
    %534 = vector.shape_cast %530 : vector<8x8xf32> to vector<1x8x8xf32>
    %535 = tpu.concatenate %531, %532, %533, %534 in 0 : vector<1x8x8xf32>, vector<1x8x8xf32>, vector<1x8x8xf32>, vector<1x8x8xf32> -> vector<4x8x8xf32>
    %536 = arith.truncf %535 : vector<4x8x8xf32> to vector<4x8x8xbf16>
    %cst_134 = arith.constant dense<0.000000e+00> : vector<4x8x8xf32>
    %537 = tpu.matmul %516, %526, %cst_134 {dimension_numbers = #tpu.dot_dimension_numbers<[2], [2], [1], [1], [0, 0, 0, 1, 1, 1], [0], [0]>} : vector<4x8x8xbf16>, vector<4x8x8xbf16>, vector<4x8x8xf32> -> vector<4x8x8xf32>
    %538 = vector.broadcast %4 : vector<1x1x8xf32> to vector<4x8x8xf32>
    %539 = arith.addf %537, %538 : vector<4x8x8xf32>
    %cst_135 = arith.constant dense<0xFF800000> : vector<4x8xf32>
    %540 = vector.multi_reduction <maximumf>, %539, %cst_135 [2] : vector<4x8x8xf32> to vector<4x8xf32>
    %541 = vector.shape_cast %540 : vector<4x8xf32> to vector<4x8x1xf32>
    %542 = vector.broadcast %541 : vector<4x8x1xf32> to vector<4x8x8xf32>
    %543 = arith.subf %539, %542 : vector<4x8x8xf32>
    %544 = math.exp %543 : vector<4x8x8xf32>
    %cst_136 = arith.constant dense<0.000000e+00> : vector<4x8xf32>
    %545 = vector.multi_reduction <add>, %544, %cst_136 [2] : vector<4x8x8xf32> to vector<4x8xf32>
    %546 = vector.shape_cast %545 : vector<4x8xf32> to vector<4x8x1xf32>
    %547 = tpu.reciprocal %546 {approx = true} : vector<4x8x1xf32> -> vector<4x8x1xf32>
    %548 = vector.broadcast %547 : vector<4x8x1xf32> to vector<4x8x8xf32>
    %549 = arith.mulf %544, %548 : vector<4x8x8xf32>
    %550 = arith.truncf %549 : vector<4x8x8xf32> to vector<4x8x8xbf16>
    %cst_137 = arith.constant dense<0.000000e+00> : vector<4x8x8xf32>
    %551 = tpu.matmul %550, %536, %cst_137 {dimension_numbers = #tpu.dot_dimension_numbers<[2], [1], [1], [2], [0, 0, 0, 1, 1, 2], [0], [0]>} : vector<4x8x8xbf16>, vector<4x8x8xbf16>, vector<4x8x8xf32> -> vector<4x8x8xf32>
    %552 = vector.extract_strided_slice %551 {offsets = [0, 0, 0], sizes = [1, 8, 8], strides = [1, 1, 1]} : vector<4x8x8xf32> to vector<1x8x8xf32>
    %553 = vector.shape_cast %552 : vector<1x8x8xf32> to vector<8x8xf32>
    %554 = vector.extract_strided_slice %551 {offsets = [1, 0, 0], sizes = [1, 8, 8], strides = [1, 1, 1]} : vector<4x8x8xf32> to vector<1x8x8xf32>
    %555 = vector.shape_cast %554 : vector<1x8x8xf32> to vector<8x8xf32>
    %556 = vector.extract_strided_slice %551 {offsets = [2, 0, 0], sizes = [1, 8, 8], strides = [1, 1, 1]} : vector<4x8x8xf32> to vector<1x8x8xf32>
    %557 = vector.shape_cast %556 : vector<1x8x8xf32> to vector<8x8xf32>
    %558 = vector.extract_strided_slice %551 {offsets = [3, 0, 0], sizes = [1, 8, 8], strides = [1, 1, 1]} : vector<4x8x8xf32> to vector<1x8x8xf32>
    %559 = vector.shape_cast %558 : vector<1x8x8xf32> to vector<8x8xf32>
    %560 = tpu.concatenate %553, %555, %557, %559 in 1 : vector<8x8xf32>, vector<8x8xf32>, vector<8x8xf32>, vector<8x8xf32> -> vector<8x32xf32>
    %c0_138 = arith.constant 0 : index
    %c1280 = arith.constant 1280 : index
    %561 = vector.load %arg5[%c0_138, %c1280] : memref<32x2432xbf16, #tpu.memory_space<vmem>>, vector<32x32xbf16>
    %c33 = arith.constant 33 : index
    %c0_139 = arith.constant 0 : index
    %562 = vector.load %arg7[%c33, %c0_139] : memref<56x128xf32, #tpu.memory_space<vmem>>, vector<1x32xf32>
    %563 = arith.truncf %560 : vector<8x32xf32> to vector<8x32xbf16>
    %cst_140 = arith.constant dense<0.000000e+00> : vector<8x32xf32>
    %564 = tpu.matmul %563, %561, %cst_140 {dimension_numbers = #tpu.dot_dimension_numbers<[1], [0], [0], [1], [0, 0, 1, 1], [], []>} : vector<8x32xbf16>, vector<32x32xbf16>, vector<8x32xf32> -> vector<8x32xf32>
    %565 = vector.broadcast %562 : vector<1x32xf32> to vector<8x32xf32>
    %566 = arith.addf %564, %565 : vector<8x32xf32>
    %567 = arith.addf %468, %566 : vector<8x32xf32>
    %c34 = arith.constant 34 : index
    %c0_141 = arith.constant 0 : index
    %568 = vector.load %arg7[%c34, %c0_141] : memref<56x128xf32, #tpu.memory_space<vmem>>, vector<1x32xf32>
    %c35 = arith.constant 35 : index
    %c0_142 = arith.constant 0 : index
    %569 = vector.load %arg7[%c35, %c0_142] : memref<56x128xf32, #tpu.memory_space<vmem>>, vector<1x32xf32>
    %cst_143 = arith.constant dense<0.000000e+00> : vector<8xf32>
    %570 = vector.multi_reduction <add>, %567, %cst_143 [1] : vector<8x32xf32> to vector<8xf32>
    %571 = vector.shape_cast %570 : vector<8xf32> to vector<8x1xf32>
    %cst_144 = arith.constant 3.200000e+01 : f32
    %572 = vector.broadcast %cst_144 : f32 to vector<8x1xf32>
    %573 = arith.divf %571, %572 : vector<8x1xf32>
    %574 = vector.broadcast %573 : vector<8x1xf32> to vector<8x32xf32>
    %575 = arith.subf %567, %574 : vector<8x32xf32>
    %576 = arith.mulf %575, %575 : vector<8x32xf32>
    %cst_145 = arith.constant dense<0.000000e+00> : vector<8xf32>
    %577 = vector.multi_reduction <add>, %576, %cst_145 [1] : vector<8x32xf32> to vector<8xf32>
    %578 = vector.shape_cast %577 : vector<8xf32> to vector<8x1xf32>
    %cst_146 = arith.constant 3.200000e+01 : f32
    %579 = vector.broadcast %cst_146 : f32 to vector<8x1xf32>
    %580 = arith.divf %578, %579 : vector<8x1xf32>
    %581 = vector.broadcast %573 : vector<8x1xf32> to vector<8x32xf32>
    %582 = arith.subf %567, %581 : vector<8x32xf32>
    %cst_147 = arith.constant 9.99999974E-6 : f32
    %583 = vector.broadcast %cst_147 : f32 to vector<8x1xf32>
    %584 = arith.addf %580, %583 : vector<8x1xf32>
    %585 = math.rsqrt %584 : vector<8x1xf32>
    %586 = vector.broadcast %585 : vector<8x1xf32> to vector<8x32xf32>
    %587 = arith.mulf %582, %586 : vector<8x32xf32>
    %588 = vector.broadcast %568 : vector<1x32xf32> to vector<8x32xf32>
    %589 = arith.mulf %587, %588 : vector<8x32xf32>
    %590 = vector.broadcast %569 : vector<1x32xf32> to vector<8x32xf32>
    %591 = arith.addf %589, %590 : vector<8x32xf32>
    %c0_148 = arith.constant 0 : index
    %c1408 = arith.constant 1408 : index
    %592 = vector.load %arg5[%c0_148, %c1408] : memref<32x2432xbf16, #tpu.memory_space<vmem>>, vector<32x64xbf16>
    %c36 = arith.constant 36 : index
    %c0_149 = arith.constant 0 : index
    %593 = vector.load %arg7[%c36, %c0_149] : memref<56x128xf32, #tpu.memory_space<vmem>>, vector<1x64xf32>
    %594 = arith.truncf %591 : vector<8x32xf32> to vector<8x32xbf16>
    %cst_150 = arith.constant dense<0.000000e+00> : vector<8x64xf32>
    %595 = tpu.matmul %594, %592, %cst_150 {dimension_numbers = #tpu.dot_dimension_numbers<[1], [0], [0], [1], [0, 0, 1, 1], [], []>} : vector<8x32xbf16>, vector<32x64xbf16>, vector<8x64xf32> -> vector<8x64xf32>
    %596 = vector.broadcast %593 : vector<1x64xf32> to vector<8x64xf32>
    %597 = arith.addf %595, %596 : vector<8x64xf32>
    %598 = arith.mulf %597, %597 : vector<8x64xf32>
    %599 = arith.mulf %597, %598 : vector<8x64xf32>
    %cst_151 = arith.constant 4.471500e-02 : f32
    %600 = vector.broadcast %cst_151 : f32 to vector<8x64xf32>
    %601 = arith.mulf %600, %599 : vector<8x64xf32>
    %602 = arith.addf %597, %601 : vector<8x64xf32>
    %cst_152 = arith.constant 0.797884583 : f32
    %603 = vector.broadcast %cst_152 : f32 to vector<8x64xf32>
    %604 = arith.mulf %603, %602 : vector<8x64xf32>
    %605 = math.tanh %604 : vector<8x64xf32>
    %cst_153 = arith.constant 1.000000e+00 : f32
    %606 = vector.broadcast %cst_153 : f32 to vector<8x64xf32>
    %607 = arith.addf %606, %605 : vector<8x64xf32>
    %cst_154 = arith.constant 5.000000e-01 : f32
    %608 = vector.broadcast %cst_154 : f32 to vector<8x64xf32>
    %609 = arith.mulf %608, %607 : vector<8x64xf32>
    %610 = arith.mulf %597, %609 : vector<8x64xf32>
    %c0_155 = arith.constant 0 : index
    %c256_156 = arith.constant 256 : index
    %611 = vector.load %arg6[%c0_155, %c256_156] : memref<64x512xbf16, #tpu.memory_space<vmem>>, vector<64x32xbf16>
    %c37 = arith.constant 37 : index
    %c0_157 = arith.constant 0 : index
    %612 = vector.load %arg7[%c37, %c0_157] : memref<56x128xf32, #tpu.memory_space<vmem>>, vector<1x32xf32>
    %613 = arith.truncf %610 : vector<8x64xf32> to vector<8x64xbf16>
    %cst_158 = arith.constant dense<0.000000e+00> : vector<8x32xf32>
    %614 = tpu.matmul %613, %611, %cst_158 {dimension_numbers = #tpu.dot_dimension_numbers<[1], [0], [0], [1], [0, 0, 1, 1], [], []>} : vector<8x64xbf16>, vector<64x32xbf16>, vector<8x32xf32> -> vector<8x32xf32>
    %615 = vector.broadcast %612 : vector<1x32xf32> to vector<8x32xf32>
    %616 = arith.addf %614, %615 : vector<8x32xf32>
    %617 = arith.addf %567, %616 : vector<8x32xf32>
    %c38 = arith.constant 38 : index
    %c0_159 = arith.constant 0 : index
    %618 = vector.load %arg7[%c38, %c0_159] : memref<56x128xf32, #tpu.memory_space<vmem>>, vector<1x32xf32>
    %c39 = arith.constant 39 : index
    %c0_160 = arith.constant 0 : index
    %619 = vector.load %arg7[%c39, %c0_160] : memref<56x128xf32, #tpu.memory_space<vmem>>, vector<1x32xf32>
    %cst_161 = arith.constant dense<0.000000e+00> : vector<8xf32>
    %620 = vector.multi_reduction <add>, %617, %cst_161 [1] : vector<8x32xf32> to vector<8xf32>
    %621 = vector.shape_cast %620 : vector<8xf32> to vector<8x1xf32>
    %cst_162 = arith.constant 3.200000e+01 : f32
    %622 = vector.broadcast %cst_162 : f32 to vector<8x1xf32>
    %623 = arith.divf %621, %622 : vector<8x1xf32>
    %624 = vector.broadcast %623 : vector<8x1xf32> to vector<8x32xf32>
    %625 = arith.subf %617, %624 : vector<8x32xf32>
    %626 = arith.mulf %625, %625 : vector<8x32xf32>
    %cst_163 = arith.constant dense<0.000000e+00> : vector<8xf32>
    %627 = vector.multi_reduction <add>, %626, %cst_163 [1] : vector<8x32xf32> to vector<8xf32>
    %628 = vector.shape_cast %627 : vector<8xf32> to vector<8x1xf32>
    %cst_164 = arith.constant 3.200000e+01 : f32
    %629 = vector.broadcast %cst_164 : f32 to vector<8x1xf32>
    %630 = arith.divf %628, %629 : vector<8x1xf32>
    %631 = vector.broadcast %623 : vector<8x1xf32> to vector<8x32xf32>
    %632 = arith.subf %617, %631 : vector<8x32xf32>
    %cst_165 = arith.constant 9.99999974E-6 : f32
    %633 = vector.broadcast %cst_165 : f32 to vector<8x1xf32>
    %634 = arith.addf %630, %633 : vector<8x1xf32>
    %635 = math.rsqrt %634 : vector<8x1xf32>
    %636 = vector.broadcast %635 : vector<8x1xf32> to vector<8x32xf32>
    %637 = arith.mulf %632, %636 : vector<8x32xf32>
    %638 = vector.broadcast %618 : vector<1x32xf32> to vector<8x32xf32>
    %639 = arith.mulf %637, %638 : vector<8x32xf32>
    %640 = vector.broadcast %619 : vector<1x32xf32> to vector<8x32xf32>
    %641 = arith.addf %639, %640 : vector<8x32xf32>
    %c0_166 = arith.constant 0 : index
    %c1536 = arith.constant 1536 : index
    %642 = vector.load %arg5[%c0_166, %c1536] : memref<32x2432xbf16, #tpu.memory_space<vmem>>, vector<32x96xbf16>
    %c40 = arith.constant 40 : index
    %c0_167 = arith.constant 0 : index
    %643 = vector.load %arg7[%c40, %c0_167] : memref<56x128xf32, #tpu.memory_space<vmem>>, vector<1x96xf32>
    %644 = arith.truncf %641 : vector<8x32xf32> to vector<8x32xbf16>
    %cst_168 = arith.constant dense<0.000000e+00> : vector<8x96xf32>
    %645 = tpu.matmul %644, %642, %cst_168 {dimension_numbers = #tpu.dot_dimension_numbers<[1], [0], [0], [1], [0, 0, 1, 1], [], []>} : vector<8x32xbf16>, vector<32x96xbf16>, vector<8x96xf32> -> vector<8x96xf32>
    %646 = vector.broadcast %643 : vector<1x96xf32> to vector<8x96xf32>
    %647 = arith.addf %645, %646 : vector<8x96xf32>
    %648 = vector.extract_strided_slice %647 {offsets = [0, 0], sizes = [8, 32], strides = [1, 1]} : vector<8x96xf32> to vector<8x32xf32>
    %649 = vector.extract_strided_slice %647 {offsets = [0, 32], sizes = [8, 32], strides = [1, 1]} : vector<8x96xf32> to vector<8x32xf32>
    %650 = vector.extract_strided_slice %647 {offsets = [0, 64], sizes = [8, 32], strides = [1, 1]} : vector<8x96xf32> to vector<8x32xf32>
    %651 = vector.extract_strided_slice %648 {offsets = [0, 0], sizes = [8, 8], strides = [1, 1]} : vector<8x32xf32> to vector<8x8xf32>
    %652 = vector.extract_strided_slice %648 {offsets = [0, 8], sizes = [8, 8], strides = [1, 1]} : vector<8x32xf32> to vector<8x8xf32>
    %653 = vector.extract_strided_slice %648 {offsets = [0, 16], sizes = [8, 8], strides = [1, 1]} : vector<8x32xf32> to vector<8x8xf32>
    %654 = vector.extract_strided_slice %648 {offsets = [0, 24], sizes = [8, 8], strides = [1, 1]} : vector<8x32xf32> to vector<8x8xf32>
    %655 = vector.shape_cast %651 : vector<8x8xf32> to vector<1x8x8xf32>
    %656 = vector.shape_cast %652 : vector<8x8xf32> to vector<1x8x8xf32>
    %657 = vector.shape_cast %653 : vector<8x8xf32> to vector<1x8x8xf32>
    %658 = vector.shape_cast %654 : vector<8x8xf32> to vector<1x8x8xf32>
    %659 = tpu.concatenate %655, %656, %657, %658 in 0 : vector<1x8x8xf32>, vector<1x8x8xf32>, vector<1x8x8xf32>, vector<1x8x8xf32> -> vector<4x8x8xf32>
    %660 = arith.truncf %659 : vector<4x8x8xf32> to vector<4x8x8xbf16>
    %661 = vector.extract_strided_slice %649 {offsets = [0, 0], sizes = [8, 8], strides = [1, 1]} : vector<8x32xf32> to vector<8x8xf32>
    %662 = vector.extract_strided_slice %649 {offsets = [0, 8], sizes = [8, 8], strides = [1, 1]} : vector<8x32xf32> to vector<8x8xf32>
    %663 = vector.extract_strided_slice %649 {offsets = [0, 16], sizes = [8, 8], strides = [1, 1]} : vector<8x32xf32> to vector<8x8xf32>
    %664 = vector.extract_strided_slice %649 {offsets = [0, 24], sizes = [8, 8], strides = [1, 1]} : vector<8x32xf32> to vector<8x8xf32>
    %665 = vector.shape_cast %661 : vector<8x8xf32> to vector<1x8x8xf32>
    %666 = vector.shape_cast %662 : vector<8x8xf32> to vector<1x8x8xf32>
    %667 = vector.shape_cast %663 : vector<8x8xf32> to vector<1x8x8xf32>
    %668 = vector.shape_cast %664 : vector<8x8xf32> to vector<1x8x8xf32>
    %669 = tpu.concatenate %665, %666, %667, %668 in 0 : vector<1x8x8xf32>, vector<1x8x8xf32>, vector<1x8x8xf32>, vector<1x8x8xf32> -> vector<4x8x8xf32>
    %670 = arith.truncf %669 : vector<4x8x8xf32> to vector<4x8x8xbf16>
    %671 = vector.extract_strided_slice %650 {offsets = [0, 0], sizes = [8, 8], strides = [1, 1]} : vector<8x32xf32> to vector<8x8xf32>
    %672 = vector.extract_strided_slice %650 {offsets = [0, 8], sizes = [8, 8], strides = [1, 1]} : vector<8x32xf32> to vector<8x8xf32>
    %673 = vector.extract_strided_slice %650 {offsets = [0, 16], sizes = [8, 8], strides = [1, 1]} : vector<8x32xf32> to vector<8x8xf32>
    %674 = vector.extract_strided_slice %650 {offsets = [0, 24], sizes = [8, 8], strides = [1, 1]} : vector<8x32xf32> to vector<8x8xf32>
    %675 = vector.shape_cast %671 : vector<8x8xf32> to vector<1x8x8xf32>
    %676 = vector.shape_cast %672 : vector<8x8xf32> to vector<1x8x8xf32>
    %677 = vector.shape_cast %673 : vector<8x8xf32> to vector<1x8x8xf32>
    %678 = vector.shape_cast %674 : vector<8x8xf32> to vector<1x8x8xf32>
    %679 = tpu.concatenate %675, %676, %677, %678 in 0 : vector<1x8x8xf32>, vector<1x8x8xf32>, vector<1x8x8xf32>, vector<1x8x8xf32> -> vector<4x8x8xf32>
    %680 = arith.truncf %679 : vector<4x8x8xf32> to vector<4x8x8xbf16>
    %cst_169 = arith.constant dense<0.000000e+00> : vector<4x8x8xf32>
    %681 = tpu.matmul %660, %670, %cst_169 {dimension_numbers = #tpu.dot_dimension_numbers<[2], [2], [1], [1], [0, 0, 0, 1, 1, 1], [0], [0]>} : vector<4x8x8xbf16>, vector<4x8x8xbf16>, vector<4x8x8xf32> -> vector<4x8x8xf32>
    %682 = vector.broadcast %10 : vector<1x8x8xf32> to vector<4x8x8xf32>
    %683 = arith.addf %681, %682 : vector<4x8x8xf32>
    %cst_170 = arith.constant dense<0xFF800000> : vector<4x8xf32>
    %684 = vector.multi_reduction <maximumf>, %683, %cst_170 [2] : vector<4x8x8xf32> to vector<4x8xf32>
    %685 = vector.shape_cast %684 : vector<4x8xf32> to vector<4x8x1xf32>
    %686 = vector.broadcast %685 : vector<4x8x1xf32> to vector<4x8x8xf32>
    %687 = arith.subf %683, %686 : vector<4x8x8xf32>
    %688 = math.exp %687 : vector<4x8x8xf32>
    %cst_171 = arith.constant dense<0.000000e+00> : vector<4x8xf32>
    %689 = vector.multi_reduction <add>, %688, %cst_171 [2] : vector<4x8x8xf32> to vector<4x8xf32>
    %690 = vector.shape_cast %689 : vector<4x8xf32> to vector<4x8x1xf32>
    %691 = tpu.reciprocal %690 {approx = true} : vector<4x8x1xf32> -> vector<4x8x1xf32>
    %692 = vector.broadcast %691 : vector<4x8x1xf32> to vector<4x8x8xf32>
    %693 = arith.mulf %688, %692 : vector<4x8x8xf32>
    %694 = arith.truncf %693 : vector<4x8x8xf32> to vector<4x8x8xbf16>
    %cst_172 = arith.constant dense<0.000000e+00> : vector<4x8x8xf32>
    %695 = tpu.matmul %694, %680, %cst_172 {dimension_numbers = #tpu.dot_dimension_numbers<[2], [1], [1], [2], [0, 0, 0, 1, 1, 2], [0], [0]>} : vector<4x8x8xbf16>, vector<4x8x8xbf16>, vector<4x8x8xf32> -> vector<4x8x8xf32>
    %696 = vector.extract_strided_slice %695 {offsets = [0, 0, 0], sizes = [1, 8, 8], strides = [1, 1, 1]} : vector<4x8x8xf32> to vector<1x8x8xf32>
    %697 = vector.shape_cast %696 : vector<1x8x8xf32> to vector<8x8xf32>
    %698 = vector.extract_strided_slice %695 {offsets = [1, 0, 0], sizes = [1, 8, 8], strides = [1, 1, 1]} : vector<4x8x8xf32> to vector<1x8x8xf32>
    %699 = vector.shape_cast %698 : vector<1x8x8xf32> to vector<8x8xf32>
    %700 = vector.extract_strided_slice %695 {offsets = [2, 0, 0], sizes = [1, 8, 8], strides = [1, 1, 1]} : vector<4x8x8xf32> to vector<1x8x8xf32>
    %701 = vector.shape_cast %700 : vector<1x8x8xf32> to vector<8x8xf32>
    %702 = vector.extract_strided_slice %695 {offsets = [3, 0, 0], sizes = [1, 8, 8], strides = [1, 1, 1]} : vector<4x8x8xf32> to vector<1x8x8xf32>
    %703 = vector.shape_cast %702 : vector<1x8x8xf32> to vector<8x8xf32>
    %704 = tpu.concatenate %697, %699, %701, %703 in 1 : vector<8x8xf32>, vector<8x8xf32>, vector<8x8xf32>, vector<8x8xf32> -> vector<8x32xf32>
    %c0_173 = arith.constant 0 : index
    %c1664 = arith.constant 1664 : index
    %705 = vector.load %arg5[%c0_173, %c1664] : memref<32x2432xbf16, #tpu.memory_space<vmem>>, vector<32x32xbf16>
    %c41 = arith.constant 41 : index
    %c0_174 = arith.constant 0 : index
    %706 = vector.load %arg7[%c41, %c0_174] : memref<56x128xf32, #tpu.memory_space<vmem>>, vector<1x32xf32>
    %707 = arith.truncf %704 : vector<8x32xf32> to vector<8x32xbf16>
    %cst_175 = arith.constant dense<0.000000e+00> : vector<8x32xf32>
    %708 = tpu.matmul %707, %705, %cst_175 {dimension_numbers = #tpu.dot_dimension_numbers<[1], [0], [0], [1], [0, 0, 1, 1], [], []>} : vector<8x32xbf16>, vector<32x32xbf16>, vector<8x32xf32> -> vector<8x32xf32>
    %709 = vector.broadcast %706 : vector<1x32xf32> to vector<8x32xf32>
    %710 = arith.addf %708, %709 : vector<8x32xf32>
    %711 = arith.addf %617, %710 : vector<8x32xf32>
    %c42 = arith.constant 42 : index
    %c0_176 = arith.constant 0 : index
    %712 = vector.load %arg7[%c42, %c0_176] : memref<56x128xf32, #tpu.memory_space<vmem>>, vector<1x32xf32>
    %c43 = arith.constant 43 : index
    %c0_177 = arith.constant 0 : index
    %713 = vector.load %arg7[%c43, %c0_177] : memref<56x128xf32, #tpu.memory_space<vmem>>, vector<1x32xf32>
    %cst_178 = arith.constant dense<0.000000e+00> : vector<8xf32>
    %714 = vector.multi_reduction <add>, %711, %cst_178 [1] : vector<8x32xf32> to vector<8xf32>
    %715 = vector.shape_cast %714 : vector<8xf32> to vector<8x1xf32>
    %cst_179 = arith.constant 3.200000e+01 : f32
    %716 = vector.broadcast %cst_179 : f32 to vector<8x1xf32>
    %717 = arith.divf %715, %716 : vector<8x1xf32>
    %718 = vector.broadcast %717 : vector<8x1xf32> to vector<8x32xf32>
    %719 = arith.subf %711, %718 : vector<8x32xf32>
    %720 = arith.mulf %719, %719 : vector<8x32xf32>
    %cst_180 = arith.constant dense<0.000000e+00> : vector<8xf32>
    %721 = vector.multi_reduction <add>, %720, %cst_180 [1] : vector<8x32xf32> to vector<8xf32>
    %722 = vector.shape_cast %721 : vector<8xf32> to vector<8x1xf32>
    %cst_181 = arith.constant 3.200000e+01 : f32
    %723 = vector.broadcast %cst_181 : f32 to vector<8x1xf32>
    %724 = arith.divf %722, %723 : vector<8x1xf32>
    %725 = vector.broadcast %717 : vector<8x1xf32> to vector<8x32xf32>
    %726 = arith.subf %711, %725 : vector<8x32xf32>
    %cst_182 = arith.constant 9.99999974E-6 : f32
    %727 = vector.broadcast %cst_182 : f32 to vector<8x1xf32>
    %728 = arith.addf %724, %727 : vector<8x1xf32>
    %729 = math.rsqrt %728 : vector<8x1xf32>
    %730 = vector.broadcast %729 : vector<8x1xf32> to vector<8x32xf32>
    %731 = arith.mulf %726, %730 : vector<8x32xf32>
    %732 = vector.broadcast %712 : vector<1x32xf32> to vector<8x32xf32>
    %733 = arith.mulf %731, %732 : vector<8x32xf32>
    %734 = vector.broadcast %713 : vector<1x32xf32> to vector<8x32xf32>
    %735 = arith.addf %733, %734 : vector<8x32xf32>
    %c0_183 = arith.constant 0 : index
    %c1792 = arith.constant 1792 : index
    %736 = vector.load %arg5[%c0_183, %c1792] : memref<32x2432xbf16, #tpu.memory_space<vmem>>, vector<32x32xbf16>
    %c44 = arith.constant 44 : index
    %c0_184 = arith.constant 0 : index
    %737 = vector.load %arg7[%c44, %c0_184] : memref<56x128xf32, #tpu.memory_space<vmem>>, vector<1x32xf32>
    %738 = arith.truncf %735 : vector<8x32xf32> to vector<8x32xbf16>
    %cst_185 = arith.constant dense<0.000000e+00> : vector<8x32xf32>
    %739 = tpu.matmul %738, %736, %cst_185 {dimension_numbers = #tpu.dot_dimension_numbers<[1], [0], [0], [1], [0, 0, 1, 1], [], []>} : vector<8x32xbf16>, vector<32x32xbf16>, vector<8x32xf32> -> vector<8x32xf32>
    %740 = vector.broadcast %737 : vector<1x32xf32> to vector<8x32xf32>
    %741 = arith.addf %739, %740 : vector<8x32xf32>
    %c0_186 = arith.constant 0 : index
    %c1920 = arith.constant 1920 : index
    %742 = vector.load %arg5[%c0_186, %c1920] : memref<32x2432xbf16, #tpu.memory_space<vmem>>, vector<32x64xbf16>
    %c45 = arith.constant 45 : index
    %c0_187 = arith.constant 0 : index
    %743 = vector.load %arg7[%c45, %c0_187] : memref<56x128xf32, #tpu.memory_space<vmem>>, vector<1x64xf32>
    %744 = arith.truncf %348 : vector<8x32xf32> to vector<8x32xbf16>
    %cst_188 = arith.constant dense<0.000000e+00> : vector<8x64xf32>
    %745 = tpu.matmul %744, %742, %cst_188 {dimension_numbers = #tpu.dot_dimension_numbers<[1], [0], [0], [1], [0, 0, 1, 1], [], []>} : vector<8x32xbf16>, vector<32x64xbf16>, vector<8x64xf32> -> vector<8x64xf32>
    %746 = vector.broadcast %743 : vector<1x64xf32> to vector<8x64xf32>
    %747 = arith.addf %745, %746 : vector<8x64xf32>
    %748 = vector.extract_strided_slice %747 {offsets = [0, 0], sizes = [8, 32], strides = [1, 1]} : vector<8x64xf32> to vector<8x32xf32>
    %749 = vector.extract_strided_slice %747 {offsets = [0, 32], sizes = [8, 32], strides = [1, 1]} : vector<8x64xf32> to vector<8x32xf32>
    %750 = vector.extract_strided_slice %741 {offsets = [0, 0], sizes = [8, 8], strides = [1, 1]} : vector<8x32xf32> to vector<8x8xf32>
    %751 = vector.extract_strided_slice %741 {offsets = [0, 8], sizes = [8, 8], strides = [1, 1]} : vector<8x32xf32> to vector<8x8xf32>
    %752 = vector.extract_strided_slice %741 {offsets = [0, 16], sizes = [8, 8], strides = [1, 1]} : vector<8x32xf32> to vector<8x8xf32>
    %753 = vector.extract_strided_slice %741 {offsets = [0, 24], sizes = [8, 8], strides = [1, 1]} : vector<8x32xf32> to vector<8x8xf32>
    %754 = vector.shape_cast %750 : vector<8x8xf32> to vector<1x8x8xf32>
    %755 = vector.shape_cast %751 : vector<8x8xf32> to vector<1x8x8xf32>
    %756 = vector.shape_cast %752 : vector<8x8xf32> to vector<1x8x8xf32>
    %757 = vector.shape_cast %753 : vector<8x8xf32> to vector<1x8x8xf32>
    %758 = tpu.concatenate %754, %755, %756, %757 in 0 : vector<1x8x8xf32>, vector<1x8x8xf32>, vector<1x8x8xf32>, vector<1x8x8xf32> -> vector<4x8x8xf32>
    %759 = arith.truncf %758 : vector<4x8x8xf32> to vector<4x8x8xbf16>
    %760 = vector.extract_strided_slice %748 {offsets = [0, 0], sizes = [8, 8], strides = [1, 1]} : vector<8x32xf32> to vector<8x8xf32>
    %761 = vector.extract_strided_slice %748 {offsets = [0, 8], sizes = [8, 8], strides = [1, 1]} : vector<8x32xf32> to vector<8x8xf32>
    %762 = vector.extract_strided_slice %748 {offsets = [0, 16], sizes = [8, 8], strides = [1, 1]} : vector<8x32xf32> to vector<8x8xf32>
    %763 = vector.extract_strided_slice %748 {offsets = [0, 24], sizes = [8, 8], strides = [1, 1]} : vector<8x32xf32> to vector<8x8xf32>
    %764 = vector.shape_cast %760 : vector<8x8xf32> to vector<1x8x8xf32>
    %765 = vector.shape_cast %761 : vector<8x8xf32> to vector<1x8x8xf32>
    %766 = vector.shape_cast %762 : vector<8x8xf32> to vector<1x8x8xf32>
    %767 = vector.shape_cast %763 : vector<8x8xf32> to vector<1x8x8xf32>
    %768 = tpu.concatenate %764, %765, %766, %767 in 0 : vector<1x8x8xf32>, vector<1x8x8xf32>, vector<1x8x8xf32>, vector<1x8x8xf32> -> vector<4x8x8xf32>
    %769 = arith.truncf %768 : vector<4x8x8xf32> to vector<4x8x8xbf16>
    %770 = vector.extract_strided_slice %749 {offsets = [0, 0], sizes = [8, 8], strides = [1, 1]} : vector<8x32xf32> to vector<8x8xf32>
    %771 = vector.extract_strided_slice %749 {offsets = [0, 8], sizes = [8, 8], strides = [1, 1]} : vector<8x32xf32> to vector<8x8xf32>
    %772 = vector.extract_strided_slice %749 {offsets = [0, 16], sizes = [8, 8], strides = [1, 1]} : vector<8x32xf32> to vector<8x8xf32>
    %773 = vector.extract_strided_slice %749 {offsets = [0, 24], sizes = [8, 8], strides = [1, 1]} : vector<8x32xf32> to vector<8x8xf32>
    %774 = vector.shape_cast %770 : vector<8x8xf32> to vector<1x8x8xf32>
    %775 = vector.shape_cast %771 : vector<8x8xf32> to vector<1x8x8xf32>
    %776 = vector.shape_cast %772 : vector<8x8xf32> to vector<1x8x8xf32>
    %777 = vector.shape_cast %773 : vector<8x8xf32> to vector<1x8x8xf32>
    %778 = tpu.concatenate %774, %775, %776, %777 in 0 : vector<1x8x8xf32>, vector<1x8x8xf32>, vector<1x8x8xf32>, vector<1x8x8xf32> -> vector<4x8x8xf32>
    %779 = arith.truncf %778 : vector<4x8x8xf32> to vector<4x8x8xbf16>
    %cst_189 = arith.constant dense<0.000000e+00> : vector<4x8x8xf32>
    %780 = tpu.matmul %759, %769, %cst_189 {dimension_numbers = #tpu.dot_dimension_numbers<[2], [2], [1], [1], [0, 0, 0, 1, 1, 1], [0], [0]>} : vector<4x8x8xbf16>, vector<4x8x8xbf16>, vector<4x8x8xf32> -> vector<4x8x8xf32>
    %781 = vector.broadcast %4 : vector<1x1x8xf32> to vector<4x8x8xf32>
    %782 = arith.addf %780, %781 : vector<4x8x8xf32>
    %cst_190 = arith.constant dense<0xFF800000> : vector<4x8xf32>
    %783 = vector.multi_reduction <maximumf>, %782, %cst_190 [2] : vector<4x8x8xf32> to vector<4x8xf32>
    %784 = vector.shape_cast %783 : vector<4x8xf32> to vector<4x8x1xf32>
    %785 = vector.broadcast %784 : vector<4x8x1xf32> to vector<4x8x8xf32>
    %786 = arith.subf %782, %785 : vector<4x8x8xf32>
    %787 = math.exp %786 : vector<4x8x8xf32>
    %cst_191 = arith.constant dense<0.000000e+00> : vector<4x8xf32>
    %788 = vector.multi_reduction <add>, %787, %cst_191 [2] : vector<4x8x8xf32> to vector<4x8xf32>
    %789 = vector.shape_cast %788 : vector<4x8xf32> to vector<4x8x1xf32>
    %790 = tpu.reciprocal %789 {approx = true} : vector<4x8x1xf32> -> vector<4x8x1xf32>
    %791 = vector.broadcast %790 : vector<4x8x1xf32> to vector<4x8x8xf32>
    %792 = arith.mulf %787, %791 : vector<4x8x8xf32>
    %793 = arith.truncf %792 : vector<4x8x8xf32> to vector<4x8x8xbf16>
    %cst_192 = arith.constant dense<0.000000e+00> : vector<4x8x8xf32>
    %794 = tpu.matmul %793, %779, %cst_192 {dimension_numbers = #tpu.dot_dimension_numbers<[2], [1], [1], [2], [0, 0, 0, 1, 1, 2], [0], [0]>} : vector<4x8x8xbf16>, vector<4x8x8xbf16>, vector<4x8x8xf32> -> vector<4x8x8xf32>
    %795 = vector.extract_strided_slice %794 {offsets = [0, 0, 0], sizes = [1, 8, 8], strides = [1, 1, 1]} : vector<4x8x8xf32> to vector<1x8x8xf32>
    %796 = vector.shape_cast %795 : vector<1x8x8xf32> to vector<8x8xf32>
    %797 = vector.extract_strided_slice %794 {offsets = [1, 0, 0], sizes = [1, 8, 8], strides = [1, 1, 1]} : vector<4x8x8xf32> to vector<1x8x8xf32>
    %798 = vector.shape_cast %797 : vector<1x8x8xf32> to vector<8x8xf32>
    %799 = vector.extract_strided_slice %794 {offsets = [2, 0, 0], sizes = [1, 8, 8], strides = [1, 1, 1]} : vector<4x8x8xf32> to vector<1x8x8xf32>
    %800 = vector.shape_cast %799 : vector<1x8x8xf32> to vector<8x8xf32>
    %801 = vector.extract_strided_slice %794 {offsets = [3, 0, 0], sizes = [1, 8, 8], strides = [1, 1, 1]} : vector<4x8x8xf32> to vector<1x8x8xf32>
    %802 = vector.shape_cast %801 : vector<1x8x8xf32> to vector<8x8xf32>
    %803 = tpu.concatenate %796, %798, %800, %802 in 1 : vector<8x8xf32>, vector<8x8xf32>, vector<8x8xf32>, vector<8x8xf32> -> vector<8x32xf32>
    %c0_193 = arith.constant 0 : index
    %c2048 = arith.constant 2048 : index
    %804 = vector.load %arg5[%c0_193, %c2048] : memref<32x2432xbf16, #tpu.memory_space<vmem>>, vector<32x32xbf16>
    %c46 = arith.constant 46 : index
    %c0_194 = arith.constant 0 : index
    %805 = vector.load %arg7[%c46, %c0_194] : memref<56x128xf32, #tpu.memory_space<vmem>>, vector<1x32xf32>
    %806 = arith.truncf %803 : vector<8x32xf32> to vector<8x32xbf16>
    %cst_195 = arith.constant dense<0.000000e+00> : vector<8x32xf32>
    %807 = tpu.matmul %806, %804, %cst_195 {dimension_numbers = #tpu.dot_dimension_numbers<[1], [0], [0], [1], [0, 0, 1, 1], [], []>} : vector<8x32xbf16>, vector<32x32xbf16>, vector<8x32xf32> -> vector<8x32xf32>
    %808 = vector.broadcast %805 : vector<1x32xf32> to vector<8x32xf32>
    %809 = arith.addf %807, %808 : vector<8x32xf32>
    %810 = arith.addf %711, %809 : vector<8x32xf32>
    %c47 = arith.constant 47 : index
    %c0_196 = arith.constant 0 : index
    %811 = vector.load %arg7[%c47, %c0_196] : memref<56x128xf32, #tpu.memory_space<vmem>>, vector<1x32xf32>
    %c48 = arith.constant 48 : index
    %c0_197 = arith.constant 0 : index
    %812 = vector.load %arg7[%c48, %c0_197] : memref<56x128xf32, #tpu.memory_space<vmem>>, vector<1x32xf32>
    %cst_198 = arith.constant dense<0.000000e+00> : vector<8xf32>
    %813 = vector.multi_reduction <add>, %810, %cst_198 [1] : vector<8x32xf32> to vector<8xf32>
    %814 = vector.shape_cast %813 : vector<8xf32> to vector<8x1xf32>
    %cst_199 = arith.constant 3.200000e+01 : f32
    %815 = vector.broadcast %cst_199 : f32 to vector<8x1xf32>
    %816 = arith.divf %814, %815 : vector<8x1xf32>
    %817 = vector.broadcast %816 : vector<8x1xf32> to vector<8x32xf32>
    %818 = arith.subf %810, %817 : vector<8x32xf32>
    %819 = arith.mulf %818, %818 : vector<8x32xf32>
    %cst_200 = arith.constant dense<0.000000e+00> : vector<8xf32>
    %820 = vector.multi_reduction <add>, %819, %cst_200 [1] : vector<8x32xf32> to vector<8xf32>
    %821 = vector.shape_cast %820 : vector<8xf32> to vector<8x1xf32>
    %cst_201 = arith.constant 3.200000e+01 : f32
    %822 = vector.broadcast %cst_201 : f32 to vector<8x1xf32>
    %823 = arith.divf %821, %822 : vector<8x1xf32>
    %824 = vector.broadcast %816 : vector<8x1xf32> to vector<8x32xf32>
    %825 = arith.subf %810, %824 : vector<8x32xf32>
    %cst_202 = arith.constant 9.99999974E-6 : f32
    %826 = vector.broadcast %cst_202 : f32 to vector<8x1xf32>
    %827 = arith.addf %823, %826 : vector<8x1xf32>
    %828 = math.rsqrt %827 : vector<8x1xf32>
    %829 = vector.broadcast %828 : vector<8x1xf32> to vector<8x32xf32>
    %830 = arith.mulf %825, %829 : vector<8x32xf32>
    %831 = vector.broadcast %811 : vector<1x32xf32> to vector<8x32xf32>
    %832 = arith.mulf %830, %831 : vector<8x32xf32>
    %833 = vector.broadcast %812 : vector<1x32xf32> to vector<8x32xf32>
    %834 = arith.addf %832, %833 : vector<8x32xf32>
    %c0_203 = arith.constant 0 : index
    %c2176 = arith.constant 2176 : index
    %835 = vector.load %arg5[%c0_203, %c2176] : memref<32x2432xbf16, #tpu.memory_space<vmem>>, vector<32x64xbf16>
    %c49 = arith.constant 49 : index
    %c0_204 = arith.constant 0 : index
    %836 = vector.load %arg7[%c49, %c0_204] : memref<56x128xf32, #tpu.memory_space<vmem>>, vector<1x64xf32>
    %837 = arith.truncf %834 : vector<8x32xf32> to vector<8x32xbf16>
    %cst_205 = arith.constant dense<0.000000e+00> : vector<8x64xf32>
    %838 = tpu.matmul %837, %835, %cst_205 {dimension_numbers = #tpu.dot_dimension_numbers<[1], [0], [0], [1], [0, 0, 1, 1], [], []>} : vector<8x32xbf16>, vector<32x64xbf16>, vector<8x64xf32> -> vector<8x64xf32>
    %839 = vector.broadcast %836 : vector<1x64xf32> to vector<8x64xf32>
    %840 = arith.addf %838, %839 : vector<8x64xf32>
    %841 = arith.mulf %840, %840 : vector<8x64xf32>
    %842 = arith.mulf %840, %841 : vector<8x64xf32>
    %cst_206 = arith.constant 4.471500e-02 : f32
    %843 = vector.broadcast %cst_206 : f32 to vector<8x64xf32>
    %844 = arith.mulf %843, %842 : vector<8x64xf32>
    %845 = arith.addf %840, %844 : vector<8x64xf32>
    %cst_207 = arith.constant 0.797884583 : f32
    %846 = vector.broadcast %cst_207 : f32 to vector<8x64xf32>
    %847 = arith.mulf %846, %845 : vector<8x64xf32>
    %848 = math.tanh %847 : vector<8x64xf32>
    %cst_208 = arith.constant 1.000000e+00 : f32
    %849 = vector.broadcast %cst_208 : f32 to vector<8x64xf32>
    %850 = arith.addf %849, %848 : vector<8x64xf32>
    %cst_209 = arith.constant 5.000000e-01 : f32
    %851 = vector.broadcast %cst_209 : f32 to vector<8x64xf32>
    %852 = arith.mulf %851, %850 : vector<8x64xf32>
    %853 = arith.mulf %840, %852 : vector<8x64xf32>
    %c0_210 = arith.constant 0 : index
    %c384_211 = arith.constant 384 : index
    %854 = vector.load %arg6[%c0_210, %c384_211] : memref<64x512xbf16, #tpu.memory_space<vmem>>, vector<64x32xbf16>
    %c50 = arith.constant 50 : index
    %c0_212 = arith.constant 0 : index
    %855 = vector.load %arg7[%c50, %c0_212] : memref<56x128xf32, #tpu.memory_space<vmem>>, vector<1x32xf32>
    %856 = arith.truncf %853 : vector<8x64xf32> to vector<8x64xbf16>
    %cst_213 = arith.constant dense<0.000000e+00> : vector<8x32xf32>
    %857 = tpu.matmul %856, %854, %cst_213 {dimension_numbers = #tpu.dot_dimension_numbers<[1], [0], [0], [1], [0, 0, 1, 1], [], []>} : vector<8x64xbf16>, vector<64x32xbf16>, vector<8x32xf32> -> vector<8x32xf32>
    %858 = vector.broadcast %855 : vector<1x32xf32> to vector<8x32xf32>
    %859 = arith.addf %857, %858 : vector<8x32xf32>
    %860 = arith.addf %810, %859 : vector<8x32xf32>
    %c6 = arith.constant 6 : index
    %c0_214 = arith.constant 0 : index
    %861 = vector.load %arg7[%c6, %c0_214] : memref<56x128xf32, #tpu.memory_space<vmem>>, vector<1x32xf32>
    %c7 = arith.constant 7 : index
    %c0_215 = arith.constant 0 : index
    %862 = vector.load %arg7[%c7, %c0_215] : memref<56x128xf32, #tpu.memory_space<vmem>>, vector<1x32xf32>
    %cst_216 = arith.constant dense<0.000000e+00> : vector<8xf32>
    %863 = vector.multi_reduction <add>, %860, %cst_216 [1] : vector<8x32xf32> to vector<8xf32>
    %864 = vector.shape_cast %863 : vector<8xf32> to vector<8x1xf32>
    %cst_217 = arith.constant 3.200000e+01 : f32
    %865 = vector.broadcast %cst_217 : f32 to vector<8x1xf32>
    %866 = arith.divf %864, %865 : vector<8x1xf32>
    %867 = vector.broadcast %866 : vector<8x1xf32> to vector<8x32xf32>
    %868 = arith.subf %860, %867 : vector<8x32xf32>
    %869 = arith.mulf %868, %868 : vector<8x32xf32>
    %cst_218 = arith.constant dense<0.000000e+00> : vector<8xf32>
    %870 = vector.multi_reduction <add>, %869, %cst_218 [1] : vector<8x32xf32> to vector<8xf32>
    %871 = vector.shape_cast %870 : vector<8xf32> to vector<8x1xf32>
    %cst_219 = arith.constant 3.200000e+01 : f32
    %872 = vector.broadcast %cst_219 : f32 to vector<8x1xf32>
    %873 = arith.divf %871, %872 : vector<8x1xf32>
    %874 = vector.broadcast %866 : vector<8x1xf32> to vector<8x32xf32>
    %875 = arith.subf %860, %874 : vector<8x32xf32>
    %cst_220 = arith.constant 9.99999974E-6 : f32
    %876 = vector.broadcast %cst_220 : f32 to vector<8x1xf32>
    %877 = arith.addf %873, %876 : vector<8x1xf32>
    %878 = math.rsqrt %877 : vector<8x1xf32>
    %879 = vector.broadcast %878 : vector<8x1xf32> to vector<8x32xf32>
    %880 = arith.mulf %875, %879 : vector<8x32xf32>
    %881 = vector.broadcast %861 : vector<1x32xf32> to vector<8x32xf32>
    %882 = arith.mulf %880, %881 : vector<8x32xf32>
    %883 = vector.broadcast %862 : vector<1x32xf32> to vector<8x32xf32>
    %884 = arith.addf %882, %883 : vector<8x32xf32>
    %885 = arith.truncf %884 : vector<8x32xf32> to vector<8x32xbf16>
    %c0_221 = arith.constant 0 : index
    %c2304 = arith.constant 2304 : index
    %886 = vector.load %arg5[%c0_221, %c2304] : memref<32x2432xbf16, #tpu.memory_space<vmem>>, vector<32x128xbf16>
    %cst_222 = arith.constant dense<0.000000e+00> : vector<8x128xf32>
    %887 = tpu.matmul %885, %886, %cst_222 {dimension_numbers = #tpu.dot_dimension_numbers<[1], [0], [0], [1], [0, 0, 1, 1], [], []>} : vector<8x32xbf16>, vector<32x128xbf16>, vector<8x128xf32> -> vector<8x128xf32>
    %c8 = arith.constant 8 : index
    %c0_223 = arith.constant 0 : index
    %888 = vector.load %arg7[%c8, %c0_223] : memref<56x128xf32, #tpu.memory_space<vmem>>, vector<1x128xf32>
    %889 = vector.broadcast %888 : vector<1x128xf32> to vector<8x128xf32>
    %890 = arith.addf %887, %889 : vector<8x128xf32>
    %c0_224 = arith.constant 0 : index
    %c0_225 = arith.constant 0 : index
    %c0_226 = arith.constant 0 : index
    %891 = vector.load %arg8[%c0_224, %c0_225, %c0_226] : memref<1x8x128xf32, #tpu.memory_space<vmem>>, vector<1x8x128xf32>
    %892 = vector.shape_cast %891 : vector<1x8x128xf32> to vector<8x128xf32>
    %893 = vector.shape_cast %890 : vector<8x128xf32> to vector<1x8x128xf32>
    tpu.vector_store %arg8[%c0_224, %c0_225, %c0_226], %893 {strides = array<i32>} : memref<1x8x128xf32, #tpu.memory_space<vmem>>, vector<1x8x128xf32>,
    %cst_227 = arith.constant dense<0xFF800000> : vector<8xf32>
    %894 = vector.multi_reduction <maximumf>, %890, %cst_227 [1] : vector<8x128xf32> to vector<8xf32>
    %895 = vector.shape_cast %894 : vector<8xf32> to vector<8x1xf32>
    %896 = vector.broadcast %895 : vector<8x1xf32> to vector<8x128xf32>
    %897 = arith.subf %890, %896 : vector<8x128xf32>
    %898 = math.exp %897 : vector<8x128xf32>
    %cst_228 = arith.constant dense<0.000000e+00> : vector<8xf32>
    %899 = vector.multi_reduction <add>, %898, %cst_228 [1] : vector<8x128xf32> to vector<8xf32>
    %900 = vector.shape_cast %899 : vector<8xf32> to vector<8x1xf32>
    %901 = math.log %900 : vector<8x1xf32>
    %902 = vector.broadcast %901 : vector<8x1xf32> to vector<8x128xf32>
    %903 = arith.subf %897, %902 : vector<8x128xf32>
    %c0_229 = arith.constant 0 : index
    %c0_230 = arith.constant 0 : index
    %c0_231 = arith.constant 0 : index
    %904 = vector.load %arg4[%c0_229, %c0_230, %c0_231] : memref<1x8x1xi32, #tpu.memory_space<vmem>>, vector<1x8x1xi32>
    %905 = vector.shape_cast %904 : vector<1x8x1xi32> to vector<8x1xi32>
    %906 = tpu.iota {dimensions = array<i32: 1>} : vector<8x128xi32>
    %907 = vector.broadcast %905 : vector<8x1xi32> to vector<8x128xi32>
    %908 = arith.cmpi eq, %906, %907 : vector<8x128xi32>
    %cst_232 = arith.constant 0.899999976 : f32
    %cst_233 = arith.constant 0.0016129032 : f32
    %909 = vector.broadcast %cst_232 : f32 to vector<8x128xf32>
    %910 = vector.broadcast %cst_233 : f32 to vector<8x128xf32>
    %911 = arith.select %908, %909, %910 : vector<8x128xi1>, vector<8x128xf32>
    %cst_234 = arith.constant -0.105360515 : f32
    %cst_235 = arith.constant -6.42971945 : f32
    %912 = vector.broadcast %cst_234 : f32 to vector<8x128xf32>
    %913 = vector.broadcast %cst_235 : f32 to vector<8x128xf32>
    %914 = arith.select %908, %912, %913 : vector<8x128xi1>, vector<8x128xf32>
    %915 = arith.subf %914, %903 : vector<8x128xf32>
    %916 = arith.mulf %911, %915 : vector<8x128xf32>
    %c1_i32 = arith.constant 1 : i32
    %917 = vector.broadcast %c1_i32 : i32 to vector<8x128xi32>
    %918 = arith.cmpi ne, %906, %917 : vector<8x128xi32>
    %c64_i32 = arith.constant 64 : i32
    %919 = vector.broadcast %c64_i32 : i32 to vector<8x128xi32>
    %920 = arith.cmpi slt, %906, %919 : vector<8x128xi32>
    %921 = arith.andi %918, %920 : vector<8x128xi1>
    %cst_236 = arith.constant 0.000000e+00 : f32
    %922 = vector.broadcast %cst_236 : f32 to vector<8x128xf32>
    %923 = arith.select %921, %916, %922 : vector<8x128xi1>, vector<8x128xf32>
    %c1_i32_237 = arith.constant 1 : i32
    %924 = vector.broadcast %c1_i32_237 : i32 to vector<8x1xi32>
    %925 = arith.cmpi eq, %905, %924 : vector<8x1xi32>
    %cst_238 = arith.constant 0.000000e+00 : f32
    %926 = vector.shape_cast %925 : vector<8x1xi1> to vector<8x1xi1>
    %927 = vector.broadcast %926 : vector<8x1xi1> to vector<8x128xi1>
    %928 = vector.broadcast %cst_238 : f32 to vector<8x128xf32>
    %929 = arith.select %927, %928, %923 : vector<8x128xi1>, vector<8x128xf32>
    %930 = vector.shape_cast %929 : vector<8x128xf32> to vector<1x8x128xf32>
    %cst_239 = arith.constant dense<0.000000e+00> : vector<1xf32>
    %931 = vector.multi_reduction <add>, %930, %cst_239 [1, 2] : vector<1x8x128xf32> to vector<1xf32>
    %932 = vector.shape_cast %931 : vector<1xf32> to vector<1x1x1xf32>
    %933 = vector.extract %932[0, 0, 0] : f32 from vector<1x1x1xf32>
    %934 = vector.broadcast %933 : f32 to vector<1x1x1xf32>
    %c0_240 = arith.constant 0 : index
    %c0_241 = arith.constant 0 : index
    %c0_242 = arith.constant 0 : index
    %935 = vector.load %arg9[%c0_240, %c0_241, %c0_242] : memref<1x1x1xf32, #tpu.memory_space<vmem>>, vector<1x1x1xf32>
    tpu.vector_store %arg9[%c0_240, %c0_241, %c0_242], %934 {strides = array<i32>} : memref<1x1x1xf32, #tpu.memory_space<vmem>>, vector<1x1x1xf32>,
    return
  }
  func.func @transform_0(%arg0: i32) -> (i32, i32, i32) {
    %c0_i32 = arith.constant 0 : i32
    %c0_i32_0 = arith.constant 0 : i32
    %c0_i32_1 = arith.constant 0 : i32
    return %arg0, %c0_i32, %c0_i32_0 : i32, i32, i32
  }
  func.func @transform_1(%arg0: i32) -> (i32, i32, i32) {
    %c0_i32 = arith.constant 0 : i32
    %c0_i32_0 = arith.constant 0 : i32
    %c0_i32_1 = arith.constant 0 : i32
    return %arg0, %c0_i32, %c0_i32_0 : i32, i32, i32
  }
  func.func @transform_2(%arg0: i32) -> (i32, i32, i32) {
    %c0_i32 = arith.constant 0 : i32
    %c0_i32_0 = arith.constant 0 : i32
    %c0_i32_1 = arith.constant 0 : i32
    return %arg0, %c0_i32, %c0_i32_0 : i32, i32, i32
  }
  func.func @transform_3(%arg0: i32) -> (i32, i32, i32) {
    %c0_i32 = arith.constant 0 : i32
    %c0_i32_0 = arith.constant 0 : i32
    %c0_i32_1 = arith.constant 0 : i32
    return %arg0, %c0_i32, %c0_i32_0 : i32, i32, i32
  }
  func.func @transform_4(%arg0: i32) -> (i32, i32) {
    %c0_i32 = arith.constant 0 : i32
    %c0_i32_0 = arith.constant 0 : i32
    %c0_i32_1 = arith.constant 0 : i32
    return %c0_i32, %c0_i32_0 : i32, i32
  }
  func.func @transform_5(%arg0: i32) -> (i32, i32) {
    %c0_i32 = arith.constant 0 : i32
    %c0_i32_0 = arith.constant 0 : i32
    %c0_i32_1 = arith.constant 0 : i32
    return %c0_i32, %c0_i32_0 : i32, i32
  }
  func.func @transform_6(%arg0: i32) -> (i32, i32) {
    %c0_i32 = arith.constant 0 : i32
    %c0_i32_0 = arith.constant 0 : i32
    %c0_i32_1 = arith.constant 0 : i32
    return %c0_i32, %c0_i32_0 : i32, i32
  }
  func.func @transform_7(%arg0: i32) -> (i32, i32, i32) {
    %c0_i32 = arith.constant 0 : i32
    %c0_i32_0 = arith.constant 0 : i32
    %c0_i32_1 = arith.constant 0 : i32
    return %arg0, %c0_i32, %c0_i32_0 : i32, i32, i32
  }
  func.func @transform_8(%arg0: i32) -> (i32, i32, i32) {
    %c0_i32 = arith.constant 0 : i32
    %c0_i32_0 = arith.constant 0 : i32
    %c0_i32_1 = arith.constant 0 : i32
    return %arg0, %c0_i32, %c0_i32_0 : i32, i32, i32
  }
}

</mosaic_0001>

<llo_original>
// kernel: translation_network_forward.1
$region0: #{translation_network_forward.1}
  #allocation0 [shape = 'u32[]', space=smem, size = 0x4, offset = 0x4, fixed_abs, tag = 'smem constant byte address 0x4 - core index']
  #allocation1 [shape = 'u32[144,128]{1,0:T(1,128)}', space=vmem, size = 0x12000, scoped, tag = 'internal scratch']
  %s0 = inlined_call_operand.vmem [shape: f32[2,8,32], index: 0, kind: input, shape index: {}]
  %s1 = inlined_call_operand.vmem [shape: f32[2,8,32], index: 1, kind: input, shape index: {}]
  %s2 = inlined_call_operand.vmem [shape: f32[2,1,8], index: 2, kind: input, shape index: {}]
  %s3 = inlined_call_operand.vmem [shape: s32[2,8,1], index: 3, kind: input, shape index: {}]
  %s4 = inlined_call_operand.vmem [shape: bf16[32,2432], index: 4, kind: input, shape index: {}]
  %s5 = inlined_call_operand.vmem [shape: bf16[64,512], index: 5, kind: input, shape index: {}]
  %s6 = inlined_call_operand.vmem [shape: f32[56,128], index: 6, kind: input, shape index: {}]
  %s7 = inlined_call_operand.hbm [shape: f32[2,8,128], index: 7, kind: output, shape index: {0}]
  %s8 = inlined_call_operand.vmem [shape: f32[2,1,1], index: 8, kind: output, shape index: {1}]
  %9 = xla_tuple %s7, %s8
  %s10 = sld [smem:[#allocation0]]
  $region69: #{translation_network_forward.1} parent=0
    _
  %s12 = ssub.s32 1, %s10
  %s13 = scalar_select 0, %s12, %s10
  $region1: #{translation_network_forward.1} parent=0
    #allocation2 [shape = 'u8[8192]{0}', space=vmem, size = 0x2000, scoped, tag = 'output window, operand 0']
    #allocation3 [shape = 's32[2]{0}', space=sflag, size = 0x8, scoped, tag = 'scoped memory for translation_network_forward.1']
    %14 = vsyncpa [#allocation3], 0
    %s15 = scalar_lea.sflag [#allocation3], 1
    %16 = vsyncpa %s15, 0
    loop: start=0, step=1, limit=4
    $region2: #{translation_network_forward.1} parent=1 // loop_pre_header
      _
    $region3: #{translation_network_forward.1} parent=1 // loop_header
      %s18 = sphi 0, %s22
      %p19 = scmp.ge.s32.totalorder %s18, 4
      %s28 = sphi 0, %s30
      %s31 = sphi 0, %s28
      %s32 = sphi 0, %s31
      %s48 = sphi 0, %s32
      %s54 = sphi 0, %s56
      %s57 = sphi 0, %s54
      %s58 = sphi 0, %s57
      %s74 = sphi 0, %s58
      %s80 = sphi 0, %s82
      %s83 = sphi 0, %s80
      %s84 = sphi 0, %s83
      %s100 = sphi 0, %s84
      %s106 = sphi 0, %s108
      %s109 = sphi 0, %s106
      %s110 = sphi 0, %s109
      %s126 = sphi 0, %s110
      %s130 = sphi 0, %s130
      %s132 = sphi 0, %s130
      %s133 = sphi 0, %s132
      %s147 = sphi 0, %s133
      %s151 = sphi 0, %s151
      %s153 = sphi 0, %s151
      %s154 = sphi 0, %s153
      %s168 = sphi 0, %s154
      %s172 = sphi 0, %s172
      %s174 = sphi 0, %s172
      %s175 = sphi 0, %s174
      %s189 = sphi 0, %s175
      %s195 = sphi 0, %s197
      %s198 = sphi 0, %s195
      %s199 = sphi 0, %s198
      %s215 = sphi 0, %s199
      %s221 = sphi 0, %s223
      %s224 = sphi 0, %s221
      %s225 = sphi 0, %s224
      %s241 = sphi 0, %s225
    $region4: #{translation_network_forward.1} parent=1 // loop_header_branch
      %21 = sbr.rel (%p19) target = $region8
    $region5: #{translation_network_forward.1} parent=1 // loop_body
      %s23 = ssub.s32 %s18, 1
      %s24 = ssub.s32 %s18, 2
      %s25 = sadd.s32 %s18, 1
      %s26 = ssub.s32 %s18, %s25
      %p27 = scmp.eq.s32.totalorder %s26, 0
      %s29 = sadd.s32 %s28, 1
      %s30 = scalar_select %p27, %s28, %s29
      %p33 = pneg %p27
      %p34 = scmp.eq.s32.totalorder %s18, 1
      %p35 = por %p33, %p34
      %p36 = scmp.ne.s32.totalorder %s28, %s31
      %p37 = scmp.eq.s32.totalorder %s18, 0
      %p38 = por %p36, %p37
      %p39 = scmp.ne.s32.totalorder %s28, %s31
      %p40 = scmp.eq.s32.totalorder %s23, 1
      %p41 = por %p39, %p40
      %p42 = scmp.ne.s32.totalorder %s31, %s32
      %p43 = scmp.eq.s32.totalorder %s23, 0
      %p44 = por %p42, %p43
      %p45 = scmp.ne.s32.totalorder %s31, %s32
      %p46 = scmp.eq.s32.totalorder %s24, 1
      %p47 = por %p45, %p46
      %p49 = scmp.ne.s32.totalorder %s32, %s48
      %p50 = scmp.eq.s32.totalorder %s24, 0
      %p51 = por %p49, %p50
      %s52 = ssub.s32 %s18, %s25
      %p53 = scmp.eq.s32.totalorder %s52, 0
      %s55 = sadd.s32 %s54, 1
      %s56 = scalar_select %p53, %s54, %s55
      %p59 = pneg %p53
      %p60 = scmp.eq.s32.totalorder %s18, 1
      %p61 = por %p59, %p60
      %p62 = scmp.ne.s32.totalorder %s54, %s57
      %p63 = scmp.eq.s32.totalorder %s18, 0
      %p64 = por %p62, %p63
      %p65 = scmp.ne.s32.totalorder %s54, %s57
      %p66 = scmp.eq.s32.totalorder %s23, 1
      %p67 = por %p65, %p66
      %p68 = scmp.ne.s32.totalorder %s57, %s58
      %p69 = scmp.eq.s32.totalorder %s23, 0
      %p70 = por %p68, %p69
      %p71 = scmp.ne.s32.totalorder %s57, %s58
      %p72 = scmp.eq.s32.totalorder %s24, 1
      %p73 = por %p71, %p72
      %p75 = scmp.ne.s32.totalorder %s58, %s74
      %p76 = scmp.eq.s32.totalorder %s24, 0
      %p77 = por %p75, %p76
      %s78 = ssub.s32 %s18, %s25
      %p79 = scmp.eq.s32.totalorder %s78, 0
      %s81 = sadd.s32 %s80, 1
      %s82 = scalar_select %p79, %s80, %s81
      %p85 = pneg %p79
      %p86 = scmp.eq.s32.totalorder %s18, 1
      %p87 = por %p85, %p86
      %p88 = scmp.ne.s32.totalorder %s80, %s83
      %p89 = scmp.eq.s32.totalorder %s18, 0
      %p90 = por %p88, %p89
      %p91 = scmp.ne.s32.totalorder %s80, %s83
      %p92 = scmp.eq.s32.totalorder %s23, 1
      %p93 = por %p91, %p92
      %p94 = scmp.ne.s32.totalorder %s83, %s84
      %p95 = scmp.eq.s32.totalorder %s23, 0
      %p96 = por %p94, %p95
      %p97 = scmp.ne.s32.totalorder %s83, %s84
      %p98 = scmp.eq.s32.totalorder %s24, 1
      %p99 = por %p97, %p98
      %p101 = scmp.ne.s32.totalorder %s84, %s100
      %p102 = scmp.eq.s32.totalorder %s24, 0
      %p103 = por %p101, %p102
      %s104 = ssub.s32 %s18, %s25
      %p105 = scmp.eq.s32.totalorder %s104, 0
      %s107 = sadd.s32 %s106, 1
      %s108 = scalar_select %p105, %s106, %s107
      %p111 = pneg %p105
      %p112 = scmp.eq.s32.totalorder %s18, 1
      %p113 = por %p111, %p112
      %p114 = scmp.ne.s32.totalorder %s106, %s109
      %p115 = scmp.eq.s32.totalorder %s18, 0
      %p116 = por %p114, %p115
      %p117 = scmp.ne.s32.totalorder %s106, %s109
      %p118 = scmp.eq.s32.totalorder %s23, 1
      %p119 = por %p117, %p118
      %p120 = scmp.ne.s32.totalorder %s109, %s110
      %p121 = scmp.eq.s32.totalorder %s23, 0
      %p122 = por %p120, %p121
      %p123 = scmp.ne.s32.totalorder %s109, %s110
      %p124 = scmp.eq.s32.totalorder %s24, 1
      %p125 = por %p123, %p124
      %p127 = scmp.ne.s32.totalorder %s110, %s126
      %p128 = scmp.eq.s32.totalorder %s24, 0
      %p129 = por %p127, %p128
      %s131 = sadd.s32 %s130, 1
      %p134 = scmp.eq.s32.totalorder %s18, 1
      %p135 = scmp.ne.s32.totalorder %s130, %s132
      %p136 = scmp.eq.s32.totalorder %s18, 0
      %p137 = por %p135, %p136
      %p138 = scmp.ne.s32.totalorder %s130, %s132
      %p139 = scmp.eq.s32.totalorder %s23, 1
      %p140 = por %p138, %p139
      %p141 = scmp.ne.s32.totalorder %s132, %s133
      %p142 = scmp.eq.s32.totalorder %s23, 0
      %p143 = por %p141, %p142
      %p144 = scmp.ne.s32.totalorder %s132, %s133
      %p145 = scmp.eq.s32.totalorder %s24, 1
      %p146 = por %p144, %p145
      %p148 = scmp.ne.s32.totalorder %s133, %s147
      %p149 = scmp.eq.s32.totalorder %s24, 0
      %p150 = por %p148, %p149
      %s152 = sadd.s32 %s151, 1
      %p155 = scmp.eq.s32.totalorder %s18, 1
      %p156 = scmp.ne.s32.totalorder %s151, %s153
      %p157 = scmp.eq.s32.totalorder %s18, 0
      %p158 = por %p156, %p157
      %p159 = scmp.ne.s32.totalorder %s151, %s153
      %p160 = scmp.eq.s32.totalorder %s23, 1
      %p161 = por %p159, %p160
      %p162 = scmp.ne.s32.totalorder %s153, %s154
      %p163 = scmp.eq.s32.totalorder %s23, 0
      %p164 = por %p162, %p163
      %p165 = scmp.ne.s32.totalorder %s153, %s154
      %p166 = scmp.eq.s32.totalorder %s24, 1
      %p167 = por %p165, %p166
      %p169 = scmp.ne.s32.totalorder %s154, %s168
      %p170 = scmp.eq.s32.totalorder %s24, 0
      %p171 = por %p169, %p170
      %s173 = sadd.s32 %s172, 1
      %p176 = scmp.eq.s32.totalorder %s18, 1
      %p177 = scmp.ne.s32.totalorder %s172, %s174
      %p178 = scmp.eq.s32.totalorder %s18, 0
      %p179 = por %p177, %p178
      %p180 = scmp.ne.s32.totalorder %s172, %s174
      %p181 = scmp.eq.s32.totalorder %s23, 1
      %p182 = por %p180, %p181
      %p183 = scmp.ne.s32.totalorder %s174, %s175
      %p184 = scmp.eq.s32.totalorder %s23, 0
      %p185 = por %p183, %p184
      %p186 = scmp.ne.s32.totalorder %s174, %s175
      %p187 = scmp.eq.s32.totalorder %s24, 1
      %p188 = por %p186, %p187
      %p190 = scmp.ne.s32.totalorder %s175, %s189
      %p191 = scmp.eq.s32.totalorder %s24, 0
      %p192 = por %p190, %p191
      %s193 = ssub.s32 %s18, %s25
      %p194 = scmp.eq.s32.totalorder %s193, 0
      %s196 = sadd.s32 %s195, 1
      %s197 = scalar_select %p194, %s195, %s196
      %p200 = pneg %p194
      %p201 = scmp.eq.s32.totalorder %s18, 1
      %p202 = por %p200, %p201
      %p203 = scmp.ne.s32.totalorder %s195, %s198
      %p204 = scmp.eq.s32.totalorder %s18, 0
      %p205 = por %p203, %p204
      %p206 = scmp.ne.s32.totalorder %s195, %s198
      %p207 = scmp.eq.s32.totalorder %s23, 1
      %p208 = por %p206, %p207
      %p209 = scmp.ne.s32.totalorder %s198, %s199
      %p210 = scmp.eq.s32.totalorder %s23, 0
      %p211 = por %p209, %p210
      %p212 = scmp.ne.s32.totalorder %s198, %s199
      %p213 = scmp.eq.s32.totalorder %s24, 1
      %p214 = por %p212, %p213
      %p216 = scmp.ne.s32.totalorder %s199, %s215
      %p217 = scmp.eq.s32.totalorder %s24, 0
      %p218 = por %p216, %p217
      %s219 = ssub.s32 %s18, %s25
      %p220 = scmp.eq.s32.totalorder %s219, 0
      %s222 = sadd.s32 %s221, 1
      %s223 = scalar_select %p220, %s221, %s222
      %p226 = pneg %p220
      %p227 = scmp.eq.s32.totalorder %s18, 1
      %p228 = por %p226, %p227
      %p229 = scmp.ne.s32.totalorder %s221, %s224
      %p230 = scmp.eq.s32.totalorder %s18, 0
      %p231 = por %p229, %p230
      %p232 = scmp.ne.s32.totalorder %s221, %s224
      %p233 = scmp.eq.s32.totalorder %s23, 1
      %p234 = por %p232, %p233
      %p235 = scmp.ne.s32.totalorder %s224, %s225
      %p236 = scmp.eq.s32.totalorder %s23, 0
      %p237 = por %p235, %p236
      %p238 = scmp.ne.s32.totalorder %s224, %s225
      %p239 = scmp.eq.s32.totalorder %s24, 1
      %p240 = por %p238, %p239
      %p242 = scmp.ne.s32.totalorder %s225, %s241
      %p243 = scmp.eq.s32.totalorder %s24, 0
      %p244 = por %p242, %p243
      %p245 = scmp.le.s32.totalorder 1, %s18
      %p246 = scmp.lt.s32.totalorder %s18, 3
      %p247 = pnand %p245, %p246
      %p248 = pneg %p247
      // Predicated region
      $region9: #{translation_network_forward.1} parent=5 // pred_check
        _
      $region10: #{translation_network_forward.1} parent=5 // pred_check_branch
        %250 = sbr.rel (%p247) target = $region12
      $region11: #{translation_network_forward.1} parent=5 // pred_region
        %s251 = ssub.s32 %s18, 1
        // Predicated region
        $region13: #{translation_network_forward.1} parent=11 // pred_check
          %p252 = pneg %p143
        $region14: #{translation_network_forward.1} parent=11 // pred_check_branch
          %254 = sbr.rel (%p252) target = $region16
        $region15: #{translation_network_forward.1} parent=11 // pred_region
          _
        $region16: #{translation_network_forward.1} parent=11 // pred_fallthru
          _
        // Predicated region
        $region17: #{translation_network_forward.1} parent=11 // pred_check
          %p255 = pneg %p164
        $region18: #{translation_network_forward.1} parent=11 // pred_check_branch
          %257 = sbr.rel (%p255) target = $region20
        $region19: #{translation_network_forward.1} parent=11 // pred_region
          _
        $region20: #{translation_network_forward.1} parent=11 // pred_fallthru
          _
        // Predicated region
        $region21: #{translation_network_forward.1} parent=11 // pred_check
          %p258 = pneg %p185
        $region22: #{translation_network_forward.1} parent=11 // pred_check_branch
          %260 = sbr.rel (%p258) target = $region24
        $region23: #{translation_network_forward.1} parent=11 // pred_region
          _
        $region24: #{translation_network_forward.1} parent=11 // pred_fallthru
          _
      $region12: #{translation_network_forward.1} parent=5 // pred_fallthru
        _
      %p261 = scmp.lt.s32.totalorder %s18, 2
      // Predicated region
      $region25: #{translation_network_forward.1} parent=5 // pred_check
        %p262 = pneg %p261
      $region26: #{translation_network_forward.1} parent=5 // pred_check_branch
        %264 = sbr.rel (%p262) target = $region28
      $region27: #{translation_network_forward.1} parent=5 // pred_region
        // Predicated region
        $region29: #{translation_network_forward.1} parent=27 // pred_check
          %p265 = pneg %p38
        $region30: #{translation_network_forward.1} parent=27 // pred_check_branch
          %267 = sbr.rel (%p265) target = $region32
        $region31: #{translation_network_forward.1} parent=27 // pred_region
          %p268 = scmp.lt.s32.totalorder %s18, 1
          %s269 = scalar_select %p268, %s18, 1
          %s270 = smul.addr %s269, 8
          %s271 = scalar_lea.vmem %s0, %s270
        $region32: #{translation_network_forward.1} parent=27 // pred_fallthru
          _
        // Predicated region
        $region33: #{translation_network_forward.1} parent=27 // pred_check
          %p272 = pneg %p64
        $region34: #{translation_network_forward.1} parent=27 // pred_check_branch
          %274 = sbr.rel (%p272) target = $region36
        $region35: #{translation_network_forward.1} parent=27 // pred_region
          %p275 = scmp.lt.s32.totalorder %s18, 1
          %s276 = scalar_select %p275, %s18, 1
          %s277 = smul.addr %s276, 8
          %s278 = scalar_lea.vmem %s1, %s277
        $region36: #{translation_network_forward.1} parent=27 // pred_fallthru
          _
        // Predicated region
        $region37: #{translation_network_forward.1} parent=27 // pred_check
          %p279 = pneg %p90
        $region38: #{translation_network_forward.1} parent=27 // pred_check_branch
          %281 = sbr.rel (%p279) target = $region40
        $region39: #{translation_network_forward.1} parent=27 // pred_region
          %p282 = scmp.lt.s32.totalorder %s18, 1
          %s283 = scalar_select %p282, %s18, 1
          %s284 = scalar_lea.vmem %s2, %s283
        $region40: #{translation_network_forward.1} parent=27 // pred_fallthru
          _
        // Predicated region
        $region41: #{translation_network_forward.1} parent=27 // pred_check
          %p285 = pneg %p116
        $region42: #{translation_network_forward.1} parent=27 // pred_check_branch
          %287 = sbr.rel (%p285) target = $region44
        $region43: #{translation_network_forward.1} parent=27 // pred_region
          %p288 = scmp.lt.s32.totalorder %s18, 1
          %s289 = scalar_select %p288, %s18, 1
          %s290 = smul.addr %s289, 8
          %s291 = scalar_lea.vmem %s3, %s290
        $region44: #{translation_network_forward.1} parent=27 // pred_fallthru
          _
      $region28: #{translation_network_forward.1} parent=5 // pred_fallthru
        _
      %p292 = scmp.le.s32.totalorder 1, %s18
      %p293 = scmp.lt.s32.totalorder %s18, 3
      %p294 = pnand %p292, %p293
      %p295 = pneg %p294
      // Predicated region
      $region45: #{translation_network_forward.1} parent=5 // pred_check
        _
      $region46: #{translation_network_forward.1} parent=5 // pred_check_branch
        %297 = sbr.rel (%p294) target = $region48
      $region47: #{translation_network_forward.1} parent=5 // pred_region
        %s298 = ssub.s32 %s18, 1
        %p299 = scmp.lt.s32.totalorder %s23, 1
        %s300 = scalar_select %p299, %s23, 1
        %s301 = smul.addr %s300, 8
        %s302 = scalar_lea.vmem %s0, %s301
        %p303 = pneg %p44
        %p304 = pneg %p41
        %p305 = scmp.lt.s32.totalorder %s23, 1
        %s306 = scalar_select %p305, %s23, 1
        %s307 = smul.addr %s306, 8
        %s308 = scalar_lea.vmem %s1, %s307
        %p309 = pneg %p70
        %p310 = pneg %p67
        %p311 = scmp.lt.s32.totalorder %s23, 1
        %s312 = scalar_select %p311, %s23, 1
        %s313 = scalar_lea.vmem %s2, %s312
        %p314 = pneg %p96
        %p315 = pneg %p93
        %p316 = scmp.lt.s32.totalorder %s23, 1
        %s317 = scalar_select %p316, %s23, 1
        %s318 = smul.addr %s317, 8
        %s319 = scalar_lea.vmem %s3, %s318
        %p320 = pneg %p122
        %p321 = pneg %p119
        %p322 = pneg %p143
        %p323 = pneg %p140
        %p324 = pneg %p164
        %p325 = pneg %p161
        %p326 = pneg %p185
        %p327 = pneg %p182
        %p328 = pneg %p211
        %p329 = pneg %p208
        %s330 = sand.u32 %s198, 1
        %s331 = scalar_lea.sflag [#allocation3], %s330
        %s332 = sand.u32 %s198, 1
        %s333 = smul.addr %s332, 8
        %s334 = scalar_lea.vmem [#allocation2], %s333
        %p335 = pneg %p237
        %p336 = pneg %p234
        %p337 = scmp.lt.s32.totalorder %s23, 1
        %s338 = scalar_select %p337, %s23, 1
        %s339 = scalar_lea.vmem %s8, %s338
        %p340 = scmp.lt.s32.totalorder %s23, 1
        %s341 = scalar_select %p340, %s23, 1
        %s342 = smul.addr %s341, 8
        %s343 = scalar_lea.vmem %s0, %s342
        %p344 = scmp.lt.s32.totalorder %s23, 1
        %s345 = scalar_select %p344, %s23, 1
        %s346 = smul.addr %s345, 8
        %s347 = scalar_lea.vmem %s1, %s346
        %p348 = scmp.lt.s32.totalorder %s23, 1
        %s349 = scalar_select %p348, %s23, 1
        %s350 = scalar_lea.vmem %s2, %s349
        %p351 = scmp.lt.s32.totalorder %s23, 1
        %s352 = scalar_select %p351, %s23, 1
        %s353 = smul.addr %s352, 8
        %s354 = scalar_lea.vmem %s3, %s353
        %p355 = scmp.lt.s32.totalorder %s23, 1
        %s356 = scalar_select %p355, %s23, 1
        %s357 = scalar_lea.vmem %s8, %s356
        %v359 = vld [vmem:[%s350] sm:$0x1]
        %v360 = vsub.f32 1.0, %v359
        %v361 = vmul.f32 %v360, -1e+09
        %v362 = vlaneseq
        %v363 = vshrl.u32 %v362, 7
        %v364 = vlaneseq
        %v365 = vand.u32 %v364, 127
        %vm366 = vcmp.ge.s32.totalorder %v363, %v365
        %v367 = vsel %vm366, 0.0, -1e+09
        %v368 = vld [vmem:[%s343] sm:$0xff]
        %v369 = vld [vmem:[%s6] sm:$0x1]
        %v370 = vld [vmem:[%s6 + $0x1] sm:$0x1]
        %vm371 = vcmask 261120
        %v372 = vsel %vm371, %v368, 0.0
        %373 = vadd.xlane.f32.xlu0 %v372
        %v374 = vpop.xlane.xlu0 %373
        %v375 = vrcp.pop 32.0
        %v376 = vmul.f32 %v374, %v375
        %v377 = vsub.f32 %v368, %v376
        %v378 = vmul.f32 %v377, %v377
        %v379 = vsel %vm371, %v378, 0.0
        %380 = vadd.xlane.f32.xlu0 %v379
        %v381 = vpop.xlane.xlu0 %380
        %v382 = vmul.f32 %v381, %v375
        %v383 = vadd.f32 %v382, 1e-05
        %v384 = vrsqrt.pop %v383
        %v385 = vmul.f32 %v377, %v384
        %v386 = vlaneseq
        %v387 = vshrl.u32 %v386, 7
        %v388 = vsub.s32 0, %v387
        %v389 = vrot.slane %v369, %v388
        %v390 = vmul.f32 %v385, %v389
        %v391 = vlaneseq
        %v392 = vshrl.u32 %v391, 7
        %v393 = vsub.s32 0, %v392
        %v394 = vrot.slane %v370, %v393
        %v395 = vadd.f32 %v390, %v394
        %v396 = vld [vmem:[%s6 + $0x9] sm:$0x1]
        %v397 = vld [vmem:[%s6 + $0xa] sm:$0x1]
        %v398 = vsel %vm371, %v395, 0.0
        %399 = vadd.xlane.f32.xlu0 %v398
        %v400 = vpop.xlane.xlu0 %399
        %v401 = vmul.f32 %v400, %v375
        %v402 = vsub.f32 %v395, %v401
        %v403 = vmul.f32 %v402, %v402
        %v404 = vsel %vm371, %v403, 0.0
        %405 = vadd.xlane.f32.xlu0 %v404
        %v406 = vpop.xlane.xlu0 %405
        %v407 = vmul.f32 %v406, %v375
        %v408 = vadd.f32 %v407, 1e-05
        %v409 = vrsqrt.pop %v408
        %v410 = vmul.f32 %v402, %v409
        %v411 = vlaneseq
        %v412 = vshrl.u32 %v411, 7
        %v413 = vsub.s32 0, %v412
        %v414 = vrot.slane %v396, %v413
        %v415 = vmul.f32 %v410, %v414
        %v416 = vlaneseq
        %v417 = vshrl.u32 %v416, 7
        %v418 = vsub.s32 0, %v417
        %v419 = vrot.slane %v397, %v418
        %v420 = vadd.f32 %v415, %v419
        %v421 = vld [vmem:[%s4] sm:$0xf]
        %v422 = vld [vmem:[%s4 + $0x4c] sm:$0xf]
        %v423 = vld [vmem:[%s4 + $0x98] sm:$0xf]
        %v424 = vld [vmem:[%s4 + $0xe4] sm:$0xf]
        %v425 = vld [vmem:[%s6 + $0xb] sm:$0x1]
        %v426 = vpack.c.bf16 %v420, %v420
        %v427 = vlaneseq
        %v428 = vshrl.u32 %v427, 7
        %v429 = vsub.s32 0, %v428
        %v430 = vrot.slane %v425, %v429
        %v435 = vunpack.c.l.b16 %v421
        %v436 = vunpack.c.l.b16 %v422
        %v437 = vunpack.c.l.b16 %v423
        %v438 = vunpack.c.l.b16 %v424
        %v439 = vpack.c.b16 %v436, %v435
        %v440 = vpack.c.b16 %v438, %v437
        %v444 = vsel %vm371, %v426, 0
        %446 = vmatprep.subr.bf16.mxu0 0
        %447 = vmatpush1.bf16.msra.mxu0 %v439
        %448 = vmatprep.subr.bf16.mxu0 0
        %449 = vmatpush1.bf16.msra.mxu0 %v440
        %450 = vmatprep.subr.bf16.mxu0 0
        %451 = vmatpush1.bf16.msra.mxu0 0
        %452 = vmatprep.subr.bf16.mxu0 0
        %453 = vmatpush1.bf16.msra.mxu0 0
        %454 = vmatprep.subr.bf16.mxu0 0
        %455 = vmatpush1.bf16.msra.mxu0 0
        %456 = vmatprep.subr.bf16.mxu0 0
        %457 = vmatpush1.bf16.msra.mxu0 0
        %458 = vmatprep.subr.bf16.mxu0 0
        %459 = vmatpush1.bf16.msra.mxu0 0
        %460 = vmatprep.subr.bf16.mxu0 0
        %461 = vmatpush1.bf16.msra.mxu0 0
        %462 = vmatprep.subr.bf16.mxu0 0
        %463 = vmatpush1.bf16.msra.mxu0 0
        %464 = vmatprep.subr.bf16.mxu0 0
        %465 = vmatpush1.bf16.msra.mxu0 0
        %466 = vmatprep.subr.bf16.mxu0 0
        %467 = vmatpush1.bf16.msra.mxu0 0
        %468 = vmatprep.subr.bf16.mxu0 0
        %469 = vmatpush1.bf16.msra.mxu0 0
        %470 = vmatprep.subr.bf16.mxu0 0
        %471 = vmatpush1.bf16.msra.mxu0 0
        %472 = vmatprep.subr.bf16.mxu0 0
        %473 = vmatpush1.bf16.msra.mxu0 0
        %474 = vmatprep.subr.bf16.mxu0 0
        %475 = vmatpush1.bf16.msra.mxu0 0
        %476 = vmatprep.subr.bf16.mxu0 0
        %477 = vmatpush1.bf16.msra.mxu0 0
        %478 = vmatprep.mubr.bf16.mxu0 0
        %479 = vmatmul.mubr.bf16.gmra.mrb[0].mxu0 %v444
        %v480 = vpop.f32.mrb[0].mxu0
        %v481 = vadd.f32 %v430, %v480
        %v482 = vpop.f32.mrb[0].mxu0
        %v483 = vpop.f32.mrb[0].mxu0
        %v484 = vpop.f32.mrb[0].mxu0
        %485 = vdwg.mxu0
        %487 = vrot.lane.b32.xlu0 %v481, 120
        %v488 = vpop.permute.xlu0 %487
        %490 = vrot.lane.b32.xlu0 %v481, 112
        %v491 = vpop.permute.xlu0 %490
        %493 = vrot.lane.b32.xlu0 %v481, 104
        %v494 = vpop.permute.xlu0 %493
        %v496 = vpack.c.bf16 %v481, %v481
        %v497 = vpack.c.bf16 %v488, %v488
        %v498 = vpack.c.bf16 %v491, %v491
        %v499 = vpack.c.bf16 %v494, %v494
        %v501 = vlaneseq
        %v502 = vshrl.u32 %v501, 7
        %v503 = vsub.s32 0, %v502
        %v504 = vrot.slane %v361, %v503
        %507 = vrot.lane.b32.xlu0 %v496, 96
        %v508 = vpop.permute.xlu0 %507
        %vm509 = vcmask 64512
        %v511 = vsel %vm509, %v496, 0
        %v514 = vsel %vm509, %v508, 0
        %516 = vmatprep.subr.bf16.mxu0 0
        %517 = vmatpush1.bf16.xpose.msra.mxu0 %v514
        %518 = vmatprep.subr.bf16.mxu0 0
        %519 = vmatpush1.bf16.xpose.msra.mxu0 0
        %520 = vmatprep.subr.bf16.mxu0 0
        %521 = vmatpush1.bf16.xpose.msra.mxu0 0
        %522 = vmatprep.subr.bf16.mxu0 0
        %523 = vmatpush1.bf16.xpose.msra.mxu0 0
        %524 = vmatprep.subr.bf16.mxu0 0
        %525 = vmatpush1.bf16.xpose.msra.mxu0 0
        %526 = vmatprep.subr.bf16.mxu0 0
        %527 = vmatpush1.bf16.xpose.msra.mxu0 0
        %528 = vmatprep.subr.bf16.mxu0 0
        %529 = vmatpush1.bf16.xpose.msra.mxu0 0
        %530 = vmatprep.subr.bf16.mxu0 0
        %531 = vmatpush1.bf16.xpose.msra.mxu0 0
        %532 = vmatprep.subr.bf16.mxu0 0
        %533 = vmatpush1.bf16.xpose.msra.mxu0 0
        %534 = vmatprep.subr.bf16.mxu0 0
        %535 = vmatpush1.bf16.xpose.msra.mxu0 0
        %536 = vmatprep.subr.bf16.mxu0 0
        %537 = vmatpush1.bf16.xpose.msra.mxu0 0
        %538 = vmatprep.subr.bf16.mxu0 0
        %539 = vmatpush1.bf16.xpose.msra.mxu0 0
        %540 = vmatprep.subr.bf16.mxu0 0
        %541 = vmatpush1.bf16.xpose.msra.mxu0 0
        %542 = vmatprep.subr.bf16.mxu0 0
        %543 = vmatpush1.bf16.xpose.msra.mxu0 0
        %544 = vmatprep.subr.bf16.mxu0 0
        %545 = vmatpush1.bf16.xpose.msra.mxu0 0
        %546 = vmatprep.subr.bf16.mxu0 0
        %547 = vmatpush1.bf16.xpose.msra.mxu0 0
        %548 = vmatprep.mubr.bf16.mxu0 0
        %549 = vmatmul.mubr.bf16.gmra.mrb[0].mxu0 %v511
        %v550 = vpop.f32.mrb[0].mxu0
        %v551 = vadd.f32 %v504, %v550
        %v552 = vpop.f32.mrb[0].mxu0
        %v553 = vpop.f32.mrb[0].mxu0
        %v554 = vpop.f32.mrb[0].mxu0
        %555 = vdwg.mxu0
        %557 = vrot.lane.b32.xlu0 %v497, 96
        %v558 = vpop.permute.xlu0 %557
        %v560 = vsel %vm509, %v497, 0
        %v563 = vsel %vm509, %v558, 0
        %565 = vmatprep.subr.bf16.mxu0 0
        %566 = vmatpush1.bf16.xpose.msra.mxu0 %v563
        %567 = vmatprep.subr.bf16.mxu0 0
        %568 = vmatpush1.bf16.xpose.msra.mxu0 0
        %569 = vmatprep.subr.bf16.mxu0 0
        %570 = vmatpush1.bf16.xpose.msra.mxu0 0
        %571 = vmatprep.subr.bf16.mxu0 0
        %572 = vmatpush1.bf16.xpose.msra.mxu0 0
        %573 = vmatprep.subr.bf16.mxu0 0
        %574 = vmatpush1.bf16.xpose.msra.mxu0 0
        %575 = vmatprep.subr.bf16.mxu0 0
        %576 = vmatpush1.bf16.xpose.msra.mxu0 0
        %577 = vmatprep.subr.bf16.mxu0 0
        %578 = vmatpush1.bf16.xpose.msra.mxu0 0
        %579 = vmatprep.subr.bf16.mxu0 0
        %580 = vmatpush1.bf16.xpose.msra.mxu0 0
        %581 = vmatprep.subr.bf16.mxu0 0
        %582 = vmatpush1.bf16.xpose.msra.mxu0 0
        %583 = vmatprep.subr.bf16.mxu0 0
        %584 = vmatpush1.bf16.xpose.msra.mxu0 0
        %585 = vmatprep.subr.bf16.mxu0 0
        %586 = vmatpush1.bf16.xpose.msra.mxu0 0
        %587 = vmatprep.subr.bf16.mxu0 0
        %588 = vmatpush1.bf16.xpose.msra.mxu0 0
        %589 = vmatprep.subr.bf16.mxu0 0
        %590 = vmatpush1.bf16.xpose.msra.mxu0 0
        %591 = vmatprep.subr.bf16.mxu0 0
        %592 = vmatpush1.bf16.xpose.msra.mxu0 0
        %593 = vmatprep.subr.bf16.mxu0 0
        %594 = vmatpush1.bf16.xpose.msra.mxu0 0
        %595 = vmatprep.subr.bf16.mxu0 0
        %596 = vmatpush1.bf16.xpose.msra.mxu0 0
        %597 = vmatprep.mubr.bf16.mxu0 0
        %598 = vmatmul.mubr.bf16.gmra.mrb[0].mxu0 %v560
        %v599 = vpop.f32.mrb[0].mxu0
        %v600 = vadd.f32 %v504, %v599
        %v601 = vpop.f32.mrb[0].mxu0
        %v602 = vpop.f32.mrb[0].mxu0
        %v603 = vpop.f32.mrb[0].mxu0
        %604 = vdwg.mxu0
        %606 = vrot.lane.b32.xlu0 %v498, 96
        %v607 = vpop.permute.xlu0 %606
        %v609 = vsel %vm509, %v498, 0
        %v612 = vsel %vm509, %v607, 0
        %614 = vmatprep.subr.bf16.mxu0 0
        %615 = vmatpush1.bf16.xpose.msra.mxu0 %v612
        %616 = vmatprep.subr.bf16.mxu0 0
        %617 = vmatpush1.bf16.xpose.msra.mxu0 0
        %618 = vmatprep.subr.bf16.mxu0 0
        %619 = vmatpush1.bf16.xpose.msra.mxu0 0
        %620 = vmatprep.subr.bf16.mxu0 0
        %621 = vmatpush1.bf16.xpose.msra.mxu0 0
        %622 = vmatprep.subr.bf16.mxu0 0
        %623 = vmatpush1.bf16.xpose.msra.mxu0 0
        %624 = vmatprep.subr.bf16.mxu0 0
        %625 = vmatpush1.bf16.xpose.msra.mxu0 0
        %626 = vmatprep.subr.bf16.mxu0 0
        %627 = vmatpush1.bf16.xpose.msra.mxu0 0
        %628 = vmatprep.subr.bf16.mxu0 0
        %629 = vmatpush1.bf16.xpose.msra.mxu0 0
        %630 = vmatprep.subr.bf16.mxu0 0
        %631 = vmatpush1.bf16.xpose.msra.mxu0 0
        %632 = vmatprep.subr.bf16.mxu0 0
        %633 = vmatpush1.bf16.xpose.msra.mxu0 0
        %634 = vmatprep.subr.bf16.mxu0 0
        %635 = vmatpush1.bf16.xpose.msra.mxu0 0
        %636 = vmatprep.subr.bf16.mxu0 0
        %637 = vmatpush1.bf16.xpose.msra.mxu0 0
        %638 = vmatprep.subr.bf16.mxu0 0
        %639 = vmatpush1.bf16.xpose.msra.mxu0 0
        %640 = vmatprep.subr.bf16.mxu0 0
        %641 = vmatpush1.bf16.xpose.msra.mxu0 0
        %642 = vmatprep.subr.bf16.mxu0 0
        %643 = vmatpush1.bf16.xpose.msra.mxu0 0
        %644 = vmatprep.subr.bf16.mxu0 0
        %645 = vmatpush1.bf16.xpose.msra.mxu0 0
        %646 = vmatprep.mubr.bf16.mxu0 0
        %647 = vmatmul.mubr.bf16.gmra.mrb[0].mxu0 %v609
        %v648 = vpop.f32.mrb[0].mxu0
        %v649 = vadd.f32 %v504, %v648
        %v650 = vpop.f32.mrb[0].mxu0
        %v651 = vpop.f32.mrb[0].mxu0
        %v652 = vpop.f32.mrb[0].mxu0
        %653 = vdwg.mxu0
        %655 = vrot.lane.b32.xlu0 %v499, 96
        %v656 = vpop.permute.xlu0 %655
        %v658 = vsel %vm509, %v499, 0
        %v661 = vsel %vm509, %v656, 0
        %663 = vmatprep.subr.bf16.mxu0 0
        %664 = vmatpush1.bf16.xpose.msra.mxu0 %v661
        %665 = vmatprep.subr.bf16.mxu0 0
        %666 = vmatpush1.bf16.xpose.msra.mxu0 0
        %667 = vmatprep.subr.bf16.mxu0 0
        %668 = vmatpush1.bf16.xpose.msra.mxu0 0
        %669 = vmatprep.subr.bf16.mxu0 0
        %670 = vmatpush1.bf16.xpose.msra.mxu0 0
        %671 = vmatprep.subr.bf16.mxu0 0
        %672 = vmatpush1.bf16.xpose.msra.mxu0 0
        %673 = vmatprep.subr.bf16.mxu0 0
        %674 = vmatpush1.bf16.xpose.msra.mxu0 0
        %675 = vmatprep.subr.bf16.mxu0 0
        %676 = vmatpush1.bf16.xpose.msra.mxu0 0
        %677 = vmatprep.subr.bf16.mxu0 0
        %678 = vmatpush1.bf16.xpose.msra.mxu0 0
        %679 = vmatprep.subr.bf16.mxu0 0
        %680 = vmatpush1.bf16.xpose.msra.mxu0 0
        %681 = vmatprep.subr.bf16.mxu0 0
        %682 = vmatpush1.bf16.xpose.msra.mxu0 0
        %683 = vmatprep.subr.bf16.mxu0 0
        %684 = vmatpush1.bf16.xpose.msra.mxu0 0
        %685 = vmatprep.subr.bf16.mxu0 0
        %686 = vmatpush1.bf16.xpose.msra.mxu0 0
        %687 = vmatprep.subr.bf16.mxu0 0
        %688 = vmatpush1.bf16.xpose.msra.mxu0 0
        %689 = vmatprep.subr.bf16.mxu0 0
        %690 = vmatpush1.bf16.xpose.msra.mxu0 0
        %691 = vmatprep.subr.bf16.mxu0 0
        %692 = vmatpush1.bf16.xpose.msra.mxu0 0
        %693 = vmatprep.subr.bf16.mxu0 0
        %694 = vmatpush1.bf16.xpose.msra.mxu0 0
        %695 = vmatprep.mubr.bf16.mxu0 0
        %696 = vmatmul.mubr.bf16.gmra.mrb[0].mxu0 %v658
        %v697 = vpop.f32.mrb[0].mxu0
        %v698 = vadd.f32 %v504, %v697
        %v699 = vpop.f32.mrb[0].mxu0
        %v700 = vpop.f32.mrb[0].mxu0
        %v701 = vpop.f32.mrb[0].mxu0
        %702 = vdwg.mxu0
        %v703 = vsel %vm509, %v551, -inf
        %704 = vmax.xlane.f32.xlu0 %v703
        %v705 = vpop.xlane.xlu0 %704
        %v706 = vsel %vm509, %v600, -inf
        %707 = vmax.xlane.f32.xlu0 %v706
        %v708 = vpop.xlane.xlu0 %707
        %v709 = vsel %vm509, %v649, -inf
        %710 = vmax.xlane.f32.xlu0 %v709
        %v711 = vpop.xlane.xlu0 %710
        %v712 = vsel %vm509, %v698, -inf
        %713 = vmax.xlane.f32.xlu0 %v712
        %v714 = vpop.xlane.xlu0 %713
        %v715 = vsub.f32 %v551, %v705
        %v716 = vsub.f32 %v600, %v708
        %v717 = vsub.f32 %v649, %v711
        %v718 = vsub.f32 %v698, %v714
        %v719 = vmul.f32 %v715, 1.442695
        %v720 = vpow.pop %v719
        %v721 = vmul.f32 %v716, 1.442695
        %v722 = vpow.pop %v721
        %v723 = vmul.f32 %v717, 1.442695
        %v724 = vpow.pop %v723
        %v725 = vmul.f32 %v718, 1.442695
        %v726 = vpow.pop %v725
        %v727 = vsel %vm509, %v720, 0.0
        %728 = vadd.xlane.f32.xlu0 %v727
        %v729 = vpop.xlane.xlu0 %728
        %v730 = vsel %vm509, %v722, 0.0
        %731 = vadd.xlane.f32.xlu0 %v730
        %v732 = vpop.xlane.xlu0 %731
        %v733 = vsel %vm509, %v724, 0.0
        %734 = vadd.xlane.f32.xlu0 %v733
        %v735 = vpop.xlane.xlu0 %734
        %v736 = vsel %vm509, %v726, 0.0
        %737 = vadd.xlane.f32.xlu0 %v736
        %v738 = vpop.xlane.xlu0 %737
        %v739 = vrcp.pop %v729
        %v740 = vrcp.pop %v732
        %v741 = vrcp.pop %v735
        %v742 = vrcp.pop %v738
        %v743 = vmul.f32 %v720, %v739
        %v744 = vmul.f32 %v722, %v740
        %v745 = vmul.f32 %v724, %v741
        %v746 = vmul.f32 %v726, %v742
        %v747 = vpack.c.bf16 %v743, %v743
        %v748 = vpack.c.bf16 %v744, %v744
        %v749 = vpack.c.bf16 %v745, %v745
        %v750 = vpack.c.bf16 %v746, %v746
        %751 = vrot.lane.b32.xlu0 %v496, 64
        %v752 = vpop.permute.xlu0 %751
        %v754 = vsel %vm509, %v747, 0
        %vm756 = vcmask 1043456
        %v758 = vsel %vm756, %v752, 0
        %760 = vmatprep.subr.bf16.mxu0 0
        %761 = vmatpush1.bf16.msra.mxu0 %v758
        %762 = vmatprep.subr.bf16.mxu0 0
        %763 = vmatpush1.bf16.msra.mxu0 0
        %764 = vmatprep.subr.bf16.mxu0 0
        %765 = vmatpush1.bf16.msra.mxu0 0
        %766 = vmatprep.subr.bf16.mxu0 0
        %767 = vmatpush1.bf16.msra.mxu0 0
        %768 = vmatprep.subr.bf16.mxu0 0
        %769 = vmatpush1.bf16.msra.mxu0 0
        %770 = vmatprep.subr.bf16.mxu0 0
        %771 = vmatpush1.bf16.msra.mxu0 0
        %772 = vmatprep.subr.bf16.mxu0 0
        %773 = vmatpush1.bf16.msra.mxu0 0
        %774 = vmatprep.subr.bf16.mxu0 0
        %775 = vmatpush1.bf16.msra.mxu0 0
        %776 = vmatprep.subr.bf16.mxu0 0
        %777 = vmatpush1.bf16.msra.mxu0 0
        %778 = vmatprep.subr.bf16.mxu0 0
        %779 = vmatpush1.bf16.msra.mxu0 0
        %780 = vmatprep.subr.bf16.mxu0 0
        %781 = vmatpush1.bf16.msra.mxu0 0
        %782 = vmatprep.subr.bf16.mxu0 0
        %783 = vmatpush1.bf16.msra.mxu0 0
        %784 = vmatprep.subr.bf16.mxu0 0
        %785 = vmatpush1.bf16.msra.mxu0 0
        %786 = vmatprep.subr.bf16.mxu0 0
        %787 = vmatpush1.bf16.msra.mxu0 0
        %788 = vmatprep.subr.bf16.mxu0 0
        %789 = vmatpush1.bf16.msra.mxu0 0
        %790 = vmatprep.subr.bf16.mxu0 0
        %791 = vmatpush1.bf16.msra.mxu0 0
        %792 = vmatprep.mubr.bf16.mxu0 0
        %793 = vmatmul.mubr.bf16.gmra.mrb[0].mxu0 %v754
        %v794 = vpop.f32.mrb[0].mxu0
        %v795 = vadd.f32 0.0, %v794
        %v796 = vpop.f32.mrb[0].mxu0
        %v797 = vpop.f32.mrb[0].mxu0
        %v798 = vpop.f32.mrb[0].mxu0
        %799 = vdwg.mxu0
        %800 = vrot.lane.b32.xlu0 %v497, 64
        %v801 = vpop.permute.xlu0 %800
        %v803 = vsel %vm509, %v748, 0
        %v806 = vsel %vm756, %v801, 0
        %808 = vmatprep.subr.bf16.mxu0 0
        %809 = vmatpush1.bf16.msra.mxu0 %v806
        %810 = vmatprep.subr.bf16.mxu0 0
        %811 = vmatpush1.bf16.msra.mxu0 0
        %812 = vmatprep.subr.bf16.mxu0 0
        %813 = vmatpush1.bf16.msra.mxu0 0
        %814 = vmatprep.subr.bf16.mxu0 0
        %815 = vmatpush1.bf16.msra.mxu0 0
        %816 = vmatprep.subr.bf16.mxu0 0
        %817 = vmatpush1.bf16.msra.mxu0 0
        %818 = vmatprep.subr.bf16.mxu0 0
        %819 = vmatpush1.bf16.msra.mxu0 0
        %820 = vmatprep.subr.bf16.mxu0 0
        %821 = vmatpush1.bf16.msra.mxu0 0
        %822 = vmatprep.subr.bf16.mxu0 0
        %823 = vmatpush1.bf16.msra.mxu0 0
        %824 = vmatprep.subr.bf16.mxu0 0
        %825 = vmatpush1.bf16.msra.mxu0 0
        %826 = vmatprep.subr.bf16.mxu0 0
        %827 = vmatpush1.bf16.msra.mxu0 0
        %828 = vmatprep.subr.bf16.mxu0 0
        %829 = vmatpush1.bf16.msra.mxu0 0
        %830 = vmatprep.subr.bf16.mxu0 0
        %831 = vmatpush1.bf16.msra.mxu0 0
        %832 = vmatprep.subr.bf16.mxu0 0
        %833 = vmatpush1.bf16.msra.mxu0 0
        %834 = vmatprep.subr.bf16.mxu0 0
        %835 = vmatpush1.bf16.msra.mxu0 0
        %836 = vmatprep.subr.bf16.mxu0 0
        %837 = vmatpush1.bf16.msra.mxu0 0
        %838 = vmatprep.subr.bf16.mxu0 0
        %839 = vmatpush1.bf16.msra.mxu0 0
        %840 = vmatprep.mubr.bf16.mxu0 0
        %841 = vmatmul.mubr.bf16.gmra.mrb[0].mxu0 %v803
        %v842 = vpop.f32.mrb[0].mxu0
        %v843 = vadd.f32 0.0, %v842
        %v844 = vpop.f32.mrb[0].mxu0
        %v845 = vpop.f32.mrb[0].mxu0
        %v846 = vpop.f32.mrb[0].mxu0
        %847 = vdwg.mxu0
        %848 = vrot.lane.b32.xlu0 %v498, 64
        %v849 = vpop.permute.xlu0 %848
        %v851 = vsel %vm509, %v749, 0
        %v854 = vsel %vm756, %v849, 0
        %856 = vmatprep.subr.bf16.mxu0 0
        %857 = vmatpush1.bf16.msra.mxu0 %v854
        %858 = vmatprep.subr.bf16.mxu0 0
        %859 = vmatpush1.bf16.msra.mxu0 0
        %860 = vmatprep.subr.bf16.mxu0 0
        %861 = vmatpush1.bf16.msra.mxu0 0
        %862 = vmatprep.subr.bf16.mxu0 0
        %863 = vmatpush1.bf16.msra.mxu0 0
        %864 = vmatprep.subr.bf16.mxu0 0
        %865 = vmatpush1.bf16.msra.mxu0 0
        %866 = vmatprep.subr.bf16.mxu0 0
        %867 = vmatpush1.bf16.msra.mxu0 0
        %868 = vmatprep.subr.bf16.mxu0 0
        %869 = vmatpush1.bf16.msra.mxu0 0
        %870 = vmatprep.subr.bf16.mxu0 0
        %871 = vmatpush1.bf16.msra.mxu0 0
        %872 = vmatprep.subr.bf16.mxu0 0
        %873 = vmatpush1.bf16.msra.mxu0 0
        %874 = vmatprep.subr.bf16.mxu0 0
        %875 = vmatpush1.bf16.msra.mxu0 0
        %876 = vmatprep.subr.bf16.mxu0 0
        %877 = vmatpush1.bf16.msra.mxu0 0
        %878 = vmatprep.subr.bf16.mxu0 0
        %879 = vmatpush1.bf16.msra.mxu0 0
        %880 = vmatprep.subr.bf16.mxu0 0
        %881 = vmatpush1.bf16.msra.mxu0 0
        %882 = vmatprep.subr.bf16.mxu0 0
        %883 = vmatpush1.bf16.msra.mxu0 0
        %884 = vmatprep.subr.bf16.mxu0 0
        %885 = vmatpush1.bf16.msra.mxu0 0
        %886 = vmatprep.subr.bf16.mxu0 0
        %887 = vmatpush1.bf16.msra.mxu0 0
        %888 = vmatprep.mubr.bf16.mxu0 0
        %889 = vmatmul.mubr.bf16.gmra.mrb[0].mxu0 %v851
        %v890 = vpop.f32.mrb[0].mxu0
        %v891 = vadd.f32 0.0, %v890
        %v892 = vpop.f32.mrb[0].mxu0
        %v893 = vpop.f32.mrb[0].mxu0
        %v894 = vpop.f32.mrb[0].mxu0
        %895 = vdwg.mxu0
        %896 = vrot.lane.b32.xlu0 %v499, 64
        %v897 = vpop.permute.xlu0 %896
        %v899 = vsel %vm509, %v750, 0
        %v902 = vsel %vm756, %v897, 0
        %904 = vmatprep.subr.bf16.mxu0 0
        %905 = vmatpush1.bf16.msra.mxu0 %v902
        %906 = vmatprep.subr.bf16.mxu0 0
        %907 = vmatpush1.bf16.msra.mxu0 0
        %908 = vmatprep.subr.bf16.mxu0 0
        %909 = vmatpush1.bf16.msra.mxu0 0
        %910 = vmatprep.subr.bf16.mxu0 0
        %911 = vmatpush1.bf16.msra.mxu0 0
        %912 = vmatprep.subr.bf16.mxu0 0
        %913 = vmatpush1.bf16.msra.mxu0 0
        %914 = vmatprep.subr.bf16.mxu0 0
        %915 = vmatpush1.bf16.msra.mxu0 0
        %916 = vmatprep.subr.bf16.mxu0 0
        %917 = vmatpush1.bf16.msra.mxu0 0
        %918 = vmatprep.subr.bf16.mxu0 0
        %919 = vmatpush1.bf16.msra.mxu0 0
        %920 = vmatprep.subr.bf16.mxu0 0
        %921 = vmatpush1.bf16.msra.mxu0 0
        %922 = vmatprep.subr.bf16.mxu0 0
        %923 = vmatpush1.bf16.msra.mxu0 0
        %924 = vmatprep.subr.bf16.mxu0 0
        %925 = vmatpush1.bf16.msra.mxu0 0
        %926 = vmatprep.subr.bf16.mxu0 0
        %927 = vmatpush1.bf16.msra.mxu0 0
        %928 = vmatprep.subr.bf16.mxu0 0
        %929 = vmatpush1.bf16.msra.mxu0 0
        %930 = vmatprep.subr.bf16.mxu0 0
        %931 = vmatpush1.bf16.msra.mxu0 0
        %932 = vmatprep.subr.bf16.mxu0 0
        %933 = vmatpush1.bf16.msra.mxu0 0
        %934 = vmatprep.subr.bf16.mxu0 0
        %935 = vmatpush1.bf16.msra.mxu0 0
        %936 = vmatprep.mubr.bf16.mxu0 0
        %937 = vmatmul.mubr.bf16.gmra.mrb[0].mxu0 %v899
        %v938 = vpop.f32.mrb[0].mxu0
        %v939 = vadd.f32 0.0, %v938
        %v940 = vpop.f32.mrb[0].mxu0
        %v941 = vpop.f32.mrb[0].mxu0
        %v942 = vpop.f32.mrb[0].mxu0
        %943 = vdwg.mxu0
        %945 = vrot.lane.b32.xlu0 %v843, 8
        %v946 = vpop.permute.xlu0 %945
        %949 = vrot.lane.b32.xlu0 %v891, 16
        %v950 = vpop.permute.xlu0 %949
        %953 = vrot.lane.b32.xlu0 %v939, 24
        %v954 = vpop.permute.xlu0 %953
        %v956 = vsel %vm509, %v795, %v946
        %vm957 = vcmask 130048
        %v958 = vsel %vm957, %v956, %v950
        %vm959 = vcmask 195584
        %v960 = vsel %vm959, %v958, %v954
        %v961 = vld [vmem:[%s4 + $0x4] sm:$0xf]
        %v962 = vld [vmem:[%s4 + $0x50] sm:$0xf]
        %v963 = vld [vmem:[%s4 + $0x9c] sm:$0xf]
        %v964 = vld [vmem:[%s4 + $0xe8] sm:$0xf]
        %v965 = vld [vmem:[%s6 + $0xc] sm:$0x1]
        %v966 = vpack.c.bf16 %v960, %v960
        %v967 = vlaneseq
        %v968 = vshrl.u32 %v967, 7
        %v969 = vsub.s32 0, %v968
        %v970 = vrot.slane %v965, %v969
        %v975 = vunpack.c.l.b16 %v961
        %v976 = vunpack.c.l.b16 %v962
        %v977 = vunpack.c.l.b16 %v963
        %v978 = vunpack.c.l.b16 %v964
        %v979 = vpack.c.b16 %v976, %v975
        %v980 = vpack.c.b16 %v978, %v977
        %v984 = vsel %vm371, %v966, 0
        %986 = vmatprep.subr.bf16.mxu0 0
        %987 = vmatpush1.bf16.msra.mxu0 %v979
        %988 = vmatprep.subr.bf16.mxu0 0
        %989 = vmatpush1.bf16.msra.mxu0 %v980
        %990 = vmatprep.subr.bf16.mxu0 0
        %991 = vmatpush1.bf16.msra.mxu0 0
        %992 = vmatprep.subr.bf16.mxu0 0
        %993 = vmatpush1.bf16.msra.mxu0 0
        %994 = vmatprep.subr.bf16.mxu0 0
        %995 = vmatpush1.bf16.msra.mxu0 0
        %996 = vmatprep.subr.bf16.mxu0 0
        %997 = vmatpush1.bf16.msra.mxu0 0
        %998 = vmatprep.subr.bf16.mxu0 0
        %999 = vmatpush1.bf16.msra.mxu0 0
        %1000 = vmatprep.subr.bf16.mxu0 0
        %1001 = vmatpush1.bf16.msra.mxu0 0
        %1002 = vmatprep.subr.bf16.mxu0 0
        %1003 = vmatpush1.bf16.msra.mxu0 0
        %1004 = vmatprep.subr.bf16.mxu0 0
        %1005 = vmatpush1.bf16.msra.mxu0 0
        %1006 = vmatprep.subr.bf16.mxu0 0
        %1007 = vmatpush1.bf16.msra.mxu0 0
        %1008 = vmatprep.subr.bf16.mxu0 0
        %1009 = vmatpush1.bf16.msra.mxu0 0
        %1010 = vmatprep.subr.bf16.mxu0 0
        %1011 = vmatpush1.bf16.msra.mxu0 0
        %1012 = vmatprep.subr.bf16.mxu0 0
        %1013 = vmatpush1.bf16.msra.mxu0 0
        %1014 = vmatprep.subr.bf16.mxu0 0
        %1015 = vmatpush1.bf16.msra.mxu0 0
        %1016 = vmatprep.subr.bf16.mxu0 0
        %1017 = vmatpush1.bf16.msra.mxu0 0
        %1018 = vmatprep.mubr.bf16.mxu0 0
        %1019 = vmatmul.mubr.bf16.gmra.mrb[0].mxu0 %v984
        %v1020 = vpop.f32.mrb[0].mxu0
        %v1021 = vadd.f32 %v970, %v1020
        %v1022 = vpop.f32.mrb[0].mxu0
        %v1023 = vpop.f32.mrb[0].mxu0
        %v1024 = vpop.f32.mrb[0].mxu0
        %1025 = vdwg.mxu0
        %v1026 = vadd.f32 %v395, %v1021
        %v1027 = vld [vmem:[%s6 + $0xd] sm:$0x1]
        %v1028 = vld [vmem:[%s6 + $0xe] sm:$0x1]
        %v1029 = vsel %vm371, %v1026, 0.0
        %1030 = vadd.xlane.f32.xlu0 %v1029
        %v1031 = vpop.xlane.xlu0 %1030
        %v1032 = vmul.f32 %v1031, %v375
        %v1033 = vsub.f32 %v1026, %v1032
        %v1034 = vmul.f32 %v1033, %v1033
        %v1035 = vsel %vm371, %v1034, 0.0
        %1036 = vadd.xlane.f32.xlu0 %v1035
        %v1037 = vpop.xlane.xlu0 %1036
        %v1038 = vmul.f32 %v1037, %v375
        %v1039 = vadd.f32 %v1038, 1e-05
        %v1040 = vrsqrt.pop %v1039
        %v1041 = vmul.f32 %v1033, %v1040
        %v1042 = vlaneseq
        %v1043 = vshrl.u32 %v1042, 7
        %v1044 = vsub.s32 0, %v1043
        %v1045 = vrot.slane %v1027, %v1044
        %v1046 = vmul.f32 %v1041, %v1045
        %v1047 = vlaneseq
        %v1048 = vshrl.u32 %v1047, 7
        %v1049 = vsub.s32 0, %v1048
        %v1050 = vrot.slane %v1028, %v1049
        %v1051 = vadd.f32 %v1046, %v1050
        %v1052 = vld [vmem:[%s4 + $0x8] sm:$0xf]
        %v1053 = vld [vmem:[%s4 + $0x54] sm:$0xf]
        %v1054 = vld [vmem:[%s4 + $0xa0] sm:$0xf]
        %v1055 = vld [vmem:[%s4 + $0xec] sm:$0xf]
        %v1056 = vld [vmem:[%s6 + $0xf] sm:$0x1]
        %v1057 = vpack.c.bf16 %v1051, %v1051
        %v1058 = vlaneseq
        %v1059 = vshrl.u32 %v1058, 7
        %v1060 = vsub.s32 0, %v1059
        %v1061 = vrot.slane %v1056, %v1060
        %v1066 = vunpack.c.l.b16 %v1052
        %v1067 = vunpack.c.l.b16 %v1053
        %v1068 = vunpack.c.l.b16 %v1054
        %v1069 = vunpack.c.l.b16 %v1055
        %v1070 = vpack.c.b16 %v1067, %v1066
        %v1071 = vpack.c.b16 %v1069, %v1068
        %v1075 = vsel %vm371, %v1057, 0
        %1077 = vmatprep.subr.bf16.mxu0 0
        %1078 = vmatpush1.bf16.msra.mxu0 %v1070
        %1079 = vmatprep.subr.bf16.mxu0 0
        %1080 = vmatpush1.bf16.msra.mxu0 %v1071
        %1081 = vmatprep.subr.bf16.mxu0 0
        %1082 = vmatpush1.bf16.msra.mxu0 0
        %1083 = vmatprep.subr.bf16.mxu0 0
        %1084 = vmatpush1.bf16.msra.mxu0 0
        %1085 = vmatprep.subr.bf16.mxu0 0
        %1086 = vmatpush1.bf16.msra.mxu0 0
        %1087 = vmatprep.subr.bf16.mxu0 0
        %1088 = vmatpush1.bf16.msra.mxu0 0
        %1089 = vmatprep.subr.bf16.mxu0 0
        %1090 = vmatpush1.bf16.msra.mxu0 0
        %1091 = vmatprep.subr.bf16.mxu0 0
        %1092 = vmatpush1.bf16.msra.mxu0 0
        %1093 = vmatprep.subr.bf16.mxu0 0
        %1094 = vmatpush1.bf16.msra.mxu0 0
        %1095 = vmatprep.subr.bf16.mxu0 0
        %1096 = vmatpush1.bf16.msra.mxu0 0
        %1097 = vmatprep.subr.bf16.mxu0 0
        %1098 = vmatpush1.bf16.msra.mxu0 0
        %1099 = vmatprep.subr.bf16.mxu0 0
        %1100 = vmatpush1.bf16.msra.mxu0 0
        %1101 = vmatprep.subr.bf16.mxu0 0
        %1102 = vmatpush1.bf16.msra.mxu0 0
        %1103 = vmatprep.subr.bf16.mxu0 0
        %1104 = vmatpush1.bf16.msra.mxu0 0
        %1105 = vmatprep.subr.bf16.mxu0 0
        %1106 = vmatpush1.bf16.msra.mxu0 0
        %1107 = vmatprep.subr.bf16.mxu0 0
        %1108 = vmatpush1.bf16.msra.mxu0 0
        %1109 = vmatprep.mubr.bf16.mxu0 0
        %1110 = vmatmul.mubr.bf16.gmra.mrb[0].mxu0 %v1075
        %v1111 = vpop.f32.mrb[0].mxu0
        %v1112 = vadd.f32 %v1061, %v1111
        %v1113 = vpop.f32.mrb[0].mxu0
        %v1114 = vpop.f32.mrb[0].mxu0
        %v1115 = vpop.f32.mrb[0].mxu0
        %1116 = vdwg.mxu0
        %v1117 = vmul.f32 %v1112, %v1112
        %v1118 = vmul.f32 %v1112, %v1117
        %v1119 = vmul.f32 %v1118, 0.044715
        %v1120 = vadd.f32 %v1112, %v1119
        %v1121 = vmul.f32 %v1120, 0.7978846
        %v1122 = vtanh.pop %v1121
        %v1123 = vadd.f32 %v1122, 1.0
        %v1124 = vmul.f32 %v1123, 0.5
        %v1125 = vmul.f32 %v1112, %v1124
        %v1126 = vld [vmem:[%s5] sm:$0xf]
        %v1127 = vld [vmem:[%s5 + $0x10] sm:$0xf]
        %v1128 = vld [vmem:[%s5 + $0x20] sm:$0xf]
        %v1129 = vld [vmem:[%s5 + $0x30] sm:$0xf]
        %v1130 = vld [vmem:[%s5 + $0x40] sm:$0xf]
        %v1131 = vld [vmem:[%s5 + $0x50] sm:$0xf]
        %v1132 = vld [vmem:[%s5 + $0x60] sm:$0xf]
        %v1133 = vld [vmem:[%s5 + $0x70] sm:$0xf]
        %v1134 = vld [vmem:[%s6 + $0x10] sm:$0x1]
        %v1135 = vpack.c.bf16 %v1125, %v1125
        %v1136 = vlaneseq
        %v1137 = vshrl.u32 %v1136, 7
        %v1138 = vsub.s32 0, %v1137
        %v1139 = vrot.slane %v1134, %v1138
        %v1148 = vunpack.c.l.b16 %v1126
        %v1149 = vunpack.c.l.b16 %v1127
        %v1150 = vunpack.c.l.b16 %v1128
        %v1151 = vunpack.c.l.b16 %v1129
        %v1152 = vunpack.c.l.b16 %v1130
        %v1153 = vunpack.c.l.b16 %v1131
        %v1154 = vunpack.c.l.b16 %v1132
        %v1155 = vunpack.c.l.b16 %v1133
        %v1156 = vpack.c.b16 %v1149, %v1148
        %v1157 = vpack.c.b16 %v1151, %v1150
        %v1158 = vpack.c.b16 %v1153, %v1152
        %v1159 = vpack.c.b16 %v1155, %v1154
        %vm1164 = vcmask 523264
        %v1166 = vsel %vm1164, %v1135, 0
        %1168 = vmatprep.subr.bf16.mxu0 0
        %1169 = vmatpush1.bf16.msra.mxu0 %v1156
        %1170 = vmatprep.subr.bf16.mxu0 0
        %1171 = vmatpush1.bf16.msra.mxu0 %v1157
        %1172 = vmatprep.subr.bf16.mxu0 0
        %1173 = vmatpush1.bf16.msra.mxu0 %v1158
        %1174 = vmatprep.subr.bf16.mxu0 0
        %1175 = vmatpush1.bf16.msra.mxu0 %v1159
        %1176 = vmatprep.subr.bf16.mxu0 0
        %1177 = vmatpush1.bf16.msra.mxu0 0
        %1178 = vmatprep.subr.bf16.mxu0 0
        %1179 = vmatpush1.bf16.msra.mxu0 0
        %1180 = vmatprep.subr.bf16.mxu0 0
        %1181 = vmatpush1.bf16.msra.mxu0 0
        %1182 = vmatprep.subr.bf16.mxu0 0
        %1183 = vmatpush1.bf16.msra.mxu0 0
        %1184 = vmatprep.subr.bf16.mxu0 0
        %1185 = vmatpush1.bf16.msra.mxu0 0
        %1186 = vmatprep.subr.bf16.mxu0 0
        %1187 = vmatpush1.bf16.msra.mxu0 0
        %1188 = vmatprep.subr.bf16.mxu0 0
        %1189 = vmatpush1.bf16.msra.mxu0 0
        %1190 = vmatprep.subr.bf16.mxu0 0
        %1191 = vmatpush1.bf16.msra.mxu0 0
        %1192 = vmatprep.subr.bf16.mxu0 0
        %1193 = vmatpush1.bf16.msra.mxu0 0
        %1194 = vmatprep.subr.bf16.mxu0 0
        %1195 = vmatpush1.bf16.msra.mxu0 0
        %1196 = vmatprep.subr.bf16.mxu0 0
        %1197 = vmatpush1.bf16.msra.mxu0 0
        %1198 = vmatprep.subr.bf16.mxu0 0
        %1199 = vmatpush1.bf16.msra.mxu0 0
        %1200 = vmatprep.mubr.bf16.mxu0 0
        %1201 = vmatmul.mubr.bf16.gmra.mrb[0].mxu0 %v1166
        %v1202 = vpop.f32.mrb[0].mxu0
        %v1203 = vadd.f32 %v1139, %v1202
        %v1204 = vpop.f32.mrb[0].mxu0
        %v1205 = vpop.f32.mrb[0].mxu0
        %v1206 = vpop.f32.mrb[0].mxu0
        %1207 = vdwg.mxu0
        %v1208 = vadd.f32 %v1026, %v1203
        %v1209 = vld [vmem:[%s6 + $0x11] sm:$0x1]
        %v1210 = vld [vmem:[%s6 + $0x12] sm:$0x1]
        %v1211 = vsel %vm371, %v1208, 0.0
        %1212 = vadd.xlane.f32.xlu0 %v1211
        %v1213 = vpop.xlane.xlu0 %1212
        %v1214 = vmul.f32 %v1213, %v375
        %v1215 = vsub.f32 %v1208, %v1214
        %v1216 = vmul.f32 %v1215, %v1215
        %v1217 = vsel %vm371, %v1216, 0.0
        %1218 = vadd.xlane.f32.xlu0 %v1217
        %v1219 = vpop.xlane.xlu0 %1218
        %v1220 = vmul.f32 %v1219, %v375
        %v1221 = vadd.f32 %v1220, 1e-05
        %v1222 = vrsqrt.pop %v1221
        %v1223 = vmul.f32 %v1215, %v1222
        %v1224 = vlaneseq
        %v1225 = vshrl.u32 %v1224, 7
        %v1226 = vsub.s32 0, %v1225
        %v1227 = vrot.slane %v1209, %v1226
        %v1228 = vmul.f32 %v1223, %v1227
        %v1229 = vlaneseq
        %v1230 = vshrl.u32 %v1229, 7
        %v1231 = vsub.s32 0, %v1230
        %v1232 = vrot.slane %v1210, %v1231
        %v1233 = vadd.f32 %v1228, %v1232
        %v1234 = vld [vmem:[%s4 + $0xc] sm:$0xf]
        %v1235 = vld [vmem:[%s4 + $0x58] sm:$0xf]
        %v1236 = vld [vmem:[%s4 + $0xa4] sm:$0xf]
        %v1237 = vld [vmem:[%s4 + $0xf0] sm:$0xf]
        %v1238 = vld [vmem:[%s6 + $0x13] sm:$0x1]
        %v1239 = vpack.c.bf16 %v1233, %v1233
        %v1240 = vlaneseq
        %v1241 = vshrl.u32 %v1240, 7
        %v1242 = vsub.s32 0, %v1241
        %v1243 = vrot.slane %v1238, %v1242
        %v1248 = vunpack.c.l.b16 %v1234
        %v1249 = vunpack.c.l.b16 %v1235
        %v1250 = vunpack.c.l.b16 %v1236
        %v1251 = vunpack.c.l.b16 %v1237
        %v1252 = vpack.c.b16 %v1249, %v1248
        %v1253 = vpack.c.b16 %v1251, %v1250
        %v1257 = vsel %vm371, %v1239, 0
        %1259 = vmatprep.subr.bf16.mxu0 0
        %1260 = vmatpush1.bf16.msra.mxu0 %v1252
        %1261 = vmatprep.subr.bf16.mxu0 0
        %1262 = vmatpush1.bf16.msra.mxu0 %v1253
        %1263 = vmatprep.subr.bf16.mxu0 0
        %1264 = vmatpush1.bf16.msra.mxu0 0
        %1265 = vmatprep.subr.bf16.mxu0 0
        %1266 = vmatpush1.bf16.msra.mxu0 0
        %1267 = vmatprep.subr.bf16.mxu0 0
        %1268 = vmatpush1.bf16.msra.mxu0 0
        %1269 = vmatprep.subr.bf16.mxu0 0
        %1270 = vmatpush1.bf16.msra.mxu0 0
        %1271 = vmatprep.subr.bf16.mxu0 0
        %1272 = vmatpush1.bf16.msra.mxu0 0
        %1273 = vmatprep.subr.bf16.mxu0 0
        %1274 = vmatpush1.bf16.msra.mxu0 0
        %1275 = vmatprep.subr.bf16.mxu0 0
        %1276 = vmatpush1.bf16.msra.mxu0 0
        %1277 = vmatprep.subr.bf16.mxu0 0
        %1278 = vmatpush1.bf16.msra.mxu0 0
        %1279 = vmatprep.subr.bf16.mxu0 0
        %1280 = vmatpush1.bf16.msra.mxu0 0
        %1281 = vmatprep.subr.bf16.mxu0 0
        %1282 = vmatpush1.bf16.msra.mxu0 0
        %1283 = vmatprep.subr.bf16.mxu0 0
        %1284 = vmatpush1.bf16.msra.mxu0 0
        %1285 = vmatprep.subr.bf16.mxu0 0
        %1286 = vmatpush1.bf16.msra.mxu0 0
        %1287 = vmatprep.subr.bf16.mxu0 0
        %1288 = vmatpush1.bf16.msra.mxu0 0
        %1289 = vmatprep.subr.bf16.mxu0 0
        %1290 = vmatpush1.bf16.msra.mxu0 0
        %1291 = vmatprep.mubr.bf16.mxu0 0
        %1292 = vmatmul.mubr.bf16.gmra.mrb[0].mxu0 %v1257
        %v1293 = vpop.f32.mrb[0].mxu0
        %v1294 = vadd.f32 %v1243, %v1293
        %v1295 = vpop.f32.mrb[0].mxu0
        %v1296 = vpop.f32.mrb[0].mxu0
        %v1297 = vpop.f32.mrb[0].mxu0
        %1298 = vdwg.mxu0
        %1300 = vrot.lane.b32.xlu0 %v1294, 120
        %v1301 = vpop.permute.xlu0 %1300
        %1303 = vrot.lane.b32.xlu0 %v1294, 112
        %v1304 = vpop.permute.xlu0 %1303
        %1306 = vrot.lane.b32.xlu0 %v1294, 104
        %v1307 = vpop.permute.xlu0 %1306
        %v1309 = vpack.c.bf16 %v1294, %v1294
        %v1310 = vpack.c.bf16 %v1301, %v1301
        %v1311 = vpack.c.bf16 %v1304, %v1304
        %v1312 = vpack.c.bf16 %v1307, %v1307
        %1314 = vrot.lane.b32.xlu0 %v1309, 96
        %v1315 = vpop.permute.xlu0 %1314
        %v1317 = vsel %vm509, %v1309, 0
        %v1320 = vsel %vm509, %v1315, 0
        %1322 = vmatprep.subr.bf16.mxu0 0
        %1323 = vmatpush1.bf16.xpose.msra.mxu0 %v1320
        %1324 = vmatprep.subr.bf16.mxu0 0
        %1325 = vmatpush1.bf16.xpose.msra.mxu0 0
        %1326 = vmatprep.subr.bf16.mxu0 0
        %1327 = vmatpush1.bf16.xpose.msra.mxu0 0
        %1328 = vmatprep.subr.bf16.mxu0 0
        %1329 = vmatpush1.bf16.xpose.msra.mxu0 0
        %1330 = vmatprep.subr.bf16.mxu0 0
        %1331 = vmatpush1.bf16.xpose.msra.mxu0 0
        %1332 = vmatprep.subr.bf16.mxu0 0
        %1333 = vmatpush1.bf16.xpose.msra.mxu0 0
        %1334 = vmatprep.subr.bf16.mxu0 0
        %1335 = vmatpush1.bf16.xpose.msra.mxu0 0
        %1336 = vmatprep.subr.bf16.mxu0 0
        %1337 = vmatpush1.bf16.xpose.msra.mxu0 0
        %1338 = vmatprep.subr.bf16.mxu0 0
        %1339 = vmatpush1.bf16.xpose.msra.mxu0 0
        %1340 = vmatprep.subr.bf16.mxu0 0
        %1341 = vmatpush1.bf16.xpose.msra.mxu0 0
        %1342 = vmatprep.subr.bf16.mxu0 0
        %1343 = vmatpush1.bf16.xpose.msra.mxu0 0
        %1344 = vmatprep.subr.bf16.mxu0 0
        %1345 = vmatpush1.bf16.xpose.msra.mxu0 0
        %1346 = vmatprep.subr.bf16.mxu0 0
        %1347 = vmatpush1.bf16.xpose.msra.mxu0 0
        %1348 = vmatprep.subr.bf16.mxu0 0
        %1349 = vmatpush1.bf16.xpose.msra.mxu0 0
        %1350 = vmatprep.subr.bf16.mxu0 0
        %1351 = vmatpush1.bf16.xpose.msra.mxu0 0
        %1352 = vmatprep.subr.bf16.mxu0 0
        %1353 = vmatpush1.bf16.xpose.msra.mxu0 0
        %1354 = vmatprep.mubr.bf16.mxu0 0
        %1355 = vmatmul.mubr.bf16.gmra.mrb[0].mxu0 %v1317
        %v1356 = vpop.f32.mrb[0].mxu0
        %v1357 = vadd.f32 %v504, %v1356
        %v1358 = vpop.f32.mrb[0].mxu0
        %v1359 = vpop.f32.mrb[0].mxu0
        %v1360 = vpop.f32.mrb[0].mxu0
        %1361 = vdwg.mxu0
        %1363 = vrot.lane.b32.xlu0 %v1310, 96
        %v1364 = vpop.permute.xlu0 %1363
        %v1366 = vsel %vm509, %v1310, 0
        %v1369 = vsel %vm509, %v1364, 0
        %1371 = vmatprep.subr.bf16.mxu0 0
        %1372 = vmatpush1.bf16.xpose.msra.mxu0 %v1369
        %1373 = vmatprep.subr.bf16.mxu0 0
        %1374 = vmatpush1.bf16.xpose.msra.mxu0 0
        %1375 = vmatprep.subr.bf16.mxu0 0
        %1376 = vmatpush1.bf16.xpose.msra.mxu0 0
        %1377 = vmatprep.subr.bf16.mxu0 0
        %1378 = vmatpush1.bf16.xpose.msra.mxu0 0
        %1379 = vmatprep.subr.bf16.mxu0 0
        %1380 = vmatpush1.bf16.xpose.msra.mxu0 0
        %1381 = vmatprep.subr.bf16.mxu0 0
        %1382 = vmatpush1.bf16.xpose.msra.mxu0 0
        %1383 = vmatprep.subr.bf16.mxu0 0
        %1384 = vmatpush1.bf16.xpose.msra.mxu0 0
        %1385 = vmatprep.subr.bf16.mxu0 0
        %1386 = vmatpush1.bf16.xpose.msra.mxu0 0
        %1387 = vmatprep.subr.bf16.mxu0 0
        %1388 = vmatpush1.bf16.xpose.msra.mxu0 0
        %1389 = vmatprep.subr.bf16.mxu0 0
        %1390 = vmatpush1.bf16.xpose.msra.mxu0 0
        %1391 = vmatprep.subr.bf16.mxu0 0
        %1392 = vmatpush1.bf16.xpose.msra.mxu0 0
        %1393 = vmatprep.subr.bf16.mxu0 0
        %1394 = vmatpush1.bf16.xpose.msra.mxu0 0
        %1395 = vmatprep.subr.bf16.mxu0 0
        %1396 = vmatpush1.bf16.xpose.msra.mxu0 0
        %1397 = vmatprep.subr.bf16.mxu0 0
        %1398 = vmatpush1.bf16.xpose.msra.mxu0 0
        %1399 = vmatprep.subr.bf16.mxu0 0
        %1400 = vmatpush1.bf16.xpose.msra.mxu0 0
        %1401 = vmatprep.subr.bf16.mxu0 0
        %1402 = vmatpush1.bf16.xpose.msra.mxu0 0
        %1403 = vmatprep.mubr.bf16.mxu0 0
        %1404 = vmatmul.mubr.bf16.gmra.mrb[0].mxu0 %v1366
        %v1405 = vpop.f32.mrb[0].mxu0
        %v1406 = vadd.f32 %v504, %v1405
        %v1407 = vpop.f32.mrb[0].mxu0
        %v1408 = vpop.f32.mrb[0].mxu0
        %v1409 = vpop.f32.mrb[0].mxu0
        %1410 = vdwg.mxu0
        %1412 = vrot.lane.b32.xlu0 %v1311, 96
        %v1413 = vpop.permute.xlu0 %1412
        %v1415 = vsel %vm509, %v1311, 0
        %v1418 = vsel %vm509, %v1413, 0
        %1420 = vmatprep.subr.bf16.mxu0 0
        %1421 = vmatpush1.bf16.xpose.msra.mxu0 %v1418
        %1422 = vmatprep.subr.bf16.mxu0 0
        %1423 = vmatpush1.bf16.xpose.msra.mxu0 0
        %1424 = vmatprep.subr.bf16.mxu0 0
        %1425 = vmatpush1.bf16.xpose.msra.mxu0 0
        %1426 = vmatprep.subr.bf16.mxu0 0
        %1427 = vmatpush1.bf16.xpose.msra.mxu0 0
        %1428 = vmatprep.subr.bf16.mxu0 0
        %1429 = vmatpush1.bf16.xpose.msra.mxu0 0
        %1430 = vmatprep.subr.bf16.mxu0 0
        %1431 = vmatpush1.bf16.xpose.msra.mxu0 0
        %1432 = vmatprep.subr.bf16.mxu0 0
        %1433 = vmatpush1.bf16.xpose.msra.mxu0 0
        %1434 = vmatprep.subr.bf16.mxu0 0
        %1435 = vmatpush1.bf16.xpose.msra.mxu0 0
        %1436 = vmatprep.subr.bf16.mxu0 0
        %1437 = vmatpush1.bf16.xpose.msra.mxu0 0
        %1438 = vmatprep.subr.bf16.mxu0 0
        %1439 = vmatpush1.bf16.xpose.msra.mxu0 0
        %1440 = vmatprep.subr.bf16.mxu0 0
        %1441 = vmatpush1.bf16.xpose.msra.mxu0 0
        %1442 = vmatprep.subr.bf16.mxu0 0
        %1443 = vmatpush1.bf16.xpose.msra.mxu0 0
        %1444 = vmatprep.subr.bf16.mxu0 0
        %1445 = vmatpush1.bf16.xpose.msra.mxu0 0
        %1446 = vmatprep.subr.bf16.mxu0 0
        %1447 = vmatpush1.bf16.xpose.msra.mxu0 0
        %1448 = vmatprep.subr.bf16.mxu0 0
        %1449 = vmatpush1.bf16.xpose.msra.mxu0 0
        %1450 = vmatprep.subr.bf16.mxu0 0
        %1451 = vmatpush1.bf16.xpose.msra.mxu0 0
        %1452 = vmatprep.mubr.bf16.mxu0 0
        %1453 = vmatmul.mubr.bf16.gmra.mrb[0].mxu0 %v1415
        %v1454 = vpop.f32.mrb[0].mxu0
        %v1455 = vadd.f32 %v504, %v1454
        %v1456 = vpop.f32.mrb[0].mxu0
        %v1457 = vpop.f32.mrb[0].mxu0
        %v1458 = vpop.f32.mrb[0].mxu0
        %1459 = vdwg.mxu0
        %1461 = vrot.lane.b32.xlu0 %v1312, 96
        %v1462 = vpop.permute.xlu0 %1461
        %v1464 = vsel %vm509, %v1312, 0
        %v1467 = vsel %vm509, %v1462, 0
        %1469 = vmatprep.subr.bf16.mxu0 0
        %1470 = vmatpush1.bf16.xpose.msra.mxu0 %v1467
        %1471 = vmatprep.subr.bf16.mxu0 0
        %1472 = vmatpush1.bf16.xpose.msra.mxu0 0
        %1473 = vmatprep.subr.bf16.mxu0 0
        %1474 = vmatpush1.bf16.xpose.msra.mxu0 0
        %1475 = vmatprep.subr.bf16.mxu0 0
        %1476 = vmatpush1.bf16.xpose.msra.mxu0 0
        %1477 = vmatprep.subr.bf16.mxu0 0
        %1478 = vmatpush1.bf16.xpose.msra.mxu0 0
        %1479 = vmatprep.subr.bf16.mxu0 0
        %1480 = vmatpush1.bf16.xpose.msra.mxu0 0
        %1481 = vmatprep.subr.bf16.mxu0 0
        %1482 = vmatpush1.bf16.xpose.msra.mxu0 0
        %1483 = vmatprep.subr.bf16.mxu0 0
        %1484 = vmatpush1.bf16.xpose.msra.mxu0 0
        %1485 = vmatprep.subr.bf16.mxu0 0
        %1486 = vmatpush1.bf16.xpose.msra.mxu0 0
        %1487 = vmatprep.subr.bf16.mxu0 0
        %1488 = vmatpush1.bf16.xpose.msra.mxu0 0
        %1489 = vmatprep.subr.bf16.mxu0 0
        %1490 = vmatpush1.bf16.xpose.msra.mxu0 0
        %1491 = vmatprep.subr.bf16.mxu0 0
        %1492 = vmatpush1.bf16.xpose.msra.mxu0 0
        %1493 = vmatprep.subr.bf16.mxu0 0
        %1494 = vmatpush1.bf16.xpose.msra.mxu0 0
        %1495 = vmatprep.subr.bf16.mxu0 0
        %1496 = vmatpush1.bf16.xpose.msra.mxu0 0
        %1497 = vmatprep.subr.bf16.mxu0 0
        %1498 = vmatpush1.bf16.xpose.msra.mxu0 0
        %1499 = vmatprep.subr.bf16.mxu0 0
        %1500 = vmatpush1.bf16.xpose.msra.mxu0 0
        %1501 = vmatprep.mubr.bf16.mxu0 0
        %1502 = vmatmul.mubr.bf16.gmra.mrb[0].mxu0 %v1464
        %v1503 = vpop.f32.mrb[0].mxu0
        %v1504 = vadd.f32 %v504, %v1503
        %v1505 = vpop.f32.mrb[0].mxu0
        %v1506 = vpop.f32.mrb[0].mxu0
        %v1507 = vpop.f32.mrb[0].mxu0
        %1508 = vdwg.mxu0
        %v1509 = vsel %vm509, %v1357, -inf
        %1510 = vmax.xlane.f32.xlu0 %v1509
        %v1511 = vpop.xlane.xlu0 %1510
        %v1512 = vsel %vm509, %v1406, -inf
        %1513 = vmax.xlane.f32.xlu0 %v1512
        %v1514 = vpop.xlane.xlu0 %1513
        %v1515 = vsel %vm509, %v1455, -inf
        %1516 = vmax.xlane.f32.xlu0 %v1515
        %v1517 = vpop.xlane.xlu0 %1516
        %v1518 = vsel %vm509, %v1504, -inf
        %1519 = vmax.xlane.f32.xlu0 %v1518
        %v1520 = vpop.xlane.xlu0 %1519
        %v1521 = vsub.f32 %v1357, %v1511
        %v1522 = vsub.f32 %v1406, %v1514
        %v1523 = vsub.f32 %v1455, %v1517
        %v1524 = vsub.f32 %v1504, %v1520
        %v1525 = vmul.f32 %v1521, 1.442695
        %v1526 = vpow.pop %v1525
        %v1527 = vmul.f32 %v1522, 1.442695
        %v1528 = vpow.pop %v1527
        %v1529 = vmul.f32 %v1523, 1.442695
        %v1530 = vpow.pop %v1529
        %v1531 = vmul.f32 %v1524, 1.442695
        %v1532 = vpow.pop %v1531
        %v1533 = vsel %vm509, %v1526, 0.0
        %1534 = vadd.xlane.f32.xlu0 %v1533
        %v1535 = vpop.xlane.xlu0 %1534
        %v1536 = vsel %vm509, %v1528, 0.0
        %1537 = vadd.xlane.f32.xlu0 %v1536
        %v1538 = vpop.xlane.xlu0 %1537
        %v1539 = vsel %vm509, %v1530, 0.0
        %1540 = vadd.xlane.f32.xlu0 %v1539
        %v1541 = vpop.xlane.xlu0 %1540
        %v1542 = vsel %vm509, %v1532, 0.0
        %1543 = vadd.xlane.f32.xlu0 %v1542
        %v1544 = vpop.xlane.xlu0 %1543
        %v1545 = vrcp.pop %v1535
        %v1546 = vrcp.pop %v1538
        %v1547 = vrcp.pop %v1541
        %v1548 = vrcp.pop %v1544
        %v1549 = vmul.f32 %v1526, %v1545
        %v1550 = vmul.f32 %v1528, %v1546
        %v1551 = vmul.f32 %v1530, %v1547
        %v1552 = vmul.f32 %v1532, %v1548
        %v1553 = vpack.c.bf16 %v1549, %v1549
        %v1554 = vpack.c.bf16 %v1550, %v1550
        %v1555 = vpack.c.bf16 %v1551, %v1551
        %v1556 = vpack.c.bf16 %v1552, %v1552
        %1557 = vrot.lane.b32.xlu0 %v1309, 64
        %v1558 = vpop.permute.xlu0 %1557
        %v1560 = vsel %vm509, %v1553, 0
        %v1563 = vsel %vm756, %v1558, 0
        %1565 = vmatprep.subr.bf16.mxu0 0
        %1566 = vmatpush1.bf16.msra.mxu0 %v1563
        %1567 = vmatprep.subr.bf16.mxu0 0
        %1568 = vmatpush1.bf16.msra.mxu0 0
        %1569 = vmatprep.subr.bf16.mxu0 0
        %1570 = vmatpush1.bf16.msra.mxu0 0
        %1571 = vmatprep.subr.bf16.mxu0 0
        %1572 = vmatpush1.bf16.msra.mxu0 0
        %1573 = vmatprep.subr.bf16.mxu0 0
        %1574 = vmatpush1.bf16.msra.mxu0 0
        %1575 = vmatprep.subr.bf16.mxu0 0
        %1576 = vmatpush1.bf16.msra.mxu0 0
        %1577 = vmatprep.subr.bf16.mxu0 0
        %1578 = vmatpush1.bf16.msra.mxu0 0
        %1579 = vmatprep.subr.bf16.mxu0 0
        %1580 = vmatpush1.bf16.msra.mxu0 0
        %1581 = vmatprep.subr.bf16.mxu0 0
        %1582 = vmatpush1.bf16.msra.mxu0 0
        %1583 = vmatprep.subr.bf16.mxu0 0
        %1584 = vmatpush1.bf16.msra.mxu0 0
        %1585 = vmatprep.subr.bf16.mxu0 0
        %1586 = vmatpush1.bf16.msra.mxu0 0
        %1587 = vmatprep.subr.bf16.mxu0 0
        %1588 = vmatpush1.bf16.msra.mxu0 0
        %1589 = vmatprep.subr.bf16.mxu0 0
        %1590 = vmatpush1.bf16.msra.mxu0 0
        %1591 = vmatprep.subr.bf16.mxu0 0
        %1592 = vmatpush1.bf16.msra.mxu0 0
        %1593 = vmatprep.subr.bf16.mxu0 0
        %1594 = vmatpush1.bf16.msra.mxu0 0
        %1595 = vmatprep.subr.bf16.mxu0 0
        %1596 = vmatpush1.bf16.msra.mxu0 0
        %1597 = vmatprep.mubr.bf16.mxu0 0
        %1598 = vmatmul.mubr.bf16.gmra.mrb[0].mxu0 %v1560
        %v1599 = vpop.f32.mrb[0].mxu0
        %v1600 = vadd.f32 0.0, %v1599
        %v1601 = vpop.f32.mrb[0].mxu0
        %v1602 = vpop.f32.mrb[0].mxu0
        %v1603 = vpop.f32.mrb[0].mxu0
        %1604 = vdwg.mxu0
        %1605 = vrot.lane.b32.xlu0 %v1310, 64
        %v1606 = vpop.permute.xlu0 %1605
        %v1608 = vsel %vm509, %v1554, 0
        %v1611 = vsel %vm756, %v1606, 0
        %1613 = vmatprep.subr.bf16.mxu0 0
        %1614 = vmatpush1.bf16.msra.mxu0 %v1611
        %1615 = vmatprep.subr.bf16.mxu0 0
        %1616 = vmatpush1.bf16.msra.mxu0 0
        %1617 = vmatprep.subr.bf16.mxu0 0
        %1618 = vmatpush1.bf16.msra.mxu0 0
        %1619 = vmatprep.subr.bf16.mxu0 0
        %1620 = vmatpush1.bf16.msra.mxu0 0
        %1621 = vmatprep.subr.bf16.mxu0 0
        %1622 = vmatpush1.bf16.msra.mxu0 0
        %1623 = vmatprep.subr.bf16.mxu0 0
        %1624 = vmatpush1.bf16.msra.mxu0 0
        %1625 = vmatprep.subr.bf16.mxu0 0
        %1626 = vmatpush1.bf16.msra.mxu0 0
        %1627 = vmatprep.subr.bf16.mxu0 0
        %1628 = vmatpush1.bf16.msra.mxu0 0
        %1629 = vmatprep.subr.bf16.mxu0 0
        %1630 = vmatpush1.bf16.msra.mxu0 0
        %1631 = vmatprep.subr.bf16.mxu0 0
        %1632 = vmatpush1.bf16.msra.mxu0 0
        %1633 = vmatprep.subr.bf16.mxu0 0
        %1634 = vmatpush1.bf16.msra.mxu0 0
        %1635 = vmatprep.subr.bf16.mxu0 0
        %1636 = vmatpush1.bf16.msra.mxu0 0
        %1637 = vmatprep.subr.bf16.mxu0 0
        %1638 = vmatpush1.bf16.msra.mxu0 0
        %1639 = vmatprep.subr.bf16.mxu0 0
        %1640 = vmatpush1.bf16.msra.mxu0 0
        %1641 = vmatprep.subr.bf16.mxu0 0
        %1642 = vmatpush1.bf16.msra.mxu0 0
        %1643 = vmatprep.subr.bf16.mxu0 0
        %1644 = vmatpush1.bf16.msra.mxu0 0
        %1645 = vmatprep.mubr.bf16.mxu0 0
        %1646 = vmatmul.mubr.bf16.gmra.mrb[0].mxu0 %v1608
        %v1647 = vpop.f32.mrb[0].mxu0
        %v1648 = vadd.f32 0.0, %v1647
        %v1649 = vpop.f32.mrb[0].mxu0
        %v1650 = vpop.f32.mrb[0].mxu0
        %v1651 = vpop.f32.mrb[0].mxu0
        %1652 = vdwg.mxu0
        %1653 = vrot.lane.b32.xlu0 %v1311, 64
        %v1654 = vpop.permute.xlu0 %1653
        %v1656 = vsel %vm509, %v1555, 0
        %v1659 = vsel %vm756, %v1654, 0
        %1661 = vmatprep.subr.bf16.mxu0 0
        %1662 = vmatpush1.bf16.msra.mxu0 %v1659
        %1663 = vmatprep.subr.bf16.mxu0 0
        %1664 = vmatpush1.bf16.msra.mxu0 0
        %1665 = vmatprep.subr.bf16.mxu0 0
        %1666 = vmatpush1.bf16.msra.mxu0 0
        %1667 = vmatprep.subr.bf16.mxu0 0
        %1668 = vmatpush1.bf16.msra.mxu0 0
        %1669 = vmatprep.subr.bf16.mxu0 0
        %1670 = vmatpush1.bf16.msra.mxu0 0
        %1671 = vmatprep.subr.bf16.mxu0 0
        %1672 = vmatpush1.bf16.msra.mxu0 0
        %1673 = vmatprep.subr.bf16.mxu0 0
        %1674 = vmatpush1.bf16.msra.mxu0 0
        %1675 = vmatprep.subr.bf16.mxu0 0
        %1676 = vmatpush1.bf16.msra.mxu0 0
        %1677 = vmatprep.subr.bf16.mxu0 0
        %1678 = vmatpush1.bf16.msra.mxu0 0
        %1679 = vmatprep.subr.bf16.mxu0 0
        %1680 = vmatpush1.bf16.msra.mxu0 0
        %1681 = vmatprep.subr.bf16.mxu0 0
        %1682 = vmatpush1.bf16.msra.mxu0 0
        %1683 = vmatprep.subr.bf16.mxu0 0
        %1684 = vmatpush1.bf16.msra.mxu0 0
        %1685 = vmatprep.subr.bf16.mxu0 0
        %1686 = vmatpush1.bf16.msra.mxu0 0
        %1687 = vmatprep.subr.bf16.mxu0 0
        %1688 = vmatpush1.bf16.msra.mxu0 0
        %1689 = vmatprep.subr.bf16.mxu0 0
        %1690 = vmatpush1.bf16.msra.mxu0 0
        %1691 = vmatprep.subr.bf16.mxu0 0
        %1692 = vmatpush1.bf16.msra.mxu0 0
        %1693 = vmatprep.mubr.bf16.mxu0 0
        %1694 = vmatmul.mubr.bf16.gmra.mrb[0].mxu0 %v1656
        %v1695 = vpop.f32.mrb[0].mxu0
        %v1696 = vadd.f32 0.0, %v1695
        %v1697 = vpop.f32.mrb[0].mxu0
        %v1698 = vpop.f32.mrb[0].mxu0
        %v1699 = vpop.f32.mrb[0].mxu0
        %1700 = vdwg.mxu0
        %1701 = vrot.lane.b32.xlu0 %v1312, 64
        %v1702 = vpop.permute.xlu0 %1701
        %v1704 = vsel %vm509, %v1556, 0
        %v1707 = vsel %vm756, %v1702, 0
        %1709 = vmatprep.subr.bf16.mxu0 0
        %1710 = vmatpush1.bf16.msra.mxu0 %v1707
        %1711 = vmatprep.subr.bf16.mxu0 0
        %1712 = vmatpush1.bf16.msra.mxu0 0
        %1713 = vmatprep.subr.bf16.mxu0 0
        %1714 = vmatpush1.bf16.msra.mxu0 0
        %1715 = vmatprep.subr.bf16.mxu0 0
        %1716 = vmatpush1.bf16.msra.mxu0 0
        %1717 = vmatprep.subr.bf16.mxu0 0
        %1718 = vmatpush1.bf16.msra.mxu0 0
        %1719 = vmatprep.subr.bf16.mxu0 0
        %1720 = vmatpush1.bf16.msra.mxu0 0
        %1721 = vmatprep.subr.bf16.mxu0 0
        %1722 = vmatpush1.bf16.msra.mxu0 0
        %1723 = vmatprep.subr.bf16.mxu0 0
        %1724 = vmatpush1.bf16.msra.mxu0 0
        %1725 = vmatprep.subr.bf16.mxu0 0
        %1726 = vmatpush1.bf16.msra.mxu0 0
        %1727 = vmatprep.subr.bf16.mxu0 0
        %1728 = vmatpush1.bf16.msra.mxu0 0
        %1729 = vmatprep.subr.bf16.mxu0 0
        %1730 = vmatpush1.bf16.msra.mxu0 0
        %1731 = vmatprep.subr.bf16.mxu0 0
        %1732 = vmatpush1.bf16.msra.mxu0 0
        %1733 = vmatprep.subr.bf16.mxu0 0
        %1734 = vmatpush1.bf16.msra.mxu0 0
        %1735 = vmatprep.subr.bf16.mxu0 0
        %1736 = vmatpush1.bf16.msra.mxu0 0
        %1737 = vmatprep.subr.bf16.mxu0 0
        %1738 = vmatpush1.bf16.msra.mxu0 0
        %1739 = vmatprep.subr.bf16.mxu0 0
        %1740 = vmatpush1.bf16.msra.mxu0 0
        %1741 = vmatprep.mubr.bf16.mxu0 0
        %1742 = vmatmul.mubr.bf16.gmra.mrb[0].mxu0 %v1704
        %v1743 = vpop.f32.mrb[0].mxu0
        %v1744 = vadd.f32 0.0, %v1743
        %v1745 = vpop.f32.mrb[0].mxu0
        %v1746 = vpop.f32.mrb[0].mxu0
        %v1747 = vpop.f32.mrb[0].mxu0
        %1748 = vdwg.mxu0
        %1750 = vrot.lane.b32.xlu0 %v1648, 8
        %v1751 = vpop.permute.xlu0 %1750
        %1754 = vrot.lane.b32.xlu0 %v1696, 16
        %v1755 = vpop.permute.xlu0 %1754
        %1758 = vrot.lane.b32.xlu0 %v1744, 24
        %v1759 = vpop.permute.xlu0 %1758
        %v1761 = vsel %vm509, %v1600, %v1751
        %v1762 = vsel %vm957, %v1761, %v1755
        %v1763 = vsel %vm959, %v1762, %v1759
        %v1764 = vld [vmem:[%s4 + $0x10] sm:$0xf]
        %v1765 = vld [vmem:[%s4 + $0x5c] sm:$0xf]
        %v1766 = vld [vmem:[%s4 + $0xa8] sm:$0xf]
        %v1767 = vld [vmem:[%s4 + $0xf4] sm:$0xf]
        %v1768 = vld [vmem:[%s6 + $0x14] sm:$0x1]
        %v1769 = vpack.c.bf16 %v1763, %v1763
        %v1770 = vlaneseq
        %v1771 = vshrl.u32 %v1770, 7
        %v1772 = vsub.s32 0, %v1771
        %v1773 = vrot.slane %v1768, %v1772
        %v1778 = vunpack.c.l.b16 %v1764
        %v1779 = vunpack.c.l.b16 %v1765
        %v1780 = vunpack.c.l.b16 %v1766
        %v1781 = vunpack.c.l.b16 %v1767
        %v1782 = vpack.c.b16 %v1779, %v1778
        %v1783 = vpack.c.b16 %v1781, %v1780
        %v1787 = vsel %vm371, %v1769, 0
        %1789 = vmatprep.subr.bf16.mxu0 0
        %1790 = vmatpush1.bf16.msra.mxu0 %v1782
        %1791 = vmatprep.subr.bf16.mxu0 0
        %1792 = vmatpush1.bf16.msra.mxu0 %v1783
        %1793 = vmatprep.subr.bf16.mxu0 0
        %1794 = vmatpush1.bf16.msra.mxu0 0
        %1795 = vmatprep.subr.bf16.mxu0 0
        %1796 = vmatpush1.bf16.msra.mxu0 0
        %1797 = vmatprep.subr.bf16.mxu0 0
        %1798 = vmatpush1.bf16.msra.mxu0 0
        %1799 = vmatprep.subr.bf16.mxu0 0
        %1800 = vmatpush1.bf16.msra.mxu0 0
        %1801 = vmatprep.subr.bf16.mxu0 0
        %1802 = vmatpush1.bf16.msra.mxu0 0
        %1803 = vmatprep.subr.bf16.mxu0 0
        %1804 = vmatpush1.bf16.msra.mxu0 0
        %1805 = vmatprep.subr.bf16.mxu0 0
        %1806 = vmatpush1.bf16.msra.mxu0 0
        %1807 = vmatprep.subr.bf16.mxu0 0
        %1808 = vmatpush1.bf16.msra.mxu0 0
        %1809 = vmatprep.subr.bf16.mxu0 0
        %1810 = vmatpush1.bf16.msra.mxu0 0
        %1811 = vmatprep.subr.bf16.mxu0 0
        %1812 = vmatpush1.bf16.msra.mxu0 0
        %1813 = vmatprep.subr.bf16.mxu0 0
        %1814 = vmatpush1.bf16.msra.mxu0 0
        %1815 = vmatprep.subr.bf16.mxu0 0
        %1816 = vmatpush1.bf16.msra.mxu0 0
        %1817 = vmatprep.subr.bf16.mxu0 0
        %1818 = vmatpush1.bf16.msra.mxu0 0
        %1819 = vmatprep.subr.bf16.mxu0 0
        %1820 = vmatpush1.bf16.msra.mxu0 0
        %1821 = vmatprep.mubr.bf16.mxu0 0
        %1822 = vmatmul.mubr.bf16.gmra.mrb[0].mxu0 %v1787
        %v1823 = vpop.f32.mrb[0].mxu0
        %v1824 = vadd.f32 %v1773, %v1823
        %v1825 = vpop.f32.mrb[0].mxu0
        %v1826 = vpop.f32.mrb[0].mxu0
        %v1827 = vpop.f32.mrb[0].mxu0
        %1828 = vdwg.mxu0
        %v1829 = vadd.f32 %v1208, %v1824
        %v1830 = vld [vmem:[%s6 + $0x15] sm:$0x1]
        %v1831 = vld [vmem:[%s6 + $0x16] sm:$0x1]
        %v1832 = vsel %vm371, %v1829, 0.0
        %1833 = vadd.xlane.f32.xlu0 %v1832
        %v1834 = vpop.xlane.xlu0 %1833
        %v1835 = vmul.f32 %v1834, %v375
        %v1836 = vsub.f32 %v1829, %v1835
        %v1837 = vmul.f32 %v1836, %v1836
        %v1838 = vsel %vm371, %v1837, 0.0
        %1839 = vadd.xlane.f32.xlu0 %v1838
        %v1840 = vpop.xlane.xlu0 %1839
        %v1841 = vmul.f32 %v1840, %v375
        %v1842 = vadd.f32 %v1841, 1e-05
        %v1843 = vrsqrt.pop %v1842
        %v1844 = vmul.f32 %v1836, %v1843
        %v1845 = vlaneseq
        %v1846 = vshrl.u32 %v1845, 7
        %v1847 = vsub.s32 0, %v1846
        %v1848 = vrot.slane %v1830, %v1847
        %v1849 = vmul.f32 %v1844, %v1848
        %v1850 = vlaneseq
        %v1851 = vshrl.u32 %v1850, 7
        %v1852 = vsub.s32 0, %v1851
        %v1853 = vrot.slane %v1831, %v1852
        %v1854 = vadd.f32 %v1849, %v1853
        %v1855 = vld [vmem:[%s4 + $0x14] sm:$0xf]
        %v1856 = vld [vmem:[%s4 + $0x60] sm:$0xf]
        %v1857 = vld [vmem:[%s4 + $0xac] sm:$0xf]
        %v1858 = vld [vmem:[%s4 + $0xf8] sm:$0xf]
        %v1859 = vld [vmem:[%s6 + $0x17] sm:$0x1]
        %v1860 = vpack.c.bf16 %v1854, %v1854
        %v1861 = vlaneseq
        %v1862 = vshrl.u32 %v1861, 7
        %v1863 = vsub.s32 0, %v1862
        %v1864 = vrot.slane %v1859, %v1863
        %v1869 = vunpack.c.l.b16 %v1855
        %v1870 = vunpack.c.l.b16 %v1856
        %v1871 = vunpack.c.l.b16 %v1857
        %v1872 = vunpack.c.l.b16 %v1858
        %v1873 = vpack.c.b16 %v1870, %v1869
        %v1874 = vpack.c.b16 %v1872, %v1871
        %v1878 = vsel %vm371, %v1860, 0
        %1880 = vmatprep.subr.bf16.mxu0 0
        %1881 = vmatpush1.bf16.msra.mxu0 %v1873
        %1882 = vmatprep.subr.bf16.mxu0 0
        %1883 = vmatpush1.bf16.msra.mxu0 %v1874
        %1884 = vmatprep.subr.bf16.mxu0 0
        %1885 = vmatpush1.bf16.msra.mxu0 0
        %1886 = vmatprep.subr.bf16.mxu0 0
        %1887 = vmatpush1.bf16.msra.mxu0 0
        %1888 = vmatprep.subr.bf16.mxu0 0
        %1889 = vmatpush1.bf16.msra.mxu0 0
        %1890 = vmatprep.subr.bf16.mxu0 0
        %1891 = vmatpush1.bf16.msra.mxu0 0
        %1892 = vmatprep.subr.bf16.mxu0 0
        %1893 = vmatpush1.bf16.msra.mxu0 0
        %1894 = vmatprep.subr.bf16.mxu0 0
        %1895 = vmatpush1.bf16.msra.mxu0 0
        %1896 = vmatprep.subr.bf16.mxu0 0
        %1897 = vmatpush1.bf16.msra.mxu0 0
        %1898 = vmatprep.subr.bf16.mxu0 0
        %1899 = vmatpush1.bf16.msra.mxu0 0
        %1900 = vmatprep.subr.bf16.mxu0 0
        %1901 = vmatpush1.bf16.msra.mxu0 0
        %1902 = vmatprep.subr.bf16.mxu0 0
        %1903 = vmatpush1.bf16.msra.mxu0 0
        %1904 = vmatprep.subr.bf16.mxu0 0
        %1905 = vmatpush1.bf16.msra.mxu0 0
        %1906 = vmatprep.subr.bf16.mxu0 0
        %1907 = vmatpush1.bf16.msra.mxu0 0
        %1908 = vmatprep.subr.bf16.mxu0 0
        %1909 = vmatpush1.bf16.msra.mxu0 0
        %1910 = vmatprep.subr.bf16.mxu0 0
        %1911 = vmatpush1.bf16.msra.mxu0 0
        %1912 = vmatprep.mubr.bf16.mxu0 0
        %1913 = vmatmul.mubr.bf16.gmra.mrb[0].mxu0 %v1878
        %v1914 = vpop.f32.mrb[0].mxu0
        %v1915 = vadd.f32 %v1864, %v1914
        %v1916 = vpop.f32.mrb[0].mxu0
        %v1917 = vpop.f32.mrb[0].mxu0
        %v1918 = vpop.f32.mrb[0].mxu0
        %1919 = vdwg.mxu0
        %v1920 = vmul.f32 %v1915, %v1915
        %v1921 = vmul.f32 %v1915, %v1920
        %v1922 = vmul.f32 %v1921, 0.044715
        %v1923 = vadd.f32 %v1915, %v1922
        %v1924 = vmul.f32 %v1923, 0.7978846
        %v1925 = vtanh.pop %v1924
        %v1926 = vadd.f32 %v1925, 1.0
        %v1927 = vmul.f32 %v1926, 0.5
        %v1928 = vmul.f32 %v1915, %v1927
        %v1929 = vld [vmem:[%s5 + $0x4] sm:$0xf]
        %v1930 = vld [vmem:[%s5 + $0x14] sm:$0xf]
        %v1931 = vld [vmem:[%s5 + $0x24] sm:$0xf]
        %v1932 = vld [vmem:[%s5 + $0x34] sm:$0xf]
        %v1933 = vld [vmem:[%s5 + $0x44] sm:$0xf]
        %v1934 = vld [vmem:[%s5 + $0x54] sm:$0xf]
        %v1935 = vld [vmem:[%s5 + $0x64] sm:$0xf]
        %v1936 = vld [vmem:[%s5 + $0x74] sm:$0xf]
        %v1937 = vld [vmem:[%s6 + $0x18] sm:$0x1]
        %v1938 = vpack.c.bf16 %v1928, %v1928
        %v1939 = vlaneseq
        %v1940 = vshrl.u32 %v1939, 7
        %v1941 = vsub.s32 0, %v1940
        %v1942 = vrot.slane %v1937, %v1941
        %v1951 = vunpack.c.l.b16 %v1929
        %v1952 = vunpack.c.l.b16 %v1930
        %v1953 = vunpack.c.l.b16 %v1931
        %v1954 = vunpack.c.l.b16 %v1932
        %v1955 = vunpack.c.l.b16 %v1933
        %v1956 = vunpack.c.l.b16 %v1934
        %v1957 = vunpack.c.l.b16 %v1935
        %v1958 = vunpack.c.l.b16 %v1936
        %v1959 = vpack.c.b16 %v1952, %v1951
        %v1960 = vpack.c.b16 %v1954, %v1953
        %v1961 = vpack.c.b16 %v1956, %v1955
        %v1962 = vpack.c.b16 %v1958, %v1957
        %v1968 = vsel %vm1164, %v1938, 0
        %1970 = vmatprep.subr.bf16.mxu0 0
        %1971 = vmatpush1.bf16.msra.mxu0 %v1959
        %1972 = vmatprep.subr.bf16.mxu0 0
        %1973 = vmatpush1.bf16.msra.mxu0 %v1960
        %1974 = vmatprep.subr.bf16.mxu0 0
        %1975 = vmatpush1.bf16.msra.mxu0 %v1961
        %1976 = vmatprep.subr.bf16.mxu0 0
        %1977 = vmatpush1.bf16.msra.mxu0 %v1962
        %1978 = vmatprep.subr.bf16.mxu0 0
        %1979 = vmatpush1.bf16.msra.mxu0 0
        %1980 = vmatprep.subr.bf16.mxu0 0
        %1981 = vmatpush1.bf16.msra.mxu0 0
        %1982 = vmatprep.subr.bf16.mxu0 0
        %1983 = vmatpush1.bf16.msra.mxu0 0
        %1984 = vmatprep.subr.bf16.mxu0 0
        %1985 = vmatpush1.bf16.msra.mxu0 0
        %1986 = vmatprep.subr.bf16.mxu0 0
        %1987 = vmatpush1.bf16.msra.mxu0 0
        %1988 = vmatprep.subr.bf16.mxu0 0
        %1989 = vmatpush1.bf16.msra.mxu0 0
        %1990 = vmatprep.subr.bf16.mxu0 0
        %1991 = vmatpush1.bf16.msra.mxu0 0
        %1992 = vmatprep.subr.bf16.mxu0 0
        %1993 = vmatpush1.bf16.msra.mxu0 0
        %1994 = vmatprep.subr.bf16.mxu0 0
        %1995 = vmatpush1.bf16.msra.mxu0 0
        %1996 = vmatprep.subr.bf16.mxu0 0
        %1997 = vmatpush1.bf16.msra.mxu0 0
        %1998 = vmatprep.subr.bf16.mxu0 0
        %1999 = vmatpush1.bf16.msra.mxu0 0
        %2000 = vmatprep.subr.bf16.mxu0 0
        %2001 = vmatpush1.bf16.msra.mxu0 0
        %2002 = vmatprep.mubr.bf16.mxu0 0
        %2003 = vmatmul.mubr.bf16.gmra.mrb[0].mxu0 %v1968
        %v2004 = vpop.f32.mrb[0].mxu0
        %v2005 = vadd.f32 %v1942, %v2004
        %v2006 = vpop.f32.mrb[0].mxu0
        %v2007 = vpop.f32.mrb[0].mxu0
        %v2008 = vpop.f32.mrb[0].mxu0
        %2009 = vdwg.mxu0
        %v2010 = vadd.f32 %v1829, %v2005
        %v2011 = vld [vmem:[%s6 + $0x2] sm:$0x1]
        %v2012 = vld [vmem:[%s6 + $0x3] sm:$0x1]
        %v2013 = vsel %vm371, %v2010, 0.0
        %2014 = vadd.xlane.f32.xlu0 %v2013
        %v2015 = vpop.xlane.xlu0 %2014
        %v2016 = vmul.f32 %v2015, %v375
        %v2017 = vsub.f32 %v2010, %v2016
        %v2018 = vmul.f32 %v2017, %v2017
        %v2019 = vsel %vm371, %v2018, 0.0
        %2020 = vadd.xlane.f32.xlu0 %v2019
        %v2021 = vpop.xlane.xlu0 %2020
        %v2022 = vmul.f32 %v2021, %v375
        %v2023 = vadd.f32 %v2022, 1e-05
        %v2024 = vrsqrt.pop %v2023
        %v2025 = vmul.f32 %v2017, %v2024
        %v2026 = vlaneseq
        %v2027 = vshrl.u32 %v2026, 7
        %v2028 = vsub.s32 0, %v2027
        %v2029 = vrot.slane %v2011, %v2028
        %v2030 = vmul.f32 %v2025, %v2029
        %v2031 = vlaneseq
        %v2032 = vshrl.u32 %v2031, 7
        %v2033 = vsub.s32 0, %v2032
        %v2034 = vrot.slane %v2012, %v2033
        %v2035 = vadd.f32 %v2030, %v2034
        %v2036 = vld [vmem:[%s347] sm:$0xff]
        %v2037 = vld [vmem:[%s6 + $0x4] sm:$0x1]
        %v2038 = vld [vmem:[%s6 + $0x5] sm:$0x1]
        %v2039 = vsel %vm371, %v2036, 0.0
        %2040 = vadd.xlane.f32.xlu0 %v2039
        %v2041 = vpop.xlane.xlu0 %2040
        %v2042 = vmul.f32 %v2041, %v375
        %v2043 = vsub.f32 %v2036, %v2042
        %v2044 = vmul.f32 %v2043, %v2043
        %v2045 = vsel %vm371, %v2044, 0.0
        %2046 = vadd.xlane.f32.xlu0 %v2045
        %v2047 = vpop.xlane.xlu0 %2046
        %v2048 = vmul.f32 %v2047, %v375
        %v2049 = vadd.f32 %v2048, 1e-05
        %v2050 = vrsqrt.pop %v2049
        %v2051 = vmul.f32 %v2043, %v2050
        %v2052 = vlaneseq
        %v2053 = vshrl.u32 %v2052, 7
        %v2054 = vsub.s32 0, %v2053
        %v2055 = vrot.slane %v2037, %v2054
        %v2056 = vmul.f32 %v2051, %v2055
        %v2057 = vlaneseq
        %v2058 = vshrl.u32 %v2057, 7
        %v2059 = vsub.s32 0, %v2058
        %v2060 = vrot.slane %v2038, %v2059
        %v2061 = vadd.f32 %v2056, %v2060
        %v2062 = vld [vmem:[%s6 + $0x19] sm:$0x1]
        %v2063 = vld [vmem:[%s6 + $0x1a] sm:$0x1]
        %v2064 = vsel %vm371, %v2061, 0.0
        %2065 = vadd.xlane.f32.xlu0 %v2064
        %v2066 = vpop.xlane.xlu0 %2065
        %v2067 = vmul.f32 %v2066, %v375
        %v2068 = vsub.f32 %v2061, %v2067
        %v2069 = vmul.f32 %v2068, %v2068
        %v2070 = vsel %vm371, %v2069, 0.0
        %2071 = vadd.xlane.f32.xlu0 %v2070
        %v2072 = vpop.xlane.xlu0 %2071
        %v2073 = vmul.f32 %v2072, %v375
        %v2074 = vadd.f32 %v2073, 1e-05
        %v2075 = vrsqrt.pop %v2074
        %v2076 = vmul.f32 %v2068, %v2075
        %v2077 = vlaneseq
        %v2078 = vshrl.u32 %v2077, 7
        %v2079 = vsub.s32 0, %v2078
        %v2080 = vrot.slane %v2062, %v2079
        %v2081 = vmul.f32 %v2076, %v2080
        %v2082 = vlaneseq
        %v2083 = vshrl.u32 %v2082, 7
        %v2084 = vsub.s32 0, %v2083
        %v2085 = vrot.slane %v2063, %v2084
        %v2086 = vadd.f32 %v2081, %v2085
        %v2087 = vld [vmem:[%s4 + $0x18] sm:$0xf]
        %v2088 = vld [vmem:[%s4 + $0x64] sm:$0xf]
        %v2089 = vld [vmem:[%s4 + $0xb0] sm:$0xf]
        %v2090 = vld [vmem:[%s4 + $0xfc] sm:$0xf]
        %v2091 = vld [vmem:[%s6 + $0x1b] sm:$0x1]
        %v2092 = vpack.c.bf16 %v2086, %v2086
        %v2093 = vlaneseq
        %v2094 = vshrl.u32 %v2093, 7
        %v2095 = vsub.s32 0, %v2094
        %v2096 = vrot.slane %v2091, %v2095
        %v2101 = vunpack.c.l.b16 %v2087
        %v2102 = vunpack.c.l.b16 %v2088
        %v2103 = vunpack.c.l.b16 %v2089
        %v2104 = vunpack.c.l.b16 %v2090
        %v2105 = vpack.c.b16 %v2102, %v2101
        %v2106 = vpack.c.b16 %v2104, %v2103
        %v2110 = vsel %vm371, %v2092, 0
        %2112 = vmatprep.subr.bf16.mxu0 0
        %2113 = vmatpush1.bf16.msra.mxu0 %v2105
        %2114 = vmatprep.subr.bf16.mxu0 0
        %2115 = vmatpush1.bf16.msra.mxu0 %v2106
        %2116 = vmatprep.subr.bf16.mxu0 0
        %2117 = vmatpush1.bf16.msra.mxu0 0
        %2118 = vmatprep.subr.bf16.mxu0 0
        %2119 = vmatpush1.bf16.msra.mxu0 0
        %2120 = vmatprep.subr.bf16.mxu0 0
        %2121 = vmatpush1.bf16.msra.mxu0 0
        %2122 = vmatprep.subr.bf16.mxu0 0
        %2123 = vmatpush1.bf16.msra.mxu0 0
        %2124 = vmatprep.subr.bf16.mxu0 0
        %2125 = vmatpush1.bf16.msra.mxu0 0
        %2126 = vmatprep.subr.bf16.mxu0 0
        %2127 = vmatpush1.bf16.msra.mxu0 0
        %2128 = vmatprep.subr.bf16.mxu0 0
        %2129 = vmatpush1.bf16.msra.mxu0 0
        %2130 = vmatprep.subr.bf16.mxu0 0
        %2131 = vmatpush1.bf16.msra.mxu0 0
        %2132 = vmatprep.subr.bf16.mxu0 0
        %2133 = vmatpush1.bf16.msra.mxu0 0
        %2134 = vmatprep.subr.bf16.mxu0 0
        %2135 = vmatpush1.bf16.msra.mxu0 0
        %2136 = vmatprep.subr.bf16.mxu0 0
        %2137 = vmatpush1.bf16.msra.mxu0 0
        %2138 = vmatprep.subr.bf16.mxu0 0
        %2139 = vmatpush1.bf16.msra.mxu0 0
        %2140 = vmatprep.subr.bf16.mxu0 0
        %2141 = vmatpush1.bf16.msra.mxu0 0
        %2142 = vmatprep.subr.bf16.mxu0 0
        %2143 = vmatpush1.bf16.msra.mxu0 0
        %2144 = vmatprep.mubr.bf16.mxu0 0
        %2145 = vmatmul.mubr.bf16.gmra.mrb[0].mxu0 %v2110
        %v2146 = vpop.f32.mrb[0].mxu0
        %v2147 = vadd.f32 %v2096, %v2146
        %v2148 = vpop.f32.mrb[0].mxu0
        %v2149 = vpop.f32.mrb[0].mxu0
        %v2150 = vpop.f32.mrb[0].mxu0
        %2151 = vdwg.mxu0
        %2153 = vrot.lane.b32.xlu0 %v2147, 120
        %v2154 = vpop.permute.xlu0 %2153
        %2156 = vrot.lane.b32.xlu0 %v2147, 112
        %v2157 = vpop.permute.xlu0 %2156
        %2159 = vrot.lane.b32.xlu0 %v2147, 104
        %v2160 = vpop.permute.xlu0 %2159
        %v2162 = vpack.c.bf16 %v2147, %v2147
        %v2163 = vpack.c.bf16 %v2154, %v2154
        %v2164 = vpack.c.bf16 %v2157, %v2157
        %v2165 = vpack.c.bf16 %v2160, %v2160
        %2167 = vrot.lane.b32.xlu0 %v2162, 96
        %v2168 = vpop.permute.xlu0 %2167
        %v2170 = vsel %vm509, %v2162, 0
        %v2173 = vsel %vm509, %v2168, 0
        %2175 = vmatprep.subr.bf16.mxu0 0
        %2176 = vmatpush1.bf16.xpose.msra.mxu0 %v2173
        %2177 = vmatprep.subr.bf16.mxu0 0
        %2178 = vmatpush1.bf16.xpose.msra.mxu0 0
        %2179 = vmatprep.subr.bf16.mxu0 0
        %2180 = vmatpush1.bf16.xpose.msra.mxu0 0
        %2181 = vmatprep.subr.bf16.mxu0 0
        %2182 = vmatpush1.bf16.xpose.msra.mxu0 0
        %2183 = vmatprep.subr.bf16.mxu0 0
        %2184 = vmatpush1.bf16.xpose.msra.mxu0 0
        %2185 = vmatprep.subr.bf16.mxu0 0
        %2186 = vmatpush1.bf16.xpose.msra.mxu0 0
        %2187 = vmatprep.subr.bf16.mxu0 0
        %2188 = vmatpush1.bf16.xpose.msra.mxu0 0
        %2189 = vmatprep.subr.bf16.mxu0 0
        %2190 = vmatpush1.bf16.xpose.msra.mxu0 0
        %2191 = vmatprep.subr.bf16.mxu0 0
        %2192 = vmatpush1.bf16.xpose.msra.mxu0 0
        %2193 = vmatprep.subr.bf16.mxu0 0
        %2194 = vmatpush1.bf16.xpose.msra.mxu0 0
        %2195 = vmatprep.subr.bf16.mxu0 0
        %2196 = vmatpush1.bf16.xpose.msra.mxu0 0
        %2197 = vmatprep.subr.bf16.mxu0 0
        %2198 = vmatpush1.bf16.xpose.msra.mxu0 0
        %2199 = vmatprep.subr.bf16.mxu0 0
        %2200 = vmatpush1.bf16.xpose.msra.mxu0 0
        %2201 = vmatprep.subr.bf16.mxu0 0
        %2202 = vmatpush1.bf16.xpose.msra.mxu0 0
        %2203 = vmatprep.subr.bf16.mxu0 0
        %2204 = vmatpush1.bf16.xpose.msra.mxu0 0
        %2205 = vmatprep.subr.bf16.mxu0 0
        %2206 = vmatpush1.bf16.xpose.msra.mxu0 0
        %2207 = vmatprep.mubr.bf16.mxu0 0
        %2208 = vmatmul.mubr.bf16.gmra.mrb[0].mxu0 %v2170
        %v2209 = vpop.f32.mrb[0].mxu0
        %v2210 = vadd.f32 %v367, %v2209
        %v2211 = vpop.f32.mrb[0].mxu0
        %v2212 = vpop.f32.mrb[0].mxu0
        %v2213 = vpop.f32.mrb[0].mxu0
        %2214 = vdwg.mxu0
        %2216 = vrot.lane.b32.xlu0 %v2163, 96
        %v2217 = vpop.permute.xlu0 %2216
        %v2219 = vsel %vm509, %v2163, 0
        %v2222 = vsel %vm509, %v2217, 0
        %2224 = vmatprep.subr.bf16.mxu0 0
        %2225 = vmatpush1.bf16.xpose.msra.mxu0 %v2222
        %2226 = vmatprep.subr.bf16.mxu0 0
        %2227 = vmatpush1.bf16.xpose.msra.mxu0 0
        %2228 = vmatprep.subr.bf16.mxu0 0
        %2229 = vmatpush1.bf16.xpose.msra.mxu0 0
        %2230 = vmatprep.subr.bf16.mxu0 0
        %2231 = vmatpush1.bf16.xpose.msra.mxu0 0
        %2232 = vmatprep.subr.bf16.mxu0 0
        %2233 = vmatpush1.bf16.xpose.msra.mxu0 0
        %2234 = vmatprep.subr.bf16.mxu0 0
        %2235 = vmatpush1.bf16.xpose.msra.mxu0 0
        %2236 = vmatprep.subr.bf16.mxu0 0
        %2237 = vmatpush1.bf16.xpose.msra.mxu0 0
        %2238 = vmatprep.subr.bf16.mxu0 0
        %2239 = vmatpush1.bf16.xpose.msra.mxu0 0
        %2240 = vmatprep.subr.bf16.mxu0 0
        %2241 = vmatpush1.bf16.xpose.msra.mxu0 0
        %2242 = vmatprep.subr.bf16.mxu0 0
        %2243 = vmatpush1.bf16.xpose.msra.mxu0 0
        %2244 = vmatprep.subr.bf16.mxu0 0
        %2245 = vmatpush1.bf16.xpose.msra.mxu0 0
        %2246 = vmatprep.subr.bf16.mxu0 0
        %2247 = vmatpush1.bf16.xpose.msra.mxu0 0
        %2248 = vmatprep.subr.bf16.mxu0 0
        %2249 = vmatpush1.bf16.xpose.msra.mxu0 0
        %2250 = vmatprep.subr.bf16.mxu0 0
        %2251 = vmatpush1.bf16.xpose.msra.mxu0 0
        %2252 = vmatprep.subr.bf16.mxu0 0
        %2253 = vmatpush1.bf16.xpose.msra.mxu0 0
        %2254 = vmatprep.subr.bf16.mxu0 0
        %2255 = vmatpush1.bf16.xpose.msra.mxu0 0
        %2256 = vmatprep.mubr.bf16.mxu0 0
        %2257 = vmatmul.mubr.bf16.gmra.mrb[0].mxu0 %v2219
        %v2258 = vpop.f32.mrb[0].mxu0
        %v2259 = vadd.f32 %v367, %v2258
        %v2260 = vpop.f32.mrb[0].mxu0
        %v2261 = vpop.f32.mrb[0].mxu0
        %v2262 = vpop.f32.mrb[0].mxu0
        %2263 = vdwg.mxu0
        %2265 = vrot.lane.b32.xlu0 %v2164, 96
        %v2266 = vpop.permute.xlu0 %2265
        %v2268 = vsel %vm509, %v2164, 0
        %v2271 = vsel %vm509, %v2266, 0
        %2273 = vmatprep.subr.bf16.mxu0 0
        %2274 = vmatpush1.bf16.xpose.msra.mxu0 %v2271
        %2275 = vmatprep.subr.bf16.mxu0 0
        %2276 = vmatpush1.bf16.xpose.msra.mxu0 0
        %2277 = vmatprep.subr.bf16.mxu0 0
        %2278 = vmatpush1.bf16.xpose.msra.mxu0 0
        %2279 = vmatprep.subr.bf16.mxu0 0
        %2280 = vmatpush1.bf16.xpose.msra.mxu0 0
        %2281 = vmatprep.subr.bf16.mxu0 0
        %2282 = vmatpush1.bf16.xpose.msra.mxu0 0
        %2283 = vmatprep.subr.bf16.mxu0 0
        %2284 = vmatpush1.bf16.xpose.msra.mxu0 0
        %2285 = vmatprep.subr.bf16.mxu0 0
        %2286 = vmatpush1.bf16.xpose.msra.mxu0 0
        %2287 = vmatprep.subr.bf16.mxu0 0
        %2288 = vmatpush1.bf16.xpose.msra.mxu0 0
        %2289 = vmatprep.subr.bf16.mxu0 0
        %2290 = vmatpush1.bf16.xpose.msra.mxu0 0
        %2291 = vmatprep.subr.bf16.mxu0 0
        %2292 = vmatpush1.bf16.xpose.msra.mxu0 0
        %2293 = vmatprep.subr.bf16.mxu0 0
        %2294 = vmatpush1.bf16.xpose.msra.mxu0 0
        %2295 = vmatprep.subr.bf16.mxu0 0
        %2296 = vmatpush1.bf16.xpose.msra.mxu0 0
        %2297 = vmatprep.subr.bf16.mxu0 0
        %2298 = vmatpush1.bf16.xpose.msra.mxu0 0
        %2299 = vmatprep.subr.bf16.mxu0 0
        %2300 = vmatpush1.bf16.xpose.msra.mxu0 0
        %2301 = vmatprep.subr.bf16.mxu0 0
        %2302 = vmatpush1.bf16.xpose.msra.mxu0 0
        %2303 = vmatprep.subr.bf16.mxu0 0
        %2304 = vmatpush1.bf16.xpose.msra.mxu0 0
        %2305 = vmatprep.mubr.bf16.mxu0 0
        %2306 = vmatmul.mubr.bf16.gmra.mrb[0].mxu0 %v2268
        %v2307 = vpop.f32.mrb[0].mxu0
        %v2308 = vadd.f32 %v367, %v2307
        %v2309 = vpop.f32.mrb[0].mxu0
        %v2310 = vpop.f32.mrb[0].mxu0
        %v2311 = vpop.f32.mrb[0].mxu0
        %2312 = vdwg.mxu0
        %2314 = vrot.lane.b32.xlu0 %v2165, 96
        %v2315 = vpop.permute.xlu0 %2314
        %v2317 = vsel %vm509, %v2165, 0
        %v2320 = vsel %vm509, %v2315, 0
        %2322 = vmatprep.subr.bf16.mxu0 0
        %2323 = vmatpush1.bf16.xpose.msra.mxu0 %v2320
        %2324 = vmatprep.subr.bf16.mxu0 0
        %2325 = vmatpush1.bf16.xpose.msra.mxu0 0
        %2326 = vmatprep.subr.bf16.mxu0 0
        %2327 = vmatpush1.bf16.xpose.msra.mxu0 0
        %2328 = vmatprep.subr.bf16.mxu0 0
        %2329 = vmatpush1.bf16.xpose.msra.mxu0 0
        %2330 = vmatprep.subr.bf16.mxu0 0
        %2331 = vmatpush1.bf16.xpose.msra.mxu0 0
        %2332 = vmatprep.subr.bf16.mxu0 0
        %2333 = vmatpush1.bf16.xpose.msra.mxu0 0
        %2334 = vmatprep.subr.bf16.mxu0 0
        %2335 = vmatpush1.bf16.xpose.msra.mxu0 0
        %2336 = vmatprep.subr.bf16.mxu0 0
        %2337 = vmatpush1.bf16.xpose.msra.mxu0 0
        %2338 = vmatprep.subr.bf16.mxu0 0
        %2339 = vmatpush1.bf16.xpose.msra.mxu0 0
        %2340 = vmatprep.subr.bf16.mxu0 0
        %2341 = vmatpush1.bf16.xpose.msra.mxu0 0
        %2342 = vmatprep.subr.bf16.mxu0 0
        %2343 = vmatpush1.bf16.xpose.msra.mxu0 0
        %2344 = vmatprep.subr.bf16.mxu0 0
        %2345 = vmatpush1.bf16.xpose.msra.mxu0 0
        %2346 = vmatprep.subr.bf16.mxu0 0
        %2347 = vmatpush1.bf16.xpose.msra.mxu0 0
        %2348 = vmatprep.subr.bf16.mxu0 0
        %2349 = vmatpush1.bf16.xpose.msra.mxu0 0
        %2350 = vmatprep.subr.bf16.mxu0 0
        %2351 = vmatpush1.bf16.xpose.msra.mxu0 0
        %2352 = vmatprep.subr.bf16.mxu0 0
        %2353 = vmatpush1.bf16.xpose.msra.mxu0 0
        %2354 = vmatprep.mubr.bf16.mxu0 0
        %2355 = vmatmul.mubr.bf16.gmra.mrb[0].mxu0 %v2317
        %v2356 = vpop.f32.mrb[0].mxu0
        %v2357 = vadd.f32 %v367, %v2356
        %v2358 = vpop.f32.mrb[0].mxu0
        %v2359 = vpop.f32.mrb[0].mxu0
        %v2360 = vpop.f32.mrb[0].mxu0
        %2361 = vdwg.mxu0
        %v2362 = vsel %vm509, %v2210, -inf
        %2363 = vmax.xlane.f32.xlu0 %v2362
        %v2364 = vpop.xlane.xlu0 %2363
        %v2365 = vsel %vm509, %v2259, -inf
        %2366 = vmax.xlane.f32.xlu0 %v2365
        %v2367 = vpop.xlane.xlu0 %2366
        %v2368 = vsel %vm509, %v2308, -inf
        %2369 = vmax.xlane.f32.xlu0 %v2368
        %v2370 = vpop.xlane.xlu0 %2369
        %v2371 = vsel %vm509, %v2357, -inf
        %2372 = vmax.xlane.f32.xlu0 %v2371
        %v2373 = vpop.xlane.xlu0 %2372
        %v2374 = vsub.f32 %v2210, %v2364
        %v2375 = vsub.f32 %v2259, %v2367
        %v2376 = vsub.f32 %v2308, %v2370
        %v2377 = vsub.f32 %v2357, %v2373
        %v2378 = vmul.f32 %v2374, 1.442695
        %v2379 = vpow.pop %v2378
        %v2380 = vmul.f32 %v2375, 1.442695
        %v2381 = vpow.pop %v2380
        %v2382 = vmul.f32 %v2376, 1.442695
        %v2383 = vpow.pop %v2382
        %v2384 = vmul.f32 %v2377, 1.442695
        %v2385 = vpow.pop %v2384
        %v2386 = vsel %vm509, %v2379, 0.0
        %2387 = vadd.xlane.f32.xlu0 %v2386
        %v2388 = vpop.xlane.xlu0 %2387
        %v2389 = vsel %vm509, %v2381, 0.0
        %2390 = vadd.xlane.f32.xlu0 %v2389
        %v2391 = vpop.xlane.xlu0 %2390
        %v2392 = vsel %vm509, %v2383, 0.0
        %2393 = vadd.xlane.f32.xlu0 %v2392
        %v2394 = vpop.xlane.xlu0 %2393
        %v2395 = vsel %vm509, %v2385, 0.0
        %2396 = vadd.xlane.f32.xlu0 %v2395
        %v2397 = vpop.xlane.xlu0 %2396
        %v2398 = vrcp.pop %v2388
        %v2399 = vrcp.pop %v2391
        %v2400 = vrcp.pop %v2394
        %v2401 = vrcp.pop %v2397
        %v2402 = vmul.f32 %v2379, %v2398
        %v2403 = vmul.f32 %v2381, %v2399
        %v2404 = vmul.f32 %v2383, %v2400
        %v2405 = vmul.f32 %v2385, %v2401
        %v2406 = vpack.c.bf16 %v2402, %v2402
        %v2407 = vpack.c.bf16 %v2403, %v2403
        %v2408 = vpack.c.bf16 %v2404, %v2404
        %v2409 = vpack.c.bf16 %v2405, %v2405
        %2410 = vrot.lane.b32.xlu0 %v2162, 64
        %v2411 = vpop.permute.xlu0 %2410
        %v2413 = vsel %vm509, %v2406, 0
        %v2416 = vsel %vm756, %v2411, 0
        %2418 = vmatprep.subr.bf16.mxu0 0
        %2419 = vmatpush1.bf16.msra.mxu0 %v2416
        %2420 = vmatprep.subr.bf16.mxu0 0
        %2421 = vmatpush1.bf16.msra.mxu0 0
        %2422 = vmatprep.subr.bf16.mxu0 0
        %2423 = vmatpush1.bf16.msra.mxu0 0
        %2424 = vmatprep.subr.bf16.mxu0 0
        %2425 = vmatpush1.bf16.msra.mxu0 0
        %2426 = vmatprep.subr.bf16.mxu0 0
        %2427 = vmatpush1.bf16.msra.mxu0 0
        %2428 = vmatprep.subr.bf16.mxu0 0
        %2429 = vmatpush1.bf16.msra.mxu0 0
        %2430 = vmatprep.subr.bf16.mxu0 0
        %2431 = vmatpush1.bf16.msra.mxu0 0
        %2432 = vmatprep.subr.bf16.mxu0 0
        %2433 = vmatpush1.bf16.msra.mxu0 0
        %2434 = vmatprep.subr.bf16.mxu0 0
        %2435 = vmatpush1.bf16.msra.mxu0 0
        %2436 = vmatprep.subr.bf16.mxu0 0
        %2437 = vmatpush1.bf16.msra.mxu0 0
        %2438 = vmatprep.subr.bf16.mxu0 0
        %2439 = vmatpush1.bf16.msra.mxu0 0
        %2440 = vmatprep.subr.bf16.mxu0 0
        %2441 = vmatpush1.bf16.msra.mxu0 0
        %2442 = vmatprep.subr.bf16.mxu0 0
        %2443 = vmatpush1.bf16.msra.mxu0 0
        %2444 = vmatprep.subr.bf16.mxu0 0
        %2445 = vmatpush1.bf16.msra.mxu0 0
        %2446 = vmatprep.subr.bf16.mxu0 0
        %2447 = vmatpush1.bf16.msra.mxu0 0
        %2448 = vmatprep.subr.bf16.mxu0 0
        %2449 = vmatpush1.bf16.msra.mxu0 0
        %2450 = vmatprep.mubr.bf16.mxu0 0
        %2451 = vmatmul.mubr.bf16.gmra.mrb[0].mxu0 %v2413
        %v2452 = vpop.f32.mrb[0].mxu0
        %v2453 = vadd.f32 0.0, %v2452
        %v2454 = vpop.f32.mrb[0].mxu0
        %v2455 = vpop.f32.mrb[0].mxu0
        %v2456 = vpop.f32.mrb[0].mxu0
        %2457 = vdwg.mxu0
        %2458 = vrot.lane.b32.xlu0 %v2163, 64
        %v2459 = vpop.permute.xlu0 %2458
        %v2461 = vsel %vm509, %v2407, 0
        %v2464 = vsel %vm756, %v2459, 0
        %2466 = vmatprep.subr.bf16.mxu0 0
        %2467 = vmatpush1.bf16.msra.mxu0 %v2464
        %2468 = vmatprep.subr.bf16.mxu0 0
        %2469 = vmatpush1.bf16.msra.mxu0 0
        %2470 = vmatprep.subr.bf16.mxu0 0
        %2471 = vmatpush1.bf16.msra.mxu0 0
        %2472 = vmatprep.subr.bf16.mxu0 0
        %2473 = vmatpush1.bf16.msra.mxu0 0
        %2474 = vmatprep.subr.bf16.mxu0 0
        %2475 = vmatpush1.bf16.msra.mxu0 0
        %2476 = vmatprep.subr.bf16.mxu0 0
        %2477 = vmatpush1.bf16.msra.mxu0 0
        %2478 = vmatprep.subr.bf16.mxu0 0
        %2479 = vmatpush1.bf16.msra.mxu0 0
        %2480 = vmatprep.subr.bf16.mxu0 0
        %2481 = vmatpush1.bf16.msra.mxu0 0
        %2482 = vmatprep.subr.bf16.mxu0 0
        %2483 = vmatpush1.bf16.msra.mxu0 0
        %2484 = vmatprep.subr.bf16.mxu0 0
        %2485 = vmatpush1.bf16.msra.mxu0 0
        %2486 = vmatprep.subr.bf16.mxu0 0
        %2487 = vmatpush1.bf16.msra.mxu0 0
        %2488 = vmatprep.subr.bf16.mxu0 0
        %2489 = vmatpush1.bf16.msra.mxu0 0
        %2490 = vmatprep.subr.bf16.mxu0 0
        %2491 = vmatpush1.bf16.msra.mxu0 0
        %2492 = vmatprep.subr.bf16.mxu0 0
        %2493 = vmatpush1.bf16.msra.mxu0 0
        %2494 = vmatprep.subr.bf16.mxu0 0
        %2495 = vmatpush1.bf16.msra.mxu0 0
        %2496 = vmatprep.subr.bf16.mxu0 0
        %2497 = vmatpush1.bf16.msra.mxu0 0
        %2498 = vmatprep.mubr.bf16.mxu0 0
        %2499 = vmatmul.mubr.bf16.gmra.mrb[0].mxu0 %v2461
        %v2500 = vpop.f32.mrb[0].mxu0
        %v2501 = vadd.f32 0.0, %v2500
        %v2502 = vpop.f32.mrb[0].mxu0
        %v2503 = vpop.f32.mrb[0].mxu0
        %v2504 = vpop.f32.mrb[0].mxu0
        %2505 = vdwg.mxu0
        %2506 = vrot.lane.b32.xlu0 %v2164, 64
        %v2507 = vpop.permute.xlu0 %2506
        %v2509 = vsel %vm509, %v2408, 0
        %v2512 = vsel %vm756, %v2507, 0
        %2514 = vmatprep.subr.bf16.mxu0 0
        %2515 = vmatpush1.bf16.msra.mxu0 %v2512
        %2516 = vmatprep.subr.bf16.mxu0 0
        %2517 = vmatpush1.bf16.msra.mxu0 0
        %2518 = vmatprep.subr.bf16.mxu0 0
        %2519 = vmatpush1.bf16.msra.mxu0 0
        %2520 = vmatprep.subr.bf16.mxu0 0
        %2521 = vmatpush1.bf16.msra.mxu0 0
        %2522 = vmatprep.subr.bf16.mxu0 0
        %2523 = vmatpush1.bf16.msra.mxu0 0
        %2524 = vmatprep.subr.bf16.mxu0 0
        %2525 = vmatpush1.bf16.msra.mxu0 0
        %2526 = vmatprep.subr.bf16.mxu0 0
        %2527 = vmatpush1.bf16.msra.mxu0 0
        %2528 = vmatprep.subr.bf16.mxu0 0
        %2529 = vmatpush1.bf16.msra.mxu0 0
        %2530 = vmatprep.subr.bf16.mxu0 0
        %2531 = vmatpush1.bf16.msra.mxu0 0
        %2532 = vmatprep.subr.bf16.mxu0 0
        %2533 = vmatpush1.bf16.msra.mxu0 0
        %2534 = vmatprep.subr.bf16.mxu0 0
        %2535 = vmatpush1.bf16.msra.mxu0 0
        %2536 = vmatprep.subr.bf16.mxu0 0
        %2537 = vmatpush1.bf16.msra.mxu0 0
        %2538 = vmatprep.subr.bf16.mxu0 0
        %2539 = vmatpush1.bf16.msra.mxu0 0
        %2540 = vmatprep.subr.bf16.mxu0 0
        %2541 = vmatpush1.bf16.msra.mxu0 0
        %2542 = vmatprep.subr.bf16.mxu0 0
        %2543 = vmatpush1.bf16.msra.mxu0 0
        %2544 = vmatprep.subr.bf16.mxu0 0
        %2545 = vmatpush1.bf16.msra.mxu0 0
        %2546 = vmatprep.mubr.bf16.mxu0 0
        %2547 = vmatmul.mubr.bf16.gmra.mrb[0].mxu0 %v2509
        %v2548 = vpop.f32.mrb[0].mxu0
        %v2549 = vadd.f32 0.0, %v2548
        %v2550 = vpop.f32.mrb[0].mxu0
        %v2551 = vpop.f32.mrb[0].mxu0
        %v2552 = vpop.f32.mrb[0].mxu0
        %2553 = vdwg.mxu0
        %2554 = vrot.lane.b32.xlu0 %v2165, 64
        %v2555 = vpop.permute.xlu0 %2554
        %v2557 = vsel %vm509, %v2409, 0
        %v2560 = vsel %vm756, %v2555, 0
        %2562 = vmatprep.subr.bf16.mxu0 0
        %2563 = vmatpush1.bf16.msra.mxu0 %v2560
        %2564 = vmatprep.subr.bf16.mxu0 0
        %2565 = vmatpush1.bf16.msra.mxu0 0
        %2566 = vmatprep.subr.bf16.mxu0 0
        %2567 = vmatpush1.bf16.msra.mxu0 0
        %2568 = vmatprep.subr.bf16.mxu0 0
        %2569 = vmatpush1.bf16.msra.mxu0 0
        %2570 = vmatprep.subr.bf16.mxu0 0
        %2571 = vmatpush1.bf16.msra.mxu0 0
        %2572 = vmatprep.subr.bf16.mxu0 0
        %2573 = vmatpush1.bf16.msra.mxu0 0
        %2574 = vmatprep.subr.bf16.mxu0 0
        %2575 = vmatpush1.bf16.msra.mxu0 0
        %2576 = vmatprep.subr.bf16.mxu0 0
        %2577 = vmatpush1.bf16.msra.mxu0 0
        %2578 = vmatprep.subr.bf16.mxu0 0
        %2579 = vmatpush1.bf16.msra.mxu0 0
        %2580 = vmatprep.subr.bf16.mxu0 0
        %2581 = vmatpush1.bf16.msra.mxu0 0
        %2582 = vmatprep.subr.bf16.mxu0 0
        %2583 = vmatpush1.bf16.msra.mxu0 0
        %2584 = vmatprep.subr.bf16.mxu0 0
        %2585 = vmatpush1.bf16.msra.mxu0 0
        %2586 = vmatprep.subr.bf16.mxu0 0
        %2587 = vmatpush1.bf16.msra.mxu0 0
        %2588 = vmatprep.subr.bf16.mxu0 0
        %2589 = vmatpush1.bf16.msra.mxu0 0
        %2590 = vmatprep.subr.bf16.mxu0 0
        %2591 = vmatpush1.bf16.msra.mxu0 0
        %2592 = vmatprep.subr.bf16.mxu0 0
        %2593 = vmatpush1.bf16.msra.mxu0 0
        %2594 = vmatprep.mubr.bf16.mxu0 0
        %2595 = vmatmul.mubr.bf16.gmra.mrb[0].mxu0 %v2557
        %v2596 = vpop.f32.mrb[0].mxu0
        %v2597 = vadd.f32 0.0, %v2596
        %v2598 = vpop.f32.mrb[0].mxu0
        %v2599 = vpop.f32.mrb[0].mxu0
        %v2600 = vpop.f32.mrb[0].mxu0
        %2601 = vdwg.mxu0
        %2603 = vrot.lane.b32.xlu0 %v2501, 8
        %v2604 = vpop.permute.xlu0 %2603
        %2607 = vrot.lane.b32.xlu0 %v2549, 16
        %v2608 = vpop.permute.xlu0 %2607
        %2611 = vrot.lane.b32.xlu0 %v2597, 24
        %v2612 = vpop.permute.xlu0 %2611
        %v2614 = vsel %vm509, %v2453, %v2604
        %v2615 = vsel %vm957, %v2614, %v2608
        %v2616 = vsel %vm959, %v2615, %v2612
        %v2617 = vld [vmem:[%s4 + $0x1c] sm:$0xf]
        %v2618 = vld [vmem:[%s4 + $0x68] sm:$0xf]
        %v2619 = vld [vmem:[%s4 + $0xb4] sm:$0xf]
        %v2620 = vld [vmem:[%s4 + $0x100] sm:$0xf]
        %v2621 = vld [vmem:[%s6 + $0x1c] sm:$0x1]
        %v2622 = vpack.c.bf16 %v2616, %v2616
        %v2623 = vlaneseq
        %v2624 = vshrl.u32 %v2623, 7
        %v2625 = vsub.s32 0, %v2624
        %v2626 = vrot.slane %v2621, %v2625
        %v2631 = vunpack.c.l.b16 %v2617
        %v2632 = vunpack.c.l.b16 %v2618
        %v2633 = vunpack.c.l.b16 %v2619
        %v2634 = vunpack.c.l.b16 %v2620
        %v2635 = vpack.c.b16 %v2632, %v2631
        %v2636 = vpack.c.b16 %v2634, %v2633
        %v2640 = vsel %vm371, %v2622, 0
        %2642 = vmatprep.subr.bf16.mxu0 0
        %2643 = vmatpush1.bf16.msra.mxu0 %v2635
        %2644 = vmatprep.subr.bf16.mxu0 0
        %2645 = vmatpush1.bf16.msra.mxu0 %v2636
        %2646 = vmatprep.subr.bf16.mxu0 0
        %2647 = vmatpush1.bf16.msra.mxu0 0
        %2648 = vmatprep.subr.bf16.mxu0 0
        %2649 = vmatpush1.bf16.msra.mxu0 0
        %2650 = vmatprep.subr.bf16.mxu0 0
        %2651 = vmatpush1.bf16.msra.mxu0 0
        %2652 = vmatprep.subr.bf16.mxu0 0
        %2653 = vmatpush1.bf16.msra.mxu0 0
        %2654 = vmatprep.subr.bf16.mxu0 0
        %2655 = vmatpush1.bf16.msra.mxu0 0
        %2656 = vmatprep.subr.bf16.mxu0 0
        %2657 = vmatpush1.bf16.msra.mxu0 0
        %2658 = vmatprep.subr.bf16.mxu0 0
        %2659 = vmatpush1.bf16.msra.mxu0 0
        %2660 = vmatprep.subr.bf16.mxu0 0
        %2661 = vmatpush1.bf16.msra.mxu0 0
        %2662 = vmatprep.subr.bf16.mxu0 0
        %2663 = vmatpush1.bf16.msra.mxu0 0
        %2664 = vmatprep.subr.bf16.mxu0 0
        %2665 = vmatpush1.bf16.msra.mxu0 0
        %2666 = vmatprep.subr.bf16.mxu0 0
        %2667 = vmatpush1.bf16.msra.mxu0 0
        %2668 = vmatprep.subr.bf16.mxu0 0
        %2669 = vmatpush1.bf16.msra.mxu0 0
        %2670 = vmatprep.subr.bf16.mxu0 0
        %2671 = vmatpush1.bf16.msra.mxu0 0
        %2672 = vmatprep.subr.bf16.mxu0 0
        %2673 = vmatpush1.bf16.msra.mxu0 0
        %2674 = vmatprep.mubr.bf16.mxu0 0
        %2675 = vmatmul.mubr.bf16.gmra.mrb[0].mxu0 %v2640
        %v2676 = vpop.f32.mrb[0].mxu0
        %v2677 = vadd.f32 %v2626, %v2676
        %v2678 = vpop.f32.mrb[0].mxu0
        %v2679 = vpop.f32.mrb[0].mxu0
        %v2680 = vpop.f32.mrb[0].mxu0
        %2681 = vdwg.mxu0
        %v2682 = vadd.f32 %v2061, %v2677
        %v2683 = vld [vmem:[%s6 + $0x1d] sm:$0x1]
        %v2684 = vld [vmem:[%s6 + $0x1e] sm:$0x1]
        %v2685 = vsel %vm371, %v2682, 0.0
        %2686 = vadd.xlane.f32.xlu0 %v2685
        %v2687 = vpop.xlane.xlu0 %2686
        %v2688 = vmul.f32 %v2687, %v375
        %v2689 = vsub.f32 %v2682, %v2688
        %v2690 = vmul.f32 %v2689, %v2689
        %v2691 = vsel %vm371, %v2690, 0.0
        %2692 = vadd.xlane.f32.xlu0 %v2691
        %v2693 = vpop.xlane.xlu0 %2692
        %v2694 = vmul.f32 %v2693, %v375
        %v2695 = vadd.f32 %v2694, 1e-05
        %v2696 = vrsqrt.pop %v2695
        %v2697 = vmul.f32 %v2689, %v2696
        %v2698 = vlaneseq
        %v2699 = vshrl.u32 %v2698, 7
        %v2700 = vsub.s32 0, %v2699
        %v2701 = vrot.slane %v2683, %v2700
        %v2702 = vmul.f32 %v2697, %v2701
        %v2703 = vlaneseq
        %v2704 = vshrl.u32 %v2703, 7
        %v2705 = vsub.s32 0, %v2704
        %v2706 = vrot.slane %v2684, %v2705
        %v2707 = vadd.f32 %v2702, %v2706
        %v2708 = vld [vmem:[%s4 + $0x20] sm:$0xf]
        %v2709 = vld [vmem:[%s4 + $0x6c] sm:$0xf]
        %v2710 = vld [vmem:[%s4 + $0xb8] sm:$0xf]
        %v2711 = vld [vmem:[%s4 + $0x104] sm:$0xf]
        %v2712 = vld [vmem:[%s6 + $0x1f] sm:$0x1]
        %v2713 = vpack.c.bf16 %v2707, %v2707
        %v2714 = vlaneseq
        %v2715 = vshrl.u32 %v2714, 7
        %v2716 = vsub.s32 0, %v2715
        %v2717 = vrot.slane %v2712, %v2716
        %v2722 = vunpack.c.l.b16 %v2708
        %v2723 = vunpack.c.l.b16 %v2709
        %v2724 = vunpack.c.l.b16 %v2710
        %v2725 = vunpack.c.l.b16 %v2711
        %v2726 = vpack.c.b16 %v2723, %v2722
        %v2727 = vpack.c.b16 %v2725, %v2724
        %v2731 = vsel %vm371, %v2713, 0
        %2733 = vmatprep.subr.bf16.mxu0 0
        %2734 = vmatpush1.bf16.msra.mxu0 %v2726
        %2735 = vmatprep.subr.bf16.mxu0 0
        %2736 = vmatpush1.bf16.msra.mxu0 %v2727
        %2737 = vmatprep.subr.bf16.mxu0 0
        %2738 = vmatpush1.bf16.msra.mxu0 0
        %2739 = vmatprep.subr.bf16.mxu0 0
        %2740 = vmatpush1.bf16.msra.mxu0 0
        %2741 = vmatprep.subr.bf16.mxu0 0
        %2742 = vmatpush1.bf16.msra.mxu0 0
        %2743 = vmatprep.subr.bf16.mxu0 0
        %2744 = vmatpush1.bf16.msra.mxu0 0
        %2745 = vmatprep.subr.bf16.mxu0 0
        %2746 = vmatpush1.bf16.msra.mxu0 0
        %2747 = vmatprep.subr.bf16.mxu0 0
        %2748 = vmatpush1.bf16.msra.mxu0 0
        %2749 = vmatprep.subr.bf16.mxu0 0
        %2750 = vmatpush1.bf16.msra.mxu0 0
        %2751 = vmatprep.subr.bf16.mxu0 0
        %2752 = vmatpush1.bf16.msra.mxu0 0
        %2753 = vmatprep.subr.bf16.mxu0 0
        %2754 = vmatpush1.bf16.msra.mxu0 0
        %2755 = vmatprep.subr.bf16.mxu0 0
        %2756 = vmatpush1.bf16.msra.mxu0 0
        %2757 = vmatprep.subr.bf16.mxu0 0
        %2758 = vmatpush1.bf16.msra.mxu0 0
        %2759 = vmatprep.subr.bf16.mxu0 0
        %2760 = vmatpush1.bf16.msra.mxu0 0
        %2761 = vmatprep.subr.bf16.mxu0 0
        %2762 = vmatpush1.bf16.msra.mxu0 0
        %2763 = vmatprep.subr.bf16.mxu0 0
        %2764 = vmatpush1.bf16.msra.mxu0 0
        %2765 = vmatprep.mubr.bf16.mxu0 0
        %2766 = vmatmul.mubr.bf16.gmra.mrb[0].mxu0 %v2731
        %v2767 = vpop.f32.mrb[0].mxu0
        %v2768 = vadd.f32 %v2717, %v2767
        %v2769 = vpop.f32.mrb[0].mxu0
        %v2770 = vpop.f32.mrb[0].mxu0
        %v2771 = vpop.f32.mrb[0].mxu0
        %2772 = vdwg.mxu0
        %v2773 = vld [vmem:[%s4 + $0x24] sm:$0xf]
        %v2774 = vld [vmem:[%s4 + $0x70] sm:$0xf]
        %v2775 = vld [vmem:[%s4 + $0xbc] sm:$0xf]
        %v2776 = vld [vmem:[%s4 + $0x108] sm:$0xf]
        %v2777 = vld [vmem:[%s6 + $0x20] sm:$0x1]
        %v2778 = vpack.c.bf16 %v2035, %v2035
        %v2779 = vlaneseq
        %v2780 = vshrl.u32 %v2779, 7
        %v2781 = vsub.s32 0, %v2780
        %v2782 = vrot.slane %v2777, %v2781
        %v2787 = vunpack.c.l.b16 %v2773
        %v2788 = vunpack.c.l.b16 %v2774
        %v2789 = vunpack.c.l.b16 %v2775
        %v2790 = vunpack.c.l.b16 %v2776
        %v2791 = vpack.c.b16 %v2788, %v2787
        %v2792 = vpack.c.b16 %v2790, %v2789
        %v2796 = vsel %vm371, %v2778, 0
        %2798 = vmatprep.subr.bf16.mxu0 0
        %2799 = vmatpush1.bf16.msra.mxu0 %v2791
        %2800 = vmatprep.subr.bf16.mxu0 0
        %2801 = vmatpush1.bf16.msra.mxu0 %v2792
        %2802 = vmatprep.subr.bf16.mxu0 0
        %2803 = vmatpush1.bf16.msra.mxu0 0
        %2804 = vmatprep.subr.bf16.mxu0 0
        %2805 = vmatpush1.bf16.msra.mxu0 0
        %2806 = vmatprep.subr.bf16.mxu0 0
        %2807 = vmatpush1.bf16.msra.mxu0 0
        %2808 = vmatprep.subr.bf16.mxu0 0
        %2809 = vmatpush1.bf16.msra.mxu0 0
        %2810 = vmatprep.subr.bf16.mxu0 0
        %2811 = vmatpush1.bf16.msra.mxu0 0
        %2812 = vmatprep.subr.bf16.mxu0 0
        %2813 = vmatpush1.bf16.msra.mxu0 0
        %2814 = vmatprep.subr.bf16.mxu0 0
        %2815 = vmatpush1.bf16.msra.mxu0 0
        %2816 = vmatprep.subr.bf16.mxu0 0
        %2817 = vmatpush1.bf16.msra.mxu0 0
        %2818 = vmatprep.subr.bf16.mxu0 0
        %2819 = vmatpush1.bf16.msra.mxu0 0
        %2820 = vmatprep.subr.bf16.mxu0 0
        %2821 = vmatpush1.bf16.msra.mxu0 0
        %2822 = vmatprep.subr.bf16.mxu0 0
        %2823 = vmatpush1.bf16.msra.mxu0 0
        %2824 = vmatprep.subr.bf16.mxu0 0
        %2825 = vmatpush1.bf16.msra.mxu0 0
        %2826 = vmatprep.subr.bf16.mxu0 0
        %2827 = vmatpush1.bf16.msra.mxu0 0
        %2828 = vmatprep.subr.bf16.mxu0 0
        %2829 = vmatpush1.bf16.msra.mxu0 0
        %2830 = vmatprep.mubr.bf16.mxu0 0
        %2831 = vmatmul.mubr.bf16.gmra.mrb[0].mxu0 %v2796
        %v2832 = vpop.f32.mrb[0].mxu0
        %v2833 = vadd.f32 %v2782, %v2832
        %v2834 = vpop.f32.mrb[0].mxu0
        %v2835 = vpop.f32.mrb[0].mxu0
        %v2836 = vpop.f32.mrb[0].mxu0
        %2837 = vdwg.mxu0
        %2839 = vrot.lane.b32.xlu0 %v2768, 120
        %v2840 = vpop.permute.xlu0 %2839
        %2842 = vrot.lane.b32.xlu0 %v2768, 112
        %v2843 = vpop.permute.xlu0 %2842
        %2845 = vrot.lane.b32.xlu0 %v2768, 104
        %v2846 = vpop.permute.xlu0 %2845
        %v2848 = vpack.c.bf16 %v2768, %v2768
        %v2849 = vpack.c.bf16 %v2840, %v2840
        %v2850 = vpack.c.bf16 %v2843, %v2843
        %v2851 = vpack.c.bf16 %v2846, %v2846
        %2853 = vrot.lane.b32.xlu0 %v2833, 120
        %v2854 = vpop.permute.xlu0 %2853
        %2856 = vrot.lane.b32.xlu0 %v2833, 112
        %v2857 = vpop.permute.xlu0 %2856
        %2859 = vrot.lane.b32.xlu0 %v2833, 104
        %v2860 = vpop.permute.xlu0 %2859
        %v2862 = vpack.c.bf16 %v2833, %v2833
        %v2863 = vpack.c.bf16 %v2854, %v2854
        %v2864 = vpack.c.bf16 %v2857, %v2857
        %v2865 = vpack.c.bf16 %v2860, %v2860
        %v2867 = vsel %vm509, %v2848, 0
        %v2870 = vsel %vm509, %v2862, 0
        %2872 = vmatprep.subr.bf16.mxu0 0
        %2873 = vmatpush1.bf16.xpose.msra.mxu0 %v2870
        %2874 = vmatprep.subr.bf16.mxu0 0
        %2875 = vmatpush1.bf16.xpose.msra.mxu0 0
        %2876 = vmatprep.subr.bf16.mxu0 0
        %2877 = vmatpush1.bf16.xpose.msra.mxu0 0
        %2878 = vmatprep.subr.bf16.mxu0 0
        %2879 = vmatpush1.bf16.xpose.msra.mxu0 0
        %2880 = vmatprep.subr.bf16.mxu0 0
        %2881 = vmatpush1.bf16.xpose.msra.mxu0 0
        %2882 = vmatprep.subr.bf16.mxu0 0
        %2883 = vmatpush1.bf16.xpose.msra.mxu0 0
        %2884 = vmatprep.subr.bf16.mxu0 0
        %2885 = vmatpush1.bf16.xpose.msra.mxu0 0
        %2886 = vmatprep.subr.bf16.mxu0 0
        %2887 = vmatpush1.bf16.xpose.msra.mxu0 0
        %2888 = vmatprep.subr.bf16.mxu0 0
        %2889 = vmatpush1.bf16.xpose.msra.mxu0 0
        %2890 = vmatprep.subr.bf16.mxu0 0
        %2891 = vmatpush1.bf16.xpose.msra.mxu0 0
        %2892 = vmatprep.subr.bf16.mxu0 0
        %2893 = vmatpush1.bf16.xpose.msra.mxu0 0
        %2894 = vmatprep.subr.bf16.mxu0 0
        %2895 = vmatpush1.bf16.xpose.msra.mxu0 0
        %2896 = vmatprep.subr.bf16.mxu0 0
        %2897 = vmatpush1.bf16.xpose.msra.mxu0 0
        %2898 = vmatprep.subr.bf16.mxu0 0
        %2899 = vmatpush1.bf16.xpose.msra.mxu0 0
        %2900 = vmatprep.subr.bf16.mxu0 0
        %2901 = vmatpush1.bf16.xpose.msra.mxu0 0
        %2902 = vmatprep.subr.bf16.mxu0 0
        %2903 = vmatpush1.bf16.xpose.msra.mxu0 0
        %2904 = vmatprep.mubr.bf16.mxu0 0
        %2905 = vmatmul.mubr.bf16.gmra.mrb[0].mxu0 %v2867
        %v2906 = vpop.f32.mrb[0].mxu0
        %v2907 = vadd.f32 %v504, %v2906
        %v2908 = vpop.f32.mrb[0].mxu0
        %v2909 = vpop.f32.mrb[0].mxu0
        %v2910 = vpop.f32.mrb[0].mxu0
        %2911 = vdwg.mxu0
        %v2913 = vsel %vm509, %v2849, 0
        %v2916 = vsel %vm509, %v2863, 0
        %2918 = vmatprep.subr.bf16.mxu0 0
        %2919 = vmatpush1.bf16.xpose.msra.mxu0 %v2916
        %2920 = vmatprep.subr.bf16.mxu0 0
        %2921 = vmatpush1.bf16.xpose.msra.mxu0 0
        %2922 = vmatprep.subr.bf16.mxu0 0
        %2923 = vmatpush1.bf16.xpose.msra.mxu0 0
        %2924 = vmatprep.subr.bf16.mxu0 0
        %2925 = vmatpush1.bf16.xpose.msra.mxu0 0
        %2926 = vmatprep.subr.bf16.mxu0 0
        %2927 = vmatpush1.bf16.xpose.msra.mxu0 0
        %2928 = vmatprep.subr.bf16.mxu0 0
        %2929 = vmatpush1.bf16.xpose.msra.mxu0 0
        %2930 = vmatprep.subr.bf16.mxu0 0
        %2931 = vmatpush1.bf16.xpose.msra.mxu0 0
        %2932 = vmatprep.subr.bf16.mxu0 0
        %2933 = vmatpush1.bf16.xpose.msra.mxu0 0
        %2934 = vmatprep.subr.bf16.mxu0 0
        %2935 = vmatpush1.bf16.xpose.msra.mxu0 0
        %2936 = vmatprep.subr.bf16.mxu0 0
        %2937 = vmatpush1.bf16.xpose.msra.mxu0 0
        %2938 = vmatprep.subr.bf16.mxu0 0
        %2939 = vmatpush1.bf16.xpose.msra.mxu0 0
        %2940 = vmatprep.subr.bf16.mxu0 0
        %2941 = vmatpush1.bf16.xpose.msra.mxu0 0
        %2942 = vmatprep.subr.bf16.mxu0 0
        %2943 = vmatpush1.bf16.xpose.msra.mxu0 0
        %2944 = vmatprep.subr.bf16.mxu0 0
        %2945 = vmatpush1.bf16.xpose.msra.mxu0 0
        %2946 = vmatprep.subr.bf16.mxu0 0
        %2947 = vmatpush1.bf16.xpose.msra.mxu0 0
        %2948 = vmatprep.subr.bf16.mxu0 0
        %2949 = vmatpush1.bf16.xpose.msra.mxu0 0
        %2950 = vmatprep.mubr.bf16.mxu0 0
        %2951 = vmatmul.mubr.bf16.gmra.mrb[0].mxu0 %v2913
        %v2952 = vpop.f32.mrb[0].mxu0
        %v2953 = vadd.f32 %v504, %v2952
        %v2954 = vpop.f32.mrb[0].mxu0
        %v2955 = vpop.f32.mrb[0].mxu0
        %v2956 = vpop.f32.mrb[0].mxu0
        %2957 = vdwg.mxu0
        %v2959 = vsel %vm509, %v2850, 0
        %v2962 = vsel %vm509, %v2864, 0
        %2964 = vmatprep.subr.bf16.mxu0 0
        %2965 = vmatpush1.bf16.xpose.msra.mxu0 %v2962
        %2966 = vmatprep.subr.bf16.mxu0 0
        %2967 = vmatpush1.bf16.xpose.msra.mxu0 0
        %2968 = vmatprep.subr.bf16.mxu0 0
        %2969 = vmatpush1.bf16.xpose.msra.mxu0 0
        %2970 = vmatprep.subr.bf16.mxu0 0
        %2971 = vmatpush1.bf16.xpose.msra.mxu0 0
        %2972 = vmatprep.subr.bf16.mxu0 0
        %2973 = vmatpush1.bf16.xpose.msra.mxu0 0
        %2974 = vmatprep.subr.bf16.mxu0 0
        %2975 = vmatpush1.bf16.xpose.msra.mxu0 0
        %2976 = vmatprep.subr.bf16.mxu0 0
        %2977 = vmatpush1.bf16.xpose.msra.mxu0 0
        %2978 = vmatprep.subr.bf16.mxu0 0
        %2979 = vmatpush1.bf16.xpose.msra.mxu0 0
        %2980 = vmatprep.subr.bf16.mxu0 0
        %2981 = vmatpush1.bf16.xpose.msra.mxu0 0
        %2982 = vmatprep.subr.bf16.mxu0 0
        %2983 = vmatpush1.bf16.xpose.msra.mxu0 0
        %2984 = vmatprep.subr.bf16.mxu0 0
        %2985 = vmatpush1.bf16.xpose.msra.mxu0 0
        %2986 = vmatprep.subr.bf16.mxu0 0
        %2987 = vmatpush1.bf16.xpose.msra.mxu0 0
        %2988 = vmatprep.subr.bf16.mxu0 0
        %2989 = vmatpush1.bf16.xpose.msra.mxu0 0
        %2990 = vmatprep.subr.bf16.mxu0 0
        %2991 = vmatpush1.bf16.xpose.msra.mxu0 0
        %2992 = vmatprep.subr.bf16.mxu0 0
        %2993 = vmatpush1.bf16.xpose.msra.mxu0 0
        %2994 = vmatprep.subr.bf16.mxu0 0
        %2995 = vmatpush1.bf16.xpose.msra.mxu0 0
        %2996 = vmatprep.mubr.bf16.mxu0 0
        %2997 = vmatmul.mubr.bf16.gmra.mrb[0].mxu0 %v2959
        %v2998 = vpop.f32.mrb[0].mxu0
        %v2999 = vadd.f32 %v504, %v2998
        %v3000 = vpop.f32.mrb[0].mxu0
        %v3001 = vpop.f32.mrb[0].mxu0
        %v3002 = vpop.f32.mrb[0].mxu0
        %3003 = vdwg.mxu0
        %v3005 = vsel %vm509, %v2851, 0
        %v3008 = vsel %vm509, %v2865, 0
        %3010 = vmatprep.subr.bf16.mxu0 0
        %3011 = vmatpush1.bf16.xpose.msra.mxu0 %v3008
        %3012 = vmatprep.subr.bf16.mxu0 0
        %3013 = vmatpush1.bf16.xpose.msra.mxu0 0
        %3014 = vmatprep.subr.bf16.mxu0 0
        %3015 = vmatpush1.bf16.xpose.msra.mxu0 0
        %3016 = vmatprep.subr.bf16.mxu0 0
        %3017 = vmatpush1.bf16.xpose.msra.mxu0 0
        %3018 = vmatprep.subr.bf16.mxu0 0
        %3019 = vmatpush1.bf16.xpose.msra.mxu0 0
        %3020 = vmatprep.subr.bf16.mxu0 0
        %3021 = vmatpush1.bf16.xpose.msra.mxu0 0
        %3022 = vmatprep.subr.bf16.mxu0 0
        %3023 = vmatpush1.bf16.xpose.msra.mxu0 0
        %3024 = vmatprep.subr.bf16.mxu0 0
        %3025 = vmatpush1.bf16.xpose.msra.mxu0 0
        %3026 = vmatprep.subr.bf16.mxu0 0
        %3027 = vmatpush1.bf16.xpose.msra.mxu0 0
        %3028 = vmatprep.subr.bf16.mxu0 0
        %3029 = vmatpush1.bf16.xpose.msra.mxu0 0
        %3030 = vmatprep.subr.bf16.mxu0 0
        %3031 = vmatpush1.bf16.xpose.msra.mxu0 0
        %3032 = vmatprep.subr.bf16.mxu0 0
        %3033 = vmatpush1.bf16.xpose.msra.mxu0 0
        %3034 = vmatprep.subr.bf16.mxu0 0
        %3035 = vmatpush1.bf16.xpose.msra.mxu0 0
        %3036 = vmatprep.subr.bf16.mxu0 0
        %3037 = vmatpush1.bf16.xpose.msra.mxu0 0
        %3038 = vmatprep.subr.bf16.mxu0 0
        %3039 = vmatpush1.bf16.xpose.msra.mxu0 0
        %3040 = vmatprep.subr.bf16.mxu0 0
        %3041 = vmatpush1.bf16.xpose.msra.mxu0 0
        %3042 = vmatprep.mubr.bf16.mxu0 0
        %3043 = vmatmul.mubr.bf16.gmra.mrb[0].mxu0 %v3005
        %v3044 = vpop.f32.mrb[0].mxu0
        %v3045 = vadd.f32 %v504, %v3044
        %v3046 = vpop.f32.mrb[0].mxu0
        %v3047 = vpop.f32.mrb[0].mxu0
        %v3048 = vpop.f32.mrb[0].mxu0
        %3049 = vdwg.mxu0
        %v3050 = vsel %vm509, %v2907, -inf
        %3051 = vmax.xlane.f32.xlu0 %v3050
        %v3052 = vpop.xlane.xlu0 %3051
        %v3053 = vsel %vm509, %v2953, -inf
        %3054 = vmax.xlane.f32.xlu0 %v3053
        %v3055 = vpop.xlane.xlu0 %3054
        %v3056 = vsel %vm509, %v2999, -inf
        %3057 = vmax.xlane.f32.xlu0 %v3056
        %v3058 = vpop.xlane.xlu0 %3057
        %v3059 = vsel %vm509, %v3045, -inf
        %3060 = vmax.xlane.f32.xlu0 %v3059
        %v3061 = vpop.xlane.xlu0 %3060
        %v3062 = vsub.f32 %v2907, %v3052
        %v3063 = vsub.f32 %v2953, %v3055
        %v3064 = vsub.f32 %v2999, %v3058
        %v3065 = vsub.f32 %v3045, %v3061
        %v3066 = vmul.f32 %v3062, 1.442695
        %v3067 = vpow.pop %v3066
        %v3068 = vmul.f32 %v3063, 1.442695
        %v3069 = vpow.pop %v3068
        %v3070 = vmul.f32 %v3064, 1.442695
        %v3071 = vpow.pop %v3070
        %v3072 = vmul.f32 %v3065, 1.442695
        %v3073 = vpow.pop %v3072
        %v3074 = vsel %vm509, %v3067, 0.0
        %3075 = vadd.xlane.f32.xlu0 %v3074
        %v3076 = vpop.xlane.xlu0 %3075
        %v3077 = vsel %vm509, %v3069, 0.0
        %3078 = vadd.xlane.f32.xlu0 %v3077
        %v3079 = vpop.xlane.xlu0 %3078
        %v3080 = vsel %vm509, %v3071, 0.0
        %3081 = vadd.xlane.f32.xlu0 %v3080
        %v3082 = vpop.xlane.xlu0 %3081
        %v3083 = vsel %vm509, %v3073, 0.0
        %3084 = vadd.xlane.f32.xlu0 %v3083
        %v3085 = vpop.xlane.xlu0 %3084
        %v3086 = vrcp.pop %v3076
        %v3087 = vrcp.pop %v3079
        %v3088 = vrcp.pop %v3082
        %v3089 = vrcp.pop %v3085
        %v3090 = vmul.f32 %v3067, %v3086
        %v3091 = vmul.f32 %v3069, %v3087
        %v3092 = vmul.f32 %v3071, %v3088
        %v3093 = vmul.f32 %v3073, %v3089
        %v3094 = vpack.c.bf16 %v3090, %v3090
        %v3095 = vpack.c.bf16 %v3091, %v3091
        %v3096 = vpack.c.bf16 %v3092, %v3092
        %v3097 = vpack.c.bf16 %v3093, %v3093
        %3099 = vrot.lane.b32.xlu0 %v2862, 96
        %v3100 = vpop.permute.xlu0 %3099
        %v3102 = vsel %vm509, %v3094, 0
        %v3105 = vsel %vm756, %v3100, 0
        %3107 = vmatprep.subr.bf16.mxu0 0
        %3108 = vmatpush1.bf16.msra.mxu0 %v3105
        %3109 = vmatprep.subr.bf16.mxu0 0
        %3110 = vmatpush1.bf16.msra.mxu0 0
        %3111 = vmatprep.subr.bf16.mxu0 0
        %3112 = vmatpush1.bf16.msra.mxu0 0
        %3113 = vmatprep.subr.bf16.mxu0 0
        %3114 = vmatpush1.bf16.msra.mxu0 0
        %3115 = vmatprep.subr.bf16.mxu0 0
        %3116 = vmatpush1.bf16.msra.mxu0 0
        %3117 = vmatprep.subr.bf16.mxu0 0
        %3118 = vmatpush1.bf16.msra.mxu0 0
        %3119 = vmatprep.subr.bf16.mxu0 0
        %3120 = vmatpush1.bf16.msra.mxu0 0
        %3121 = vmatprep.subr.bf16.mxu0 0
        %3122 = vmatpush1.bf16.msra.mxu0 0
        %3123 = vmatprep.subr.bf16.mxu0 0
        %3124 = vmatpush1.bf16.msra.mxu0 0
        %3125 = vmatprep.subr.bf16.mxu0 0
        %3126 = vmatpush1.bf16.msra.mxu0 0
        %3127 = vmatprep.subr.bf16.mxu0 0
        %3128 = vmatpush1.bf16.msra.mxu0 0
        %3129 = vmatprep.subr.bf16.mxu0 0
        %3130 = vmatpush1.bf16.msra.mxu0 0
        %3131 = vmatprep.subr.bf16.mxu0 0
        %3132 = vmatpush1.bf16.msra.mxu0 0
        %3133 = vmatprep.subr.bf16.mxu0 0
        %3134 = vmatpush1.bf16.msra.mxu0 0
        %3135 = vmatprep.subr.bf16.mxu0 0
        %3136 = vmatpush1.bf16.msra.mxu0 0
        %3137 = vmatprep.subr.bf16.mxu0 0
        %3138 = vmatpush1.bf16.msra.mxu0 0
        %3139 = vmatprep.mubr.bf16.mxu0 0
        %3140 = vmatmul.mubr.bf16.gmra.mrb[0].mxu0 %v3102
        %v3141 = vpop.f32.mrb[0].mxu0
        %v3142 = vadd.f32 0.0, %v3141
        %v3143 = vpop.f32.mrb[0].mxu0
        %v3144 = vpop.f32.mrb[0].mxu0
        %v3145 = vpop.f32.mrb[0].mxu0
        %3146 = vdwg.mxu0
        %3148 = vrot.lane.b32.xlu0 %v2863, 96
        %v3149 = vpop.permute.xlu0 %3148
        %v3151 = vsel %vm509, %v3095, 0
        %v3154 = vsel %vm756, %v3149, 0
        %3156 = vmatprep.subr.bf16.mxu0 0
        %3157 = vmatpush1.bf16.msra.mxu0 %v3154
        %3158 = vmatprep.subr.bf16.mxu0 0
        %3159 = vmatpush1.bf16.msra.mxu0 0
        %3160 = vmatprep.subr.bf16.mxu0 0
        %3161 = vmatpush1.bf16.msra.mxu0 0
        %3162 = vmatprep.subr.bf16.mxu0 0
        %3163 = vmatpush1.bf16.msra.mxu0 0
        %3164 = vmatprep.subr.bf16.mxu0 0
        %3165 = vmatpush1.bf16.msra.mxu0 0
        %3166 = vmatprep.subr.bf16.mxu0 0
        %3167 = vmatpush1.bf16.msra.mxu0 0
        %3168 = vmatprep.subr.bf16.mxu0 0
        %3169 = vmatpush1.bf16.msra.mxu0 0
        %3170 = vmatprep.subr.bf16.mxu0 0
        %3171 = vmatpush1.bf16.msra.mxu0 0
        %3172 = vmatprep.subr.bf16.mxu0 0
        %3173 = vmatpush1.bf16.msra.mxu0 0
        %3174 = vmatprep.subr.bf16.mxu0 0
        %3175 = vmatpush1.bf16.msra.mxu0 0
        %3176 = vmatprep.subr.bf16.mxu0 0
        %3177 = vmatpush1.bf16.msra.mxu0 0
        %3178 = vmatprep.subr.bf16.mxu0 0
        %3179 = vmatpush1.bf16.msra.mxu0 0
        %3180 = vmatprep.subr.bf16.mxu0 0
        %3181 = vmatpush1.bf16.msra.mxu0 0
        %3182 = vmatprep.subr.bf16.mxu0 0
        %3183 = vmatpush1.bf16.msra.mxu0 0
        %3184 = vmatprep.subr.bf16.mxu0 0
        %3185 = vmatpush1.bf16.msra.mxu0 0
        %3186 = vmatprep.subr.bf16.mxu0 0
        %3187 = vmatpush1.bf16.msra.mxu0 0
        %3188 = vmatprep.mubr.bf16.mxu0 0
        %3189 = vmatmul.mubr.bf16.gmra.mrb[0].mxu0 %v3151
        %v3190 = vpop.f32.mrb[0].mxu0
        %v3191 = vadd.f32 0.0, %v3190
        %v3192 = vpop.f32.mrb[0].mxu0
        %v3193 = vpop.f32.mrb[0].mxu0
        %v3194 = vpop.f32.mrb[0].mxu0
        %3195 = vdwg.mxu0
        %3197 = vrot.lane.b32.xlu0 %v2864, 96
        %v3198 = vpop.permute.xlu0 %3197
        %v3200 = vsel %vm509, %v3096, 0
        %v3203 = vsel %vm756, %v3198, 0
        %3205 = vmatprep.subr.bf16.mxu0 0
        %3206 = vmatpush1.bf16.msra.mxu0 %v3203
        %3207 = vmatprep.subr.bf16.mxu0 0
        %3208 = vmatpush1.bf16.msra.mxu0 0
        %3209 = vmatprep.subr.bf16.mxu0 0
        %3210 = vmatpush1.bf16.msra.mxu0 0
        %3211 = vmatprep.subr.bf16.mxu0 0
        %3212 = vmatpush1.bf16.msra.mxu0 0
        %3213 = vmatprep.subr.bf16.mxu0 0
        %3214 = vmatpush1.bf16.msra.mxu0 0
        %3215 = vmatprep.subr.bf16.mxu0 0
        %3216 = vmatpush1.bf16.msra.mxu0 0
        %3217 = vmatprep.subr.bf16.mxu0 0
        %3218 = vmatpush1.bf16.msra.mxu0 0
        %3219 = vmatprep.subr.bf16.mxu0 0
        %3220 = vmatpush1.bf16.msra.mxu0 0
        %3221 = vmatprep.subr.bf16.mxu0 0
        %3222 = vmatpush1.bf16.msra.mxu0 0
        %3223 = vmatprep.subr.bf16.mxu0 0
        %3224 = vmatpush1.bf16.msra.mxu0 0
        %3225 = vmatprep.subr.bf16.mxu0 0
        %3226 = vmatpush1.bf16.msra.mxu0 0
        %3227 = vmatprep.subr.bf16.mxu0 0
        %3228 = vmatpush1.bf16.msra.mxu0 0
        %3229 = vmatprep.subr.bf16.mxu0 0
        %3230 = vmatpush1.bf16.msra.mxu0 0
        %3231 = vmatprep.subr.bf16.mxu0 0
        %3232 = vmatpush1.bf16.msra.mxu0 0
        %3233 = vmatprep.subr.bf16.mxu0 0
        %3234 = vmatpush1.bf16.msra.mxu0 0
        %3235 = vmatprep.subr.bf16.mxu0 0
        %3236 = vmatpush1.bf16.msra.mxu0 0
        %3237 = vmatprep.mubr.bf16.mxu0 0
        %3238 = vmatmul.mubr.bf16.gmra.mrb[0].mxu0 %v3200
        %v3239 = vpop.f32.mrb[0].mxu0
        %v3240 = vadd.f32 0.0, %v3239
        %v3241 = vpop.f32.mrb[0].mxu0
        %v3242 = vpop.f32.mrb[0].mxu0
        %v3243 = vpop.f32.mrb[0].mxu0
        %3244 = vdwg.mxu0
        %3246 = vrot.lane.b32.xlu0 %v2865, 96
        %v3247 = vpop.permute.xlu0 %3246
        %v3249 = vsel %vm509, %v3097, 0
        %v3252 = vsel %vm756, %v3247, 0
        %3254 = vmatprep.subr.bf16.mxu0 0
        %3255 = vmatpush1.bf16.msra.mxu0 %v3252
        %3256 = vmatprep.subr.bf16.mxu0 0
        %3257 = vmatpush1.bf16.msra.mxu0 0
        %3258 = vmatprep.subr.bf16.mxu0 0
        %3259 = vmatpush1.bf16.msra.mxu0 0
        %3260 = vmatprep.subr.bf16.mxu0 0
        %3261 = vmatpush1.bf16.msra.mxu0 0
        %3262 = vmatprep.subr.bf16.mxu0 0
        %3263 = vmatpush1.bf16.msra.mxu0 0
        %3264 = vmatprep.subr.bf16.mxu0 0
        %3265 = vmatpush1.bf16.msra.mxu0 0
        %3266 = vmatprep.subr.bf16.mxu0 0
        %3267 = vmatpush1.bf16.msra.mxu0 0
        %3268 = vmatprep.subr.bf16.mxu0 0
        %3269 = vmatpush1.bf16.msra.mxu0 0
        %3270 = vmatprep.subr.bf16.mxu0 0
        %3271 = vmatpush1.bf16.msra.mxu0 0
        %3272 = vmatprep.subr.bf16.mxu0 0
        %3273 = vmatpush1.bf16.msra.mxu0 0
        %3274 = vmatprep.subr.bf16.mxu0 0
        %3275 = vmatpush1.bf16.msra.mxu0 0
        %3276 = vmatprep.subr.bf16.mxu0 0
        %3277 = vmatpush1.bf16.msra.mxu0 0
        %3278 = vmatprep.subr.bf16.mxu0 0
        %3279 = vmatpush1.bf16.msra.mxu0 0
        %3280 = vmatprep.subr.bf16.mxu0 0
        %3281 = vmatpush1.bf16.msra.mxu0 0
        %3282 = vmatprep.subr.bf16.mxu0 0
        %3283 = vmatpush1.bf16.msra.mxu0 0
        %3284 = vmatprep.subr.bf16.mxu0 0
        %3285 = vmatpush1.bf16.msra.mxu0 0
        %3286 = vmatprep.mubr.bf16.mxu0 0
        %3287 = vmatmul.mubr.bf16.gmra.mrb[0].mxu0 %v3249
        %v3288 = vpop.f32.mrb[0].mxu0
        %v3289 = vadd.f32 0.0, %v3288
        %v3290 = vpop.f32.mrb[0].mxu0
        %v3291 = vpop.f32.mrb[0].mxu0
        %v3292 = vpop.f32.mrb[0].mxu0
        %3293 = vdwg.mxu0
        %3295 = vrot.lane.b32.xlu0 %v3191, 8
        %v3296 = vpop.permute.xlu0 %3295
        %3299 = vrot.lane.b32.xlu0 %v3240, 16
        %v3300 = vpop.permute.xlu0 %3299
        %3303 = vrot.lane.b32.xlu0 %v3289, 24
        %v3304 = vpop.permute.xlu0 %3303
        %v3306 = vsel %vm509, %v3142, %v3296
        %v3307 = vsel %vm957, %v3306, %v3300
        %v3308 = vsel %vm959, %v3307, %v3304
        %v3309 = vld [vmem:[%s4 + $0x28] sm:$0xf]
        %v3310 = vld [vmem:[%s4 + $0x74] sm:$0xf]
        %v3311 = vld [vmem:[%s4 + $0xc0] sm:$0xf]
        %v3312 = vld [vmem:[%s4 + $0x10c] sm:$0xf]
        %v3313 = vld [vmem:[%s6 + $0x21] sm:$0x1]
        %v3314 = vpack.c.bf16 %v3308, %v3308
        %v3315 = vlaneseq
        %v3316 = vshrl.u32 %v3315, 7
        %v3317 = vsub.s32 0, %v3316
        %v3318 = vrot.slane %v3313, %v3317
        %v3323 = vunpack.c.l.b16 %v3309
        %v3324 = vunpack.c.l.b16 %v3310
        %v3325 = vunpack.c.l.b16 %v3311
        %v3326 = vunpack.c.l.b16 %v3312
        %v3327 = vpack.c.b16 %v3324, %v3323
        %v3328 = vpack.c.b16 %v3326, %v3325
        %v3332 = vsel %vm371, %v3314, 0
        %3334 = vmatprep.subr.bf16.mxu0 0
        %3335 = vmatpush1.bf16.msra.mxu0 %v3327
        %3336 = vmatprep.subr.bf16.mxu0 0
        %3337 = vmatpush1.bf16.msra.mxu0 %v3328
        %3338 = vmatprep.subr.bf16.mxu0 0
        %3339 = vmatpush1.bf16.msra.mxu0 0
        %3340 = vmatprep.subr.bf16.mxu0 0
        %3341 = vmatpush1.bf16.msra.mxu0 0
        %3342 = vmatprep.subr.bf16.mxu0 0
        %3343 = vmatpush1.bf16.msra.mxu0 0
        %3344 = vmatprep.subr.bf16.mxu0 0
        %3345 = vmatpush1.bf16.msra.mxu0 0
        %3346 = vmatprep.subr.bf16.mxu0 0
        %3347 = vmatpush1.bf16.msra.mxu0 0
        %3348 = vmatprep.subr.bf16.mxu0 0
        %3349 = vmatpush1.bf16.msra.mxu0 0
        %3350 = vmatprep.subr.bf16.mxu0 0
        %3351 = vmatpush1.bf16.msra.mxu0 0
        %3352 = vmatprep.subr.bf16.mxu0 0
        %3353 = vmatpush1.bf16.msra.mxu0 0
        %3354 = vmatprep.subr.bf16.mxu0 0
        %3355 = vmatpush1.bf16.msra.mxu0 0
        %3356 = vmatprep.subr.bf16.mxu0 0
        %3357 = vmatpush1.bf16.msra.mxu0 0
        %3358 = vmatprep.subr.bf16.mxu0 0
        %3359 = vmatpush1.bf16.msra.mxu0 0
        %3360 = vmatprep.subr.bf16.mxu0 0
        %3361 = vmatpush1.bf16.msra.mxu0 0
        %3362 = vmatprep.subr.bf16.mxu0 0
        %3363 = vmatpush1.bf16.msra.mxu0 0
        %3364 = vmatprep.subr.bf16.mxu0 0
        %3365 = vmatpush1.bf16.msra.mxu0 0
        %3366 = vmatprep.mubr.bf16.mxu0 0
        %3367 = vmatmul.mubr.bf16.gmra.mrb[0].mxu0 %v3332
        %v3368 = vpop.f32.mrb[0].mxu0
        %v3369 = vadd.f32 %v3318, %v3368
        %v3370 = vpop.f32.mrb[0].mxu0
        %v3371 = vpop.f32.mrb[0].mxu0
        %v3372 = vpop.f32.mrb[0].mxu0
        %3373 = vdwg.mxu0
        %v3374 = vadd.f32 %v2682, %v3369
        %v3375 = vld [vmem:[%s6 + $0x22] sm:$0x1]
        %v3376 = vld [vmem:[%s6 + $0x23] sm:$0x1]
        %v3377 = vsel %vm371, %v3374, 0.0
        %3378 = vadd.xlane.f32.xlu0 %v3377
        %v3379 = vpop.xlane.xlu0 %3378
        %v3380 = vmul.f32 %v3379, %v375
        %v3381 = vsub.f32 %v3374, %v3380
        %v3382 = vmul.f32 %v3381, %v3381
        %v3383 = vsel %vm371, %v3382, 0.0
        %3384 = vadd.xlane.f32.xlu0 %v3383
        %v3385 = vpop.xlane.xlu0 %3384
        %v3386 = vmul.f32 %v3385, %v375
        %v3387 = vadd.f32 %v3386, 1e-05
        %v3388 = vrsqrt.pop %v3387
        %v3389 = vmul.f32 %v3381, %v3388
        %v3390 = vlaneseq
        %v3391 = vshrl.u32 %v3390, 7
        %v3392 = vsub.s32 0, %v3391
        %v3393 = vrot.slane %v3375, %v3392
        %v3394 = vmul.f32 %v3389, %v3393
        %v3395 = vlaneseq
        %v3396 = vshrl.u32 %v3395, 7
        %v3397 = vsub.s32 0, %v3396
        %v3398 = vrot.slane %v3376, %v3397
        %v3399 = vadd.f32 %v3394, %v3398
        %v3400 = vld [vmem:[%s4 + $0x2c] sm:$0xf]
        %v3401 = vld [vmem:[%s4 + $0x78] sm:$0xf]
        %v3402 = vld [vmem:[%s4 + $0xc4] sm:$0xf]
        %v3403 = vld [vmem:[%s4 + $0x110] sm:$0xf]
        %v3404 = vld [vmem:[%s6 + $0x24] sm:$0x1]
        %v3405 = vpack.c.bf16 %v3399, %v3399
        %v3406 = vlaneseq
        %v3407 = vshrl.u32 %v3406, 7
        %v3408 = vsub.s32 0, %v3407
        %v3409 = vrot.slane %v3404, %v3408
        %v3414 = vunpack.c.l.b16 %v3400
        %v3415 = vunpack.c.l.b16 %v3401
        %v3416 = vunpack.c.l.b16 %v3402
        %v3417 = vunpack.c.l.b16 %v3403
        %v3418 = vpack.c.b16 %v3415, %v3414
        %v3419 = vpack.c.b16 %v3417, %v3416
        %v3423 = vsel %vm371, %v3405, 0
        %3425 = vmatprep.subr.bf16.mxu0 0
        %3426 = vmatpush1.bf16.msra.mxu0 %v3418
        %3427 = vmatprep.subr.bf16.mxu0 0
        %3428 = vmatpush1.bf16.msra.mxu0 %v3419
        %3429 = vmatprep.subr.bf16.mxu0 0
        %3430 = vmatpush1.bf16.msra.mxu0 0
        %3431 = vmatprep.subr.bf16.mxu0 0
        %3432 = vmatpush1.bf16.msra.mxu0 0
        %3433 = vmatprep.subr.bf16.mxu0 0
        %3434 = vmatpush1.bf16.msra.mxu0 0
        %3435 = vmatprep.subr.bf16.mxu0 0
        %3436 = vmatpush1.bf16.msra.mxu0 0
        %3437 = vmatprep.subr.bf16.mxu0 0
        %3438 = vmatpush1.bf16.msra.mxu0 0
        %3439 = vmatprep.subr.bf16.mxu0 0
        %3440 = vmatpush1.bf16.msra.mxu0 0
        %3441 = vmatprep.subr.bf16.mxu0 0
        %3442 = vmatpush1.bf16.msra.mxu0 0
        %3443 = vmatprep.subr.bf16.mxu0 0
        %3444 = vmatpush1.bf16.msra.mxu0 0
        %3445 = vmatprep.subr.bf16.mxu0 0
        %3446 = vmatpush1.bf16.msra.mxu0 0
        %3447 = vmatprep.subr.bf16.mxu0 0
        %3448 = vmatpush1.bf16.msra.mxu0 0
        %3449 = vmatprep.subr.bf16.mxu0 0
        %3450 = vmatpush1.bf16.msra.mxu0 0
        %3451 = vmatprep.subr.bf16.mxu0 0
        %3452 = vmatpush1.bf16.msra.mxu0 0
        %3453 = vmatprep.subr.bf16.mxu0 0
        %3454 = vmatpush1.bf16.msra.mxu0 0
        %3455 = vmatprep.subr.bf16.mxu0 0
        %3456 = vmatpush1.bf16.msra.mxu0 0
        %3457 = vmatprep.mubr.bf16.mxu0 0
        %3458 = vmatmul.mubr.bf16.gmra.mrb[0].mxu0 %v3423
        %v3459 = vpop.f32.mrb[0].mxu0
        %v3460 = vadd.f32 %v3409, %v3459
        %v3461 = vpop.f32.mrb[0].mxu0
        %v3462 = vpop.f32.mrb[0].mxu0
        %v3463 = vpop.f32.mrb[0].mxu0
        %3464 = vdwg.mxu0
        %v3465 = vmul.f32 %v3460, %v3460
        %v3466 = vmul.f32 %v3460, %v3465
        %v3467 = vmul.f32 %v3466, 0.044715
        %v3468 = vadd.f32 %v3460, %v3467
        %v3469 = vmul.f32 %v3468, 0.7978846
        %v3470 = vtanh.pop %v3469
        %v3471 = vadd.f32 %v3470, 1.0
        %v3472 = vmul.f32 %v3471, 0.5
        %v3473 = vmul.f32 %v3460, %v3472
        %v3474 = vld [vmem:[%s5 + $0x8] sm:$0xf]
        %v3475 = vld [vmem:[%s5 + $0x18] sm:$0xf]
        %v3476 = vld [vmem:[%s5 + $0x28] sm:$0xf]
        %v3477 = vld [vmem:[%s5 + $0x38] sm:$0xf]
        %v3478 = vld [vmem:[%s5 + $0x48] sm:$0xf]
        %v3479 = vld [vmem:[%s5 + $0x58] sm:$0xf]
        %v3480 = vld [vmem:[%s5 + $0x68] sm:$0xf]
        %v3481 = vld [vmem:[%s5 + $0x78] sm:$0xf]
        %v3482 = vld [vmem:[%s6 + $0x25] sm:$0x1]
        %v3483 = vpack.c.bf16 %v3473, %v3473
        %v3484 = vlaneseq
        %v3485 = vshrl.u32 %v3484, 7
        %v3486 = vsub.s32 0, %v3485
        %v3487 = vrot.slane %v3482, %v3486
        %v3496 = vunpack.c.l.b16 %v3474
        %v3497 = vunpack.c.l.b16 %v3475
        %v3498 = vunpack.c.l.b16 %v3476
        %v3499 = vunpack.c.l.b16 %v3477
        %v3500 = vunpack.c.l.b16 %v3478
        %v3501 = vunpack.c.l.b16 %v3479
        %v3502 = vunpack.c.l.b16 %v3480
        %v3503 = vunpack.c.l.b16 %v3481
        %v3504 = vpack.c.b16 %v3497, %v3496
        %v3505 = vpack.c.b16 %v3499, %v3498
        %v3506 = vpack.c.b16 %v3501, %v3500
        %v3507 = vpack.c.b16 %v3503, %v3502
        %v3513 = vsel %vm1164, %v3483, 0
        %3515 = vmatprep.subr.bf16.mxu0 0
        %3516 = vmatpush1.bf16.msra.mxu0 %v3504
        %3517 = vmatprep.subr.bf16.mxu0 0
        %3518 = vmatpush1.bf16.msra.mxu0 %v3505
        %3519 = vmatprep.subr.bf16.mxu0 0
        %3520 = vmatpush1.bf16.msra.mxu0 %v3506
        %3521 = vmatprep.subr.bf16.mxu0 0
        %3522 = vmatpush1.bf16.msra.mxu0 %v3507
        %3523 = vmatprep.subr.bf16.mxu0 0
        %3524 = vmatpush1.bf16.msra.mxu0 0
        %3525 = vmatprep.subr.bf16.mxu0 0
        %3526 = vmatpush1.bf16.msra.mxu0 0
        %3527 = vmatprep.subr.bf16.mxu0 0
        %3528 = vmatpush1.bf16.msra.mxu0 0
        %3529 = vmatprep.subr.bf16.mxu0 0
        %3530 = vmatpush1.bf16.msra.mxu0 0
        %3531 = vmatprep.subr.bf16.mxu0 0
        %3532 = vmatpush1.bf16.msra.mxu0 0
        %3533 = vmatprep.subr.bf16.mxu0 0
        %3534 = vmatpush1.bf16.msra.mxu0 0
        %3535 = vmatprep.subr.bf16.mxu0 0
        %3536 = vmatpush1.bf16.msra.mxu0 0
        %3537 = vmatprep.subr.bf16.mxu0 0
        %3538 = vmatpush1.bf16.msra.mxu0 0
        %3539 = vmatprep.subr.bf16.mxu0 0
        %3540 = vmatpush1.bf16.msra.mxu0 0
        %3541 = vmatprep.subr.bf16.mxu0 0
        %3542 = vmatpush1.bf16.msra.mxu0 0
        %3543 = vmatprep.subr.bf16.mxu0 0
        %3544 = vmatpush1.bf16.msra.mxu0 0
        %3545 = vmatprep.subr.bf16.mxu0 0
        %3546 = vmatpush1.bf16.msra.mxu0 0
        %3547 = vmatprep.mubr.bf16.mxu0 0
        %3548 = vmatmul.mubr.bf16.gmra.mrb[0].mxu0 %v3513
        %v3549 = vpop.f32.mrb[0].mxu0
        %v3550 = vadd.f32 %v3487, %v3549
        %v3551 = vpop.f32.mrb[0].mxu0
        %v3552 = vpop.f32.mrb[0].mxu0
        %v3553 = vpop.f32.mrb[0].mxu0
        %3554 = vdwg.mxu0
        %v3555 = vadd.f32 %v3374, %v3550
        %v3556 = vld [vmem:[%s6 + $0x26] sm:$0x1]
        %v3557 = vld [vmem:[%s6 + $0x27] sm:$0x1]
        %v3558 = vsel %vm371, %v3555, 0.0
        %3559 = vadd.xlane.f32.xlu0 %v3558
        %v3560 = vpop.xlane.xlu0 %3559
        %v3561 = vmul.f32 %v3560, %v375
        %v3562 = vsub.f32 %v3555, %v3561
        %v3563 = vmul.f32 %v3562, %v3562
        %v3564 = vsel %vm371, %v3563, 0.0
        %3565 = vadd.xlane.f32.xlu0 %v3564
        %v3566 = vpop.xlane.xlu0 %3565
        %v3567 = vmul.f32 %v3566, %v375
        %v3568 = vadd.f32 %v3567, 1e-05
        %v3569 = vrsqrt.pop %v3568
        %v3570 = vmul.f32 %v3562, %v3569
        %v3571 = vlaneseq
        %v3572 = vshrl.u32 %v3571, 7
        %v3573 = vsub.s32 0, %v3572
        %v3574 = vrot.slane %v3556, %v3573
        %v3575 = vmul.f32 %v3570, %v3574
        %v3576 = vlaneseq
        %v3577 = vshrl.u32 %v3576, 7
        %v3578 = vsub.s32 0, %v3577
        %v3579 = vrot.slane %v3557, %v3578
        %v3580 = vadd.f32 %v3575, %v3579
        %v3581 = vld [vmem:[%s4 + $0x30] sm:$0xf]
        %v3582 = vld [vmem:[%s4 + $0x7c] sm:$0xf]
        %v3583 = vld [vmem:[%s4 + $0xc8] sm:$0xf]
        %v3584 = vld [vmem:[%s4 + $0x114] sm:$0xf]
        %v3585 = vld [vmem:[%s6 + $0x28] sm:$0x1]
        %v3586 = vpack.c.bf16 %v3580, %v3580
        %v3587 = vlaneseq
        %v3588 = vshrl.u32 %v3587, 7
        %v3589 = vsub.s32 0, %v3588
        %v3590 = vrot.slane %v3585, %v3589
        %v3595 = vunpack.c.l.b16 %v3581
        %v3596 = vunpack.c.l.b16 %v3582
        %v3597 = vunpack.c.l.b16 %v3583
        %v3598 = vunpack.c.l.b16 %v3584
        %v3599 = vpack.c.b16 %v3596, %v3595
        %v3600 = vpack.c.b16 %v3598, %v3597
        %v3604 = vsel %vm371, %v3586, 0
        %3606 = vmatprep.subr.bf16.mxu0 0
        %3607 = vmatpush1.bf16.msra.mxu0 %v3599
        %3608 = vmatprep.subr.bf16.mxu0 0
        %3609 = vmatpush1.bf16.msra.mxu0 %v3600
        %3610 = vmatprep.subr.bf16.mxu0 0
        %3611 = vmatpush1.bf16.msra.mxu0 0
        %3612 = vmatprep.subr.bf16.mxu0 0
        %3613 = vmatpush1.bf16.msra.mxu0 0
        %3614 = vmatprep.subr.bf16.mxu0 0
        %3615 = vmatpush1.bf16.msra.mxu0 0
        %3616 = vmatprep.subr.bf16.mxu0 0
        %3617 = vmatpush1.bf16.msra.mxu0 0
        %3618 = vmatprep.subr.bf16.mxu0 0
        %3619 = vmatpush1.bf16.msra.mxu0 0
        %3620 = vmatprep.subr.bf16.mxu0 0
        %3621 = vmatpush1.bf16.msra.mxu0 0
        %3622 = vmatprep.subr.bf16.mxu0 0
        %3623 = vmatpush1.bf16.msra.mxu0 0
        %3624 = vmatprep.subr.bf16.mxu0 0
        %3625 = vmatpush1.bf16.msra.mxu0 0
        %3626 = vmatprep.subr.bf16.mxu0 0
        %3627 = vmatpush1.bf16.msra.mxu0 0
        %3628 = vmatprep.subr.bf16.mxu0 0
        %3629 = vmatpush1.bf16.msra.mxu0 0
        %3630 = vmatprep.subr.bf16.mxu0 0
        %3631 = vmatpush1.bf16.msra.mxu0 0
        %3632 = vmatprep.subr.bf16.mxu0 0
        %3633 = vmatpush1.bf16.msra.mxu0 0
        %3634 = vmatprep.subr.bf16.mxu0 0
        %3635 = vmatpush1.bf16.msra.mxu0 0
        %3636 = vmatprep.subr.bf16.mxu0 0
        %3637 = vmatpush1.bf16.msra.mxu0 0
        %3638 = vmatprep.mubr.bf16.mxu0 0
        %3639 = vmatmul.mubr.bf16.gmra.mrb[0].mxu0 %v3604
        %v3640 = vpop.f32.mrb[0].mxu0
        %v3641 = vadd.f32 %v3590, %v3640
        %v3642 = vpop.f32.mrb[0].mxu0
        %v3643 = vpop.f32.mrb[0].mxu0
        %v3644 = vpop.f32.mrb[0].mxu0
        %3645 = vdwg.mxu0
        %3647 = vrot.lane.b32.xlu0 %v3641, 120
        %v3648 = vpop.permute.xlu0 %3647
        %3650 = vrot.lane.b32.xlu0 %v3641, 112
        %v3651 = vpop.permute.xlu0 %3650
        %3653 = vrot.lane.b32.xlu0 %v3641, 104
        %v3654 = vpop.permute.xlu0 %3653
        %v3656 = vpack.c.bf16 %v3641, %v3641
        %v3657 = vpack.c.bf16 %v3648, %v3648
        %v3658 = vpack.c.bf16 %v3651, %v3651
        %v3659 = vpack.c.bf16 %v3654, %v3654
        %3661 = vrot.lane.b32.xlu0 %v3656, 96
        %v3662 = vpop.permute.xlu0 %3661
        %v3664 = vsel %vm509, %v3656, 0
        %v3667 = vsel %vm509, %v3662, 0
        %3669 = vmatprep.subr.bf16.mxu0 0
        %3670 = vmatpush1.bf16.xpose.msra.mxu0 %v3667
        %3671 = vmatprep.subr.bf16.mxu0 0
        %3672 = vmatpush1.bf16.xpose.msra.mxu0 0
        %3673 = vmatprep.subr.bf16.mxu0 0
        %3674 = vmatpush1.bf16.xpose.msra.mxu0 0
        %3675 = vmatprep.subr.bf16.mxu0 0
        %3676 = vmatpush1.bf16.xpose.msra.mxu0 0
        %3677 = vmatprep.subr.bf16.mxu0 0
        %3678 = vmatpush1.bf16.xpose.msra.mxu0 0
        %3679 = vmatprep.subr.bf16.mxu0 0
        %3680 = vmatpush1.bf16.xpose.msra.mxu0 0
        %3681 = vmatprep.subr.bf16.mxu0 0
        %3682 = vmatpush1.bf16.xpose.msra.mxu0 0
        %3683 = vmatprep.subr.bf16.mxu0 0
        %3684 = vmatpush1.bf16.xpose.msra.mxu0 0
        %3685 = vmatprep.subr.bf16.mxu0 0
        %3686 = vmatpush1.bf16.xpose.msra.mxu0 0
        %3687 = vmatprep.subr.bf16.mxu0 0
        %3688 = vmatpush1.bf16.xpose.msra.mxu0 0
        %3689 = vmatprep.subr.bf16.mxu0 0
        %3690 = vmatpush1.bf16.xpose.msra.mxu0 0
        %3691 = vmatprep.subr.bf16.mxu0 0
        %3692 = vmatpush1.bf16.xpose.msra.mxu0 0
        %3693 = vmatprep.subr.bf16.mxu0 0
        %3694 = vmatpush1.bf16.xpose.msra.mxu0 0
        %3695 = vmatprep.subr.bf16.mxu0 0
        %3696 = vmatpush1.bf16.xpose.msra.mxu0 0
        %3697 = vmatprep.subr.bf16.mxu0 0
        %3698 = vmatpush1.bf16.xpose.msra.mxu0 0
        %3699 = vmatprep.subr.bf16.mxu0 0
        %3700 = vmatpush1.bf16.xpose.msra.mxu0 0
        %3701 = vmatprep.mubr.bf16.mxu0 0
        %3702 = vmatmul.mubr.bf16.gmra.mrb[0].mxu0 %v3664
        %v3703 = vpop.f32.mrb[0].mxu0
        %v3704 = vadd.f32 %v367, %v3703
        %v3705 = vpop.f32.mrb[0].mxu0
        %v3706 = vpop.f32.mrb[0].mxu0
        %v3707 = vpop.f32.mrb[0].mxu0
        %3708 = vdwg.mxu0
        %3710 = vrot.lane.b32.xlu0 %v3657, 96
        %v3711 = vpop.permute.xlu0 %3710
        %v3713 = vsel %vm509, %v3657, 0
        %v3716 = vsel %vm509, %v3711, 0
        %3718 = vmatprep.subr.bf16.mxu0 0
        %3719 = vmatpush1.bf16.xpose.msra.mxu0 %v3716
        %3720 = vmatprep.subr.bf16.mxu0 0
        %3721 = vmatpush1.bf16.xpose.msra.mxu0 0
        %3722 = vmatprep.subr.bf16.mxu0 0
        %3723 = vmatpush1.bf16.xpose.msra.mxu0 0
        %3724 = vmatprep.subr.bf16.mxu0 0
        %3725 = vmatpush1.bf16.xpose.msra.mxu0 0
        %3726 = vmatprep.subr.bf16.mxu0 0
        %3727 = vmatpush1.bf16.xpose.msra.mxu0 0
        %3728 = vmatprep.subr.bf16.mxu0 0
        %3729 = vmatpush1.bf16.xpose.msra.mxu0 0
        %3730 = vmatprep.subr.bf16.mxu0 0
        %3731 = vmatpush1.bf16.xpose.msra.mxu0 0
        %3732 = vmatprep.subr.bf16.mxu0 0
        %3733 = vmatpush1.bf16.xpose.msra.mxu0 0
        %3734 = vmatprep.subr.bf16.mxu0 0
        %3735 = vmatpush1.bf16.xpose.msra.mxu0 0
        %3736 = vmatprep.subr.bf16.mxu0 0
        %3737 = vmatpush1.bf16.xpose.msra.mxu0 0
        %3738 = vmatprep.subr.bf16.mxu0 0
        %3739 = vmatpush1.bf16.xpose.msra.mxu0 0
        %3740 = vmatprep.subr.bf16.mxu0 0
        %3741 = vmatpush1.bf16.xpose.msra.mxu0 0
        %3742 = vmatprep.subr.bf16.mxu0 0
        %3743 = vmatpush1.bf16.xpose.msra.mxu0 0
        %3744 = vmatprep.subr.bf16.mxu0 0
        %3745 = vmatpush1.bf16.xpose.msra.mxu0 0
        %3746 = vmatprep.subr.bf16.mxu0 0
        %3747 = vmatpush1.bf16.xpose.msra.mxu0 0
        %3748 = vmatprep.subr.bf16.mxu0 0
        %3749 = vmatpush1.bf16.xpose.msra.mxu0 0
        %3750 = vmatprep.mubr.bf16.mxu0 0
        %3751 = vmatmul.mubr.bf16.gmra.mrb[0].mxu0 %v3713
        %v3752 = vpop.f32.mrb[0].mxu0
        %v3753 = vadd.f32 %v367, %v3752
        %v3754 = vpop.f32.mrb[0].mxu0
        %v3755 = vpop.f32.mrb[0].mxu0
        %v3756 = vpop.f32.mrb[0].mxu0
        %3757 = vdwg.mxu0
        %3759 = vrot.lane.b32.xlu0 %v3658, 96
        %v3760 = vpop.permute.xlu0 %3759
        %v3762 = vsel %vm509, %v3658, 0
        %v3765 = vsel %vm509, %v3760, 0
        %3767 = vmatprep.subr.bf16.mxu0 0
        %3768 = vmatpush1.bf16.xpose.msra.mxu0 %v3765
        %3769 = vmatprep.subr.bf16.mxu0 0
        %3770 = vmatpush1.bf16.xpose.msra.mxu0 0
        %3771 = vmatprep.subr.bf16.mxu0 0
        %3772 = vmatpush1.bf16.xpose.msra.mxu0 0
        %3773 = vmatprep.subr.bf16.mxu0 0
        %3774 = vmatpush1.bf16.xpose.msra.mxu0 0
        %3775 = vmatprep.subr.bf16.mxu0 0
        %3776 = vmatpush1.bf16.xpose.msra.mxu0 0
        %3777 = vmatprep.subr.bf16.mxu0 0
        %3778 = vmatpush1.bf16.xpose.msra.mxu0 0
        %3779 = vmatprep.subr.bf16.mxu0 0
        %3780 = vmatpush1.bf16.xpose.msra.mxu0 0
        %3781 = vmatprep.subr.bf16.mxu0 0
        %3782 = vmatpush1.bf16.xpose.msra.mxu0 0
        %3783 = vmatprep.subr.bf16.mxu0 0
        %3784 = vmatpush1.bf16.xpose.msra.mxu0 0
        %3785 = vmatprep.subr.bf16.mxu0 0
        %3786 = vmatpush1.bf16.xpose.msra.mxu0 0
        %3787 = vmatprep.subr.bf16.mxu0 0
        %3788 = vmatpush1.bf16.xpose.msra.mxu0 0
        %3789 = vmatprep.subr.bf16.mxu0 0
        %3790 = vmatpush1.bf16.xpose.msra.mxu0 0
        %3791 = vmatprep.subr.bf16.mxu0 0
        %3792 = vmatpush1.bf16.xpose.msra.mxu0 0
        %3793 = vmatprep.subr.bf16.mxu0 0
        %3794 = vmatpush1.bf16.xpose.msra.mxu0 0
        %3795 = vmatprep.subr.bf16.mxu0 0
        %3796 = vmatpush1.bf16.xpose.msra.mxu0 0
        %3797 = vmatprep.subr.bf16.mxu0 0
        %3798 = vmatpush1.bf16.xpose.msra.mxu0 0
        %3799 = vmatprep.mubr.bf16.mxu0 0
        %3800 = vmatmul.mubr.bf16.gmra.mrb[0].mxu0 %v3762
        %v3801 = vpop.f32.mrb[0].mxu0
        %v3802 = vadd.f32 %v367, %v3801
        %v3803 = vpop.f32.mrb[0].mxu0
        %v3804 = vpop.f32.mrb[0].mxu0
        %v3805 = vpop.f32.mrb[0].mxu0
        %3806 = vdwg.mxu0
        %3808 = vrot.lane.b32.xlu0 %v3659, 96
        %v3809 = vpop.permute.xlu0 %3808
        %v3811 = vsel %vm509, %v3659, 0
        %v3814 = vsel %vm509, %v3809, 0
        %3816 = vmatprep.subr.bf16.mxu0 0
        %3817 = vmatpush1.bf16.xpose.msra.mxu0 %v3814
        %3818 = vmatprep.subr.bf16.mxu0 0
        %3819 = vmatpush1.bf16.xpose.msra.mxu0 0
        %3820 = vmatprep.subr.bf16.mxu0 0
        %3821 = vmatpush1.bf16.xpose.msra.mxu0 0
        %3822 = vmatprep.subr.bf16.mxu0 0
        %3823 = vmatpush1.bf16.xpose.msra.mxu0 0
        %3824 = vmatprep.subr.bf16.mxu0 0
        %3825 = vmatpush1.bf16.xpose.msra.mxu0 0
        %3826 = vmatprep.subr.bf16.mxu0 0
        %3827 = vmatpush1.bf16.xpose.msra.mxu0 0
        %3828 = vmatprep.subr.bf16.mxu0 0
        %3829 = vmatpush1.bf16.xpose.msra.mxu0 0
        %3830 = vmatprep.subr.bf16.mxu0 0
        %3831 = vmatpush1.bf16.xpose.msra.mxu0 0
        %3832 = vmatprep.subr.bf16.mxu0 0
        %3833 = vmatpush1.bf16.xpose.msra.mxu0 0
        %3834 = vmatprep.subr.bf16.mxu0 0
        %3835 = vmatpush1.bf16.xpose.msra.mxu0 0
        %3836 = vmatprep.subr.bf16.mxu0 0
        %3837 = vmatpush1.bf16.xpose.msra.mxu0 0
        %3838 = vmatprep.subr.bf16.mxu0 0
        %3839 = vmatpush1.bf16.xpose.msra.mxu0 0
        %3840 = vmatprep.subr.bf16.mxu0 0
        %3841 = vmatpush1.bf16.xpose.msra.mxu0 0
        %3842 = vmatprep.subr.bf16.mxu0 0
        %3843 = vmatpush1.bf16.xpose.msra.mxu0 0
        %3844 = vmatprep.subr.bf16.mxu0 0
        %3845 = vmatpush1.bf16.xpose.msra.mxu0 0
        %3846 = vmatprep.subr.bf16.mxu0 0
        %3847 = vmatpush1.bf16.xpose.msra.mxu0 0
        %3848 = vmatprep.mubr.bf16.mxu0 0
        %3849 = vmatmul.mubr.bf16.gmra.mrb[0].mxu0 %v3811
        %v3850 = vpop.f32.mrb[0].mxu0
        %v3851 = vadd.f32 %v367, %v3850
        %v3852 = vpop.f32.mrb[0].mxu0
        %v3853 = vpop.f32.mrb[0].mxu0
        %v3854 = vpop.f32.mrb[0].mxu0
        %3855 = vdwg.mxu0
        %v3856 = vsel %vm509, %v3704, -inf
        %3857 = vmax.xlane.f32.xlu0 %v3856
        %v3858 = vpop.xlane.xlu0 %3857
        %v3859 = vsel %vm509, %v3753, -inf
        %3860 = vmax.xlane.f32.xlu0 %v3859
        %v3861 = vpop.xlane.xlu0 %3860
        %v3862 = vsel %vm509, %v3802, -inf
        %3863 = vmax.xlane.f32.xlu0 %v3862
        %v3864 = vpop.xlane.xlu0 %3863
        %v3865 = vsel %vm509, %v3851, -inf
        %3866 = vmax.xlane.f32.xlu0 %v3865
        %v3867 = vpop.xlane.xlu0 %3866
        %v3868 = vsub.f32 %v3704, %v3858
        %v3869 = vsub.f32 %v3753, %v3861
        %v3870 = vsub.f32 %v3802, %v3864
        %v3871 = vsub.f32 %v3851, %v3867
        %v3872 = vmul.f32 %v3868, 1.442695
        %v3873 = vpow.pop %v3872
        %v3874 = vmul.f32 %v3869, 1.442695
        %v3875 = vpow.pop %v3874
        %v3876 = vmul.f32 %v3870, 1.442695
        %v3877 = vpow.pop %v3876
        %v3878 = vmul.f32 %v3871, 1.442695
        %v3879 = vpow.pop %v3878
        %v3880 = vsel %vm509, %v3873, 0.0
        %3881 = vadd.xlane.f32.xlu0 %v3880
        %v3882 = vpop.xlane.xlu0 %3881
        %v3883 = vsel %vm509, %v3875, 0.0
        %3884 = vadd.xlane.f32.xlu0 %v3883
        %v3885 = vpop.xlane.xlu0 %3884
        %v3886 = vsel %vm509, %v3877, 0.0
        %3887 = vadd.xlane.f32.xlu0 %v3886
        %v3888 = vpop.xlane.xlu0 %3887
        %v3889 = vsel %vm509, %v3879, 0.0
        %3890 = vadd.xlane.f32.xlu0 %v3889
        %v3891 = vpop.xlane.xlu0 %3890
        %v3892 = vrcp.pop %v3882
        %v3893 = vrcp.pop %v3885
        %v3894 = vrcp.pop %v3888
        %v3895 = vrcp.pop %v3891
        %v3896 = vmul.f32 %v3873, %v3892
        %v3897 = vmul.f32 %v3875, %v3893
        %v3898 = vmul.f32 %v3877, %v3894
        %v3899 = vmul.f32 %v3879, %v3895
        %v3900 = vpack.c.bf16 %v3896, %v3896
        %v3901 = vpack.c.bf16 %v3897, %v3897
        %v3902 = vpack.c.bf16 %v3898, %v3898
        %v3903 = vpack.c.bf16 %v3899, %v3899
        %3904 = vrot.lane.b32.xlu0 %v3656, 64
        %v3905 = vpop.permute.xlu0 %3904
        %v3907 = vsel %vm509, %v3900, 0
        %v3910 = vsel %vm756, %v3905, 0
        %3912 = vmatprep.subr.bf16.mxu0 0
        %3913 = vmatpush1.bf16.msra.mxu0 %v3910
        %3914 = vmatprep.subr.bf16.mxu0 0
        %3915 = vmatpush1.bf16.msra.mxu0 0
        %3916 = vmatprep.subr.bf16.mxu0 0
        %3917 = vmatpush1.bf16.msra.mxu0 0
        %3918 = vmatprep.subr.bf16.mxu0 0
        %3919 = vmatpush1.bf16.msra.mxu0 0
        %3920 = vmatprep.subr.bf16.mxu0 0
        %3921 = vmatpush1.bf16.msra.mxu0 0
        %3922 = vmatprep.subr.bf16.mxu0 0
        %3923 = vmatpush1.bf16.msra.mxu0 0
        %3924 = vmatprep.subr.bf16.mxu0 0
        %3925 = vmatpush1.bf16.msra.mxu0 0
        %3926 = vmatprep.subr.bf16.mxu0 0
        %3927 = vmatpush1.bf16.msra.mxu0 0
        %3928 = vmatprep.subr.bf16.mxu0 0
        %3929 = vmatpush1.bf16.msra.mxu0 0
        %3930 = vmatprep.subr.bf16.mxu0 0
        %3931 = vmatpush1.bf16.msra.mxu0 0
        %3932 = vmatprep.subr.bf16.mxu0 0
        %3933 = vmatpush1.bf16.msra.mxu0 0
        %3934 = vmatprep.subr.bf16.mxu0 0
        %3935 = vmatpush1.bf16.msra.mxu0 0
        %3936 = vmatprep.subr.bf16.mxu0 0
        %3937 = vmatpush1.bf16.msra.mxu0 0
        %3938 = vmatprep.subr.bf16.mxu0 0
        %3939 = vmatpush1.bf16.msra.mxu0 0
        %3940 = vmatprep.subr.bf16.mxu0 0
        %3941 = vmatpush1.bf16.msra.mxu0 0
        %3942 = vmatprep.subr.bf16.mxu0 0
        %3943 = vmatpush1.bf16.msra.mxu0 0
        %3944 = vmatprep.mubr.bf16.mxu0 0
        %3945 = vmatmul.mubr.bf16.gmra.mrb[0].mxu0 %v3907
        %v3946 = vpop.f32.mrb[0].mxu0
        %v3947 = vadd.f32 0.0, %v3946
        %v3948 = vpop.f32.mrb[0].mxu0
        %v3949 = vpop.f32.mrb[0].mxu0
        %v3950 = vpop.f32.mrb[0].mxu0
        %3951 = vdwg.mxu0
        %3952 = vrot.lane.b32.xlu0 %v3657, 64
        %v3953 = vpop.permute.xlu0 %3952
        %v3955 = vsel %vm509, %v3901, 0
        %v3958 = vsel %vm756, %v3953, 0
        %3960 = vmatprep.subr.bf16.mxu0 0
        %3961 = vmatpush1.bf16.msra.mxu0 %v3958
        %3962 = vmatprep.subr.bf16.mxu0 0
        %3963 = vmatpush1.bf16.msra.mxu0 0
        %3964 = vmatprep.subr.bf16.mxu0 0
        %3965 = vmatpush1.bf16.msra.mxu0 0
        %3966 = vmatprep.subr.bf16.mxu0 0
        %3967 = vmatpush1.bf16.msra.mxu0 0
        %3968 = vmatprep.subr.bf16.mxu0 0
        %3969 = vmatpush1.bf16.msra.mxu0 0
        %3970 = vmatprep.subr.bf16.mxu0 0
        %3971 = vmatpush1.bf16.msra.mxu0 0
        %3972 = vmatprep.subr.bf16.mxu0 0
        %3973 = vmatpush1.bf16.msra.mxu0 0
        %3974 = vmatprep.subr.bf16.mxu0 0
        %3975 = vmatpush1.bf16.msra.mxu0 0
        %3976 = vmatprep.subr.bf16.mxu0 0
        %3977 = vmatpush1.bf16.msra.mxu0 0
        %3978 = vmatprep.subr.bf16.mxu0 0
        %3979 = vmatpush1.bf16.msra.mxu0 0
        %3980 = vmatprep.subr.bf16.mxu0 0
        %3981 = vmatpush1.bf16.msra.mxu0 0
        %3982 = vmatprep.subr.bf16.mxu0 0
        %3983 = vmatpush1.bf16.msra.mxu0 0
        %3984 = vmatprep.subr.bf16.mxu0 0
        %3985 = vmatpush1.bf16.msra.mxu0 0
        %3986 = vmatprep.subr.bf16.mxu0 0
        %3987 = vmatpush1.bf16.msra.mxu0 0
        %3988 = vmatprep.subr.bf16.mxu0 0
        %3989 = vmatpush1.bf16.msra.mxu0 0
        %3990 = vmatprep.subr.bf16.mxu0 0
        %3991 = vmatpush1.bf16.msra.mxu0 0
        %3992 = vmatprep.mubr.bf16.mxu0 0
        %3993 = vmatmul.mubr.bf16.gmra.mrb[0].mxu0 %v3955
        %v3994 = vpop.f32.mrb[0].mxu0
        %v3995 = vadd.f32 0.0, %v3994
        %v3996 = vpop.f32.mrb[0].mxu0
        %v3997 = vpop.f32.mrb[0].mxu0
        %v3998 = vpop.f32.mrb[0].mxu0
        %3999 = vdwg.mxu0
        %4000 = vrot.lane.b32.xlu0 %v3658, 64
        %v4001 = vpop.permute.xlu0 %4000
        %v4003 = vsel %vm509, %v3902, 0
        %v4006 = vsel %vm756, %v4001, 0
        %4008 = vmatprep.subr.bf16.mxu0 0
        %4009 = vmatpush1.bf16.msra.mxu0 %v4006
        %4010 = vmatprep.subr.bf16.mxu0 0
        %4011 = vmatpush1.bf16.msra.mxu0 0
        %4012 = vmatprep.subr.bf16.mxu0 0
        %4013 = vmatpush1.bf16.msra.mxu0 0
        %4014 = vmatprep.subr.bf16.mxu0 0
        %4015 = vmatpush1.bf16.msra.mxu0 0
        %4016 = vmatprep.subr.bf16.mxu0 0
        %4017 = vmatpush1.bf16.msra.mxu0 0
        %4018 = vmatprep.subr.bf16.mxu0 0
        %4019 = vmatpush1.bf16.msra.mxu0 0
        %4020 = vmatprep.subr.bf16.mxu0 0
        %4021 = vmatpush1.bf16.msra.mxu0 0
        %4022 = vmatprep.subr.bf16.mxu0 0
        %4023 = vmatpush1.bf16.msra.mxu0 0
        %4024 = vmatprep.subr.bf16.mxu0 0
        %4025 = vmatpush1.bf16.msra.mxu0 0
        %4026 = vmatprep.subr.bf16.mxu0 0
        %4027 = vmatpush1.bf16.msra.mxu0 0
        %4028 = vmatprep.subr.bf16.mxu0 0
        %4029 = vmatpush1.bf16.msra.mxu0 0
        %4030 = vmatprep.subr.bf16.mxu0 0
        %4031 = vmatpush1.bf16.msra.mxu0 0
        %4032 = vmatprep.subr.bf16.mxu0 0
        %4033 = vmatpush1.bf16.msra.mxu0 0
        %4034 = vmatprep.subr.bf16.mxu0 0
        %4035 = vmatpush1.bf16.msra.mxu0 0
        %4036 = vmatprep.subr.bf16.mxu0 0
        %4037 = vmatpush1.bf16.msra.mxu0 0
        %4038 = vmatprep.subr.bf16.mxu0 0
        %4039 = vmatpush1.bf16.msra.mxu0 0
        %4040 = vmatprep.mubr.bf16.mxu0 0
        %4041 = vmatmul.mubr.bf16.gmra.mrb[0].mxu0 %v4003
        %v4042 = vpop.f32.mrb[0].mxu0
        %v4043 = vadd.f32 0.0, %v4042
        %v4044 = vpop.f32.mrb[0].mxu0
        %v4045 = vpop.f32.mrb[0].mxu0
        %v4046 = vpop.f32.mrb[0].mxu0
        %4047 = vdwg.mxu0
        %4048 = vrot.lane.b32.xlu0 %v3659, 64
        %v4049 = vpop.permute.xlu0 %4048
        %v4051 = vsel %vm509, %v3903, 0
        %v4054 = vsel %vm756, %v4049, 0
        %4056 = vmatprep.subr.bf16.mxu0 0
        %4057 = vmatpush1.bf16.msra.mxu0 %v4054
        %4058 = vmatprep.subr.bf16.mxu0 0
        %4059 = vmatpush1.bf16.msra.mxu0 0
        %4060 = vmatprep.subr.bf16.mxu0 0
        %4061 = vmatpush1.bf16.msra.mxu0 0
        %4062 = vmatprep.subr.bf16.mxu0 0
        %4063 = vmatpush1.bf16.msra.mxu0 0
        %4064 = vmatprep.subr.bf16.mxu0 0
        %4065 = vmatpush1.bf16.msra.mxu0 0
        %4066 = vmatprep.subr.bf16.mxu0 0
        %4067 = vmatpush1.bf16.msra.mxu0 0
        %4068 = vmatprep.subr.bf16.mxu0 0
        %4069 = vmatpush1.bf16.msra.mxu0 0
        %4070 = vmatprep.subr.bf16.mxu0 0
        %4071 = vmatpush1.bf16.msra.mxu0 0
        %4072 = vmatprep.subr.bf16.mxu0 0
        %4073 = vmatpush1.bf16.msra.mxu0 0
        %4074 = vmatprep.subr.bf16.mxu0 0
        %4075 = vmatpush1.bf16.msra.mxu0 0
        %4076 = vmatprep.subr.bf16.mxu0 0
        %4077 = vmatpush1.bf16.msra.mxu0 0
        %4078 = vmatprep.subr.bf16.mxu0 0
        %4079 = vmatpush1.bf16.msra.mxu0 0
        %4080 = vmatprep.subr.bf16.mxu0 0
        %4081 = vmatpush1.bf16.msra.mxu0 0
        %4082 = vmatprep.subr.bf16.mxu0 0
        %4083 = vmatpush1.bf16.msra.mxu0 0
        %4084 = vmatprep.subr.bf16.mxu0 0
        %4085 = vmatpush1.bf16.msra.mxu0 0
        %4086 = vmatprep.subr.bf16.mxu0 0
        %4087 = vmatpush1.bf16.msra.mxu0 0
        %4088 = vmatprep.mubr.bf16.mxu0 0
        %4089 = vmatmul.mubr.bf16.gmra.mrb[0].mxu0 %v4051
        %v4090 = vpop.f32.mrb[0].mxu0
        %v4091 = vadd.f32 0.0, %v4090
        %v4092 = vpop.f32.mrb[0].mxu0
        %v4093 = vpop.f32.mrb[0].mxu0
        %v4094 = vpop.f32.mrb[0].mxu0
        %4095 = vdwg.mxu0
        %4097 = vrot.lane.b32.xlu0 %v3995, 8
        %v4098 = vpop.permute.xlu0 %4097
        %4101 = vrot.lane.b32.xlu0 %v4043, 16
        %v4102 = vpop.permute.xlu0 %4101
        %4105 = vrot.lane.b32.xlu0 %v4091, 24
        %v4106 = vpop.permute.xlu0 %4105
        %v4108 = vsel %vm509, %v3947, %v4098
        %v4109 = vsel %vm957, %v4108, %v4102
        %v4110 = vsel %vm959, %v4109, %v4106
        %v4111 = vld [vmem:[%s4 + $0x34] sm:$0xf]
        %v4112 = vld [vmem:[%s4 + $0x80] sm:$0xf]
        %v4113 = vld [vmem:[%s4 + $0xcc] sm:$0xf]
        %v4114 = vld [vmem:[%s4 + $0x118] sm:$0xf]
        %v4115 = vld [vmem:[%s6 + $0x29] sm:$0x1]
        %v4116 = vpack.c.bf16 %v4110, %v4110
        %v4117 = vlaneseq
        %v4118 = vshrl.u32 %v4117, 7
        %v4119 = vsub.s32 0, %v4118
        %v4120 = vrot.slane %v4115, %v4119
        %v4125 = vunpack.c.l.b16 %v4111
        %v4126 = vunpack.c.l.b16 %v4112
        %v4127 = vunpack.c.l.b16 %v4113
        %v4128 = vunpack.c.l.b16 %v4114
        %v4129 = vpack.c.b16 %v4126, %v4125
        %v4130 = vpack.c.b16 %v4128, %v4127
        %v4134 = vsel %vm371, %v4116, 0
        %4136 = vmatprep.subr.bf16.mxu0 0
        %4137 = vmatpush1.bf16.msra.mxu0 %v4129
        %4138 = vmatprep.subr.bf16.mxu0 0
        %4139 = vmatpush1.bf16.msra.mxu0 %v4130
        %4140 = vmatprep.subr.bf16.mxu0 0
        %4141 = vmatpush1.bf16.msra.mxu0 0
        %4142 = vmatprep.subr.bf16.mxu0 0
        %4143 = vmatpush1.bf16.msra.mxu0 0
        %4144 = vmatprep.subr.bf16.mxu0 0
        %4145 = vmatpush1.bf16.msra.mxu0 0
        %4146 = vmatprep.subr.bf16.mxu0 0
        %4147 = vmatpush1.bf16.msra.mxu0 0
        %4148 = vmatprep.subr.bf16.mxu0 0
        %4149 = vmatpush1.bf16.msra.mxu0 0
        %4150 = vmatprep.subr.bf16.mxu0 0
        %4151 = vmatpush1.bf16.msra.mxu0 0
        %4152 = vmatprep.subr.bf16.mxu0 0
        %4153 = vmatpush1.bf16.msra.mxu0 0
        %4154 = vmatprep.subr.bf16.mxu0 0
        %4155 = vmatpush1.bf16.msra.mxu0 0
        %4156 = vmatprep.subr.bf16.mxu0 0
        %4157 = vmatpush1.bf16.msra.mxu0 0
        %4158 = vmatprep.subr.bf16.mxu0 0
        %4159 = vmatpush1.bf16.msra.mxu0 0
        %4160 = vmatprep.subr.bf16.mxu0 0
        %4161 = vmatpush1.bf16.msra.mxu0 0
        %4162 = vmatprep.subr.bf16.mxu0 0
        %4163 = vmatpush1.bf16.msra.mxu0 0
        %4164 = vmatprep.subr.bf16.mxu0 0
        %4165 = vmatpush1.bf16.msra.mxu0 0
        %4166 = vmatprep.subr.bf16.mxu0 0
        %4167 = vmatpush1.bf16.msra.mxu0 0
        %4168 = vmatprep.mubr.bf16.mxu0 0
        %4169 = vmatmul.mubr.bf16.gmra.mrb[0].mxu0 %v4134
        %v4170 = vpop.f32.mrb[0].mxu0
        %v4171 = vadd.f32 %v4120, %v4170
        %v4172 = vpop.f32.mrb[0].mxu0
        %v4173 = vpop.f32.mrb[0].mxu0
        %v4174 = vpop.f32.mrb[0].mxu0
        %4175 = vdwg.mxu0
        %v4176 = vadd.f32 %v3555, %v4171
        %v4177 = vld [vmem:[%s6 + $0x2a] sm:$0x1]
        %v4178 = vld [vmem:[%s6 + $0x2b] sm:$0x1]
        %v4179 = vsel %vm371, %v4176, 0.0
        %4180 = vadd.xlane.f32.xlu0 %v4179
        %v4181 = vpop.xlane.xlu0 %4180
        %v4182 = vmul.f32 %v4181, %v375
        %v4183 = vsub.f32 %v4176, %v4182
        %v4184 = vmul.f32 %v4183, %v4183
        %v4185 = vsel %vm371, %v4184, 0.0
        %4186 = vadd.xlane.f32.xlu0 %v4185
        %v4187 = vpop.xlane.xlu0 %4186
        %v4188 = vmul.f32 %v4187, %v375
        %v4189 = vadd.f32 %v4188, 1e-05
        %v4190 = vrsqrt.pop %v4189
        %v4191 = vmul.f32 %v4183, %v4190
        %v4192 = vlaneseq
        %v4193 = vshrl.u32 %v4192, 7
        %v4194 = vsub.s32 0, %v4193
        %v4195 = vrot.slane %v4177, %v4194
        %v4196 = vmul.f32 %v4191, %v4195
        %v4197 = vlaneseq
        %v4198 = vshrl.u32 %v4197, 7
        %v4199 = vsub.s32 0, %v4198
        %v4200 = vrot.slane %v4178, %v4199
        %v4201 = vadd.f32 %v4196, %v4200
        %v4202 = vld [vmem:[%s4 + $0x38] sm:$0xf]
        %v4203 = vld [vmem:[%s4 + $0x84] sm:$0xf]
        %v4204 = vld [vmem:[%s4 + $0xd0] sm:$0xf]
        %v4205 = vld [vmem:[%s4 + $0x11c] sm:$0xf]
        %v4206 = vld [vmem:[%s6 + $0x2c] sm:$0x1]
        %v4207 = vpack.c.bf16 %v4201, %v4201
        %v4208 = vlaneseq
        %v4209 = vshrl.u32 %v4208, 7
        %v4210 = vsub.s32 0, %v4209
        %v4211 = vrot.slane %v4206, %v4210
        %v4216 = vunpack.c.l.b16 %v4202
        %v4217 = vunpack.c.l.b16 %v4203
        %v4218 = vunpack.c.l.b16 %v4204
        %v4219 = vunpack.c.l.b16 %v4205
        %v4220 = vpack.c.b16 %v4217, %v4216
        %v4221 = vpack.c.b16 %v4219, %v4218
        %v4225 = vsel %vm371, %v4207, 0
        %4227 = vmatprep.subr.bf16.mxu0 0
        %4228 = vmatpush1.bf16.msra.mxu0 %v4220
        %4229 = vmatprep.subr.bf16.mxu0 0
        %4230 = vmatpush1.bf16.msra.mxu0 %v4221
        %4231 = vmatprep.subr.bf16.mxu0 0
        %4232 = vmatpush1.bf16.msra.mxu0 0
        %4233 = vmatprep.subr.bf16.mxu0 0
        %4234 = vmatpush1.bf16.msra.mxu0 0
        %4235 = vmatprep.subr.bf16.mxu0 0
        %4236 = vmatpush1.bf16.msra.mxu0 0
        %4237 = vmatprep.subr.bf16.mxu0 0
        %4238 = vmatpush1.bf16.msra.mxu0 0
        %4239 = vmatprep.subr.bf16.mxu0 0
        %4240 = vmatpush1.bf16.msra.mxu0 0
        %4241 = vmatprep.subr.bf16.mxu0 0
        %4242 = vmatpush1.bf16.msra.mxu0 0
        %4243 = vmatprep.subr.bf16.mxu0 0
        %4244 = vmatpush1.bf16.msra.mxu0 0
        %4245 = vmatprep.subr.bf16.mxu0 0
        %4246 = vmatpush1.bf16.msra.mxu0 0
        %4247 = vmatprep.subr.bf16.mxu0 0
        %4248 = vmatpush1.bf16.msra.mxu0 0
        %4249 = vmatprep.subr.bf16.mxu0 0
        %4250 = vmatpush1.bf16.msra.mxu0 0
        %4251 = vmatprep.subr.bf16.mxu0 0
        %4252 = vmatpush1.bf16.msra.mxu0 0
        %4253 = vmatprep.subr.bf16.mxu0 0
        %4254 = vmatpush1.bf16.msra.mxu0 0
        %4255 = vmatprep.subr.bf16.mxu0 0
        %4256 = vmatpush1.bf16.msra.mxu0 0
        %4257 = vmatprep.subr.bf16.mxu0 0
        %4258 = vmatpush1.bf16.msra.mxu0 0
        %4259 = vmatprep.mubr.bf16.mxu0 0
        %4260 = vmatmul.mubr.bf16.gmra.mrb[0].mxu0 %v4225
        %v4261 = vpop.f32.mrb[0].mxu0
        %v4262 = vadd.f32 %v4211, %v4261
        %v4263 = vpop.f32.mrb[0].mxu0
        %v4264 = vpop.f32.mrb[0].mxu0
        %v4265 = vpop.f32.mrb[0].mxu0
        %4266 = vdwg.mxu0
        %v4267 = vld [vmem:[%s4 + $0x3c] sm:$0xf]
        %v4268 = vld [vmem:[%s4 + $0x88] sm:$0xf]
        %v4269 = vld [vmem:[%s4 + $0xd4] sm:$0xf]
        %v4270 = vld [vmem:[%s4 + $0x120] sm:$0xf]
        %v4271 = vld [vmem:[%s6 + $0x2d] sm:$0x1]
        %v4272 = vlaneseq
        %v4273 = vshrl.u32 %v4272, 7
        %v4274 = vsub.s32 0, %v4273
        %v4275 = vrot.slane %v4271, %v4274
        %v4280 = vunpack.c.l.b16 %v4267
        %v4281 = vunpack.c.l.b16 %v4268
        %v4282 = vunpack.c.l.b16 %v4269
        %v4283 = vunpack.c.l.b16 %v4270
        %v4284 = vpack.c.b16 %v4281, %v4280
        %v4285 = vpack.c.b16 %v4283, %v4282
        %4288 = vmatprep.subr.bf16.mxu0 0
        %4289 = vmatpush1.bf16.msra.mxu0 %v4284
        %4290 = vmatprep.subr.bf16.mxu0 0
        %4291 = vmatpush1.bf16.msra.mxu0 %v4285
        %4292 = vmatprep.subr.bf16.mxu0 0
        %4293 = vmatpush1.bf16.msra.mxu0 0
        %4294 = vmatprep.subr.bf16.mxu0 0
        %4295 = vmatpush1.bf16.msra.mxu0 0
        %4296 = vmatprep.subr.bf16.mxu0 0
        %4297 = vmatpush1.bf16.msra.mxu0 0
        %4298 = vmatprep.subr.bf16.mxu0 0
        %4299 = vmatpush1.bf16.msra.mxu0 0
        %4300 = vmatprep.subr.bf16.mxu0 0
        %4301 = vmatpush1.bf16.msra.mxu0 0
        %4302 = vmatprep.subr.bf16.mxu0 0
        %4303 = vmatpush1.bf16.msra.mxu0 0
        %4304 = vmatprep.subr.bf16.mxu0 0
        %4305 = vmatpush1.bf16.msra.mxu0 0
        %4306 = vmatprep.subr.bf16.mxu0 0
        %4307 = vmatpush1.bf16.msra.mxu0 0
        %4308 = vmatprep.subr.bf16.mxu0 0
        %4309 = vmatpush1.bf16.msra.mxu0 0
        %4310 = vmatprep.subr.bf16.mxu0 0
        %4311 = vmatpush1.bf16.msra.mxu0 0
        %4312 = vmatprep.subr.bf16.mxu0 0
        %4313 = vmatpush1.bf16.msra.mxu0 0
        %4314 = vmatprep.subr.bf16.mxu0 0
        %4315 = vmatpush1.bf16.msra.mxu0 0
        %4316 = vmatprep.subr.bf16.mxu0 0
        %4317 = vmatpush1.bf16.msra.mxu0 0
        %4318 = vmatprep.subr.bf16.mxu0 0
        %4319 = vmatpush1.bf16.msra.mxu0 0
        %4320 = vmatprep.mubr.bf16.mxu0 0
        %4321 = vmatmul.mubr.bf16.gmra.mrb[0].mxu0 %v2796
        %v4322 = vpop.f32.mrb[0].mxu0
        %v4323 = vadd.f32 %v4275, %v4322
        %v4324 = vpop.f32.mrb[0].mxu0
        %v4325 = vpop.f32.mrb[0].mxu0
        %v4326 = vpop.f32.mrb[0].mxu0
        %4327 = vdwg.mxu0
        %4329 = vrot.lane.b32.xlu0 %v4262, 120
        %v4330 = vpop.permute.xlu0 %4329
        %4332 = vrot.lane.b32.xlu0 %v4262, 112
        %v4333 = vpop.permute.xlu0 %4332
        %4335 = vrot.lane.b32.xlu0 %v4262, 104
        %v4336 = vpop.permute.xlu0 %4335
        %v4338 = vpack.c.bf16 %v4262, %v4262
        %v4339 = vpack.c.bf16 %v4330, %v4330
        %v4340 = vpack.c.bf16 %v4333, %v4333
        %v4341 = vpack.c.bf16 %v4336, %v4336
        %4343 = vrot.lane.b32.xlu0 %v4323, 120
        %v4344 = vpop.permute.xlu0 %4343
        %4346 = vrot.lane.b32.xlu0 %v4323, 112
        %v4347 = vpop.permute.xlu0 %4346
        %4349 = vrot.lane.b32.xlu0 %v4323, 104
        %v4350 = vpop.permute.xlu0 %4349
        %v4352 = vpack.c.bf16 %v4323, %v4323
        %v4353 = vpack.c.bf16 %v4344, %v4344
        %v4354 = vpack.c.bf16 %v4347, %v4347
        %v4355 = vpack.c.bf16 %v4350, %v4350
        %v4357 = vsel %vm509, %v4338, 0
        %v4360 = vsel %vm509, %v4352, 0
        %4362 = vmatprep.subr.bf16.mxu0 0
        %4363 = vmatpush1.bf16.xpose.msra.mxu0 %v4360
        %4364 = vmatprep.subr.bf16.mxu0 0
        %4365 = vmatpush1.bf16.xpose.msra.mxu0 0
        %4366 = vmatprep.subr.bf16.mxu0 0
        %4367 = vmatpush1.bf16.xpose.msra.mxu0 0
        %4368 = vmatprep.subr.bf16.mxu0 0
        %4369 = vmatpush1.bf16.xpose.msra.mxu0 0
        %4370 = vmatprep.subr.bf16.mxu0 0
        %4371 = vmatpush1.bf16.xpose.msra.mxu0 0
        %4372 = vmatprep.subr.bf16.mxu0 0
        %4373 = vmatpush1.bf16.xpose.msra.mxu0 0
        %4374 = vmatprep.subr.bf16.mxu0 0
        %4375 = vmatpush1.bf16.xpose.msra.mxu0 0
        %4376 = vmatprep.subr.bf16.mxu0 0
        %4377 = vmatpush1.bf16.xpose.msra.mxu0 0
        %4378 = vmatprep.subr.bf16.mxu0 0
        %4379 = vmatpush1.bf16.xpose.msra.mxu0 0
        %4380 = vmatprep.subr.bf16.mxu0 0
        %4381 = vmatpush1.bf16.xpose.msra.mxu0 0
        %4382 = vmatprep.subr.bf16.mxu0 0
        %4383 = vmatpush1.bf16.xpose.msra.mxu0 0
        %4384 = vmatprep.subr.bf16.mxu0 0
        %4385 = vmatpush1.bf16.xpose.msra.mxu0 0
        %4386 = vmatprep.subr.bf16.mxu0 0
        %4387 = vmatpush1.bf16.xpose.msra.mxu0 0
        %4388 = vmatprep.subr.bf16.mxu0 0
        %4389 = vmatpush1.bf16.xpose.msra.mxu0 0
        %4390 = vmatprep.subr.bf16.mxu0 0
        %4391 = vmatpush1.bf16.xpose.msra.mxu0 0
        %4392 = vmatprep.subr.bf16.mxu0 0
        %4393 = vmatpush1.bf16.xpose.msra.mxu0 0
        %4394 = vmatprep.mubr.bf16.mxu0 0
        %4395 = vmatmul.mubr.bf16.gmra.mrb[0].mxu0 %v4357
        %v4396 = vpop.f32.mrb[0].mxu0
        %v4397 = vadd.f32 %v504, %v4396
        %v4398 = vpop.f32.mrb[0].mxu0
        %v4399 = vpop.f32.mrb[0].mxu0
        %v4400 = vpop.f32.mrb[0].mxu0
        %4401 = vdwg.mxu0
        %v4403 = vsel %vm509, %v4339, 0
        %v4406 = vsel %vm509, %v4353, 0
        %4408 = vmatprep.subr.bf16.mxu0 0
        %4409 = vmatpush1.bf16.xpose.msra.mxu0 %v4406
        %4410 = vmatprep.subr.bf16.mxu0 0
        %4411 = vmatpush1.bf16.xpose.msra.mxu0 0
        %4412 = vmatprep.subr.bf16.mxu0 0
        %4413 = vmatpush1.bf16.xpose.msra.mxu0 0
        %4414 = vmatprep.subr.bf16.mxu0 0
        %4415 = vmatpush1.bf16.xpose.msra.mxu0 0
        %4416 = vmatprep.subr.bf16.mxu0 0
        %4417 = vmatpush1.bf16.xpose.msra.mxu0 0
        %4418 = vmatprep.subr.bf16.mxu0 0
        %4419 = vmatpush1.bf16.xpose.msra.mxu0 0
        %4420 = vmatprep.subr.bf16.mxu0 0
        %4421 = vmatpush1.bf16.xpose.msra.mxu0 0
        %4422 = vmatprep.subr.bf16.mxu0 0
        %4423 = vmatpush1.bf16.xpose.msra.mxu0 0
        %4424 = vmatprep.subr.bf16.mxu0 0
        %4425 = vmatpush1.bf16.xpose.msra.mxu0 0
        %4426 = vmatprep.subr.bf16.mxu0 0
        %4427 = vmatpush1.bf16.xpose.msra.mxu0 0
        %4428 = vmatprep.subr.bf16.mxu0 0
        %4429 = vmatpush1.bf16.xpose.msra.mxu0 0
        %4430 = vmatprep.subr.bf16.mxu0 0
        %4431 = vmatpush1.bf16.xpose.msra.mxu0 0
        %4432 = vmatprep.subr.bf16.mxu0 0
        %4433 = vmatpush1.bf16.xpose.msra.mxu0 0
        %4434 = vmatprep.subr.bf16.mxu0 0
        %4435 = vmatpush1.bf16.xpose.msra.mxu0 0
        %4436 = vmatprep.subr.bf16.mxu0 0
        %4437 = vmatpush1.bf16.xpose.msra.mxu0 0
        %4438 = vmatprep.subr.bf16.mxu0 0
        %4439 = vmatpush1.bf16.xpose.msra.mxu0 0
        %4440 = vmatprep.mubr.bf16.mxu0 0
        %4441 = vmatmul.mubr.bf16.gmra.mrb[0].mxu0 %v4403
        %v4442 = vpop.f32.mrb[0].mxu0
        %v4443 = vadd.f32 %v504, %v4442
        %v4444 = vpop.f32.mrb[0].mxu0
        %v4445 = vpop.f32.mrb[0].mxu0
        %v4446 = vpop.f32.mrb[0].mxu0
        %4447 = vdwg.mxu0
        %v4449 = vsel %vm509, %v4340, 0
        %v4452 = vsel %vm509, %v4354, 0
        %4454 = vmatprep.subr.bf16.mxu0 0
        %4455 = vmatpush1.bf16.xpose.msra.mxu0 %v4452
        %4456 = vmatprep.subr.bf16.mxu0 0
        %4457 = vmatpush1.bf16.xpose.msra.mxu0 0
        %4458 = vmatprep.subr.bf16.mxu0 0
        %4459 = vmatpush1.bf16.xpose.msra.mxu0 0
        %4460 = vmatprep.subr.bf16.mxu0 0
        %4461 = vmatpush1.bf16.xpose.msra.mxu0 0
        %4462 = vmatprep.subr.bf16.mxu0 0
        %4463 = vmatpush1.bf16.xpose.msra.mxu0 0
        %4464 = vmatprep.subr.bf16.mxu0 0
        %4465 = vmatpush1.bf16.xpose.msra.mxu0 0
        %4466 = vmatprep.subr.bf16.mxu0 0
        %4467 = vmatpush1.bf16.xpose.msra.mxu0 0
        %4468 = vmatprep.subr.bf16.mxu0 0
        %4469 = vmatpush1.bf16.xpose.msra.mxu0 0
        %4470 = vmatprep.subr.bf16.mxu0 0
        %4471 = vmatpush1.bf16.xpose.msra.mxu0 0
        %4472 = vmatprep.subr.bf16.mxu0 0
        %4473 = vmatpush1.bf16.xpose.msra.mxu0 0
        %4474 = vmatprep.subr.bf16.mxu0 0
        %4475 = vmatpush1.bf16.xpose.msra.mxu0 0
        %4476 = vmatprep.subr.bf16.mxu0 0
        %4477 = vmatpush1.bf16.xpose.msra.mxu0 0
        %4478 = vmatprep.subr.bf16.mxu0 0
        %4479 = vmatpush1.bf16.xpose.msra.mxu0 0
        %4480 = vmatprep.subr.bf16.mxu0 0
        %4481 = vmatpush1.bf16.xpose.msra.mxu0 0
        %4482 = vmatprep.subr.bf16.mxu0 0
        %4483 = vmatpush1.bf16.xpose.msra.mxu0 0
        %4484 = vmatprep.subr.bf16.mxu0 0
        %4485 = vmatpush1.bf16.xpose.msra.mxu0 0
        %4486 = vmatprep.mubr.bf16.mxu0 0
        %4487 = vmatmul.mubr.bf16.gmra.mrb[0].mxu0 %v4449
        %v4488 = vpop.f32.mrb[0].mxu0
        %v4489 = vadd.f32 %v504, %v4488
        %v4490 = vpop.f32.mrb[0].mxu0
        %v4491 = vpop.f32.mrb[0].mxu0
        %v4492 = vpop.f32.mrb[0].mxu0
        %4493 = vdwg.mxu0
        %v4495 = vsel %vm509, %v4341, 0
        %v4498 = vsel %vm509, %v4355, 0
        %4500 = vmatprep.subr.bf16.mxu0 0
        %4501 = vmatpush1.bf16.xpose.msra.mxu0 %v4498
        %4502 = vmatprep.subr.bf16.mxu0 0
        %4503 = vmatpush1.bf16.xpose.msra.mxu0 0
        %4504 = vmatprep.subr.bf16.mxu0 0
        %4505 = vmatpush1.bf16.xpose.msra.mxu0 0
        %4506 = vmatprep.subr.bf16.mxu0 0
        %4507 = vmatpush1.bf16.xpose.msra.mxu0 0
        %4508 = vmatprep.subr.bf16.mxu0 0
        %4509 = vmatpush1.bf16.xpose.msra.mxu0 0
        %4510 = vmatprep.subr.bf16.mxu0 0
        %4511 = vmatpush1.bf16.xpose.msra.mxu0 0
        %4512 = vmatprep.subr.bf16.mxu0 0
        %4513 = vmatpush1.bf16.xpose.msra.mxu0 0
        %4514 = vmatprep.subr.bf16.mxu0 0
        %4515 = vmatpush1.bf16.xpose.msra.mxu0 0
        %4516 = vmatprep.subr.bf16.mxu0 0
        %4517 = vmatpush1.bf16.xpose.msra.mxu0 0
        %4518 = vmatprep.subr.bf16.mxu0 0
        %4519 = vmatpush1.bf16.xpose.msra.mxu0 0
        %4520 = vmatprep.subr.bf16.mxu0 0
        %4521 = vmatpush1.bf16.xpose.msra.mxu0 0
        %4522 = vmatprep.subr.bf16.mxu0 0
        %4523 = vmatpush1.bf16.xpose.msra.mxu0 0
        %4524 = vmatprep.subr.bf16.mxu0 0
        %4525 = vmatpush1.bf16.xpose.msra.mxu0 0
        %4526 = vmatprep.subr.bf16.mxu0 0
        %4527 = vmatpush1.bf16.xpose.msra.mxu0 0
        %4528 = vmatprep.subr.bf16.mxu0 0
        %4529 = vmatpush1.bf16.xpose.msra.mxu0 0
        %4530 = vmatprep.subr.bf16.mxu0 0
        %4531 = vmatpush1.bf16.xpose.msra.mxu0 0
        %4532 = vmatprep.mubr.bf16.mxu0 0
        %4533 = vmatmul.mubr.bf16.gmra.mrb[0].mxu0 %v4495
        %v4534 = vpop.f32.mrb[0].mxu0
        %v4535 = vadd.f32 %v504, %v4534
        %v4536 = vpop.f32.mrb[0].mxu0
        %v4537 = vpop.f32.mrb[0].mxu0
        %v4538 = vpop.f32.mrb[0].mxu0
        %4539 = vdwg.mxu0
        %v4540 = vsel %vm509, %v4397, -inf
        %4541 = vmax.xlane.f32.xlu0 %v4540
        %v4542 = vpop.xlane.xlu0 %4541
        %v4543 = vsel %vm509, %v4443, -inf
        %4544 = vmax.xlane.f32.xlu0 %v4543
        %v4545 = vpop.xlane.xlu0 %4544
        %v4546 = vsel %vm509, %v4489, -inf
        %4547 = vmax.xlane.f32.xlu0 %v4546
        %v4548 = vpop.xlane.xlu0 %4547
        %v4549 = vsel %vm509, %v4535, -inf
        %4550 = vmax.xlane.f32.xlu0 %v4549
        %v4551 = vpop.xlane.xlu0 %4550
        %v4552 = vsub.f32 %v4397, %v4542
        %v4553 = vsub.f32 %v4443, %v4545
        %v4554 = vsub.f32 %v4489, %v4548
        %v4555 = vsub.f32 %v4535, %v4551
        %v4556 = vmul.f32 %v4552, 1.442695
        %v4557 = vpow.pop %v4556
        %v4558 = vmul.f32 %v4553, 1.442695
        %v4559 = vpow.pop %v4558
        %v4560 = vmul.f32 %v4554, 1.442695
        %v4561 = vpow.pop %v4560
        %v4562 = vmul.f32 %v4555, 1.442695
        %v4563 = vpow.pop %v4562
        %v4564 = vsel %vm509, %v4557, 0.0
        %4565 = vadd.xlane.f32.xlu0 %v4564
        %v4566 = vpop.xlane.xlu0 %4565
        %v4567 = vsel %vm509, %v4559, 0.0
        %4568 = vadd.xlane.f32.xlu0 %v4567
        %v4569 = vpop.xlane.xlu0 %4568
        %v4570 = vsel %vm509, %v4561, 0.0
        %4571 = vadd.xlane.f32.xlu0 %v4570
        %v4572 = vpop.xlane.xlu0 %4571
        %v4573 = vsel %vm509, %v4563, 0.0
        %4574 = vadd.xlane.f32.xlu0 %v4573
        %v4575 = vpop.xlane.xlu0 %4574
        %v4576 = vrcp.pop %v4566
        %v4577 = vrcp.pop %v4569
        %v4578 = vrcp.pop %v4572
        %v4579 = vrcp.pop %v4575
        %v4580 = vmul.f32 %v4557, %v4576
        %v4581 = vmul.f32 %v4559, %v4577
        %v4582 = vmul.f32 %v4561, %v4578
        %v4583 = vmul.f32 %v4563, %v4579
        %v4584 = vpack.c.bf16 %v4580, %v4580
        %v4585 = vpack.c.bf16 %v4581, %v4581
        %v4586 = vpack.c.bf16 %v4582, %v4582
        %v4587 = vpack.c.bf16 %v4583, %v4583
        %4589 = vrot.lane.b32.xlu0 %v4352, 96
        %v4590 = vpop.permute.xlu0 %4589
        %v4592 = vsel %vm509, %v4584, 0
        %v4595 = vsel %vm756, %v4590, 0
        %4597 = vmatprep.subr.bf16.mxu0 0
        %4598 = vmatpush1.bf16.msra.mxu0 %v4595
        %4599 = vmatprep.subr.bf16.mxu0 0
        %4600 = vmatpush1.bf16.msra.mxu0 0
        %4601 = vmatprep.subr.bf16.mxu0 0
        %4602 = vmatpush1.bf16.msra.mxu0 0
        %4603 = vmatprep.subr.bf16.mxu0 0
        %4604 = vmatpush1.bf16.msra.mxu0 0
        %4605 = vmatprep.subr.bf16.mxu0 0
        %4606 = vmatpush1.bf16.msra.mxu0 0
        %4607 = vmatprep.subr.bf16.mxu0 0
        %4608 = vmatpush1.bf16.msra.mxu0 0
        %4609 = vmatprep.subr.bf16.mxu0 0
        %4610 = vmatpush1.bf16.msra.mxu0 0
        %4611 = vmatprep.subr.bf16.mxu0 0
        %4612 = vmatpush1.bf16.msra.mxu0 0
        %4613 = vmatprep.subr.bf16.mxu0 0
        %4614 = vmatpush1.bf16.msra.mxu0 0
        %4615 = vmatprep.subr.bf16.mxu0 0
        %4616 = vmatpush1.bf16.msra.mxu0 0
        %4617 = vmatprep.subr.bf16.mxu0 0
        %4618 = vmatpush1.bf16.msra.mxu0 0
        %4619 = vmatprep.subr.bf16.mxu0 0
        %4620 = vmatpush1.bf16.msra.mxu0 0
        %4621 = vmatprep.subr.bf16.mxu0 0
        %4622 = vmatpush1.bf16.msra.mxu0 0
        %4623 = vmatprep.subr.bf16.mxu0 0
        %4624 = vmatpush1.bf16.msra.mxu0 0
        %4625 = vmatprep.subr.bf16.mxu0 0
        %4626 = vmatpush1.bf16.msra.mxu0 0
        %4627 = vmatprep.subr.bf16.mxu0 0
        %4628 = vmatpush1.bf16.msra.mxu0 0
        %4629 = vmatprep.mubr.bf16.mxu0 0
        %4630 = vmatmul.mubr.bf16.gmra.mrb[0].mxu0 %v4592
        %v4631 = vpop.f32.mrb[0].mxu0
        %v4632 = vadd.f32 0.0, %v4631
        %v4633 = vpop.f32.mrb[0].mxu0
        %v4634 = vpop.f32.mrb[0].mxu0
        %v4635 = vpop.f32.mrb[0].mxu0
        %4636 = vdwg.mxu0
        %4638 = vrot.lane.b32.xlu0 %v4353, 96
        %v4639 = vpop.permute.xlu0 %4638
        %v4641 = vsel %vm509, %v4585, 0
        %v4644 = vsel %vm756, %v4639, 0
        %4646 = vmatprep.subr.bf16.mxu0 0
        %4647 = vmatpush1.bf16.msra.mxu0 %v4644
        %4648 = vmatprep.subr.bf16.mxu0 0
        %4649 = vmatpush1.bf16.msra.mxu0 0
        %4650 = vmatprep.subr.bf16.mxu0 0
        %4651 = vmatpush1.bf16.msra.mxu0 0
        %4652 = vmatprep.subr.bf16.mxu0 0
        %4653 = vmatpush1.bf16.msra.mxu0 0
        %4654 = vmatprep.subr.bf16.mxu0 0
        %4655 = vmatpush1.bf16.msra.mxu0 0
        %4656 = vmatprep.subr.bf16.mxu0 0
        %4657 = vmatpush1.bf16.msra.mxu0 0
        %4658 = vmatprep.subr.bf16.mxu0 0
        %4659 = vmatpush1.bf16.msra.mxu0 0
        %4660 = vmatprep.subr.bf16.mxu0 0
        %4661 = vmatpush1.bf16.msra.mxu0 0
        %4662 = vmatprep.subr.bf16.mxu0 0
        %4663 = vmatpush1.bf16.msra.mxu0 0
        %4664 = vmatprep.subr.bf16.mxu0 0
        %4665 = vmatpush1.bf16.msra.mxu0 0
        %4666 = vmatprep.subr.bf16.mxu0 0
        %4667 = vmatpush1.bf16.msra.mxu0 0
        %4668 = vmatprep.subr.bf16.mxu0 0
        %4669 = vmatpush1.bf16.msra.mxu0 0
        %4670 = vmatprep.subr.bf16.mxu0 0
        %4671 = vmatpush1.bf16.msra.mxu0 0
        %4672 = vmatprep.subr.bf16.mxu0 0
        %4673 = vmatpush1.bf16.msra.mxu0 0
        %4674 = vmatprep.subr.bf16.mxu0 0
        %4675 = vmatpush1.bf16.msra.mxu0 0
        %4676 = vmatprep.subr.bf16.mxu0 0
        %4677 = vmatpush1.bf16.msra.mxu0 0
        %4678 = vmatprep.mubr.bf16.mxu0 0
        %4679 = vmatmul.mubr.bf16.gmra.mrb[0].mxu0 %v4641
        %v4680 = vpop.f32.mrb[0].mxu0
        %v4681 = vadd.f32 0.0, %v4680
        %v4682 = vpop.f32.mrb[0].mxu0
        %v4683 = vpop.f32.mrb[0].mxu0
        %v4684 = vpop.f32.mrb[0].mxu0
        %4685 = vdwg.mxu0
        %4687 = vrot.lane.b32.xlu0 %v4354, 96
        %v4688 = vpop.permute.xlu0 %4687
        %v4690 = vsel %vm509, %v4586, 0
        %v4693 = vsel %vm756, %v4688, 0
        %4695 = vmatprep.subr.bf16.mxu0 0
        %4696 = vmatpush1.bf16.msra.mxu0 %v4693
        %4697 = vmatprep.subr.bf16.mxu0 0
        %4698 = vmatpush1.bf16.msra.mxu0 0
        %4699 = vmatprep.subr.bf16.mxu0 0
        %4700 = vmatpush1.bf16.msra.mxu0 0
        %4701 = vmatprep.subr.bf16.mxu0 0
        %4702 = vmatpush1.bf16.msra.mxu0 0
        %4703 = vmatprep.subr.bf16.mxu0 0
        %4704 = vmatpush1.bf16.msra.mxu0 0
        %4705 = vmatprep.subr.bf16.mxu0 0
        %4706 = vmatpush1.bf16.msra.mxu0 0
        %4707 = vmatprep.subr.bf16.mxu0 0
        %4708 = vmatpush1.bf16.msra.mxu0 0
        %4709 = vmatprep.subr.bf16.mxu0 0
        %4710 = vmatpush1.bf16.msra.mxu0 0
        %4711 = vmatprep.subr.bf16.mxu0 0
        %4712 = vmatpush1.bf16.msra.mxu0 0
        %4713 = vmatprep.subr.bf16.mxu0 0
        %4714 = vmatpush1.bf16.msra.mxu0 0
        %4715 = vmatprep.subr.bf16.mxu0 0
        %4716 = vmatpush1.bf16.msra.mxu0 0
        %4717 = vmatprep.subr.bf16.mxu0 0
        %4718 = vmatpush1.bf16.msra.mxu0 0
        %4719 = vmatprep.subr.bf16.mxu0 0
        %4720 = vmatpush1.bf16.msra.mxu0 0
        %4721 = vmatprep.subr.bf16.mxu0 0
        %4722 = vmatpush1.bf16.msra.mxu0 0
        %4723 = vmatprep.subr.bf16.mxu0 0
        %4724 = vmatpush1.bf16.msra.mxu0 0
        %4725 = vmatprep.subr.bf16.mxu0 0
        %4726 = vmatpush1.bf16.msra.mxu0 0
        %4727 = vmatprep.mubr.bf16.mxu0 0
        %4728 = vmatmul.mubr.bf16.gmra.mrb[0].mxu0 %v4690
        %v4729 = vpop.f32.mrb[0].mxu0
        %v4730 = vadd.f32 0.0, %v4729
        %v4731 = vpop.f32.mrb[0].mxu0
        %v4732 = vpop.f32.mrb[0].mxu0
        %v4733 = vpop.f32.mrb[0].mxu0
        %4734 = vdwg.mxu0
        %4736 = vrot.lane.b32.xlu0 %v4355, 96
        %v4737 = vpop.permute.xlu0 %4736
        %v4739 = vsel %vm509, %v4587, 0
        %v4742 = vsel %vm756, %v4737, 0
        %4744 = vmatprep.subr.bf16.mxu0 0
        %4745 = vmatpush1.bf16.msra.mxu0 %v4742
        %4746 = vmatprep.subr.bf16.mxu0 0
        %4747 = vmatpush1.bf16.msra.mxu0 0
        %4748 = vmatprep.subr.bf16.mxu0 0
        %4749 = vmatpush1.bf16.msra.mxu0 0
        %4750 = vmatprep.subr.bf16.mxu0 0
        %4751 = vmatpush1.bf16.msra.mxu0 0
        %4752 = vmatprep.subr.bf16.mxu0 0
        %4753 = vmatpush1.bf16.msra.mxu0 0
        %4754 = vmatprep.subr.bf16.mxu0 0
        %4755 = vmatpush1.bf16.msra.mxu0 0
        %4756 = vmatprep.subr.bf16.mxu0 0
        %4757 = vmatpush1.bf16.msra.mxu0 0
        %4758 = vmatprep.subr.bf16.mxu0 0
        %4759 = vmatpush1.bf16.msra.mxu0 0
        %4760 = vmatprep.subr.bf16.mxu0 0
        %4761 = vmatpush1.bf16.msra.mxu0 0
        %4762 = vmatprep.subr.bf16.mxu0 0
        %4763 = vmatpush1.bf16.msra.mxu0 0
        %4764 = vmatprep.subr.bf16.mxu0 0
        %4765 = vmatpush1.bf16.msra.mxu0 0
        %4766 = vmatprep.subr.bf16.mxu0 0
        %4767 = vmatpush1.bf16.msra.mxu0 0
        %4768 = vmatprep.subr.bf16.mxu0 0
        %4769 = vmatpush1.bf16.msra.mxu0 0
        %4770 = vmatprep.subr.bf16.mxu0 0
        %4771 = vmatpush1.bf16.msra.mxu0 0
        %4772 = vmatprep.subr.bf16.mxu0 0
        %4773 = vmatpush1.bf16.msra.mxu0 0
        %4774 = vmatprep.subr.bf16.mxu0 0
        %4775 = vmatpush1.bf16.msra.mxu0 0
        %4776 = vmatprep.mubr.bf16.mxu0 0
        %4777 = vmatmul.mubr.bf16.gmra.mrb[0].mxu0 %v4739
        %v4778 = vpop.f32.mrb[0].mxu0
        %v4779 = vadd.f32 0.0, %v4778
        %v4780 = vpop.f32.mrb[0].mxu0
        %v4781 = vpop.f32.mrb[0].mxu0
        %v4782 = vpop.f32.mrb[0].mxu0
        %4783 = vdwg.mxu0
        %4785 = vrot.lane.b32.xlu0 %v4681, 8
        %v4786 = vpop.permute.xlu0 %4785
        %4789 = vrot.lane.b32.xlu0 %v4730, 16
        %v4790 = vpop.permute.xlu0 %4789
        %4793 = vrot.lane.b32.xlu0 %v4779, 24
        %v4794 = vpop.permute.xlu0 %4793
        %v4796 = vsel %vm509, %v4632, %v4786
        %v4797 = vsel %vm957, %v4796, %v4790
        %v4798 = vsel %vm959, %v4797, %v4794
        %v4799 = vld [vmem:[%s4 + $0x40] sm:$0xf]
        %v4800 = vld [vmem:[%s4 + $0x8c] sm:$0xf]
        %v4801 = vld [vmem:[%s4 + $0xd8] sm:$0xf]
        %v4802 = vld [vmem:[%s4 + $0x124] sm:$0xf]
        %v4803 = vld [vmem:[%s6 + $0x2e] sm:$0x1]
        %v4804 = vpack.c.bf16 %v4798, %v4798
        %v4805 = vlaneseq
        %v4806 = vshrl.u32 %v4805, 7
        %v4807 = vsub.s32 0, %v4806
        %v4808 = vrot.slane %v4803, %v4807
        %v4813 = vunpack.c.l.b16 %v4799
        %v4814 = vunpack.c.l.b16 %v4800
        %v4815 = vunpack.c.l.b16 %v4801
        %v4816 = vunpack.c.l.b16 %v4802
        %v4817 = vpack.c.b16 %v4814, %v4813
        %v4818 = vpack.c.b16 %v4816, %v4815
        %v4822 = vsel %vm371, %v4804, 0
        %4824 = vmatprep.subr.bf16.mxu0 0
        %4825 = vmatpush1.bf16.msra.mxu0 %v4817
        %4826 = vmatprep.subr.bf16.mxu0 0
        %4827 = vmatpush1.bf16.msra.mxu0 %v4818
        %4828 = vmatprep.subr.bf16.mxu0 0
        %4829 = vmatpush1.bf16.msra.mxu0 0
        %4830 = vmatprep.subr.bf16.mxu0 0
        %4831 = vmatpush1.bf16.msra.mxu0 0
        %4832 = vmatprep.subr.bf16.mxu0 0
        %4833 = vmatpush1.bf16.msra.mxu0 0
        %4834 = vmatprep.subr.bf16.mxu0 0
        %4835 = vmatpush1.bf16.msra.mxu0 0
        %4836 = vmatprep.subr.bf16.mxu0 0
        %4837 = vmatpush1.bf16.msra.mxu0 0
        %4838 = vmatprep.subr.bf16.mxu0 0
        %4839 = vmatpush1.bf16.msra.mxu0 0
        %4840 = vmatprep.subr.bf16.mxu0 0
        %4841 = vmatpush1.bf16.msra.mxu0 0
        %4842 = vmatprep.subr.bf16.mxu0 0
        %4843 = vmatpush1.bf16.msra.mxu0 0
        %4844 = vmatprep.subr.bf16.mxu0 0
        %4845 = vmatpush1.bf16.msra.mxu0 0
        %4846 = vmatprep.subr.bf16.mxu0 0
        %4847 = vmatpush1.bf16.msra.mxu0 0
        %4848 = vmatprep.subr.bf16.mxu0 0
        %4849 = vmatpush1.bf16.msra.mxu0 0
        %4850 = vmatprep.subr.bf16.mxu0 0
        %4851 = vmatpush1.bf16.msra.mxu0 0
        %4852 = vmatprep.subr.bf16.mxu0 0
        %4853 = vmatpush1.bf16.msra.mxu0 0
        %4854 = vmatprep.subr.bf16.mxu0 0
        %4855 = vmatpush1.bf16.msra.mxu0 0
        %4856 = vmatprep.mubr.bf16.mxu0 0
        %4857 = vmatmul.mubr.bf16.gmra.mrb[0].mxu0 %v4822
        %v4858 = vpop.f32.mrb[0].mxu0
        %v4859 = vadd.f32 %v4808, %v4858
        %v4860 = vpop.f32.mrb[0].mxu0
        %v4861 = vpop.f32.mrb[0].mxu0
        %v4862 = vpop.f32.mrb[0].mxu0
        %4863 = vdwg.mxu0
        %v4864 = vadd.f32 %v4176, %v4859
        %v4865 = vld [vmem:[%s6 + $0x2f] sm:$0x1]
        %v4866 = vld [vmem:[%s6 + $0x30] sm:$0x1]
        %v4867 = vsel %vm371, %v4864, 0.0
        %4868 = vadd.xlane.f32.xlu0 %v4867
        %v4869 = vpop.xlane.xlu0 %4868
        %v4870 = vmul.f32 %v4869, %v375
        %v4871 = vsub.f32 %v4864, %v4870
        %v4872 = vmul.f32 %v4871, %v4871
        %v4873 = vsel %vm371, %v4872, 0.0
        %4874 = vadd.xlane.f32.xlu0 %v4873
        %v4875 = vpop.xlane.xlu0 %4874
        %v4876 = vmul.f32 %v4875, %v375
        %v4877 = vadd.f32 %v4876, 1e-05
        %v4878 = vrsqrt.pop %v4877
        %v4879 = vmul.f32 %v4871, %v4878
        %v4880 = vlaneseq
        %v4881 = vshrl.u32 %v4880, 7
        %v4882 = vsub.s32 0, %v4881
        %v4883 = vrot.slane %v4865, %v4882
        %v4884 = vmul.f32 %v4879, %v4883
        %v4885 = vlaneseq
        %v4886 = vshrl.u32 %v4885, 7
        %v4887 = vsub.s32 0, %v4886
        %v4888 = vrot.slane %v4866, %v4887
        %v4889 = vadd.f32 %v4884, %v4888
        %v4890 = vld [vmem:[%s4 + $0x44] sm:$0xf]
        %v4891 = vld [vmem:[%s4 + $0x90] sm:$0xf]
        %v4892 = vld [vmem:[%s4 + $0xdc] sm:$0xf]
        %v4893 = vld [vmem:[%s4 + $0x128] sm:$0xf]
        %v4894 = vld [vmem:[%s6 + $0x31] sm:$0x1]
        %v4895 = vpack.c.bf16 %v4889, %v4889
        %v4896 = vlaneseq
        %v4897 = vshrl.u32 %v4896, 7
        %v4898 = vsub.s32 0, %v4897
        %v4899 = vrot.slane %v4894, %v4898
        %v4904 = vunpack.c.l.b16 %v4890
        %v4905 = vunpack.c.l.b16 %v4891
        %v4906 = vunpack.c.l.b16 %v4892
        %v4907 = vunpack.c.l.b16 %v4893
        %v4908 = vpack.c.b16 %v4905, %v4904
        %v4909 = vpack.c.b16 %v4907, %v4906
        %v4913 = vsel %vm371, %v4895, 0
        %4915 = vmatprep.subr.bf16.mxu0 0
        %4916 = vmatpush1.bf16.msra.mxu0 %v4908
        %4917 = vmatprep.subr.bf16.mxu0 0
        %4918 = vmatpush1.bf16.msra.mxu0 %v4909
        %4919 = vmatprep.subr.bf16.mxu0 0
        %4920 = vmatpush1.bf16.msra.mxu0 0
        %4921 = vmatprep.subr.bf16.mxu0 0
        %4922 = vmatpush1.bf16.msra.mxu0 0
        %4923 = vmatprep.subr.bf16.mxu0 0
        %4924 = vmatpush1.bf16.msra.mxu0 0
        %4925 = vmatprep.subr.bf16.mxu0 0
        %4926 = vmatpush1.bf16.msra.mxu0 0
        %4927 = vmatprep.subr.bf16.mxu0 0
        %4928 = vmatpush1.bf16.msra.mxu0 0
        %4929 = vmatprep.subr.bf16.mxu0 0
        %4930 = vmatpush1.bf16.msra.mxu0 0
        %4931 = vmatprep.subr.bf16.mxu0 0
        %4932 = vmatpush1.bf16.msra.mxu0 0
        %4933 = vmatprep.subr.bf16.mxu0 0
        %4934 = vmatpush1.bf16.msra.mxu0 0
        %4935 = vmatprep.subr.bf16.mxu0 0
        %4936 = vmatpush1.bf16.msra.mxu0 0
        %4937 = vmatprep.subr.bf16.mxu0 0
        %4938 = vmatpush1.bf16.msra.mxu0 0
        %4939 = vmatprep.subr.bf16.mxu0 0
        %4940 = vmatpush1.bf16.msra.mxu0 0
        %4941 = vmatprep.subr.bf16.mxu0 0
        %4942 = vmatpush1.bf16.msra.mxu0 0
        %4943 = vmatprep.subr.bf16.mxu0 0
        %4944 = vmatpush1.bf16.msra.mxu0 0
        %4945 = vmatprep.subr.bf16.mxu0 0
        %4946 = vmatpush1.bf16.msra.mxu0 0
        %4947 = vmatprep.mubr.bf16.mxu0 0
        %4948 = vmatmul.mubr.bf16.gmra.mrb[0].mxu0 %v4913
        %v4949 = vpop.f32.mrb[0].mxu0
        %v4950 = vadd.f32 %v4899, %v4949
        %v4951 = vpop.f32.mrb[0].mxu0
        %v4952 = vpop.f32.mrb[0].mxu0
        %v4953 = vpop.f32.mrb[0].mxu0
        %4954 = vdwg.mxu0
        %v4955 = vmul.f32 %v4950, %v4950
        %v4956 = vmul.f32 %v4950, %v4955
        %v4957 = vmul.f32 %v4956, 0.044715
        %v4958 = vadd.f32 %v4950, %v4957
        %v4959 = vmul.f32 %v4958, 0.7978846
        %v4960 = vtanh.pop %v4959
        %v4961 = vadd.f32 %v4960, 1.0
        %v4962 = vmul.f32 %v4961, 0.5
        %v4963 = vmul.f32 %v4950, %v4962
        %v4964 = vld [vmem:[%s5 + $0xc] sm:$0xf]
        %v4965 = vld [vmem:[%s5 + $0x1c] sm:$0xf]
        %v4966 = vld [vmem:[%s5 + $0x2c] sm:$0xf]
        %v4967 = vld [vmem:[%s5 + $0x3c] sm:$0xf]
        %v4968 = vld [vmem:[%s5 + $0x4c] sm:$0xf]
        %v4969 = vld [vmem:[%s5 + $0x5c] sm:$0xf]
        %v4970 = vld [vmem:[%s5 + $0x6c] sm:$0xf]
        %v4971 = vld [vmem:[%s5 + $0x7c] sm:$0xf]
        %v4972 = vld [vmem:[%s6 + $0x32] sm:$0x1]
        %v4973 = vpack.c.bf16 %v4963, %v4963
        %v4974 = vlaneseq
        %v4975 = vshrl.u32 %v4974, 7
        %v4976 = vsub.s32 0, %v4975
        %v4977 = vrot.slane %v4972, %v4976
        %v4986 = vunpack.c.l.b16 %v4964
        %v4987 = vunpack.c.l.b16 %v4965
        %v4988 = vunpack.c.l.b16 %v4966
        %v4989 = vunpack.c.l.b16 %v4967
        %v4990 = vunpack.c.l.b16 %v4968
        %v4991 = vunpack.c.l.b16 %v4969
        %v4992 = vunpack.c.l.b16 %v4970
        %v4993 = vunpack.c.l.b16 %v4971
        %v4994 = vpack.c.b16 %v4987, %v4986
        %v4995 = vpack.c.b16 %v4989, %v4988
        %v4996 = vpack.c.b16 %v4991, %v4990
        %v4997 = vpack.c.b16 %v4993, %v4992
        %v5003 = vsel %vm1164, %v4973, 0
        %5005 = vmatprep.subr.bf16.mxu0 0
        %5006 = vmatpush1.bf16.msra.mxu0 %v4994
        %5007 = vmatprep.subr.bf16.mxu0 0
        %5008 = vmatpush1.bf16.msra.mxu0 %v4995
        %5009 = vmatprep.subr.bf16.mxu0 0
        %5010 = vmatpush1.bf16.msra.mxu0 %v4996
        %5011 = vmatprep.subr.bf16.mxu0 0
        %5012 = vmatpush1.bf16.msra.mxu0 %v4997
        %5013 = vmatprep.subr.bf16.mxu0 0
        %5014 = vmatpush1.bf16.msra.mxu0 0
        %5015 = vmatprep.subr.bf16.mxu0 0
        %5016 = vmatpush1.bf16.msra.mxu0 0
        %5017 = vmatprep.subr.bf16.mxu0 0
        %5018 = vmatpush1.bf16.msra.mxu0 0
        %5019 = vmatprep.subr.bf16.mxu0 0
        %5020 = vmatpush1.bf16.msra.mxu0 0
        %5021 = vmatprep.subr.bf16.mxu0 0
        %5022 = vmatpush1.bf16.msra.mxu0 0
        %5023 = vmatprep.subr.bf16.mxu0 0
        %5024 = vmatpush1.bf16.msra.mxu0 0
        %5025 = vmatprep.subr.bf16.mxu0 0
        %5026 = vmatpush1.bf16.msra.mxu0 0
        %5027 = vmatprep.subr.bf16.mxu0 0
        %5028 = vmatpush1.bf16.msra.mxu0 0
        %5029 = vmatprep.subr.bf16.mxu0 0
        %5030 = vmatpush1.bf16.msra.mxu0 0
        %5031 = vmatprep.subr.bf16.mxu0 0
        %5032 = vmatpush1.bf16.msra.mxu0 0
        %5033 = vmatprep.subr.bf16.mxu0 0
        %5034 = vmatpush1.bf16.msra.mxu0 0
        %5035 = vmatprep.subr.bf16.mxu0 0
        %5036 = vmatpush1.bf16.msra.mxu0 0
        %5037 = vmatprep.mubr.bf16.mxu0 0
        %5038 = vmatmul.mubr.bf16.gmra.mrb[0].mxu0 %v5003
        %v5039 = vpop.f32.mrb[0].mxu0
        %v5040 = vadd.f32 %v4977, %v5039
        %v5041 = vpop.f32.mrb[0].mxu0
        %v5042 = vpop.f32.mrb[0].mxu0
        %v5043 = vpop.f32.mrb[0].mxu0
        %5044 = vdwg.mxu0
        %v5045 = vadd.f32 %v4864, %v5040
        %v5046 = vld [vmem:[%s6 + $0x6] sm:$0x1]
        %v5047 = vld [vmem:[%s6 + $0x7] sm:$0x1]
        %v5048 = vsel %vm371, %v5045, 0.0
        %5049 = vadd.xlane.f32.xlu0 %v5048
        %v5050 = vpop.xlane.xlu0 %5049
        %v5051 = vmul.f32 %v5050, %v375
        %v5052 = vsub.f32 %v5045, %v5051
        %v5053 = vmul.f32 %v5052, %v5052
        %v5054 = vsel %vm371, %v5053, 0.0
        %5055 = vadd.xlane.f32.xlu0 %v5054
        %v5056 = vpop.xlane.xlu0 %5055
        %v5057 = vmul.f32 %v5056, %v375
        %v5058 = vadd.f32 %v5057, 1e-05
        %v5059 = vrsqrt.pop %v5058
        %v5060 = vmul.f32 %v5052, %v5059
        %v5061 = vlaneseq
        %v5062 = vshrl.u32 %v5061, 7
        %v5063 = vsub.s32 0, %v5062
        %v5064 = vrot.slane %v5046, %v5063
        %v5065 = vmul.f32 %v5060, %v5064
        %v5066 = vlaneseq
        %v5067 = vshrl.u32 %v5066, 7
        %v5068 = vsub.s32 0, %v5067
        %v5069 = vrot.slane %v5047, %v5068
        %v5070 = vadd.f32 %v5065, %v5069
        %v5071 = vpack.c.bf16 %v5070, %v5070
        %v5072 = vld [vmem:[%s4 + $0x48] sm:$0xf]
        %v5073 = vld [vmem:[%s4 + $0x94] sm:$0xf]
        %v5074 = vld [vmem:[%s4 + $0xe0] sm:$0xf]
        %v5075 = vld [vmem:[%s4 + $0x12c] sm:$0xf]
        %v5076 = vld [vmem:[%s6 + $0x8] sm:$0x1]
        %v5077 = vlaneseq
        %v5078 = vshrl.u32 %v5077, 7
        %v5079 = vsub.s32 0, %v5078
        %v5080 = vrot.slane %v5076, %v5079
        %v5085 = vunpack.c.l.b16 %v5072
        %v5086 = vunpack.c.l.b16 %v5073
        %v5087 = vunpack.c.l.b16 %v5074
        %v5088 = vunpack.c.l.b16 %v5075
        %v5089 = vpack.c.b16 %v5086, %v5085
        %v5090 = vpack.c.b16 %v5088, %v5087
        %v5094 = vsel %vm371, %v5071, 0
        %5096 = vmatprep.subr.bf16.mxu0 0
        %5097 = vmatpush1.bf16.msra.mxu0 %v5089
        %5098 = vmatprep.subr.bf16.mxu0 0
        %5099 = vmatpush1.bf16.msra.mxu0 %v5090
        %5100 = vmatprep.subr.bf16.mxu0 0
        %5101 = vmatpush1.bf16.msra.mxu0 0
        %5102 = vmatprep.subr.bf16.mxu0 0
        %5103 = vmatpush1.bf16.msra.mxu0 0
        %5104 = vmatprep.subr.bf16.mxu0 0
        %5105 = vmatpush1.bf16.msra.mxu0 0
        %5106 = vmatprep.subr.bf16.mxu0 0
        %5107 = vmatpush1.bf16.msra.mxu0 0
        %5108 = vmatprep.subr.bf16.mxu0 0
        %5109 = vmatpush1.bf16.msra.mxu0 0
        %5110 = vmatprep.subr.bf16.mxu0 0
        %5111 = vmatpush1.bf16.msra.mxu0 0
        %5112 = vmatprep.subr.bf16.mxu0 0
        %5113 = vmatpush1.bf16.msra.mxu0 0
        %5114 = vmatprep.subr.bf16.mxu0 0
        %5115 = vmatpush1.bf16.msra.mxu0 0
        %5116 = vmatprep.subr.bf16.mxu0 0
        %5117 = vmatpush1.bf16.msra.mxu0 0
        %5118 = vmatprep.subr.bf16.mxu0 0
        %5119 = vmatpush1.bf16.msra.mxu0 0
        %5120 = vmatprep.subr.bf16.mxu0 0
        %5121 = vmatpush1.bf16.msra.mxu0 0
        %5122 = vmatprep.subr.bf16.mxu0 0
        %5123 = vmatpush1.bf16.msra.mxu0 0
        %5124 = vmatprep.subr.bf16.mxu0 0
        %5125 = vmatpush1.bf16.msra.mxu0 0
        %5126 = vmatprep.subr.bf16.mxu0 0
        %5127 = vmatpush1.bf16.msra.mxu0 0
        %5128 = vmatprep.mubr.bf16.mxu0 0
        %5129 = vmatmul.mubr.bf16.gmra.mrb[0].mxu0 %v5094
        %v5130 = vpop.f32.mrb[0].mxu0
        %v5131 = vadd.f32 %v5080, %v5130
        %v5132 = vpop.f32.mrb[0].mxu0
        %v5133 = vpop.f32.mrb[0].mxu0
        %v5134 = vpop.f32.mrb[0].mxu0
        %5135 = vdwg.mxu0
        %5136 = vst [vmem:[%s334] sm:$0xff] %v5131
        %5137 = vmax.xlane.f32.xlu0 %v5131
        %v5138 = vpop.xlane.xlu0 %5137
        %v5139 = vsub.f32 %v5131, %v5138
        %v5140 = vmul.f32 %v5139, 1.442695
        %v5141 = vpow.pop %v5140
        %5142 = vadd.xlane.f32.xlu0 %v5141
        %v5143 = vpop.xlane.xlu0 %5142
        %v5144 = vlog2.pop %v5143
        %v5145 = vmul.f32 %v5144, 0.6931472
        %v5146 = vsub.f32 %v5139, %v5145
        %v5147 = vld [vmem:[%s354] sm:$0xff]
        %5148 = vset.pattern.permute.xlu0 0
        %5149 = vperm.xlu0 %5148, %v5147
        %v5150 = vpop.permute.xlu0 %5149
        %vm5151 = vcmp.eq.s32.totalorder %v365, %v5150
        %v5152 = vsel %vm5151, 0.9, 0.0016129032
        %v5153 = vsel %vm5151, -0.105360515, -6.4297194
        %v5154 = vsub.f32 %v5153, %v5146
        %v5155 = vmul.f32 %v5152, %v5154
        %vm5156 = vcmp.ne.s32.totalorder %v365, 1
        %vm5157 = vcmp.lt.s32.totalorder %v365, 64
        %vm5158 = vmand %vm5156, %vm5157
        %v5159 = vsel %vm5158, %v5155, 0.0
        %vm5160 = vcmp.eq.s32.totalorder %v5147, 1
        %v5161 = vsel %vm5160, 1, 0
        %5162 = vset.pattern.permute.xlu0 0
        %5163 = vperm.xlu0 %5162, %v5161
        %v5164 = vpop.permute.xlu0 %5163
        %vm5165 = vcmp.eq.s32.totalorder %v5164, 1
        %v5166 = vsel %vm5165, 0.0, %v5159
        %5167 = vadd.xlane.f32.xlu0 %v5166
        %v5168 = vpop.xlane.xlu0 %5167
        %v5169 = vrot.slane %v5168, 4
        %v5170 = vadd.f32 %v5168, %v5169
        %v5171 = vrot.slane %v5170, 2
        %v5172 = vadd.f32 %v5170, %v5171
        %v5173 = vrot.slane %v5172, 1
        %v5174 = vadd.f32 %v5172, %v5173
        %s5175 = vtos %v5174
        %v5176 = vstv %s5175
        %vm5177 = vcmask 0
        %5178 = vst.msk [vmem:[%s357] sm:$0x1] %vm5177, %v5176
        %s5179 = sand.u32 %s198, 1
        %s5180 = scalar_lea.sflag [#allocation3], %s5179
        %s5181 = sand.u32 %s198, 1
        %s5182 = smul.addr %s5181, 8
        %s5183 = scalar_lea.vmem [#allocation2], %s5182
        %p5184 = scmp.lt.s32.totalorder %s23, 1
        %s5185 = scalar_select %p5184, %s23, 1
        %s5186 = scalar_lea.vmem %s8, %s5185
        // Predicated region
        $region49: #{translation_network_forward.1} parent=47 // pred_check
          %p5187 = pneg %p208
        $region50: #{translation_network_forward.1} parent=47 // pred_check_branch
          %5189 = sbr.rel (%p5187) target = $region52
        $region51: #{translation_network_forward.1} parent=47 // pred_region
          %s5191 = ssub.s32 128, 128
          %5192 = vsyncadd %s5180, %s5191
          %s5193 = smul.addr %s23, 128
          %s5194 = scalar_lea.hbm %s7, %s5193
          %s5196 = sshll.u32 %s5183, 4
          %s5197 = int_to_ptr.vmem [resolvable:$true] %s5196
          %5199 = dma.vmem_to_hbm [thread:$0]  %s5197, 128, %s5194, %s5180
        $region52: #{translation_network_forward.1} parent=47 // pred_fallthru
          _
        // Predicated region
        $region53: #{translation_network_forward.1} parent=47 // pred_check
          %p5200 = pneg %p234
        $region54: #{translation_network_forward.1} parent=47 // pred_check_branch
          %5202 = sbr.rel (%p5200) target = $region56
        $region55: #{translation_network_forward.1} parent=47 // pred_region
          _
        $region56: #{translation_network_forward.1} parent=47 // pred_fallthru
          _
      $region48: #{translation_network_forward.1} parent=5 // pred_fallthru
        _
      %p5203 = scmp.le.s32.totalorder 2, %s18
      // Predicated region
      $region57: #{translation_network_forward.1} parent=5 // pred_check
        %p5204 = pneg %p5203
      $region58: #{translation_network_forward.1} parent=5 // pred_check_branch
        %5206 = sbr.rel (%p5204) target = $region60
      $region59: #{translation_network_forward.1} parent=5 // pred_region
        %s5207 = ssub.s32 %s18, 2
        // Predicated region
        $region61: #{translation_network_forward.1} parent=59 // pred_check
          %p5208 = pneg %p214
        $region62: #{translation_network_forward.1} parent=59 // pred_check_branch
          %5210 = sbr.rel (%p5208) target = $region64
        $region63: #{translation_network_forward.1} parent=59 // pred_region
          %s5211 = sand.u32 %s199, 1
          %s5212 = scalar_lea.sflag [#allocation3], %s5211
          %s5213 = sand.u32 %s199, 1
          %s5214 = smul.addr %s5213, 8
          %s5215 = scalar_lea.vmem [#allocation2], %s5214
          %5216 = dma.done %s5212, 128
        $region64: #{translation_network_forward.1} parent=59 // pred_fallthru
          _
        // Predicated region
        $region65: #{translation_network_forward.1} parent=59 // pred_check
          %p5217 = pneg %p240
        $region66: #{translation_network_forward.1} parent=59 // pred_check_branch
          %5219 = sbr.rel (%p5217) target = $region68
        $region67: #{translation_network_forward.1} parent=59 // pred_region
          %p5220 = scmp.lt.s32.totalorder %s24, 1
          %s5221 = scalar_select %p5220, %s24, 1
          %s5222 = scalar_lea.vmem %s8, %s5221
        $region68: #{translation_network_forward.1} parent=59 // pred_fallthru
          _
      $region60: #{translation_network_forward.1} parent=5 // pred_fallthru
        _
    $region6: #{translation_network_forward.1} parent=1 // loop_footer
      %s22 = sadd.s32 1, %s18
    $region7: #{translation_network_forward.1} parent=1 // loop_footer_branch
      %17 = sbr.rel target = $region3
    $region8: #{translation_network_forward.1} parent=1 // loop_exit
      _
    %5223 = vsyncpa [#allocation3], 1
    %s5224 = scalar_lea.sflag [#allocation3], 1
    %5225 = vsyncpa %s5224, 1

</llo_original>
